<compile_context>
chip_gen: v7x
topology: tpu7x:2x2x1
jax: 0.10.0
libtpu: 0.0.40
codegen_flags: <defaults>
</compile_context>

<pallas_src>
import functools
import math

import numpy as np
import jax
import jax.numpy as jnp
from jax import lax
from jax.experimental import pallas as pl
from jax.experimental.pallas import tpu as pltpu


# ---------------------------------------------------------------------------
# Glue: 2D sincos position embedding (numpy, mirrors the PyTorch reference).
# ---------------------------------------------------------------------------
def get_1d_sincos_pos_embed_from_grid(embed_dim, pos):
    assert embed_dim % 2 == 0
    omega = np.arange(embed_dim // 2, dtype=np.float32)
    omega /= embed_dim / 2.0
    omega = 1.0 / 10000 ** omega
    pos = pos.reshape(-1)
    out = np.einsum("m,d->md", pos, omega)
    return np.concatenate([np.sin(out), np.cos(out)], axis=1)


def get_2d_sincos_pos_embed_from_grid(embed_dim, grid):
    assert embed_dim % 2 == 0
    emb_h = get_1d_sincos_pos_embed_from_grid(embed_dim // 2, grid[0])
    emb_w = get_1d_sincos_pos_embed_from_grid(embed_dim // 2, grid[1])
    return np.concatenate([emb_h, emb_w], axis=1)


def get_2d_sincos_pos_embed(embed_dim, grid_size):
    grid_h = np.arange(grid_size, dtype=np.float32)
    grid_w = np.arange(grid_size, dtype=np.float32)
    grid = np.meshgrid(grid_w, grid_h)
    grid = np.stack(grid, axis=0).reshape([2, 1, grid_size, grid_size])
    return get_2d_sincos_pos_embed_from_grid(embed_dim, grid)


# ---------------------------------------------------------------------------
# Glue: PyTorch-style bicubic interpolation (align_corners=False, A=-0.75) for
# get_abs_pos.  Pure numpy precompute on the (small) position table.
# TODO(synk): F.interpolate(mode='bicubic') has no in-kernel Pallas equivalent; it is
# host-side precompute glue feeding the kernel.
# ---------------------------------------------------------------------------
def _cubic_taps(in_size, out_size):
    A = -0.75
    scale = in_size / out_size
    dst = np.arange(out_size, dtype=np.float64)
    src = (dst + 0.5) * scale - 0.5
    base = np.floor(src).astype(np.int64)
    idx = base[:, None] + np.arange(-1, 3)[None, :]          # (out, 4)
    d = np.abs(src[:, None] - idx)
    d2, d3 = d * d, d * d * d
    w = np.where(
        d <= 1.0, (A + 2) * d3 - (A + 3) * d2 + 1.0,
        np.where(d < 2.0, A * d3 - 5 * A * d2 + 8 * A * d - 4 * A, 0.0))
    idx = np.clip(idx, 0, in_size - 1)                        # replicate border
    return idx, w


def _bicubic_resize_hwc(img, out_h, out_w):
    in_h, in_w, _ = img.shape
    ih, wh = _cubic_taps(in_h, out_h)
    tmp = (img[ih] * wh[:, :, None, None]).sum(axis=1)        # (out_h, in_w, C)
    iw, ww = _cubic_taps(in_w, out_w)
    return (tmp[:, iw] * ww[None, :, :, None]).sum(axis=2)    # (out_h, out_w, C)


def get_abs_pos_np(pos_embed, tgt_size, max_seq_len):
    # PyTorch hard-codes 576 (CLIP 24x24 patches); parameterized here as max_seq_len.
    src = int(math.sqrt(pos_embed.shape[0]))
    D = pos_embed.shape[1]
    th, tw = tgt_size
    img = pos_embed.astype(np.float64).reshape(src, src, D)
    out = _bicubic_resize_hwc(img, th, tw).reshape(th * tw, D)
    pad = np.zeros((max_seq_len - th * tw, D), dtype=out.dtype)
    return np.concatenate([out, pad], axis=0).astype(np.float32)


# ---------------------------------------------------------------------------
# Pallas kernel helpers
# ---------------------------------------------------------------------------
def _layer_norm(v, w, b, eps=1e-6):
    # eps=1e-6 matches norm_layer=partial(nn.LayerNorm, eps=1e-06).
    mu = jnp.mean(v, axis=-1, keepdims=True)
    var = jnp.mean(jnp.square(v - mu), axis=-1, keepdims=True)
    return (v - mu) * lax.rsqrt(var + eps) * w + b


def _erf_f32(x):
    # Abramowitz & Stegun 7.1.26 (|abs err| < 1.5e-7): float32-accurate erf for exact GELU.
    # The divide is replaced by an EUP approx reciprocal + one Newton-Raphson step, which
    # restores ~f32 accuracy (rel err ~2^-24) while freeing the VPU divide.
    a1, a2, a3, a4, a5 = 0.254829592, -0.284496736, 1.421413741, -1.453152027, 1.061405429
    p = 0.3275911
    sgn = jnp.where(x >= 0.0, 1.0, -1.0)
    ax = jnp.abs(x)
    w = 1.0 + p * ax
    r = pl.reciprocal(w, approx=True)
    t = r * (2.0 - w * r)                      # one NR step -> full f32 accuracy
    poly = ((((a5 * t + a4) * t + a3) * t + a2) * t + a1) * t
    return sgn * (1.0 - poly * jnp.exp(-ax * ax))


# dot_general dimension numbers: contract last dim of both operands (no rhs transpose).
_NT_DIMS = (((1,), (1,)), ((), ()))


def resampler_kernel(num_heads,
                     x_ref, pos_ref, bias_ref, qp_ref,
                     lnkv_w_ref, lnkv_b_ref,
                     wk_ref, bk_ref, wv_ref, bv_ref,
                     wo_ref, bo_ref,
                     ln1_w_ref, ln1_b_ref,
                     wup_ref, bup_ref, wpr_ref, bpr_ref,
                     ln2_w_ref, ln2_b_ref,
                     out_ref,
                     kp_ref, vp_ref, x1_ref, z_ref):
    f32 = jnp.float32
    bf16 = jnp.bfloat16
    j = pl.program_id(1)                        # MLP output-feature tile index
    n_mlp = pl.num_programs(1)
    D = out_ref.shape[-1]
    hd = D // num_heads

    # ------------------------------------------------------------------
    # Attention path: executed once per batch row (first MLP tile only).
    # ------------------------------------------------------------------
    @pl.when(j == 0)
    def _attention():
        x = x_ref[0]                            # (S, D) f32
        pos = pos_ref[0].astype(f32)            # bf16 input, upcast for the f32 add
        x_ln = _layer_norm(x, lnkv_w_ref[...], lnkv_b_ref[...])
        key = (x_ln + pos).astype(bf16)         # key = x_ln + tanh(alpha) * pos_embeds
        value = x_ln.astype(bf16)

        # K / V projections: bf16 operands, f32 accumulation, f32 bias; results parked
        # in bf16 VMEM scratch so the head loop reads only (.., hd) slices per step.
        kp_ref[...] = (jnp.dot(key, wk_ref[...], preferred_element_type=f32)
                       + bk_ref[...]).astype(bf16)
        vp_ref[...] = (jnp.dot(value, wv_ref[...], preferred_element_type=f32)
                       + bv_ref[...]).astype(bf16)

        bias = bias_ref[0]                      # (1, S) f32: 0 for valid keys, -1e30 padded
        z_ref[...] = jnp.zeros(z_ref.shape, z_ref.dtype)

        # Per-head loop as a fori_loop (bounded live ranges); each head's output is folded
        # straight into the out_proj accumulation -> no (Q, hd) masked partial stores and
        # no separate (Q, D) x (D, D) W_o matmul afterwards.
        # TODO(synk): attention dropout (p=0.3) is a training-mode op; eval semantics used.
        def head_body(h, carry):
            off = pl.multiple_of(h * hd, hd)
            qh = qp_ref[:, pl.ds(off, hd)]      # (Q, hd) bf16 (pre-projected, pre-scaled)
            kh = kp_ref[:, pl.ds(off, hd)]      # (S, hd) bf16
            vh = vp_ref[:, pl.ds(off, hd)]      # (S, hd) bf16
            s = lax.dot_general(qh, kh, _NT_DIMS,
                                preferred_element_type=f32)   # (Q, S) f32, no transpose
            s = s + bias
            s = s - jnp.max(s, axis=-1, keepdims=True)
            p = jnp.exp(s)
            p = p * pl.reciprocal(jnp.sum(p, axis=-1, keepdims=True), approx=True)
            head = jnp.dot(p.astype(bf16), vh, preferred_element_type=f32)   # (Q, hd)
            z_ref[...] += jnp.dot(head.astype(bf16),
                                  wo_ref[pl.ds(off, hd), :],
                                  preferred_element_type=f32)                # (Q, D)
            return carry

        lax.fori_loop(0, num_heads, head_body, 0)

        attn_out = z_ref[...] + bo_ref[...]
        x1 = _layer_norm(attn_out, ln1_w_ref[...], ln1_b_ref[...])
        x1_ref[...] = x1                        # residual / MLP input, reused across tiles
        z_ref[...] = x1                         # init accumulator with the residual

    # ------------------------------------------------------------------
    # MLP: one output-feature tile of updim_proj -> GELU -> proj per grid step,
    # accumulated into the residual-initialized (Q, D) accumulator.
    # ------------------------------------------------------------------
    x1 = x1_ref[...]
    y = jnp.dot(x1.astype(bf16), wup_ref[...], preferred_element_type=f32) + bup_ref[...]
    y = 0.5 * y * (1.0 + _erf_f32(y * (1.0 / math.sqrt(2.0))))      # exact GELU
    z_ref[...] += jnp.dot(y.astype(bf16), wpr_ref[...], preferred_element_type=f32)

    @pl.when(j == n_mlp - 1)
    def _finalize():
        z = z_ref[...] + bpr_ref[...]
        out_ref[0] = _layer_norm(z, ln2_w_ref[...], ln2_b_ref[...])


# ---------------------------------------------------------------------------
# Wrapper
# ---------------------------------------------------------------------------
def _pick_vmem_limit():
    # ~96 MiB on 128-MiB parts (v5e/v6e), ~48 MiB on 64-MiB v7x.
    mib = 1024 * 1024
    try:
        cap = int(pltpu.get_tpu_info().vmem_capacity_bytes)
    except Exception:
        cap = 64 * mib
    return min(96 * mib, (cap * 3) // 4)


def resampler_forward(params, x, pos_scaled, attention_mask, *, num_heads,
                      mlp_tile=None, single_buffer_weights=True):
    B, S, D = x.shape
    Q = params["query"].shape[0]
    D2 = params["w_up"].shape[1]
    assert D % num_heads == 0
    hd = D // num_heads
    f32, bf16 = jnp.float32, jnp.bfloat16

    # MLP output-feature streaming tile (keep >=256 for MXU fill; <=512 for v7x VMEM).
    tn2 = mlp_tile if mlp_tile is not None else min(D2, 512)
    assert D2 % tn2 == 0
    n_mlp = D2 // tn2

    # --- hoisted, batch-invariant query projection (f32 math, bf16 result) ---
    scale = 1.0 / math.sqrt(hd)
    qp = ((jnp.dot(params["query"].astype(f32), params["w_q"].astype(f32))
           + params["b_q"].astype(f32)) * scale).astype(bf16)          # (Q, D)

    # Projection weights fed to the MXU in bf16 (no-op casts when params already bf16);
    # biases / LN params stay f32.
    wk = params["w_k"].astype(bf16)
    wv = params["w_v"].astype(bf16)
    wo = params["w_o"].astype(bf16)
    wup = params["w_up"].astype(bf16)
    wpr = params["w_proj"].astype(bf16)

    pos_b = pos_scaled.astype(bf16)             # halves pos HBM->VMEM DMA bytes
    # key_padding_mask = ~attention_mask -> additive bias, precomputed once (not per head).
    key_bias = jnp.where(attention_mask > 0.5, 0.0, -1e30).astype(f32)  # (B, 1, S)

    def per_batch(shape):
        n = len(shape)
        return pl.BlockSpec((1,) + shape, lambda b, j, n=n: (b,) + (0,) * n)

    def shared(shape):
        n = len(shape)
        idx = lambda b, j, n=n: (0,) * n
        if single_buffer_weights:
            # Grid-invariant blocks: no benefit from double-buffering, halve their VMEM.
            return pl.BlockSpec(shape, idx, pipeline_mode=pl.Buffered(buffer_count=1))
        return pl.BlockSpec(shape, idx)

    # W_up / b_up / W_proj are streamed over the MLP tile axis (double-buffered by default
    # so the next tile's DMA overlaps the current tile's matmuls).
    # TODO(synk): for very large D, W_k/W_v/W_o could be streamed the same way.
    wup_spec = pl.BlockSpec((D, tn2), lambda b, j: (0, j))
    bup_spec = pl.BlockSpec((1, tn2), lambda b, j: (0, j))
    wpr_spec = pl.BlockSpec((tn2, D), lambda b, j: (j, 0))

    in_specs = [
        per_batch((S, D)),                 # x (f32)
        per_batch((S, D)),                 # tanh(alpha) * pos_embeds (bf16)
        per_batch((1, S)),                 # key-padding additive bias (f32)
        shared((Q, D)),                    # pre-projected, pre-scaled queries (bf16)
        shared((1, D)), shared((1, D)),    # ln_kv
        shared((D, D)), shared((1, D)),    # W_k (bf16), b_k
        shared((D, D)), shared((1, D)),    # W_v (bf16), b_v
        shared((D, D)), shared((1, D)),    # out_proj W_o (bf16), b_o
        shared((1, D)), shared((1, D)),    # ln1
        wup_spec, bup_spec,                # updim_proj tile (bf16), b_up tile
        wpr_spec, shared((1, D)),          # proj tile (bf16), b_proj
        shared((1, D)), shared((1, D)),    # ln2
    ]
    out_spec = pl.BlockSpec((1, Q, D), lambda b, j: (b, 0, 0))

    kernel = functools.partial(resampler_kernel, num_heads)
    # Note (v7x megacore): only the batch axis is "parallel"; the MLP-tile axis gives each
    # core n_mlp pipelined blocks per batch row so weight-tile DMAs overlap compute.  For
    # tiny B, production callers should batch more rows per call.
    return pl.pallas_call(
        kernel,
        out_shape=jax.ShapeDtypeStruct((B, Q, D), jnp.float32),
        grid_spec=pltpu.PrefetchScalarGridSpec(
            num_scalar_prefetch=0,
            grid=(B, n_mlp),
            in_specs=in_specs,
            out_specs=out_spec,
            scratch_shapes=[
                pltpu.VMEM((S, D), bf16),      # kp (projected keys)
                pltpu.VMEM((S, D), bf16),      # vp (projected values)
                pltpu.VMEM((Q, D), jnp.float32),   # x1 (ln1 output / residual)
                pltpu.VMEM((Q, D), jnp.float32),   # z  (head + MLP accumulator)
            ],
        ),
        compiler_params=pltpu.CompilerParams(
            dimension_semantics=("parallel", "arbitrary"),
            vmem_limit_bytes=_pick_vmem_limit(),
        ),
    )(x, pos_b, key_bias, qp,
      params["ln_kv_w"], params["ln_kv_b"],
      wk, params["b_k"],
      wv, params["b_v"],
      wo, params["b_o"],
      params["ln1_w"], params["ln1_b"],
      wup, params["b_up"],
      wpr, params["b_proj"],
      params["ln2_w"], params["ln2_b"])


# ---------------------------------------------------------------------------
# Pure-JAX reference (f32 math) for a sanity check against the kernel.
# ---------------------------------------------------------------------------
def reference_forward(params, x, pos_scaled, attention_mask, num_heads):
    f32 = jnp.float32
    B, S, D = x.shape
    Q = params["query"].shape[0]
    hd = D // num_heads

    def ln(v, w, b, eps=1e-6):
        mu = jnp.mean(v, -1, keepdims=True)
        var = jnp.mean(jnp.square(v - mu), -1, keepdims=True)
        return (v - mu) / jnp.sqrt(var + eps) * w + b

    x_ln = ln(x, params["ln_kv_w"], params["ln_kv_b"])
    key = x_ln + pos_scaled
    value = x_ln
    q = (params["query"] @ params["w_q"] + params["b_q"]) / math.sqrt(hd)      # (Q, D)
    k = key @ params["w_k"].astype(f32) + params["b_k"]                        # (B, S, D)
    v = value @ params["w_v"].astype(f32) + params["b_v"]
    qh = q.reshape(Q, num_heads, hd)
    kh = k.reshape(B, S, num_heads, hd)
    vh = v.reshape(B, S, num_heads, hd)
    s = jnp.einsum("qhd,bshd->bhqs", qh, kh)
    bias = jnp.where(attention_mask > 0.5, 0.0, -1e30)                         # (B, 1, S)
    s = s + bias[:, :, None, :]
    p = jax.nn.softmax(s, axis=-1)
    attn = jnp.einsum("bhqs,bshd->bqhd", p, vh).reshape(B, Q, D)
    attn = attn @ params["w_o"].astype(f32) + params["b_o"]
    x1 = ln(attn, params["ln1_w"], params["ln1_b"])
    y = x1 @ params["w_up"].astype(f32) + params["b_up"]
    y = 0.5 * y * (1.0 + jax.scipy.special.erf(y / jnp.sqrt(2.0)))
    z = y @ params["w_proj"].astype(f32) + params["b_proj"] + x1
    return ln(z, params["ln2_w"], params["ln2_b"])


# ---------------------------------------------------------------------------
# Main
# ---------------------------------------------------------------------------
if __name__ == "__main__":
    # Small, lane-dense synthetic shapes (last dims multiples of 128, hd = 128):
    # batch, kv_seq (analog of 576), embed, heads, learnable queries, MLP hidden + tile.
    B, S, D, H, Q = 2, 128, 256, 2, 16
    SRC_GRID = 8                              # src_grid_size -> pos_embed has 64 rows
    D2 = 2 * D                                # updim_proj hidden = 512
    TN2 = 256                                 # -> 2 MLP tiles, exercises the streaming axis
    f32, bf16 = jnp.float32, jnp.bfloat16

    key = jax.random.PRNGKey(0)
    ks = jax.random.split(key, 12)
    std = 1.0 / math.sqrt(D)

    # Projection weights stored pre-transposed to (in, out) and pre-cast to bf16 so no
    # per-call conversion traffic is launched; query/biases/LN params stay f32.
    params = {
        "query":  jax.random.normal(ks[0], (Q, D), f32) * std,
        "ln_kv_w": jnp.ones((1, D), f32),  "ln_kv_b": jnp.zeros((1, D), f32),
        "w_q": jax.random.normal(ks[1], (D, D), f32) * std,  "b_q": jnp.zeros((1, D), f32),
        "w_k": (jax.random.normal(ks[2], (D, D), f32) * std).astype(bf16),
        "b_k": jnp.zeros((1, D), f32),
        "w_v": (jax.random.normal(ks[3], (D, D), f32) * std).astype(bf16),
        "b_v": jnp.zeros((1, D), f32),
        "w_o": (jax.random.normal(ks[4], (D, D), f32) * std).astype(bf16),
        "b_o": jnp.zeros((1, D), f32),
        "ln1_w": jnp.ones((1, D), f32),   "ln1_b": jnp.zeros((1, D), f32),
        "w_up": (jax.random.normal(ks[5], (D, D2), f32) * std).astype(bf16),
        "b_up": jnp.zeros((1, D2), f32),
        "w_proj": (jax.random.normal(ks[6], (D2, D), f32) * (1.0 / math.sqrt(D2))).astype(bf16),
        "b_proj": jnp.zeros((1, D), f32),
        "ln2_w": jnp.ones((1, D), f32),   "ln2_b": jnp.zeros((1, D), f32),
    }
    # TODO(synk): sep_embeddings is a module parameter unused in forward(); not modeled.

    # Inputs
    x = jax.random.normal(ks[7], (B, S, D), f32)
    tgt_sizes = [(8, 12), (10, 11)]                    # per-sample (h, w); h*w <= S
    attention_mask_np = np.zeros((B, 1, S), np.float32)
    for b, (th, tw) in enumerate(tgt_sizes):
        attention_mask_np[b, 0, :th * tw] = 1.0        # True = valid token
    attention_mask = jnp.asarray(attention_mask_np)

    # pos_embed param (sincos init, as in __init__), bicubic-resized + zero-padded per sample.
    pos_embed = get_2d_sincos_pos_embed(D, SRC_GRID)   # (SRC_GRID**2, D)
    pos_embeds = np.stack([get_abs_pos_np(pos_embed, t, S) for t in tgt_sizes], axis=0)
    # alpha is zero-initialized in PyTorch (tanh(0)=0); nonzero here to exercise the branch.
    alpha = jnp.asarray(0.1, f32)
    pos_scaled = jnp.tanh(alpha) * jnp.asarray(pos_embeds, f32)

    fwd = jax.jit(functools.partial(resampler_forward, num_heads=H, mlp_tile=TN2,
                                    single_buffer_weights=True))
    try:
        out = fwd(params, x, pos_scaled, attention_mask)
        jax.block_until_ready(out)
    except Exception:
        # Fallback for JAX builds where pipeline_mode=pl.Buffered(1) is not supported.
        fwd = jax.jit(functools.partial(resampler_forward, num_heads=H, mlp_tile=TN2,
                                        single_buffer_weights=False))
        out = fwd(params, x, pos_scaled, attention_mask)
        jax.block_until_ready(out)

    assert out.shape == (B, Q, D) and out.dtype == jnp.float32
    assert bool(jnp.all(jnp.isfinite(out)))

    # Loose sanity check vs. an f32 reference (bf16 matmuls + approx reciprocal => ~1e-2).
    ref = reference_forward(params, x, pos_scaled, attention_mask, H)
    max_err = float(jnp.max(jnp.abs(out - ref)))
    assert max_err < 0.25, f"kernel deviates from reference: max|err|={max_err}"
    print("KERNEL_OK")
</pallas_src>

<mosaic_0001>
module attributes {stable_mosaic.version = 11 : i64} {
  func.func @resampler_kernel(%arg0: i32, %arg1: i32, %arg2: memref<1x128x256xf32, #tpu.memory_space<vmem>>, %arg3: memref<1x128x256xbf16, #tpu.memory_space<vmem>>, %arg4: memref<1x1x128xf32, #tpu.memory_space<vmem>>, %arg5: memref<16x256xbf16, #tpu.memory_space<vmem>>, %arg6: memref<1x256xf32, #tpu.memory_space<vmem>>, %arg7: memref<1x256xf32, #tpu.memory_space<vmem>>, %arg8: memref<256x256xbf16, #tpu.memory_space<vmem>>, %arg9: memref<1x256xf32, #tpu.memory_space<vmem>>, %arg10: memref<256x256xbf16, #tpu.memory_space<vmem>>, %arg11: memref<1x256xf32, #tpu.memory_space<vmem>>, %arg12: memref<256x256xbf16, #tpu.memory_space<vmem>>, %arg13: memref<1x256xf32, #tpu.memory_space<vmem>>, %arg14: memref<1x256xf32, #tpu.memory_space<vmem>>, %arg15: memref<1x256xf32, #tpu.memory_space<vmem>>, %arg16: memref<256x256xbf16, #tpu.memory_space<vmem>>, %arg17: memref<1x256xf32, #tpu.memory_space<vmem>>, %arg18: memref<256x256xbf16, #tpu.memory_space<vmem>>, %arg19: memref<1x256xf32, #tpu.memory_space<vmem>>, %arg20: memref<1x256xf32, #tpu.memory_space<vmem>>, %arg21: memref<1x256xf32, #tpu.memory_space<vmem>>, %arg22: memref<1x16x256xf32, #tpu.memory_space<vmem>>, %arg23: memref<128x256xbf16, #tpu.memory_space<vmem>>, %arg24: memref<128x256xbf16, #tpu.memory_space<vmem>>, %arg25: memref<16x256xf32, #tpu.memory_space<vmem>>, %arg26: memref<16x256xf32, #tpu.memory_space<vmem>>) attributes {dimension_semantics = [#tpu.dimension_semantics<parallel>, #tpu.dimension_semantics<arbitrary>], iteration_bounds = array<i64: 2, 2>, scalar_prefetch = 0 : i64, scratch_operands = 4 : i64, tpu.core_type = #tpu.core_type<tc>, window_params = [{transform_indices = @transform_0, window_bounds = array<i64: 1, 128, 256>}, {transform_indices = @transform_1, window_bounds = array<i64: 1, 128, 256>}, {transform_indices = @transform_2, window_bounds = array<i64: 1, 1, 128>}, {pipeline_mode = #tpu.pipeline_mode<synchronous>, transform_indices = @transform_3, window_bounds = array<i64: 16, 256>}, {pipeline_mode = #tpu.pipeline_mode<synchronous>, transform_indices = @transform_4, window_bounds = array<i64: 1, 256>}, {pipeline_mode = #tpu.pipeline_mode<synchronous>, transform_indices = @transform_5, window_bounds = array<i64: 1, 256>}, {pipeline_mode = #tpu.pipeline_mode<synchronous>, transform_indices = @transform_6, window_bounds = array<i64: 256, 256>}, {pipeline_mode = #tpu.pipeline_mode<synchronous>, transform_indices = @transform_7, window_bounds = array<i64: 1, 256>}, {pipeline_mode = #tpu.pipeline_mode<synchronous>, transform_indices = @transform_8, window_bounds = array<i64: 256, 256>}, {pipeline_mode = #tpu.pipeline_mode<synchronous>, transform_indices = @transform_9, window_bounds = array<i64: 1, 256>}, {pipeline_mode = #tpu.pipeline_mode<synchronous>, transform_indices = @transform_10, window_bounds = array<i64: 256, 256>}, {pipeline_mode = #tpu.pipeline_mode<synchronous>, transform_indices = @transform_11, window_bounds = array<i64: 1, 256>}, {pipeline_mode = #tpu.pipeline_mode<synchronous>, transform_indices = @transform_12, window_bounds = array<i64: 1, 256>}, {pipeline_mode = #tpu.pipeline_mode<synchronous>, transform_indices = @transform_13, window_bounds = array<i64: 1, 256>}, {transform_indices = @transform_14, window_bounds = array<i64: 256, 256>}, {transform_indices = @transform_15, window_bounds = array<i64: 1, 256>}, {transform_indices = @transform_16, window_bounds = array<i64: 256, 256>}, {pipeline_mode = #tpu.pipeline_mode<synchronous>, transform_indices = @transform_17, window_bounds = array<i64: 1, 256>}, {pipeline_mode = #tpu.pipeline_mode<synchronous>, transform_indices = @transform_18, window_bounds = array<i64: 1, 256>}, {pipeline_mode = #tpu.pipeline_mode<synchronous>, transform_indices = @transform_19, window_bounds = array<i64: 1, 256>}, {transform_indices = @transform_20, window_bounds = array<i64: 1, 16, 256>}]} {
    %c0_i32 = arith.constant 0 : i32
    %0 = arith.cmpi eq, %arg1, %c0_i32 : i32
    %1 = arith.extui %0 : i1 to i32
    %c0_i32_0 = arith.constant 0 : i32
    %2 = arith.cmpi ne, %1, %c0_i32_0 : i32
    scf.if %2 {
      %c0_30 = arith.constant 0 : index
      %c0_31 = arith.constant 0 : index
      %c0_32 = arith.constant 0 : index
      %63 = vector.load %arg2[%c0_30, %c0_31, %c0_32] : memref<1x128x256xf32, #tpu.memory_space<vmem>>, vector<1x128x256xf32>
      %64 = vector.shape_cast %63 : vector<1x128x256xf32> to vector<128x256xf32>
      %c0_33 = arith.constant 0 : index
      %c0_34 = arith.constant 0 : index
      %c0_35 = arith.constant 0 : index
      %65 = vector.load %arg3[%c0_33, %c0_34, %c0_35] : memref<1x128x256xbf16, #tpu.memory_space<vmem>>, vector<1x128x256xbf16>
      %66 = vector.shape_cast %65 : vector<1x128x256xbf16> to vector<128x256xbf16>
      %67 = arith.extf %66 : vector<128x256xbf16> to vector<128x256xf32>
      %c0_36 = arith.constant 0 : index
      %c0_37 = arith.constant 0 : index
      %68 = vector.load %arg6[%c0_36, %c0_37] : memref<1x256xf32, #tpu.memory_space<vmem>>, vector<1x256xf32>
      %c0_38 = arith.constant 0 : index
      %c0_39 = arith.constant 0 : index
      %69 = vector.load %arg7[%c0_38, %c0_39] : memref<1x256xf32, #tpu.memory_space<vmem>>, vector<1x256xf32>
      %cst_40 = arith.constant dense<0.000000e+00> : vector<128xf32>
      %70 = vector.multi_reduction <add>, %64, %cst_40 [1] : vector<128x256xf32> to vector<128xf32>
      %71 = vector.shape_cast %70 : vector<128xf32> to vector<128x1xf32>
      %cst_41 = arith.constant 2.560000e+02 : f32
      %72 = vector.broadcast %cst_41 : f32 to vector<128x1xf32>
      %73 = arith.divf %71, %72 : vector<128x1xf32>
      %74 = vector.broadcast %73 : vector<128x1xf32> to vector<128x256xf32>
      %75 = arith.subf %64, %74 : vector<128x256xf32>
      %76 = arith.mulf %75, %75 : vector<128x256xf32>
      %cst_42 = arith.constant dense<0.000000e+00> : vector<128xf32>
      %77 = vector.multi_reduction <add>, %76, %cst_42 [1] : vector<128x256xf32> to vector<128xf32>
      %78 = vector.shape_cast %77 : vector<128xf32> to vector<128x1xf32>
      %cst_43 = arith.constant 2.560000e+02 : f32
      %79 = vector.broadcast %cst_43 : f32 to vector<128x1xf32>
      %80 = arith.divf %78, %79 : vector<128x1xf32>
      %81 = vector.broadcast %73 : vector<128x1xf32> to vector<128x256xf32>
      %82 = arith.subf %64, %81 : vector<128x256xf32>
      %cst_44 = arith.constant 9.99999997E-7 : f32
      %83 = vector.broadcast %cst_44 : f32 to vector<128x1xf32>
      %84 = arith.addf %80, %83 : vector<128x1xf32>
      %85 = math.rsqrt %84 : vector<128x1xf32>
      %86 = vector.broadcast %85 : vector<128x1xf32> to vector<128x256xf32>
      %87 = arith.mulf %82, %86 : vector<128x256xf32>
      %88 = vector.broadcast %68 : vector<1x256xf32> to vector<128x256xf32>
      %89 = arith.mulf %87, %88 : vector<128x256xf32>
      %90 = vector.broadcast %69 : vector<1x256xf32> to vector<128x256xf32>
      %91 = arith.addf %89, %90 : vector<128x256xf32>
      %92 = arith.addf %91, %67 : vector<128x256xf32>
      %93 = arith.truncf %92 : vector<128x256xf32> to vector<128x256xbf16>
      %94 = arith.truncf %91 : vector<128x256xf32> to vector<128x256xbf16>
      %c0_45 = arith.constant 0 : index
      %c0_46 = arith.constant 0 : index
      %95 = vector.load %arg8[%c0_45, %c0_46] : memref<256x256xbf16, #tpu.memory_space<vmem>>, vector<256x256xbf16>
      %cst_47 = arith.constant dense<0.000000e+00> : vector<128x256xf32>
      %96 = tpu.matmul %93, %95, %cst_47 {dimension_numbers = #tpu.dot_dimension_numbers<[1], [0], [0], [1], [0, 0, 1, 1], [], []>} : vector<128x256xbf16>, vector<256x256xbf16>, vector<128x256xf32> -> vector<128x256xf32>
      %c0_48 = arith.constant 0 : index
      %c0_49 = arith.constant 0 : index
      %97 = vector.load %arg9[%c0_48, %c0_49] : memref<1x256xf32, #tpu.memory_space<vmem>>, vector<1x256xf32>
      %98 = vector.broadcast %97 : vector<1x256xf32> to vector<128x256xf32>
      %99 = arith.addf %96, %98 : vector<128x256xf32>
      %100 = arith.truncf %99 : vector<128x256xf32> to vector<128x256xbf16>
      %c0_50 = arith.constant 0 : index
      %c0_51 = arith.constant 0 : index
      %101 = vector.load %arg23[%c0_50, %c0_51] : memref<128x256xbf16, #tpu.memory_space<vmem>>, vector<128x256xbf16>
      tpu.vector_store %arg23[%c0_50, %c0_51], %100 {strides = array<i32>} : memref<128x256xbf16, #tpu.memory_space<vmem>>, vector<128x256xbf16>,
      %c0_52 = arith.constant 0 : index
      %c0_53 = arith.constant 0 : index
      %102 = vector.load %arg10[%c0_52, %c0_53] : memref<256x256xbf16, #tpu.memory_space<vmem>>, vector<256x256xbf16>
      %cst_54 = arith.constant dense<0.000000e+00> : vector<128x256xf32>
      %103 = tpu.matmul %94, %102, %cst_54 {dimension_numbers = #tpu.dot_dimension_numbers<[1], [0], [0], [1], [0, 0, 1, 1], [], []>} : vector<128x256xbf16>, vector<256x256xbf16>, vector<128x256xf32> -> vector<128x256xf32>
      %c0_55 = arith.constant 0 : index
      %c0_56 = arith.constant 0 : index
      %104 = vector.load %arg11[%c0_55, %c0_56] : memref<1x256xf32, #tpu.memory_space<vmem>>, vector<1x256xf32>
      %105 = vector.broadcast %104 : vector<1x256xf32> to vector<128x256xf32>
      %106 = arith.addf %103, %105 : vector<128x256xf32>
      %107 = arith.truncf %106 : vector<128x256xf32> to vector<128x256xbf16>
      %c0_57 = arith.constant 0 : index
      %c0_58 = arith.constant 0 : index
      %108 = vector.load %arg24[%c0_57, %c0_58] : memref<128x256xbf16, #tpu.memory_space<vmem>>, vector<128x256xbf16>
      tpu.vector_store %arg24[%c0_57, %c0_58], %107 {strides = array<i32>} : memref<128x256xbf16, #tpu.memory_space<vmem>>, vector<128x256xbf16>,
      %c0_59 = arith.constant 0 : index
      %c0_60 = arith.constant 0 : index
      %c0_61 = arith.constant 0 : index
      %109 = vector.load %arg4[%c0_59, %c0_60, %c0_61] : memref<1x1x128xf32, #tpu.memory_space<vmem>>, vector<1x1x128xf32>
      %110 = vector.shape_cast %109 : vector<1x1x128xf32> to vector<1x128xf32>
      %cst_62 = arith.constant 0.000000e+00 : f32
      %111 = vector.broadcast %cst_62 : f32 to vector<16x256xf32>
      %c0_63 = arith.constant 0 : index
      %c0_64 = arith.constant 0 : index
      %112 = vector.load %arg26[%c0_63, %c0_64] : memref<16x256xf32, #tpu.memory_space<vmem>>, vector<16x256xf32>
      tpu.vector_store %arg26[%c0_63, %c0_64], %111 {strides = array<i32>} : memref<16x256xf32, #tpu.memory_space<vmem>>, vector<16x256xf32>,
      %c0_i32_65 = arith.constant 0 : i32
      %c2_i32 = arith.constant 2 : i32
      %113 = arith.addi %c0_i32_65, %c2_i32 : i32
      %c1_i32_66 = arith.constant 1 : i32
      scf.for %arg27 = %c0_i32_65 to %113 step %c1_i32_66  : i32 {
        %c128_i32 = arith.constant 128 : i32
        %144 = arith.muli %arg27, %c128_i32 : i32
        %145 = tpu.assume_multiple %144, 128 : i32
        %c0_85 = arith.constant 0 : index
        %146 = arith.index_cast %145 : i32 to index
        %147 = vector.load %arg5[%c0_85, %146] : memref<16x256xbf16, #tpu.memory_space<vmem>>, vector<16x128xbf16>
        %c0_86 = arith.constant 0 : index
        %148 = arith.index_cast %145 : i32 to index
        %149 = vector.load %arg23[%c0_86, %148] : memref<128x256xbf16, #tpu.memory_space<vmem>>, vector<128x128xbf16>
        %c0_87 = arith.constant 0 : index
        %150 = arith.index_cast %145 : i32 to index
        %151 = vector.load %arg24[%c0_87, %150] : memref<128x256xbf16, #tpu.memory_space<vmem>>, vector<128x128xbf16>
        %cst_88 = arith.constant dense<0.000000e+00> : vector<16x128xf32>
        %152 = tpu.matmul %147, %149, %cst_88 {dimension_numbers = #tpu.dot_dimension_numbers<[1], [1], [0], [0], [0, 0, 1, 0], [], []>} : vector<16x128xbf16>, vector<128x128xbf16>, vector<16x128xf32> -> vector<16x128xf32>
        %153 = vector.broadcast %110 : vector<1x128xf32> to vector<16x128xf32>
        %154 = arith.addf %152, %153 : vector<16x128xf32>
        %cst_89 = arith.constant dense<0xFF800000> : vector<16xf32>
        %155 = vector.multi_reduction <maximumf>, %154, %cst_89 [1] : vector<16x128xf32> to vector<16xf32>
        %156 = vector.shape_cast %155 : vector<16xf32> to vector<16x1xf32>
        %157 = vector.broadcast %156 : vector<16x1xf32> to vector<16x128xf32>
        %158 = arith.subf %154, %157 : vector<16x128xf32>
        %159 = math.exp %158 : vector<16x128xf32>
        %cst_90 = arith.constant dense<0.000000e+00> : vector<16xf32>
        %160 = vector.multi_reduction <add>, %159, %cst_90 [1] : vector<16x128xf32> to vector<16xf32>
        %161 = vector.shape_cast %160 : vector<16xf32> to vector<16x1xf32>
        %162 = tpu.reciprocal %161 {approx = true} : vector<16x1xf32> -> vector<16x1xf32>
        %163 = vector.broadcast %162 : vector<16x1xf32> to vector<16x128xf32>
        %164 = arith.mulf %159, %163 : vector<16x128xf32>
        %165 = arith.truncf %164 : vector<16x128xf32> to vector<16x128xbf16>
        %cst_91 = arith.constant dense<0.000000e+00> : vector<16x128xf32>
        %166 = tpu.matmul %165, %151, %cst_91 {dimension_numbers = #tpu.dot_dimension_numbers<[1], [0], [0], [1], [0, 0, 1, 1], [], []>} : vector<16x128xbf16>, vector<128x128xbf16>, vector<16x128xf32> -> vector<16x128xf32>
        %c0_92 = arith.constant 0 : index
        %c0_93 = arith.constant 0 : index
        %167 = vector.load %arg26[%c0_92, %c0_93] : memref<16x256xf32, #tpu.memory_space<vmem>>, vector<16x256xf32>
        %168 = arith.truncf %166 : vector<16x128xf32> to vector<16x128xbf16>
        %169 = arith.index_cast %145 : i32 to index
        %c0_94 = arith.constant 0 : index
        %170 = vector.load %arg12[%169, %c0_94] : memref<256x256xbf16, #tpu.memory_space<vmem>>, vector<128x256xbf16>
        %cst_95 = arith.constant dense<0.000000e+00> : vector<16x256xf32>
        %171 = tpu.matmul %168, %170, %cst_95 {dimension_numbers = #tpu.dot_dimension_numbers<[1], [0], [0], [1], [0, 0, 1, 1], [], []>} : vector<16x128xbf16>, vector<128x256xbf16>, vector<16x256xf32> -> vector<16x256xf32>
        %172 = arith.addf %167, %171 : vector<16x256xf32>
        %c0_96 = arith.constant 0 : index
        %c0_97 = arith.constant 0 : index
        %173 = vector.load %arg26[%c0_96, %c0_97] : memref<16x256xf32, #tpu.memory_space<vmem>>, vector<16x256xf32>
        tpu.vector_store %arg26[%c0_96, %c0_97], %172 {strides = array<i32>} : memref<16x256xf32, #tpu.memory_space<vmem>>, vector<16x256xf32>,
      }
      %c2_i32_67 = arith.constant 2 : i32
      %c0_68 = arith.constant 0 : index
      %c0_69 = arith.constant 0 : index
      %114 = vector.load %arg26[%c0_68, %c0_69] : memref<16x256xf32, #tpu.memory_space<vmem>>, vector<16x256xf32>
      %c0_70 = arith.constant 0 : index
      %c0_71 = arith.constant 0 : index
      %115 = vector.load %arg13[%c0_70, %c0_71] : memref<1x256xf32, #tpu.memory_space<vmem>>, vector<1x256xf32>
      %116 = vector.broadcast %115 : vector<1x256xf32> to vector<16x256xf32>
      %117 = arith.addf %114, %116 : vector<16x256xf32>
      %c0_72 = arith.constant 0 : index
      %c0_73 = arith.constant 0 : index
      %118 = vector.load %arg14[%c0_72, %c0_73] : memref<1x256xf32, #tpu.memory_space<vmem>>, vector<1x256xf32>
      %c0_74 = arith.constant 0 : index
      %c0_75 = arith.constant 0 : index
      %119 = vector.load %arg15[%c0_74, %c0_75] : memref<1x256xf32, #tpu.memory_space<vmem>>, vector<1x256xf32>
      %cst_76 = arith.constant dense<0.000000e+00> : vector<16xf32>
      %120 = vector.multi_reduction <add>, %117, %cst_76 [1] : vector<16x256xf32> to vector<16xf32>
      %121 = vector.shape_cast %120 : vector<16xf32> to vector<16x1xf32>
      %cst_77 = arith.constant 2.560000e+02 : f32
      %122 = vector.broadcast %cst_77 : f32 to vector<16x1xf32>
      %123 = arith.divf %121, %122 : vector<16x1xf32>
      %124 = vector.broadcast %123 : vector<16x1xf32> to vector<16x256xf32>
      %125 = arith.subf %117, %124 : vector<16x256xf32>
      %126 = arith.mulf %125, %125 : vector<16x256xf32>
      %cst_78 = arith.constant dense<0.000000e+00> : vector<16xf32>
      %127 = vector.multi_reduction <add>, %126, %cst_78 [1] : vector<16x256xf32> to vector<16xf32>
      %128 = vector.shape_cast %127 : vector<16xf32> to vector<16x1xf32>
      %cst_79 = arith.constant 2.560000e+02 : f32
      %129 = vector.broadcast %cst_79 : f32 to vector<16x1xf32>
      %130 = arith.divf %128, %129 : vector<16x1xf32>
      %131 = vector.broadcast %123 : vector<16x1xf32> to vector<16x256xf32>
      %132 = arith.subf %117, %131 : vector<16x256xf32>
      %cst_80 = arith.constant 9.99999997E-7 : f32
      %133 = vector.broadcast %cst_80 : f32 to vector<16x1xf32>
      %134 = arith.addf %130, %133 : vector<16x1xf32>
      %135 = math.rsqrt %134 : vector<16x1xf32>
      %136 = vector.broadcast %135 : vector<16x1xf32> to vector<16x256xf32>
      %137 = arith.mulf %132, %136 : vector<16x256xf32>
      %138 = vector.broadcast %118 : vector<1x256xf32> to vector<16x256xf32>
      %139 = arith.mulf %137, %138 : vector<16x256xf32>
      %140 = vector.broadcast %119 : vector<1x256xf32> to vector<16x256xf32>
      %141 = arith.addf %139, %140 : vector<16x256xf32>
      %c0_81 = arith.constant 0 : index
      %c0_82 = arith.constant 0 : index
      %142 = vector.load %arg25[%c0_81, %c0_82] : memref<16x256xf32, #tpu.memory_space<vmem>>, vector<16x256xf32>
      tpu.vector_store %arg25[%c0_81, %c0_82], %141 {strides = array<i32>} : memref<16x256xf32, #tpu.memory_space<vmem>>, vector<16x256xf32>,
      %c0_83 = arith.constant 0 : index
      %c0_84 = arith.constant 0 : index
      %143 = vector.load %arg26[%c0_83, %c0_84] : memref<16x256xf32, #tpu.memory_space<vmem>>, vector<16x256xf32>
      tpu.vector_store %arg26[%c0_83, %c0_84], %141 {strides = array<i32>} : memref<16x256xf32, #tpu.memory_space<vmem>>, vector<16x256xf32>,
    } else {
    }
    %c0 = arith.constant 0 : index
    %c0_1 = arith.constant 0 : index
    %3 = vector.load %arg25[%c0, %c0_1] : memref<16x256xf32, #tpu.memory_space<vmem>>, vector<16x256xf32>
    %4 = arith.truncf %3 : vector<16x256xf32> to vector<16x256xbf16>
    %c0_2 = arith.constant 0 : index
    %c0_3 = arith.constant 0 : index
    %5 = vector.load %arg16[%c0_2, %c0_3] : memref<256x256xbf16, #tpu.memory_space<vmem>>, vector<256x256xbf16>
    %cst = arith.constant dense<0.000000e+00> : vector<16x256xf32>
    %6 = tpu.matmul %4, %5, %cst {dimension_numbers = #tpu.dot_dimension_numbers<[1], [0], [0], [1], [0, 0, 1, 1], [], []>} : vector<16x256xbf16>, vector<256x256xbf16>, vector<16x256xf32> -> vector<16x256xf32>
    %c0_4 = arith.constant 0 : index
    %c0_5 = arith.constant 0 : index
    %7 = vector.load %arg17[%c0_4, %c0_5] : memref<1x256xf32, #tpu.memory_space<vmem>>, vector<1x256xf32>
    %8 = vector.broadcast %7 : vector<1x256xf32> to vector<16x256xf32>
    %9 = arith.addf %6, %8 : vector<16x256xf32>
    %cst_6 = arith.constant 5.000000e-01 : f32
    %10 = vector.broadcast %cst_6 : f32 to vector<16x256xf32>
    %11 = arith.mulf %10, %9 : vector<16x256xf32>
    %cst_7 = arith.constant 0.707106769 : f32
    %12 = vector.broadcast %cst_7 : f32 to vector<16x256xf32>
    %13 = arith.mulf %9, %12 : vector<16x256xf32>
    %cst_8 = arith.constant 0.000000e+00 : f32
    %14 = vector.broadcast %cst_8 : f32 to vector<16x256xf32>
    %15 = arith.cmpf oge, %13, %14 : vector<16x256xf32>
    %cst_9 = arith.constant 1.000000e+00 : f32
    %cst_10 = arith.constant -1.000000e+00 : f32
    %16 = vector.broadcast %cst_9 : f32 to vector<16x256xf32>
    %17 = vector.broadcast %cst_10 : f32 to vector<16x256xf32>
    %18 = arith.select %15, %16, %17 : vector<16x256xi1>, vector<16x256xf32>
    %19 = math.absf %13 : vector<16x256xf32>
    %cst_11 = arith.constant 0.327591091 : f32
    %20 = vector.broadcast %cst_11 : f32 to vector<16x256xf32>
    %21 = arith.mulf %20, %19 : vector<16x256xf32>
    %cst_12 = arith.constant 1.000000e+00 : f32
    %22 = vector.broadcast %cst_12 : f32 to vector<16x256xf32>
    %23 = arith.addf %22, %21 : vector<16x256xf32>
    %24 = tpu.reciprocal %23 {approx = true} : vector<16x256xf32> -> vector<16x256xf32>
    %25 = arith.mulf %23, %24 : vector<16x256xf32>
    %cst_13 = arith.constant 2.000000e+00 : f32
    %26 = vector.broadcast %cst_13 : f32 to vector<16x256xf32>
    %27 = arith.subf %26, %25 : vector<16x256xf32>
    %28 = arith.mulf %24, %27 : vector<16x256xf32>
    %cst_14 = arith.constant 1.06140542 : f32
    %29 = vector.broadcast %cst_14 : f32 to vector<16x256xf32>
    %30 = arith.mulf %29, %28 : vector<16x256xf32>
    %cst_15 = arith.constant -1.45315206 : f32
    %31 = vector.broadcast %cst_15 : f32 to vector<16x256xf32>
    %32 = arith.addf %30, %31 : vector<16x256xf32>
    %33 = arith.mulf %32, %28 : vector<16x256xf32>
    %cst_16 = arith.constant 1.42141378 : f32
    %34 = vector.broadcast %cst_16 : f32 to vector<16x256xf32>
    %35 = arith.addf %33, %34 : vector<16x256xf32>
    %36 = arith.mulf %35, %28 : vector<16x256xf32>
    %cst_17 = arith.constant -0.284496725 : f32
    %37 = vector.broadcast %cst_17 : f32 to vector<16x256xf32>
    %38 = arith.addf %36, %37 : vector<16x256xf32>
    %39 = arith.mulf %38, %28 : vector<16x256xf32>
    %cst_18 = arith.constant 0.254829586 : f32
    %40 = vector.broadcast %cst_18 : f32 to vector<16x256xf32>
    %41 = arith.addf %39, %40 : vector<16x256xf32>
    %42 = arith.mulf %41, %28 : vector<16x256xf32>
    %cst_19 = arith.constant 0.000000e+00 : f32
    %43 = vector.broadcast %cst_19 : f32 to vector<16x256xf32>
    %44 = arith.subf %43, %19 : vector<16x256xf32>
    %45 = arith.mulf %44, %19 : vector<16x256xf32>
    %46 = math.exp %45 : vector<16x256xf32>
    %47 = arith.mulf %42, %46 : vector<16x256xf32>
    %cst_20 = arith.constant 1.000000e+00 : f32
    %48 = vector.broadcast %cst_20 : f32 to vector<16x256xf32>
    %49 = arith.subf %48, %47 : vector<16x256xf32>
    %50 = arith.mulf %18, %49 : vector<16x256xf32>
    %cst_21 = arith.constant 1.000000e+00 : f32
    %51 = vector.broadcast %cst_21 : f32 to vector<16x256xf32>
    %52 = arith.addf %51, %50 : vector<16x256xf32>
    %53 = arith.mulf %11, %52 : vector<16x256xf32>
    %c0_22 = arith.constant 0 : index
    %c0_23 = arith.constant 0 : index
    %54 = vector.load %arg26[%c0_22, %c0_23] : memref<16x256xf32, #tpu.memory_space<vmem>>, vector<16x256xf32>
    %55 = arith.truncf %53 : vector<16x256xf32> to vector<16x256xbf16>
    %c0_24 = arith.constant 0 : index
    %c0_25 = arith.constant 0 : index
    %56 = vector.load %arg18[%c0_24, %c0_25] : memref<256x256xbf16, #tpu.memory_space<vmem>>, vector<256x256xbf16>
    %cst_26 = arith.constant dense<0.000000e+00> : vector<16x256xf32>
    %57 = tpu.matmul %55, %56, %cst_26 {dimension_numbers = #tpu.dot_dimension_numbers<[1], [0], [0], [1], [0, 0, 1, 1], [], []>} : vector<16x256xbf16>, vector<256x256xbf16>, vector<16x256xf32> -> vector<16x256xf32>
    %58 = arith.addf %54, %57 : vector<16x256xf32>
    %c0_27 = arith.constant 0 : index
    %c0_28 = arith.constant 0 : index
    %59 = vector.load %arg26[%c0_27, %c0_28] : memref<16x256xf32, #tpu.memory_space<vmem>>, vector<16x256xf32>
    tpu.vector_store %arg26[%c0_27, %c0_28], %58 {strides = array<i32>} : memref<16x256xf32, #tpu.memory_space<vmem>>, vector<16x256xf32>,
    %c1_i32 = arith.constant 1 : i32
    %60 = arith.cmpi eq, %arg1, %c1_i32 : i32
    %61 = arith.extui %60 : i1 to i32
    %c0_i32_29 = arith.constant 0 : i32
    %62 = arith.cmpi ne, %61, %c0_i32_29 : i32
    scf.if %62 {
      %c0_30 = arith.constant 0 : index
      %c0_31 = arith.constant 0 : index
      %63 = vector.load %arg26[%c0_30, %c0_31] : memref<16x256xf32, #tpu.memory_space<vmem>>, vector<16x256xf32>
      %c0_32 = arith.constant 0 : index
      %c0_33 = arith.constant 0 : index
      %64 = vector.load %arg19[%c0_32, %c0_33] : memref<1x256xf32, #tpu.memory_space<vmem>>, vector<1x256xf32>
      %65 = vector.broadcast %64 : vector<1x256xf32> to vector<16x256xf32>
      %66 = arith.addf %63, %65 : vector<16x256xf32>
      %c0_34 = arith.constant 0 : index
      %c0_35 = arith.constant 0 : index
      %67 = vector.load %arg20[%c0_34, %c0_35] : memref<1x256xf32, #tpu.memory_space<vmem>>, vector<1x256xf32>
      %c0_36 = arith.constant 0 : index
      %c0_37 = arith.constant 0 : index
      %68 = vector.load %arg21[%c0_36, %c0_37] : memref<1x256xf32, #tpu.memory_space<vmem>>, vector<1x256xf32>
      %cst_38 = arith.constant dense<0.000000e+00> : vector<16xf32>
      %69 = vector.multi_reduction <add>, %66, %cst_38 [1] : vector<16x256xf32> to vector<16xf32>
      %70 = vector.shape_cast %69 : vector<16xf32> to vector<16x1xf32>
      %cst_39 = arith.constant 2.560000e+02 : f32
      %71 = vector.broadcast %cst_39 : f32 to vector<16x1xf32>
      %72 = arith.divf %70, %71 : vector<16x1xf32>
      %73 = vector.broadcast %72 : vector<16x1xf32> to vector<16x256xf32>
      %74 = arith.subf %66, %73 : vector<16x256xf32>
      %75 = arith.mulf %74, %74 : vector<16x256xf32>
      %cst_40 = arith.constant dense<0.000000e+00> : vector<16xf32>
      %76 = vector.multi_reduction <add>, %75, %cst_40 [1] : vector<16x256xf32> to vector<16xf32>
      %77 = vector.shape_cast %76 : vector<16xf32> to vector<16x1xf32>
      %cst_41 = arith.constant 2.560000e+02 : f32
      %78 = vector.broadcast %cst_41 : f32 to vector<16x1xf32>
      %79 = arith.divf %77, %78 : vector<16x1xf32>
      %80 = vector.broadcast %72 : vector<16x1xf32> to vector<16x256xf32>
      %81 = arith.subf %66, %80 : vector<16x256xf32>
      %cst_42 = arith.constant 9.99999997E-7 : f32
      %82 = vector.broadcast %cst_42 : f32 to vector<16x1xf32>
      %83 = arith.addf %79, %82 : vector<16x1xf32>
      %84 = math.rsqrt %83 : vector<16x1xf32>
      %85 = vector.broadcast %84 : vector<16x1xf32> to vector<16x256xf32>
      %86 = arith.mulf %81, %85 : vector<16x256xf32>
      %87 = vector.broadcast %67 : vector<1x256xf32> to vector<16x256xf32>
      %88 = arith.mulf %86, %87 : vector<16x256xf32>
      %89 = vector.broadcast %68 : vector<1x256xf32> to vector<16x256xf32>
      %90 = arith.addf %88, %89 : vector<16x256xf32>
      %c0_43 = arith.constant 0 : index
      %c0_44 = arith.constant 0 : index
      %c0_45 = arith.constant 0 : index
      %91 = vector.load %arg22[%c0_43, %c0_44, %c0_45] : memref<1x16x256xf32, #tpu.memory_space<vmem>>, vector<1x16x256xf32>
      %92 = vector.shape_cast %91 : vector<1x16x256xf32> to vector<16x256xf32>
      %93 = vector.shape_cast %90 : vector<16x256xf32> to vector<1x16x256xf32>
      tpu.vector_store %arg22[%c0_43, %c0_44, %c0_45], %93 {strides = array<i32>} : memref<1x16x256xf32, #tpu.memory_space<vmem>>, vector<1x16x256xf32>,
    } else {
    }
    return
  }
  func.func @transform_0(%arg0: i32, %arg1: i32) -> (i32, i32, i32) {
    %c0_i32 = arith.constant 0 : i32
    %c0_i32_0 = arith.constant 0 : i32
    %c0_i32_1 = arith.constant 0 : i32
    return %arg0, %c0_i32, %c0_i32_0 : i32, i32, i32
  }
  func.func @transform_1(%arg0: i32, %arg1: i32) -> (i32, i32, i32) {
    %c0_i32 = arith.constant 0 : i32
    %c0_i32_0 = arith.constant 0 : i32
    %c0_i32_1 = arith.constant 0 : i32
    return %arg0, %c0_i32, %c0_i32_0 : i32, i32, i32
  }
  func.func @transform_2(%arg0: i32, %arg1: i32) -> (i32, i32, i32) {
    %c0_i32 = arith.constant 0 : i32
    %c0_i32_0 = arith.constant 0 : i32
    %c0_i32_1 = arith.constant 0 : i32
    return %arg0, %c0_i32, %c0_i32_0 : i32, i32, i32
  }
  func.func @transform_3(%arg0: i32, %arg1: i32) -> (i32, i32) {
    %c0_i32 = arith.constant 0 : i32
    %c0_i32_0 = arith.constant 0 : i32
    %c0_i32_1 = arith.constant 0 : i32
    return %c0_i32, %c0_i32_0 : i32, i32
  }
  func.func @transform_4(%arg0: i32, %arg1: i32) -> (i32, i32) {
    %c0_i32 = arith.constant 0 : i32
    %c0_i32_0 = arith.constant 0 : i32
    %c0_i32_1 = arith.constant 0 : i32
    return %c0_i32, %c0_i32_0 : i32, i32
  }
  func.func @transform_5(%arg0: i32, %arg1: i32) -> (i32, i32) {
    %c0_i32 = arith.constant 0 : i32
    %c0_i32_0 = arith.constant 0 : i32
    %c0_i32_1 = arith.constant 0 : i32
    return %c0_i32, %c0_i32_0 : i32, i32
  }
  func.func @transform_6(%arg0: i32, %arg1: i32) -> (i32, i32) {
    %c0_i32 = arith.constant 0 : i32
    %c0_i32_0 = arith.constant 0 : i32
    %c0_i32_1 = arith.constant 0 : i32
    return %c0_i32, %c0_i32_0 : i32, i32
  }
  func.func @transform_7(%arg0: i32, %arg1: i32) -> (i32, i32) {
    %c0_i32 = arith.constant 0 : i32
    %c0_i32_0 = arith.constant 0 : i32
    %c0_i32_1 = arith.constant 0 : i32
    return %c0_i32, %c0_i32_0 : i32, i32
  }
  func.func @transform_8(%arg0: i32, %arg1: i32) -> (i32, i32) {
    %c0_i32 = arith.constant 0 : i32
    %c0_i32_0 = arith.constant 0 : i32
    %c0_i32_1 = arith.constant 0 : i32
    return %c0_i32, %c0_i32_0 : i32, i32
  }
  func.func @transform_9(%arg0: i32, %arg1: i32) -> (i32, i32) {
    %c0_i32 = arith.constant 0 : i32
    %c0_i32_0 = arith.constant 0 : i32
    %c0_i32_1 = arith.constant 0 : i32
    return %c0_i32, %c0_i32_0 : i32, i32
  }
  func.func @transform_10(%arg0: i32, %arg1: i32) -> (i32, i32) {
    %c0_i32 = arith.constant 0 : i32
    %c0_i32_0 = arith.constant 0 : i32
    %c0_i32_1 = arith.constant 0 : i32
    return %c0_i32, %c0_i32_0 : i32, i32
  }
  func.func @transform_11(%arg0: i32, %arg1: i32) -> (i32, i32) {
    %c0_i32 = arith.constant 0 : i32
    %c0_i32_0 = arith.constant 0 : i32
    %c0_i32_1 = arith.constant 0 : i32
    return %c0_i32, %c0_i32_0 : i32, i32
  }
  func.func @transform_12(%arg0: i32, %arg1: i32) -> (i32, i32) {
    %c0_i32 = arith.constant 0 : i32
    %c0_i32_0 = arith.constant 0 : i32
    %c0_i32_1 = arith.constant 0 : i32
    return %c0_i32, %c0_i32_0 : i32, i32
  }
  func.func @transform_13(%arg0: i32, %arg1: i32) -> (i32, i32) {
    %c0_i32 = arith.constant 0 : i32
    %c0_i32_0 = arith.constant 0 : i32
    %c0_i32_1 = arith.constant 0 : i32
    return %c0_i32, %c0_i32_0 : i32, i32
  }
  func.func @transform_14(%arg0: i32, %arg1: i32) -> (i32, i32) {
    %c0_i32 = arith.constant 0 : i32
    %c0_i32_0 = arith.constant 0 : i32
    return %c0_i32, %arg1 : i32, i32
  }
  func.func @transform_15(%arg0: i32, %arg1: i32) -> (i32, i32) {
    %c0_i32 = arith.constant 0 : i32
    %c0_i32_0 = arith.constant 0 : i32
    return %c0_i32, %arg1 : i32, i32
  }
  func.func @transform_16(%arg0: i32, %arg1: i32) -> (i32, i32) {
    %c0_i32 = arith.constant 0 : i32
    %c0_i32_0 = arith.constant 0 : i32
    return %arg1, %c0_i32 : i32, i32
  }
  func.func @transform_17(%arg0: i32, %arg1: i32) -> (i32, i32) {
    %c0_i32 = arith.constant 0 : i32
    %c0_i32_0 = arith.constant 0 : i32
    %c0_i32_1 = arith.constant 0 : i32
    return %c0_i32, %c0_i32_0 : i32, i32
  }
  func.func @transform_18(%arg0: i32, %arg1: i32) -> (i32, i32) {
    %c0_i32 = arith.constant 0 : i32
    %c0_i32_0 = arith.constant 0 : i32
    %c0_i32_1 = arith.constant 0 : i32
    return %c0_i32, %c0_i32_0 : i32, i32
  }
  func.func @transform_19(%arg0: i32, %arg1: i32) -> (i32, i32) {
    %c0_i32 = arith.constant 0 : i32
    %c0_i32_0 = arith.constant 0 : i32
    %c0_i32_1 = arith.constant 0 : i32
    return %c0_i32, %c0_i32_0 : i32, i32
  }
  func.func @transform_20(%arg0: i32, %arg1: i32) -> (i32, i32, i32) {
    %c0_i32 = arith.constant 0 : i32
    %c0_i32_0 = arith.constant 0 : i32
    %c0_i32_1 = arith.constant 0 : i32
    return %arg0, %c0_i32, %c0_i32_0 : i32, i32, i32
  }
}

module attributes {stable_mosaic.version = 11 : i64} {
  func.func @resampler_kernel(%arg0: i32, %arg1: i32, %arg2: memref<1x128x256xf32, #tpu.memory_space<vmem>>, %arg3: memref<1x128x256xbf16, #tpu.memory_space<vmem>>, %arg4: memref<1x1x128xf32, #tpu.memory_space<vmem>>, %arg5: memref<16x256xbf16, #tpu.memory_space<vmem>>, %arg6: memref<1x256xf32, #tpu.memory_space<vmem>>, %arg7: memref<1x256xf32, #tpu.memory_space<vmem>>, %arg8: memref<256x256xbf16, #tpu.memory_space<vmem>>, %arg9: memref<1x256xf32, #tpu.memory_space<vmem>>, %arg10: memref<256x256xbf16, #tpu.memory_space<vmem>>, %arg11: memref<1x256xf32, #tpu.memory_space<vmem>>, %arg12: memref<256x256xbf16, #tpu.memory_space<vmem>>, %arg13: memref<1x256xf32, #tpu.memory_space<vmem>>, %arg14: memref<1x256xf32, #tpu.memory_space<vmem>>, %arg15: memref<1x256xf32, #tpu.memory_space<vmem>>, %arg16: memref<256x256xbf16, #tpu.memory_space<vmem>>, %arg17: memref<1x256xf32, #tpu.memory_space<vmem>>, %arg18: memref<256x256xbf16, #tpu.memory_space<vmem>>, %arg19: memref<1x256xf32, #tpu.memory_space<vmem>>, %arg20: memref<1x256xf32, #tpu.memory_space<vmem>>, %arg21: memref<1x256xf32, #tpu.memory_space<vmem>>, %arg22: memref<1x16x256xf32, #tpu.memory_space<vmem>>, %arg23: memref<128x256xbf16, #tpu.memory_space<vmem>>, %arg24: memref<128x256xbf16, #tpu.memory_space<vmem>>, %arg25: memref<16x256xf32, #tpu.memory_space<vmem>>, %arg26: memref<16x256xf32, #tpu.memory_space<vmem>>) attributes {dimension_semantics = [#tpu.dimension_semantics<parallel>, #tpu.dimension_semantics<arbitrary>], iteration_bounds = array<i64: 2, 2>, scalar_prefetch = 0 : i64, scratch_operands = 4 : i64, tpu.core_type = #tpu.core_type<tc>, window_params = [{transform_indices = @transform_0, window_bounds = array<i64: 1, 128, 256>}, {transform_indices = @transform_1, window_bounds = array<i64: 1, 128, 256>}, {transform_indices = @transform_2, window_bounds = array<i64: 1, 1, 128>}, {pipeline_mode = #tpu.pipeline_mode<synchronous>, transform_indices = @transform_3, window_bounds = array<i64: 16, 256>}, {pipeline_mode = #tpu.pipeline_mode<synchronous>, transform_indices = @transform_4, window_bounds = array<i64: 1, 256>}, {pipeline_mode = #tpu.pipeline_mode<synchronous>, transform_indices = @transform_5, window_bounds = array<i64: 1, 256>}, {pipeline_mode = #tpu.pipeline_mode<synchronous>, transform_indices = @transform_6, window_bounds = array<i64: 256, 256>}, {pipeline_mode = #tpu.pipeline_mode<synchronous>, transform_indices = @transform_7, window_bounds = array<i64: 1, 256>}, {pipeline_mode = #tpu.pipeline_mode<synchronous>, transform_indices = @transform_8, window_bounds = array<i64: 256, 256>}, {pipeline_mode = #tpu.pipeline_mode<synchronous>, transform_indices = @transform_9, window_bounds = array<i64: 1, 256>}, {pipeline_mode = #tpu.pipeline_mode<synchronous>, transform_indices = @transform_10, window_bounds = array<i64: 256, 256>}, {pipeline_mode = #tpu.pipeline_mode<synchronous>, transform_indices = @transform_11, window_bounds = array<i64: 1, 256>}, {pipeline_mode = #tpu.pipeline_mode<synchronous>, transform_indices = @transform_12, window_bounds = array<i64: 1, 256>}, {pipeline_mode = #tpu.pipeline_mode<synchronous>, transform_indices = @transform_13, window_bounds = array<i64: 1, 256>}, {transform_indices = @transform_14, window_bounds = array<i64: 256, 256>}, {transform_indices = @transform_15, window_bounds = array<i64: 1, 256>}, {transform_indices = @transform_16, window_bounds = array<i64: 256, 256>}, {pipeline_mode = #tpu.pipeline_mode<synchronous>, transform_indices = @transform_17, window_bounds = array<i64: 1, 256>}, {pipeline_mode = #tpu.pipeline_mode<synchronous>, transform_indices = @transform_18, window_bounds = array<i64: 1, 256>}, {pipeline_mode = #tpu.pipeline_mode<synchronous>, transform_indices = @transform_19, window_bounds = array<i64: 1, 256>}, {transform_indices = @transform_20, window_bounds = array<i64: 1, 16, 256>}]} {
    %c0_i32 = arith.constant 0 : i32
    %0 = arith.cmpi eq, %arg1, %c0_i32 : i32
    %1 = arith.extui %0 : i1 to i32
    %c0_i32_0 = arith.constant 0 : i32
    %2 = arith.cmpi ne, %1, %c0_i32_0 : i32
    scf.if %2 {
      %c0_30 = arith.constant 0 : index
      %c0_31 = arith.constant 0 : index
      %c0_32 = arith.constant 0 : index
      %63 = vector.load %arg2[%c0_30, %c0_31, %c0_32] : memref<1x128x256xf32, #tpu.memory_space<vmem>>, vector<1x128x256xf32>
      %64 = vector.shape_cast %63 : vector<1x128x256xf32> to vector<128x256xf32>
      %c0_33 = arith.constant 0 : index
      %c0_34 = arith.constant 0 : index
      %c0_35 = arith.constant 0 : index
      %65 = vector.load %arg3[%c0_33, %c0_34, %c0_35] : memref<1x128x256xbf16, #tpu.memory_space<vmem>>, vector<1x128x256xbf16>
      %66 = vector.shape_cast %65 : vector<1x128x256xbf16> to vector<128x256xbf16>
      %67 = arith.extf %66 : vector<128x256xbf16> to vector<128x256xf32>
      %c0_36 = arith.constant 0 : index
      %c0_37 = arith.constant 0 : index
      %68 = vector.load %arg6[%c0_36, %c0_37] : memref<1x256xf32, #tpu.memory_space<vmem>>, vector<1x256xf32>
      %c0_38 = arith.constant 0 : index
      %c0_39 = arith.constant 0 : index
      %69 = vector.load %arg7[%c0_38, %c0_39] : memref<1x256xf32, #tpu.memory_space<vmem>>, vector<1x256xf32>
      %cst_40 = arith.constant dense<0.000000e+00> : vector<128xf32>
      %70 = vector.multi_reduction <add>, %64, %cst_40 [1] : vector<128x256xf32> to vector<128xf32>
      %71 = vector.shape_cast %70 : vector<128xf32> to vector<128x1xf32>
      %cst_41 = arith.constant 2.560000e+02 : f32
      %72 = vector.broadcast %cst_41 : f32 to vector<128x1xf32>
      %73 = arith.divf %71, %72 : vector<128x1xf32>
      %74 = vector.broadcast %73 : vector<128x1xf32> to vector<128x256xf32>
      %75 = arith.subf %64, %74 : vector<128x256xf32>
      %76 = arith.mulf %75, %75 : vector<128x256xf32>
      %cst_42 = arith.constant dense<0.000000e+00> : vector<128xf32>
      %77 = vector.multi_reduction <add>, %76, %cst_42 [1] : vector<128x256xf32> to vector<128xf32>
      %78 = vector.shape_cast %77 : vector<128xf32> to vector<128x1xf32>
      %cst_43 = arith.constant 2.560000e+02 : f32
      %79 = vector.broadcast %cst_43 : f32 to vector<128x1xf32>
      %80 = arith.divf %78, %79 : vector<128x1xf32>
      %81 = vector.broadcast %73 : vector<128x1xf32> to vector<128x256xf32>
      %82 = arith.subf %64, %81 : vector<128x256xf32>
      %cst_44 = arith.constant 9.99999997E-7 : f32
      %83 = vector.broadcast %cst_44 : f32 to vector<128x1xf32>
      %84 = arith.addf %80, %83 : vector<128x1xf32>
      %85 = math.rsqrt %84 : vector<128x1xf32>
      %86 = vector.broadcast %85 : vector<128x1xf32> to vector<128x256xf32>
      %87 = arith.mulf %82, %86 : vector<128x256xf32>
      %88 = vector.broadcast %68 : vector<1x256xf32> to vector<128x256xf32>
      %89 = arith.mulf %87, %88 : vector<128x256xf32>
      %90 = vector.broadcast %69 : vector<1x256xf32> to vector<128x256xf32>
      %91 = arith.addf %89, %90 : vector<128x256xf32>
      %92 = arith.addf %91, %67 : vector<128x256xf32>
      %93 = arith.truncf %92 : vector<128x256xf32> to vector<128x256xbf16>
      %94 = arith.truncf %91 : vector<128x256xf32> to vector<128x256xbf16>
      %c0_45 = arith.constant 0 : index
      %c0_46 = arith.constant 0 : index
      %95 = vector.load %arg8[%c0_45, %c0_46] : memref<256x256xbf16, #tpu.memory_space<vmem>>, vector<256x256xbf16>
      %cst_47 = arith.constant dense<0.000000e+00> : vector<128x256xf32>
      %96 = tpu.matmul %93, %95, %cst_47 {dimension_numbers = #tpu.dot_dimension_numbers<[1], [0], [0], [1], [0, 0, 1, 1], [], []>} : vector<128x256xbf16>, vector<256x256xbf16>, vector<128x256xf32> -> vector<128x256xf32>
      %c0_48 = arith.constant 0 : index
      %c0_49 = arith.constant 0 : index
      %97 = vector.load %arg9[%c0_48, %c0_49] : memref<1x256xf32, #tpu.memory_space<vmem>>, vector<1x256xf32>
      %98 = vector.broadcast %97 : vector<1x256xf32> to vector<128x256xf32>
      %99 = arith.addf %96, %98 : vector<128x256xf32>
      %100 = arith.truncf %99 : vector<128x256xf32> to vector<128x256xbf16>
      %c0_50 = arith.constant 0 : index
      %c0_51 = arith.constant 0 : index
      %101 = vector.load %arg23[%c0_50, %c0_51] : memref<128x256xbf16, #tpu.memory_space<vmem>>, vector<128x256xbf16>
      tpu.vector_store %arg23[%c0_50, %c0_51], %100 {strides = array<i32>} : memref<128x256xbf16, #tpu.memory_space<vmem>>, vector<128x256xbf16>,
      %c0_52 = arith.constant 0 : index
      %c0_53 = arith.constant 0 : index
      %102 = vector.load %arg10[%c0_52, %c0_53] : memref<256x256xbf16, #tpu.memory_space<vmem>>, vector<256x256xbf16>
      %cst_54 = arith.constant dense<0.000000e+00> : vector<128x256xf32>
      %103 = tpu.matmul %94, %102, %cst_54 {dimension_numbers = #tpu.dot_dimension_numbers<[1], [0], [0], [1], [0, 0, 1, 1], [], []>} : vector<128x256xbf16>, vector<256x256xbf16>, vector<128x256xf32> -> vector<128x256xf32>
      %c0_55 = arith.constant 0 : index
      %c0_56 = arith.constant 0 : index
      %104 = vector.load %arg11[%c0_55, %c0_56] : memref<1x256xf32, #tpu.memory_space<vmem>>, vector<1x256xf32>
      %105 = vector.broadcast %104 : vector<1x256xf32> to vector<128x256xf32>
      %106 = arith.addf %103, %105 : vector<128x256xf32>
      %107 = arith.truncf %106 : vector<128x256xf32> to vector<128x256xbf16>
      %c0_57 = arith.constant 0 : index
      %c0_58 = arith.constant 0 : index
      %108 = vector.load %arg24[%c0_57, %c0_58] : memref<128x256xbf16, #tpu.memory_space<vmem>>, vector<128x256xbf16>
      tpu.vector_store %arg24[%c0_57, %c0_58], %107 {strides = array<i32>} : memref<128x256xbf16, #tpu.memory_space<vmem>>, vector<128x256xbf16>,
      %c0_59 = arith.constant 0 : index
      %c0_60 = arith.constant 0 : index
      %c0_61 = arith.constant 0 : index
      %109 = vector.load %arg4[%c0_59, %c0_60, %c0_61] : memref<1x1x128xf32, #tpu.memory_space<vmem>>, vector<1x1x128xf32>
      %110 = vector.shape_cast %109 : vector<1x1x128xf32> to vector<1x128xf32>
      %cst_62 = arith.constant 0.000000e+00 : f32
      %111 = vector.broadcast %cst_62 : f32 to vector<16x256xf32>
      %c0_63 = arith.constant 0 : index
      %c0_64 = arith.constant 0 : index
      %112 = vector.load %arg26[%c0_63, %c0_64] : memref<16x256xf32, #tpu.memory_space<vmem>>, vector<16x256xf32>
      tpu.vector_store %arg26[%c0_63, %c0_64], %111 {strides = array<i32>} : memref<16x256xf32, #tpu.memory_space<vmem>>, vector<16x256xf32>,
      %c0_i32_65 = arith.constant 0 : i32
      %c2_i32 = arith.constant 2 : i32
      %113 = arith.addi %c0_i32_65, %c2_i32 : i32
      %c1_i32_66 = arith.constant 1 : i32
      scf.for %arg27 = %c0_i32_65 to %113 step %c1_i32_66  : i32 {
        %c128_i32 = arith.constant 128 : i32
        %144 = arith.muli %arg27, %c128_i32 : i32
        %145 = tpu.assume_multiple %144, 128 : i32
        %c0_85 = arith.constant 0 : index
        %146 = arith.index_cast %145 : i32 to index
        %147 = vector.load %arg5[%c0_85, %146] : memref<16x256xbf16, #tpu.memory_space<vmem>>, vector<16x128xbf16>
        %c0_86 = arith.constant 0 : index
        %148 = arith.index_cast %145 : i32 to index
        %149 = vector.load %arg23[%c0_86, %148] : memref<128x256xbf16, #tpu.memory_space<vmem>>, vector<128x128xbf16>
        %c0_87 = arith.constant 0 : index
        %150 = arith.index_cast %145 : i32 to index
        %151 = vector.load %arg24[%c0_87, %150] : memref<128x256xbf16, #tpu.memory_space<vmem>>, vector<128x128xbf16>
        %cst_88 = arith.constant dense<0.000000e+00> : vector<16x128xf32>
        %152 = tpu.matmul %147, %149, %cst_88 {dimension_numbers = #tpu.dot_dimension_numbers<[1], [1], [0], [0], [0, 0, 1, 0], [], []>} : vector<16x128xbf16>, vector<128x128xbf16>, vector<16x128xf32> -> vector<16x128xf32>
        %153 = vector.broadcast %110 : vector<1x128xf32> to vector<16x128xf32>
        %154 = arith.addf %152, %153 : vector<16x128xf32>
        %cst_89 = arith.constant dense<0xFF800000> : vector<16xf32>
        %155 = vector.multi_reduction <maximumf>, %154, %cst_89 [1] : vector<16x128xf32> to vector<16xf32>
        %156 = vector.shape_cast %155 : vector<16xf32> to vector<16x1xf32>
        %157 = vector.broadcast %156 : vector<16x1xf32> to vector<16x128xf32>
        %158 = arith.subf %154, %157 : vector<16x128xf32>
        %159 = math.exp %158 : vector<16x128xf32>
        %cst_90 = arith.constant dense<0.000000e+00> : vector<16xf32>
        %160 = vector.multi_reduction <add>, %159, %cst_90 [1] : vector<16x128xf32> to vector<16xf32>
        %161 = vector.shape_cast %160 : vector<16xf32> to vector<16x1xf32>
        %162 = tpu.reciprocal %161 {approx = true} : vector<16x1xf32> -> vector<16x1xf32>
        %163 = vector.broadcast %162 : vector<16x1xf32> to vector<16x128xf32>
        %164 = arith.mulf %159, %163 : vector<16x128xf32>
        %165 = arith.truncf %164 : vector<16x128xf32> to vector<16x128xbf16>
        %cst_91 = arith.constant dense<0.000000e+00> : vector<16x128xf32>
        %166 = tpu.matmul %165, %151, %cst_91 {dimension_numbers = #tpu.dot_dimension_numbers<[1], [0], [0], [1], [0, 0, 1, 1], [], []>} : vector<16x128xbf16>, vector<128x128xbf16>, vector<16x128xf32> -> vector<16x128xf32>
        %c0_92 = arith.constant 0 : index
        %c0_93 = arith.constant 0 : index
        %167 = vector.load %arg26[%c0_92, %c0_93] : memref<16x256xf32, #tpu.memory_space<vmem>>, vector<16x256xf32>
        %168 = arith.truncf %166 : vector<16x128xf32> to vector<16x128xbf16>
        %169 = arith.index_cast %145 : i32 to index
        %c0_94 = arith.constant 0 : index
        %170 = vector.load %arg12[%169, %c0_94] : memref<256x256xbf16, #tpu.memory_space<vmem>>, vector<128x256xbf16>
        %cst_95 = arith.constant dense<0.000000e+00> : vector<16x256xf32>
        %171 = tpu.matmul %168, %170, %cst_95 {dimension_numbers = #tpu.dot_dimension_numbers<[1], [0], [0], [1], [0, 0, 1, 1], [], []>} : vector<16x128xbf16>, vector<128x256xbf16>, vector<16x256xf32> -> vector<16x256xf32>
        %172 = arith.addf %167, %171 : vector<16x256xf32>
        %c0_96 = arith.constant 0 : index
        %c0_97 = arith.constant 0 : index
        %173 = vector.load %arg26[%c0_96, %c0_97] : memref<16x256xf32, #tpu.memory_space<vmem>>, vector<16x256xf32>
        tpu.vector_store %arg26[%c0_96, %c0_97], %172 {strides = array<i32>} : memref<16x256xf32, #tpu.memory_space<vmem>>, vector<16x256xf32>,
      }
      %c2_i32_67 = arith.constant 2 : i32
      %c0_68 = arith.constant 0 : index
      %c0_69 = arith.constant 0 : index
      %114 = vector.load %arg26[%c0_68, %c0_69] : memref<16x256xf32, #tpu.memory_space<vmem>>, vector<16x256xf32>
      %c0_70 = arith.constant 0 : index
      %c0_71 = arith.constant 0 : index
      %115 = vector.load %arg13[%c0_70, %c0_71] : memref<1x256xf32, #tpu.memory_space<vmem>>, vector<1x256xf32>
      %116 = vector.broadcast %115 : vector<1x256xf32> to vector<16x256xf32>
      %117 = arith.addf %114, %116 : vector<16x256xf32>
      %c0_72 = arith.constant 0 : index
      %c0_73 = arith.constant 0 : index
      %118 = vector.load %arg14[%c0_72, %c0_73] : memref<1x256xf32, #tpu.memory_space<vmem>>, vector<1x256xf32>
      %c0_74 = arith.constant 0 : index
      %c0_75 = arith.constant 0 : index
      %119 = vector.load %arg15[%c0_74, %c0_75] : memref<1x256xf32, #tpu.memory_space<vmem>>, vector<1x256xf32>
      %cst_76 = arith.constant dense<0.000000e+00> : vector<16xf32>
      %120 = vector.multi_reduction <add>, %117, %cst_76 [1] : vector<16x256xf32> to vector<16xf32>
      %121 = vector.shape_cast %120 : vector<16xf32> to vector<16x1xf32>
      %cst_77 = arith.constant 2.560000e+02 : f32
      %122 = vector.broadcast %cst_77 : f32 to vector<16x1xf32>
      %123 = arith.divf %121, %122 : vector<16x1xf32>
      %124 = vector.broadcast %123 : vector<16x1xf32> to vector<16x256xf32>
      %125 = arith.subf %117, %124 : vector<16x256xf32>
      %126 = arith.mulf %125, %125 : vector<16x256xf32>
      %cst_78 = arith.constant dense<0.000000e+00> : vector<16xf32>
      %127 = vector.multi_reduction <add>, %126, %cst_78 [1] : vector<16x256xf32> to vector<16xf32>
      %128 = vector.shape_cast %127 : vector<16xf32> to vector<16x1xf32>
      %cst_79 = arith.constant 2.560000e+02 : f32
      %129 = vector.broadcast %cst_79 : f32 to vector<16x1xf32>
      %130 = arith.divf %128, %129 : vector<16x1xf32>
      %131 = vector.broadcast %123 : vector<16x1xf32> to vector<16x256xf32>
      %132 = arith.subf %117, %131 : vector<16x256xf32>
      %cst_80 = arith.constant 9.99999997E-7 : f32
      %133 = vector.broadcast %cst_80 : f32 to vector<16x1xf32>
      %134 = arith.addf %130, %133 : vector<16x1xf32>
      %135 = math.rsqrt %134 : vector<16x1xf32>
      %136 = vector.broadcast %135 : vector<16x1xf32> to vector<16x256xf32>
      %137 = arith.mulf %132, %136 : vector<16x256xf32>
      %138 = vector.broadcast %118 : vector<1x256xf32> to vector<16x256xf32>
      %139 = arith.mulf %137, %138 : vector<16x256xf32>
      %140 = vector.broadcast %119 : vector<1x256xf32> to vector<16x256xf32>
      %141 = arith.addf %139, %140 : vector<16x256xf32>
      %c0_81 = arith.constant 0 : index
      %c0_82 = arith.constant 0 : index
      %142 = vector.load %arg25[%c0_81, %c0_82] : memref<16x256xf32, #tpu.memory_space<vmem>>, vector<16x256xf32>
      tpu.vector_store %arg25[%c0_81, %c0_82], %141 {strides = array<i32>} : memref<16x256xf32, #tpu.memory_space<vmem>>, vector<16x256xf32>,
      %c0_83 = arith.constant 0 : index
      %c0_84 = arith.constant 0 : index
      %143 = vector.load %arg26[%c0_83, %c0_84] : memref<16x256xf32, #tpu.memory_space<vmem>>, vector<16x256xf32>
      tpu.vector_store %arg26[%c0_83, %c0_84], %141 {strides = array<i32>} : memref<16x256xf32, #tpu.memory_space<vmem>>, vector<16x256xf32>,
    } else {
    }
    %c0 = arith.constant 0 : index
    %c0_1 = arith.constant 0 : index
    %3 = vector.load %arg25[%c0, %c0_1] : memref<16x256xf32, #tpu.memory_space<vmem>>, vector<16x256xf32>
    %4 = arith.truncf %3 : vector<16x256xf32> to vector<16x256xbf16>
    %c0_2 = arith.constant 0 : index
    %c0_3 = arith.constant 0 : index
    %5 = vector.load %arg16[%c0_2, %c0_3] : memref<256x256xbf16, #tpu.memory_space<vmem>>, vector<256x256xbf16>
    %cst = arith.constant dense<0.000000e+00> : vector<16x256xf32>
    %6 = tpu.matmul %4, %5, %cst {dimension_numbers = #tpu.dot_dimension_numbers<[1], [0], [0], [1], [0, 0, 1, 1], [], []>} : vector<16x256xbf16>, vector<256x256xbf16>, vector<16x256xf32> -> vector<16x256xf32>
    %c0_4 = arith.constant 0 : index
    %c0_5 = arith.constant 0 : index
    %7 = vector.load %arg17[%c0_4, %c0_5] : memref<1x256xf32, #tpu.memory_space<vmem>>, vector<1x256xf32>
    %8 = vector.broadcast %7 : vector<1x256xf32> to vector<16x256xf32>
    %9 = arith.addf %6, %8 : vector<16x256xf32>
    %cst_6 = arith.constant 5.000000e-01 : f32
    %10 = vector.broadcast %cst_6 : f32 to vector<16x256xf32>
    %11 = arith.mulf %10, %9 : vector<16x256xf32>
    %cst_7 = arith.constant 0.707106769 : f32
    %12 = vector.broadcast %cst_7 : f32 to vector<16x256xf32>
    %13 = arith.mulf %9, %12 : vector<16x256xf32>
    %cst_8 = arith.constant 0.000000e+00 : f32
    %14 = vector.broadcast %cst_8 : f32 to vector<16x256xf32>
    %15 = arith.cmpf oge, %13, %14 : vector<16x256xf32>
    %cst_9 = arith.constant 1.000000e+00 : f32
    %cst_10 = arith.constant -1.000000e+00 : f32
    %16 = vector.broadcast %cst_9 : f32 to vector<16x256xf32>
    %17 = vector.broadcast %cst_10 : f32 to vector<16x256xf32>
    %18 = arith.select %15, %16, %17 : vector<16x256xi1>, vector<16x256xf32>
    %19 = math.absf %13 : vector<16x256xf32>
    %cst_11 = arith.constant 0.327591091 : f32
    %20 = vector.broadcast %cst_11 : f32 to vector<16x256xf32>
    %21 = arith.mulf %20, %19 : vector<16x256xf32>
    %cst_12 = arith.constant 1.000000e+00 : f32
    %22 = vector.broadcast %cst_12 : f32 to vector<16x256xf32>
    %23 = arith.addf %22, %21 : vector<16x256xf32>
    %24 = tpu.reciprocal %23 {approx = true} : vector<16x256xf32> -> vector<16x256xf32>
    %25 = arith.mulf %23, %24 : vector<16x256xf32>
    %cst_13 = arith.constant 2.000000e+00 : f32
    %26 = vector.broadcast %cst_13 : f32 to vector<16x256xf32>
    %27 = arith.subf %26, %25 : vector<16x256xf32>
    %28 = arith.mulf %24, %27 : vector<16x256xf32>
    %cst_14 = arith.constant 1.06140542 : f32
    %29 = vector.broadcast %cst_14 : f32 to vector<16x256xf32>
    %30 = arith.mulf %29, %28 : vector<16x256xf32>
    %cst_15 = arith.constant -1.45315206 : f32
    %31 = vector.broadcast %cst_15 : f32 to vector<16x256xf32>
    %32 = arith.addf %30, %31 : vector<16x256xf32>
    %33 = arith.mulf %32, %28 : vector<16x256xf32>
    %cst_16 = arith.constant 1.42141378 : f32
    %34 = vector.broadcast %cst_16 : f32 to vector<16x256xf32>
    %35 = arith.addf %33, %34 : vector<16x256xf32>
    %36 = arith.mulf %35, %28 : vector<16x256xf32>
    %cst_17 = arith.constant -0.284496725 : f32
    %37 = vector.broadcast %cst_17 : f32 to vector<16x256xf32>
    %38 = arith.addf %36, %37 : vector<16x256xf32>
    %39 = arith.mulf %38, %28 : vector<16x256xf32>
    %cst_18 = arith.constant 0.254829586 : f32
    %40 = vector.broadcast %cst_18 : f32 to vector<16x256xf32>
    %41 = arith.addf %39, %40 : vector<16x256xf32>
    %42 = arith.mulf %41, %28 : vector<16x256xf32>
    %cst_19 = arith.constant 0.000000e+00 : f32
    %43 = vector.broadcast %cst_19 : f32 to vector<16x256xf32>
    %44 = arith.subf %43, %19 : vector<16x256xf32>
    %45 = arith.mulf %44, %19 : vector<16x256xf32>
    %46 = math.exp %45 : vector<16x256xf32>
    %47 = arith.mulf %42, %46 : vector<16x256xf32>
    %cst_20 = arith.constant 1.000000e+00 : f32
    %48 = vector.broadcast %cst_20 : f32 to vector<16x256xf32>
    %49 = arith.subf %48, %47 : vector<16x256xf32>
    %50 = arith.mulf %18, %49 : vector<16x256xf32>
    %cst_21 = arith.constant 1.000000e+00 : f32
    %51 = vector.broadcast %cst_21 : f32 to vector<16x256xf32>
    %52 = arith.addf %51, %50 : vector<16x256xf32>
    %53 = arith.mulf %11, %52 : vector<16x256xf32>
    %c0_22 = arith.constant 0 : index
    %c0_23 = arith.constant 0 : index
    %54 = vector.load %arg26[%c0_22, %c0_23] : memref<16x256xf32, #tpu.memory_space<vmem>>, vector<16x256xf32>
    %55 = arith.truncf %53 : vector<16x256xf32> to vector<16x256xbf16>
    %c0_24 = arith.constant 0 : index
    %c0_25 = arith.constant 0 : index
    %56 = vector.load %arg18[%c0_24, %c0_25] : memref<256x256xbf16, #tpu.memory_space<vmem>>, vector<256x256xbf16>
    %cst_26 = arith.constant dense<0.000000e+00> : vector<16x256xf32>
    %57 = tpu.matmul %55, %56, %cst_26 {dimension_numbers = #tpu.dot_dimension_numbers<[1], [0], [0], [1], [0, 0, 1, 1], [], []>} : vector<16x256xbf16>, vector<256x256xbf16>, vector<16x256xf32> -> vector<16x256xf32>
    %58 = arith.addf %54, %57 : vector<16x256xf32>
    %c0_27 = arith.constant 0 : index
    %c0_28 = arith.constant 0 : index
    %59 = vector.load %arg26[%c0_27, %c0_28] : memref<16x256xf32, #tpu.memory_space<vmem>>, vector<16x256xf32>
    tpu.vector_store %arg26[%c0_27, %c0_28], %58 {strides = array<i32>} : memref<16x256xf32, #tpu.memory_space<vmem>>, vector<16x256xf32>,
    %c1_i32 = arith.constant 1 : i32
    %60 = arith.cmpi eq, %arg1, %c1_i32 : i32
    %61 = arith.extui %60 : i1 to i32
    %c0_i32_29 = arith.constant 0 : i32
    %62 = arith.cmpi ne, %61, %c0_i32_29 : i32
    scf.if %62 {
      %c0_30 = arith.constant 0 : index
      %c0_31 = arith.constant 0 : index
      %63 = vector.load %arg26[%c0_30, %c0_31] : memref<16x256xf32, #tpu.memory_space<vmem>>, vector<16x256xf32>
      %c0_32 = arith.constant 0 : index
      %c0_33 = arith.constant 0 : index
      %64 = vector.load %arg19[%c0_32, %c0_33] : memref<1x256xf32, #tpu.memory_space<vmem>>, vector<1x256xf32>
      %65 = vector.broadcast %64 : vector<1x256xf32> to vector<16x256xf32>
      %66 = arith.addf %63, %65 : vector<16x256xf32>
      %c0_34 = arith.constant 0 : index
      %c0_35 = arith.constant 0 : index
      %67 = vector.load %arg20[%c0_34, %c0_35] : memref<1x256xf32, #tpu.memory_space<vmem>>, vector<1x256xf32>
      %c0_36 = arith.constant 0 : index
      %c0_37 = arith.constant 0 : index
      %68 = vector.load %arg21[%c0_36, %c0_37] : memref<1x256xf32, #tpu.memory_space<vmem>>, vector<1x256xf32>
      %cst_38 = arith.constant dense<0.000000e+00> : vector<16xf32>
      %69 = vector.multi_reduction <add>, %66, %cst_38 [1] : vector<16x256xf32> to vector<16xf32>
      %70 = vector.shape_cast %69 : vector<16xf32> to vector<16x1xf32>
      %cst_39 = arith.constant 2.560000e+02 : f32
      %71 = vector.broadcast %cst_39 : f32 to vector<16x1xf32>
      %72 = arith.divf %70, %71 : vector<16x1xf32>
      %73 = vector.broadcast %72 : vector<16x1xf32> to vector<16x256xf32>
      %74 = arith.subf %66, %73 : vector<16x256xf32>
      %75 = arith.mulf %74, %74 : vector<16x256xf32>
      %cst_40 = arith.constant dense<0.000000e+00> : vector<16xf32>
      %76 = vector.multi_reduction <add>, %75, %cst_40 [1] : vector<16x256xf32> to vector<16xf32>
      %77 = vector.shape_cast %76 : vector<16xf32> to vector<16x1xf32>
      %cst_41 = arith.constant 2.560000e+02 : f32
      %78 = vector.broadcast %cst_41 : f32 to vector<16x1xf32>
      %79 = arith.divf %77, %78 : vector<16x1xf32>
      %80 = vector.broadcast %72 : vector<16x1xf32> to vector<16x256xf32>
      %81 = arith.subf %66, %80 : vector<16x256xf32>
      %cst_42 = arith.constant 9.99999997E-7 : f32
      %82 = vector.broadcast %cst_42 : f32 to vector<16x1xf32>
      %83 = arith.addf %79, %82 : vector<16x1xf32>
      %84 = math.rsqrt %83 : vector<16x1xf32>
      %85 = vector.broadcast %84 : vector<16x1xf32> to vector<16x256xf32>
      %86 = arith.mulf %81, %85 : vector<16x256xf32>
      %87 = vector.broadcast %67 : vector<1x256xf32> to vector<16x256xf32>
      %88 = arith.mulf %86, %87 : vector<16x256xf32>
      %89 = vector.broadcast %68 : vector<1x256xf32> to vector<16x256xf32>
      %90 = arith.addf %88, %89 : vector<16x256xf32>
      %c0_43 = arith.constant 0 : index
      %c0_44 = arith.constant 0 : index
      %c0_45 = arith.constant 0 : index
      %91 = vector.load %arg22[%c0_43, %c0_44, %c0_45] : memref<1x16x256xf32, #tpu.memory_space<vmem>>, vector<1x16x256xf32>
      %92 = vector.shape_cast %91 : vector<1x16x256xf32> to vector<16x256xf32>
      %93 = vector.shape_cast %90 : vector<16x256xf32> to vector<1x16x256xf32>
      tpu.vector_store %arg22[%c0_43, %c0_44, %c0_45], %93 {strides = array<i32>} : memref<1x16x256xf32, #tpu.memory_space<vmem>>, vector<1x16x256xf32>,
    } else {
    }
    return
  }
  func.func @transform_0(%arg0: i32, %arg1: i32) -> (i32, i32, i32) {
    %c0_i32 = arith.constant 0 : i32
    %c0_i32_0 = arith.constant 0 : i32
    %c0_i32_1 = arith.constant 0 : i32
    return %arg0, %c0_i32, %c0_i32_0 : i32, i32, i32
  }
  func.func @transform_1(%arg0: i32, %arg1: i32) -> (i32, i32, i32) {
    %c0_i32 = arith.constant 0 : i32
    %c0_i32_0 = arith.constant 0 : i32
    %c0_i32_1 = arith.constant 0 : i32
    return %arg0, %c0_i32, %c0_i32_0 : i32, i32, i32
  }
  func.func @transform_2(%arg0: i32, %arg1: i32) -> (i32, i32, i32) {
    %c0_i32 = arith.constant 0 : i32
    %c0_i32_0 = arith.constant 0 : i32
    %c0_i32_1 = arith.constant 0 : i32
    return %arg0, %c0_i32, %c0_i32_0 : i32, i32, i32
  }
  func.func @transform_3(%arg0: i32, %arg1: i32) -> (i32, i32) {
    %c0_i32 = arith.constant 0 : i32
    %c0_i32_0 = arith.constant 0 : i32
    %c0_i32_1 = arith.constant 0 : i32
    return %c0_i32, %c0_i32_0 : i32, i32
  }
  func.func @transform_4(%arg0: i32, %arg1: i32) -> (i32, i32) {
    %c0_i32 = arith.constant 0 : i32
    %c0_i32_0 = arith.constant 0 : i32
    %c0_i32_1 = arith.constant 0 : i32
    return %c0_i32, %c0_i32_0 : i32, i32
  }
  func.func @transform_5(%arg0: i32, %arg1: i32) -> (i32, i32) {
    %c0_i32 = arith.constant 0 : i32
    %c0_i32_0 = arith.constant 0 : i32
    %c0_i32_1 = arith.constant 0 : i32
    return %c0_i32, %c0_i32_0 : i32, i32
  }
  func.func @transform_6(%arg0: i32, %arg1: i32) -> (i32, i32) {
    %c0_i32 = arith.constant 0 : i32
    %c0_i32_0 = arith.constant 0 : i32
    %c0_i32_1 = arith.constant 0 : i32
    return %c0_i32, %c0_i32_0 : i32, i32
  }
  func.func @transform_7(%arg0: i32, %arg1: i32) -> (i32, i32) {
    %c0_i32 = arith.constant 0 : i32
    %c0_i32_0 = arith.constant 0 : i32
    %c0_i32_1 = arith.constant 0 : i32
    return %c0_i32, %c0_i32_0 : i32, i32
  }
  func.func @transform_8(%arg0: i32, %arg1: i32) -> (i32, i32) {
    %c0_i32 = arith.constant 0 : i32
    %c0_i32_0 = arith.constant 0 : i32
    %c0_i32_1 = arith.constant 0 : i32
    return %c0_i32, %c0_i32_0 : i32, i32
  }
  func.func @transform_9(%arg0: i32, %arg1: i32) -> (i32, i32) {
    %c0_i32 = arith.constant 0 : i32
    %c0_i32_0 = arith.constant 0 : i32
    %c0_i32_1 = arith.constant 0 : i32
    return %c0_i32, %c0_i32_0 : i32, i32
  }
  func.func @transform_10(%arg0: i32, %arg1: i32) -> (i32, i32) {
    %c0_i32 = arith.constant 0 : i32
    %c0_i32_0 = arith.constant 0 : i32
    %c0_i32_1 = arith.constant 0 : i32
    return %c0_i32, %c0_i32_0 : i32, i32
  }
  func.func @transform_11(%arg0: i32, %arg1: i32) -> (i32, i32) {
    %c0_i32 = arith.constant 0 : i32
    %c0_i32_0 = arith.constant 0 : i32
    %c0_i32_1 = arith.constant 0 : i32
    return %c0_i32, %c0_i32_0 : i32, i32
  }
  func.func @transform_12(%arg0: i32, %arg1: i32) -> (i32, i32) {
    %c0_i32 = arith.constant 0 : i32
    %c0_i32_0 = arith.constant 0 : i32
    %c0_i32_1 = arith.constant 0 : i32
    return %c0_i32, %c0_i32_0 : i32, i32
  }
  func.func @transform_13(%arg0: i32, %arg1: i32) -> (i32, i32) {
    %c0_i32 = arith.constant 0 : i32
    %c0_i32_0 = arith.constant 0 : i32
    %c0_i32_1 = arith.constant 0 : i32
    return %c0_i32, %c0_i32_0 : i32, i32
  }
  func.func @transform_14(%arg0: i32, %arg1: i32) -> (i32, i32) {
    %c0_i32 = arith.constant 0 : i32
    %c0_i32_0 = arith.constant 0 : i32
    return %c0_i32, %arg1 : i32, i32
  }
  func.func @transform_15(%arg0: i32, %arg1: i32) -> (i32, i32) {
    %c0_i32 = arith.constant 0 : i32
    %c0_i32_0 = arith.constant 0 : i32
    return %c0_i32, %arg1 : i32, i32
  }
  func.func @transform_16(%arg0: i32, %arg1: i32) -> (i32, i32) {
    %c0_i32 = arith.constant 0 : i32
    %c0_i32_0 = arith.constant 0 : i32
    return %arg1, %c0_i32 : i32, i32
  }
  func.func @transform_17(%arg0: i32, %arg1: i32) -> (i32, i32) {
    %c0_i32 = arith.constant 0 : i32
    %c0_i32_0 = arith.constant 0 : i32
    %c0_i32_1 = arith.constant 0 : i32
    return %c0_i32, %c0_i32_0 : i32, i32
  }
  func.func @transform_18(%arg0: i32, %arg1: i32) -> (i32, i32) {
    %c0_i32 = arith.constant 0 : i32
    %c0_i32_0 = arith.constant 0 : i32
    %c0_i32_1 = arith.constant 0 : i32
    return %c0_i32, %c0_i32_0 : i32, i32
  }
  func.func @transform_19(%arg0: i32, %arg1: i32) -> (i32, i32) {
    %c0_i32 = arith.constant 0 : i32
    %c0_i32_0 = arith.constant 0 : i32
    %c0_i32_1 = arith.constant 0 : i32
    return %c0_i32, %c0_i32_0 : i32, i32
  }
  func.func @transform_20(%arg0: i32, %arg1: i32) -> (i32, i32, i32) {
    %c0_i32 = arith.constant 0 : i32
    %c0_i32_0 = arith.constant 0 : i32
    %c0_i32_1 = arith.constant 0 : i32
    return %arg0, %c0_i32, %c0_i32_0 : i32, i32, i32
  }
}

</mosaic_0001>

<llo_original>
// kernel: resampler_forward.1
$region0: #{resampler_forward.1}
  #allocation0 [shape = 'u32[]', space=smem, size = 0x4, offset = 0x4, fixed_abs, tag = 'smem constant byte address 0x4 - core index']
  #allocation1 [shape = 'u32[144,128]{1,0:T(1,128)}', space=vmem, size = 0x12000, scoped, tag = 'internal scratch']
  #allocation2 [shape = 'bf16[128,256]{1,0:T(16,128)(2,1)}', space=vmem, size = 0x10000, scoped, tag = 'scratch operand']
  #allocation3 [shape = 'bf16[128,256]{1,0:T(16,128)(2,1)}', space=vmem, size = 0x10000, scoped, tag = 'scratch operand']
  #allocation4 [shape = 'f32[16,256]{1,0:T(8,128)}', space=vmem, size = 0x4000, scoped, tag = 'scratch operand']
  #allocation5 [shape = 'f32[16,256]{1,0:T(8,128)}', space=vmem, size = 0x4000, scoped, tag = 'scratch operand']
  %s0 = inlined_call_operand.vmem [shape: f32[2,128,256], index: 0, kind: input, shape index: {}]
  %s1 = inlined_call_operand.vmem [shape: bf16[2,128,256], index: 1, kind: input, shape index: {}]
  %s2 = inlined_call_operand.vmem [shape: f32[2,1,128], index: 2, kind: input, shape index: {}]
  %s3 = inlined_call_operand.vmem [shape: bf16[16,256], index: 3, kind: input, shape index: {}]
  %s4 = inlined_call_operand.vmem [shape: f32[1,256], index: 4, kind: input, shape index: {}]
  %s5 = inlined_call_operand.vmem [shape: f32[1,256], index: 5, kind: input, shape index: {}]
  %s6 = inlined_call_operand.vmem [shape: bf16[256,256], index: 6, kind: input, shape index: {}]
  %s7 = inlined_call_operand.vmem [shape: f32[1,256], index: 7, kind: input, shape index: {}]
  %s8 = inlined_call_operand.hbm [shape: bf16[256,256], index: 8, kind: input, shape index: {}]
  %s9 = inlined_call_operand.vmem [shape: f32[1,256], index: 9, kind: input, shape index: {}]
  %s10 = inlined_call_operand.hbm [shape: bf16[256,256], index: 10, kind: input, shape index: {}]
  %s11 = inlined_call_operand.vmem [shape: f32[1,256], index: 11, kind: input, shape index: {}]
  %s12 = inlined_call_operand.vmem [shape: f32[1,256], index: 12, kind: input, shape index: {}]
  %s13 = inlined_call_operand.vmem [shape: f32[1,256], index: 13, kind: input, shape index: {}]
  %s14 = inlined_call_operand.hbm [shape: bf16[256,512], index: 14, kind: input, shape index: {}]
  %s15 = inlined_call_operand.vmem [shape: f32[1,512], index: 15, kind: input, shape index: {}]
  %s16 = inlined_call_operand.hbm [shape: bf16[512,256], index: 16, kind: input, shape index: {}]
  %s17 = inlined_call_operand.vmem [shape: f32[1,256], index: 17, kind: input, shape index: {}]
  %s18 = inlined_call_operand.vmem [shape: f32[1,256], index: 18, kind: input, shape index: {}]
  %s19 = inlined_call_operand.vmem [shape: f32[1,256], index: 19, kind: input, shape index: {}]
  %s20 = inlined_call_operand.hbm [shape: f32[2,16,256], index: 20, kind: output, shape index: {}]
  %s21 = sld [smem:[#allocation0]]
  $region144: #{resampler_forward.1} parent=0
    _
  %s23 = ssub.s32 1, %s21
  %s24 = scalar_select 0, %s23, %s21
  $region1: #{resampler_forward.1} parent=0
    #allocation6 [shape = 'u8[131072]{0}', space=vmem, size = 0x20000, scoped, tag = 'input window, operand 8, single buffered']
    #allocation7 [shape = 's32[2]{0}', space=sflag, size = 0x8, scoped, tag = 'scoped memory for resampler_forward.1']
    #allocation8 [shape = 's32[2]{0}', space=sflag, size = 0x8, scoped, tag = 'scoped memory for resampler_forward.1']
    #allocation9 [shape = 'u8[131072]{0}', space=vmem, size = 0x20000, scoped, tag = 'input window, operand 10, single buffered']
    #allocation10 [shape = 's32[1]{0}', space=sflag, size = 0x4, scoped, tag = 'scoped memory for resampler_forward.1']
    #allocation11 [shape = 'u8[262144]{0}', space=vmem, size = 0x40000, scoped, tag = 'input window, operand 14']
    #allocation12 [shape = 'u8[262144]{0}', space=vmem, size = 0x40000, scoped, tag = 'input window, operand 16']
    #allocation13 [shape = 'u8[32768]{0}', space=vmem, size = 0x8000, scoped, tag = 'output window, operand 0']
    %25 = vsyncpa [#allocation7], 0
    %26 = vsyncpa [#allocation10], 0
    %27 = vsyncpa [#allocation8], 0
    %s28 = scalar_lea.sflag [#allocation8], 1
    %29 = vsyncpa %s28, 0
    loop: start=0, step=1, limit=6
    $region2: #{resampler_forward.1} parent=1 // loop_pre_header
      _
    $region3: #{resampler_forward.1} parent=1 // loop_header
      %s31 = sphi 0, %s35
      %p32 = scmp.ge.s32.totalorder %s31, 6
      %s38 = sphi 0, %s50
      %s39 = sphi 0, %s46
      %s40 = sphi 0, %s38
      %s41 = sphi 0, %s39
      %s42 = sphi 0, %s40
      %s43 = sphi 0, %s41
      %s53 = sphi 0, %s55
      %s56 = sphi 0, %s53
      %s57 = sphi 0, %s56
      %s73 = sphi 0, %s57
      %s79 = sphi 0, %s81
      %s82 = sphi 0, %s79
      %s83 = sphi 0, %s82
      %s99 = sphi 0, %s83
      %s105 = sphi 0, %s107
      %s108 = sphi 0, %s105
      %s109 = sphi 0, %s108
      %s125 = sphi 0, %s109
      %s129 = sphi 0, %s129
      %s131 = sphi 0, %s129
      %s132 = sphi 0, %s131
      %s146 = sphi 0, %s132
      %s150 = sphi 0, %s150
      %s152 = sphi 0, %s150
      %s153 = sphi 0, %s152
      %s167 = sphi 0, %s153
      %s171 = sphi 0, %s171
      %s173 = sphi 0, %s171
      %s174 = sphi 0, %s173
      %s188 = sphi 0, %s174
      %s192 = sphi 0, %s192
      %s194 = sphi 0, %s192
      %s195 = sphi 0, %s194
      %s209 = sphi 0, %s195
      %s213 = sphi 0, %s213
      %s215 = sphi 0, %s213
      %s216 = sphi 0, %s215
      %s230 = sphi 0, %s216
      %s234 = sphi 0, %s234
      %s236 = sphi 0, %s234
      %s237 = sphi 0, %s236
      %s251 = sphi 0, %s237
      %s255 = sphi 0, %s255
      %s257 = sphi 0, %s255
      %s258 = sphi 0, %s257
      %s272 = sphi 0, %s258
      %s276 = sphi 0, %s276
      %s278 = sphi 0, %s276
      %s279 = sphi 0, %s278
      %s293 = sphi 0, %s279
      %s297 = sphi 0, %s297
      %s299 = sphi 0, %s297
      %s300 = sphi 0, %s299
      %s314 = sphi 0, %s300
      %s318 = sphi 0, %s318
      %s320 = sphi 0, %s318
      %s321 = sphi 0, %s320
      %s335 = sphi 0, %s321
      %s339 = sphi 0, %s339
      %s341 = sphi 0, %s339
      %s342 = sphi 0, %s341
      %s356 = sphi 0, %s342
      %s362 = sphi 0, %s364
      %s365 = sphi 0, %s362
      %s366 = sphi 0, %s365
      %s382 = sphi 0, %s366
      %s388 = sphi 0, %s390
      %s391 = sphi 0, %s388
      %s392 = sphi 0, %s391
      %s408 = sphi 0, %s392
      %s414 = sphi 0, %s416
      %s417 = sphi 0, %s414
      %s418 = sphi 0, %s417
      %s434 = sphi 0, %s418
      %s438 = sphi 0, %s438
      %s440 = sphi 0, %s438
      %s441 = sphi 0, %s440
      %s455 = sphi 0, %s441
      %s459 = sphi 0, %s459
      %s461 = sphi 0, %s459
      %s462 = sphi 0, %s461
      %s476 = sphi 0, %s462
      %s480 = sphi 0, %s480
      %s482 = sphi 0, %s480
      %s483 = sphi 0, %s482
      %s497 = sphi 0, %s483
      %s503 = sphi 0, %s505
      %s506 = sphi 0, %s503
      %s507 = sphi 0, %s506
      %s523 = sphi 0, %s507
    $region4: #{resampler_forward.1} parent=1 // loop_header_branch
      %34 = sbr.rel (%p32) target = $region8
    $region5: #{resampler_forward.1} parent=1 // loop_body
      %s36 = ssub.s32 %s31, 1
      %s37 = ssub.s32 %s31, 2
      %s44 = sadd.s32 1, %s39
      %p45 = scmp.ge.s32.totalorder %s44, 2
      %s46 = scalar_select %p45, 0, %s44
      %s47 = sadd.s32 1, %s38
      %s48 = scalar_select %p45, %s47, %s38
      %p49 = scmp.ge.s32.totalorder %s48, 2
      %s50 = scalar_select %p49, 0, %s48
      %s51 = ssub.s32 %s38, %s50
      %p52 = scmp.eq.s32.totalorder %s51, 0
      %s54 = sadd.s32 %s53, 1
      %s55 = scalar_select %p52, %s53, %s54
      %p58 = pneg %p52
      %p59 = scmp.eq.s32.totalorder %s31, 3
      %p60 = por %p58, %p59
      %p61 = scmp.ne.s32.totalorder %s53, %s56
      %p62 = scmp.eq.s32.totalorder %s31, 0
      %p63 = por %p61, %p62
      %p64 = scmp.ne.s32.totalorder %s53, %s56
      %p65 = scmp.eq.s32.totalorder %s36, 3
      %p66 = por %p64, %p65
      %p67 = scmp.ne.s32.totalorder %s56, %s57
      %p68 = scmp.eq.s32.totalorder %s36, 0
      %p69 = por %p67, %p68
      %p70 = scmp.ne.s32.totalorder %s56, %s57
      %p71 = scmp.eq.s32.totalorder %s37, 3
      %p72 = por %p70, %p71
      %p74 = scmp.ne.s32.totalorder %s57, %s73
      %p75 = scmp.eq.s32.totalorder %s37, 0
      %p76 = por %p74, %p75
      %s77 = ssub.s32 %s38, %s50
      %p78 = scmp.eq.s32.totalorder %s77, 0
      %s80 = sadd.s32 %s79, 1
      %s81 = scalar_select %p78, %s79, %s80
      %p84 = pneg %p78
      %p85 = scmp.eq.s32.totalorder %s31, 3
      %p86 = por %p84, %p85
      %p87 = scmp.ne.s32.totalorder %s79, %s82
      %p88 = scmp.eq.s32.totalorder %s31, 0
      %p89 = por %p87, %p88
      %p90 = scmp.ne.s32.totalorder %s79, %s82
      %p91 = scmp.eq.s32.totalorder %s36, 3
      %p92 = por %p90, %p91
      %p93 = scmp.ne.s32.totalorder %s82, %s83
      %p94 = scmp.eq.s32.totalorder %s36, 0
      %p95 = por %p93, %p94
      %p96 = scmp.ne.s32.totalorder %s82, %s83
      %p97 = scmp.eq.s32.totalorder %s37, 3
      %p98 = por %p96, %p97
      %p100 = scmp.ne.s32.totalorder %s83, %s99
      %p101 = scmp.eq.s32.totalorder %s37, 0
      %p102 = por %p100, %p101
      %s103 = ssub.s32 %s38, %s50
      %p104 = scmp.eq.s32.totalorder %s103, 0
      %s106 = sadd.s32 %s105, 1
      %s107 = scalar_select %p104, %s105, %s106
      %p110 = pneg %p104
      %p111 = scmp.eq.s32.totalorder %s31, 3
      %p112 = por %p110, %p111
      %p113 = scmp.ne.s32.totalorder %s105, %s108
      %p114 = scmp.eq.s32.totalorder %s31, 0
      %p115 = por %p113, %p114
      %p116 = scmp.ne.s32.totalorder %s105, %s108
      %p117 = scmp.eq.s32.totalorder %s36, 3
      %p118 = por %p116, %p117
      %p119 = scmp.ne.s32.totalorder %s108, %s109
      %p120 = scmp.eq.s32.totalorder %s36, 0
      %p121 = por %p119, %p120
      %p122 = scmp.ne.s32.totalorder %s108, %s109
      %p123 = scmp.eq.s32.totalorder %s37, 3
      %p124 = por %p122, %p123
      %p126 = scmp.ne.s32.totalorder %s109, %s125
      %p127 = scmp.eq.s32.totalorder %s37, 0
      %p128 = por %p126, %p127
      %s130 = sadd.s32 %s129, 1
      %p133 = scmp.eq.s32.totalorder %s31, 3
      %p134 = scmp.ne.s32.totalorder %s129, %s131
      %p135 = scmp.eq.s32.totalorder %s31, 0
      %p136 = por %p134, %p135
      %p137 = scmp.ne.s32.totalorder %s129, %s131
      %p138 = scmp.eq.s32.totalorder %s36, 3
      %p139 = por %p137, %p138
      %p140 = scmp.ne.s32.totalorder %s131, %s132
      %p141 = scmp.eq.s32.totalorder %s36, 0
      %p142 = por %p140, %p141
      %p143 = scmp.ne.s32.totalorder %s131, %s132
      %p144 = scmp.eq.s32.totalorder %s37, 3
      %p145 = por %p143, %p144
      %p147 = scmp.ne.s32.totalorder %s132, %s146
      %p148 = scmp.eq.s32.totalorder %s37, 0
      %p149 = por %p147, %p148
      %s151 = sadd.s32 %s150, 1
      %p154 = scmp.eq.s32.totalorder %s31, 3
      %p155 = scmp.ne.s32.totalorder %s150, %s152
      %p156 = scmp.eq.s32.totalorder %s31, 0
      %p157 = por %p155, %p156
      %p158 = scmp.ne.s32.totalorder %s150, %s152
      %p159 = scmp.eq.s32.totalorder %s36, 3
      %p160 = por %p158, %p159
      %p161 = scmp.ne.s32.totalorder %s152, %s153
      %p162 = scmp.eq.s32.totalorder %s36, 0
      %p163 = por %p161, %p162
      %p164 = scmp.ne.s32.totalorder %s152, %s153
      %p165 = scmp.eq.s32.totalorder %s37, 3
      %p166 = por %p164, %p165
      %p168 = scmp.ne.s32.totalorder %s153, %s167
      %p169 = scmp.eq.s32.totalorder %s37, 0
      %p170 = por %p168, %p169
      %s172 = sadd.s32 %s171, 1
      %p175 = scmp.eq.s32.totalorder %s31, 3
      %p176 = scmp.ne.s32.totalorder %s171, %s173
      %p177 = scmp.eq.s32.totalorder %s31, 0
      %p178 = por %p176, %p177
      %p179 = scmp.ne.s32.totalorder %s171, %s173
      %p180 = scmp.eq.s32.totalorder %s36, 3
      %p181 = por %p179, %p180
      %p182 = scmp.ne.s32.totalorder %s173, %s174
      %p183 = scmp.eq.s32.totalorder %s36, 0
      %p184 = por %p182, %p183
      %p185 = scmp.ne.s32.totalorder %s173, %s174
      %p186 = scmp.eq.s32.totalorder %s37, 3
      %p187 = por %p185, %p186
      %p189 = scmp.ne.s32.totalorder %s174, %s188
      %p190 = scmp.eq.s32.totalorder %s37, 0
      %p191 = por %p189, %p190
      %s193 = sadd.s32 %s192, 1
      %p196 = scmp.eq.s32.totalorder %s31, 3
      %p197 = scmp.ne.s32.totalorder %s192, %s194
      %p198 = scmp.eq.s32.totalorder %s31, 0
      %p199 = por %p197, %p198
      %p200 = scmp.ne.s32.totalorder %s192, %s194
      %p201 = scmp.eq.s32.totalorder %s36, 3
      %p202 = por %p200, %p201
      %p203 = scmp.ne.s32.totalorder %s194, %s195
      %p204 = scmp.eq.s32.totalorder %s36, 0
      %p205 = por %p203, %p204
      %p206 = scmp.ne.s32.totalorder %s194, %s195
      %p207 = scmp.eq.s32.totalorder %s37, 3
      %p208 = por %p206, %p207
      %p210 = scmp.ne.s32.totalorder %s195, %s209
      %p211 = scmp.eq.s32.totalorder %s37, 0
      %p212 = por %p210, %p211
      %s214 = sadd.s32 %s213, 1
      %p217 = scmp.eq.s32.totalorder %s31, 3
      %p218 = scmp.ne.s32.totalorder %s213, %s215
      %p219 = scmp.eq.s32.totalorder %s31, 0
      %p220 = por %p218, %p219
      %p221 = scmp.ne.s32.totalorder %s213, %s215
      %p222 = scmp.eq.s32.totalorder %s36, 3
      %p223 = por %p221, %p222
      %p224 = scmp.ne.s32.totalorder %s215, %s216
      %p225 = scmp.eq.s32.totalorder %s36, 0
      %p226 = por %p224, %p225
      %p227 = scmp.ne.s32.totalorder %s215, %s216
      %p228 = scmp.eq.s32.totalorder %s37, 3
      %p229 = por %p227, %p228
      %p231 = scmp.ne.s32.totalorder %s216, %s230
      %p232 = scmp.eq.s32.totalorder %s37, 0
      %p233 = por %p231, %p232
      %s235 = sadd.s32 %s234, 1
      %p238 = scmp.eq.s32.totalorder %s31, 3
      %p239 = scmp.ne.s32.totalorder %s234, %s236
      %p240 = scmp.eq.s32.totalorder %s31, 0
      %p241 = por %p239, %p240
      %p242 = scmp.ne.s32.totalorder %s234, %s236
      %p243 = scmp.eq.s32.totalorder %s36, 3
      %p244 = por %p242, %p243
      %p245 = scmp.ne.s32.totalorder %s236, %s237
      %p246 = scmp.eq.s32.totalorder %s36, 0
      %p247 = por %p245, %p246
      %p248 = scmp.ne.s32.totalorder %s236, %s237
      %p249 = scmp.eq.s32.totalorder %s37, 3
      %p250 = por %p248, %p249
      %p252 = scmp.ne.s32.totalorder %s237, %s251
      %p253 = scmp.eq.s32.totalorder %s37, 0
      %p254 = por %p252, %p253
      %s256 = sadd.s32 %s255, 1
      %p259 = scmp.eq.s32.totalorder %s31, 3
      %p260 = scmp.ne.s32.totalorder %s255, %s257
      %p261 = scmp.eq.s32.totalorder %s31, 0
      %p262 = por %p260, %p261
      %p263 = scmp.ne.s32.totalorder %s255, %s257
      %p264 = scmp.eq.s32.totalorder %s36, 3
      %p265 = por %p263, %p264
      %p266 = scmp.ne.s32.totalorder %s257, %s258
      %p267 = scmp.eq.s32.totalorder %s36, 0
      %p268 = por %p266, %p267
      %p269 = scmp.ne.s32.totalorder %s257, %s258
      %p270 = scmp.eq.s32.totalorder %s37, 3
      %p271 = por %p269, %p270
      %p273 = scmp.ne.s32.totalorder %s258, %s272
      %p274 = scmp.eq.s32.totalorder %s37, 0
      %p275 = por %p273, %p274
      %s277 = sadd.s32 %s276, 1
      %p280 = scmp.eq.s32.totalorder %s31, 3
      %p281 = scmp.ne.s32.totalorder %s276, %s278
      %p282 = scmp.eq.s32.totalorder %s31, 0
      %p283 = por %p281, %p282
      %p284 = scmp.ne.s32.totalorder %s276, %s278
      %p285 = scmp.eq.s32.totalorder %s36, 3
      %p286 = por %p284, %p285
      %p287 = scmp.ne.s32.totalorder %s278, %s279
      %p288 = scmp.eq.s32.totalorder %s36, 0
      %p289 = por %p287, %p288
      %p290 = scmp.ne.s32.totalorder %s278, %s279
      %p291 = scmp.eq.s32.totalorder %s37, 3
      %p292 = por %p290, %p291
      %p294 = scmp.ne.s32.totalorder %s279, %s293
      %p295 = scmp.eq.s32.totalorder %s37, 0
      %p296 = por %p294, %p295
      %s298 = sadd.s32 %s297, 1
      %p301 = scmp.eq.s32.totalorder %s31, 3
      %p302 = scmp.ne.s32.totalorder %s297, %s299
      %p303 = scmp.eq.s32.totalorder %s31, 0
      %p304 = por %p302, %p303
      %p305 = scmp.ne.s32.totalorder %s297, %s299
      %p306 = scmp.eq.s32.totalorder %s36, 3
      %p307 = por %p305, %p306
      %p308 = scmp.ne.s32.totalorder %s299, %s300
      %p309 = scmp.eq.s32.totalorder %s36, 0
      %p310 = por %p308, %p309
      %p311 = scmp.ne.s32.totalorder %s299, %s300
      %p312 = scmp.eq.s32.totalorder %s37, 3
      %p313 = por %p311, %p312
      %p315 = scmp.ne.s32.totalorder %s300, %s314
      %p316 = scmp.eq.s32.totalorder %s37, 0
      %p317 = por %p315, %p316
      %s319 = sadd.s32 %s318, 1
      %p322 = scmp.eq.s32.totalorder %s31, 3
      %p323 = scmp.ne.s32.totalorder %s318, %s320
      %p324 = scmp.eq.s32.totalorder %s31, 0
      %p325 = por %p323, %p324
      %p326 = scmp.ne.s32.totalorder %s318, %s320
      %p327 = scmp.eq.s32.totalorder %s36, 3
      %p328 = por %p326, %p327
      %p329 = scmp.ne.s32.totalorder %s320, %s321
      %p330 = scmp.eq.s32.totalorder %s36, 0
      %p331 = por %p329, %p330
      %p332 = scmp.ne.s32.totalorder %s320, %s321
      %p333 = scmp.eq.s32.totalorder %s37, 3
      %p334 = por %p332, %p333
      %p336 = scmp.ne.s32.totalorder %s321, %s335
      %p337 = scmp.eq.s32.totalorder %s37, 0
      %p338 = por %p336, %p337
      %s340 = sadd.s32 %s339, 1
      %p343 = scmp.eq.s32.totalorder %s31, 3
      %p344 = scmp.ne.s32.totalorder %s339, %s341
      %p345 = scmp.eq.s32.totalorder %s31, 0
      %p346 = por %p344, %p345
      %p347 = scmp.ne.s32.totalorder %s339, %s341
      %p348 = scmp.eq.s32.totalorder %s36, 3
      %p349 = por %p347, %p348
      %p350 = scmp.ne.s32.totalorder %s341, %s342
      %p351 = scmp.eq.s32.totalorder %s36, 0
      %p352 = por %p350, %p351
      %p353 = scmp.ne.s32.totalorder %s341, %s342
      %p354 = scmp.eq.s32.totalorder %s37, 3
      %p355 = por %p353, %p354
      %p357 = scmp.ne.s32.totalorder %s342, %s356
      %p358 = scmp.eq.s32.totalorder %s37, 0
      %p359 = por %p357, %p358
      %s360 = ssub.s32 %s39, %s46
      %p361 = scmp.eq.s32.totalorder %s360, 0
      %s363 = sadd.s32 %s362, 1
      %s364 = scalar_select %p361, %s362, %s363
      %p367 = pneg %p361
      %p368 = scmp.eq.s32.totalorder %s31, 3
      %p369 = por %p367, %p368
      %p370 = scmp.ne.s32.totalorder %s362, %s365
      %p371 = scmp.eq.s32.totalorder %s31, 0
      %p372 = por %p370, %p371
      %p373 = scmp.ne.s32.totalorder %s362, %s365
      %p374 = scmp.eq.s32.totalorder %s36, 3
      %p375 = por %p373, %p374
      %p376 = scmp.ne.s32.totalorder %s365, %s366
      %p377 = scmp.eq.s32.totalorder %s36, 0
      %p378 = por %p376, %p377
      %p379 = scmp.ne.s32.totalorder %s365, %s366
      %p380 = scmp.eq.s32.totalorder %s37, 3
      %p381 = por %p379, %p380
      %p383 = scmp.ne.s32.totalorder %s366, %s382
      %p384 = scmp.eq.s32.totalorder %s37, 0
      %p385 = por %p383, %p384
      %s386 = ssub.s32 %s39, %s46
      %p387 = scmp.eq.s32.totalorder %s386, 0
      %s389 = sadd.s32 %s388, 1
      %s390 = scalar_select %p387, %s388, %s389
      %p393 = pneg %p387
      %p394 = scmp.eq.s32.totalorder %s31, 3
      %p395 = por %p393, %p394
      %p396 = scmp.ne.s32.totalorder %s388, %s391
      %p397 = scmp.eq.s32.totalorder %s31, 0
      %p398 = por %p396, %p397
      %p399 = scmp.ne.s32.totalorder %s388, %s391
      %p400 = scmp.eq.s32.totalorder %s36, 3
      %p401 = por %p399, %p400
      %p402 = scmp.ne.s32.totalorder %s391, %s392
      %p403 = scmp.eq.s32.totalorder %s36, 0
      %p404 = por %p402, %p403
      %p405 = scmp.ne.s32.totalorder %s391, %s392
      %p406 = scmp.eq.s32.totalorder %s37, 3
      %p407 = por %p405, %p406
      %p409 = scmp.ne.s32.totalorder %s392, %s408
      %p410 = scmp.eq.s32.totalorder %s37, 0
      %p411 = por %p409, %p410
      %s412 = ssub.s32 %s39, %s46
      %p413 = scmp.eq.s32.totalorder %s412, 0
      %s415 = sadd.s32 %s414, 1
      %s416 = scalar_select %p413, %s414, %s415
      %p419 = pneg %p413
      %p420 = scmp.eq.s32.totalorder %s31, 3
      %p421 = por %p419, %p420
      %p422 = scmp.ne.s32.totalorder %s414, %s417
      %p423 = scmp.eq.s32.totalorder %s31, 0
      %p424 = por %p422, %p423
      %p425 = scmp.ne.s32.totalorder %s414, %s417
      %p426 = scmp.eq.s32.totalorder %s36, 3
      %p427 = por %p425, %p426
      %p428 = scmp.ne.s32.totalorder %s417, %s418
      %p429 = scmp.eq.s32.totalorder %s36, 0
      %p430 = por %p428, %p429
      %p431 = scmp.ne.s32.totalorder %s417, %s418
      %p432 = scmp.eq.s32.totalorder %s37, 3
      %p433 = por %p431, %p432
      %p435 = scmp.ne.s32.totalorder %s418, %s434
      %p436 = scmp.eq.s32.totalorder %s37, 0
      %p437 = por %p435, %p436
      %s439 = sadd.s32 %s438, 1
      %p442 = scmp.eq.s32.totalorder %s31, 3
      %p443 = scmp.ne.s32.totalorder %s438, %s440
      %p444 = scmp.eq.s32.totalorder %s31, 0
      %p445 = por %p443, %p444
      %p446 = scmp.ne.s32.totalorder %s438, %s440
      %p447 = scmp.eq.s32.totalorder %s36, 3
      %p448 = por %p446, %p447
      %p449 = scmp.ne.s32.totalorder %s440, %s441
      %p450 = scmp.eq.s32.totalorder %s36, 0
      %p451 = por %p449, %p450
      %p452 = scmp.ne.s32.totalorder %s440, %s441
      %p453 = scmp.eq.s32.totalorder %s37, 3
      %p454 = por %p452, %p453
      %p456 = scmp.ne.s32.totalorder %s441, %s455
      %p457 = scmp.eq.s32.totalorder %s37, 0
      %p458 = por %p456, %p457
      %s460 = sadd.s32 %s459, 1
      %p463 = scmp.eq.s32.totalorder %s31, 3
      %p464 = scmp.ne.s32.totalorder %s459, %s461
      %p465 = scmp.eq.s32.totalorder %s31, 0
      %p466 = por %p464, %p465
      %p467 = scmp.ne.s32.totalorder %s459, %s461
      %p468 = scmp.eq.s32.totalorder %s36, 3
      %p469 = por %p467, %p468
      %p470 = scmp.ne.s32.totalorder %s461, %s462
      %p471 = scmp.eq.s32.totalorder %s36, 0
      %p472 = por %p470, %p471
      %p473 = scmp.ne.s32.totalorder %s461, %s462
      %p474 = scmp.eq.s32.totalorder %s37, 3
      %p475 = por %p473, %p474
      %p477 = scmp.ne.s32.totalorder %s462, %s476
      %p478 = scmp.eq.s32.totalorder %s37, 0
      %p479 = por %p477, %p478
      %s481 = sadd.s32 %s480, 1
      %p484 = scmp.eq.s32.totalorder %s31, 3
      %p485 = scmp.ne.s32.totalorder %s480, %s482
      %p486 = scmp.eq.s32.totalorder %s31, 0
      %p487 = por %p485, %p486
      %p488 = scmp.ne.s32.totalorder %s480, %s482
      %p489 = scmp.eq.s32.totalorder %s36, 3
      %p490 = por %p488, %p489
      %p491 = scmp.ne.s32.totalorder %s482, %s483
      %p492 = scmp.eq.s32.totalorder %s36, 0
      %p493 = por %p491, %p492
      %p494 = scmp.ne.s32.totalorder %s482, %s483
      %p495 = scmp.eq.s32.totalorder %s37, 3
      %p496 = por %p494, %p495
      %p498 = scmp.ne.s32.totalorder %s483, %s497
      %p499 = scmp.eq.s32.totalorder %s37, 0
      %p500 = por %p498, %p499
      %s501 = ssub.s32 %s38, %s50
      %p502 = scmp.eq.s32.totalorder %s501, 0
      %s504 = sadd.s32 %s503, 1
      %s505 = scalar_select %p502, %s503, %s504
      %p508 = pneg %p502
      %p509 = scmp.eq.s32.totalorder %s31, 3
      %p510 = por %p508, %p509
      %p511 = scmp.ne.s32.totalorder %s503, %s506
      %p512 = scmp.eq.s32.totalorder %s31, 0
      %p513 = por %p511, %p512
      %p514 = scmp.ne.s32.totalorder %s503, %s506
      %p515 = scmp.eq.s32.totalorder %s36, 3
      %p516 = por %p514, %p515
      %p517 = scmp.ne.s32.totalorder %s506, %s507
      %p518 = scmp.eq.s32.totalorder %s36, 0
      %p519 = por %p517, %p518
      %p520 = scmp.ne.s32.totalorder %s506, %s507
      %p521 = scmp.eq.s32.totalorder %s37, 3
      %p522 = por %p520, %p521
      %p524 = scmp.ne.s32.totalorder %s507, %s523
      %p525 = scmp.eq.s32.totalorder %s37, 0
      %p526 = por %p524, %p525
      %p527 = scmp.le.s32.totalorder 1, %s31
      %p528 = scmp.lt.s32.totalorder %s31, 5
      %p529 = pnand %p527, %p528
      %p530 = pneg %p529
      // Predicated region
      $region9: #{resampler_forward.1} parent=5 // pred_check
        _
      $region10: #{resampler_forward.1} parent=5 // pred_check_branch
        %532 = sbr.rel (%p529) target = $region12
      $region11: #{resampler_forward.1} parent=5 // pred_region
        %s533 = ssub.s32 %s31, 1
        // Predicated region
        $region13: #{resampler_forward.1} parent=11 // pred_check
          %p534 = pneg %p142
        $region14: #{resampler_forward.1} parent=11 // pred_check_branch
          %536 = sbr.rel (%p534) target = $region16
        $region15: #{resampler_forward.1} parent=11 // pred_region
          _
        $region16: #{resampler_forward.1} parent=11 // pred_fallthru
          _
        // Predicated region
        $region17: #{resampler_forward.1} parent=11 // pred_check
          %p537 = pneg %p163
        $region18: #{resampler_forward.1} parent=11 // pred_check_branch
          %539 = sbr.rel (%p537) target = $region20
        $region19: #{resampler_forward.1} parent=11 // pred_region
          _
        $region20: #{resampler_forward.1} parent=11 // pred_fallthru
          _
        // Predicated region
        $region21: #{resampler_forward.1} parent=11 // pred_check
          %p540 = pneg %p184
        $region22: #{resampler_forward.1} parent=11 // pred_check_branch
          %542 = sbr.rel (%p540) target = $region24
        $region23: #{resampler_forward.1} parent=11 // pred_region
          _
        $region24: #{resampler_forward.1} parent=11 // pred_fallthru
          _
        // Predicated region
        $region25: #{resampler_forward.1} parent=11 // pred_check
          %p543 = pneg %p205
        $region26: #{resampler_forward.1} parent=11 // pred_check_branch
          %545 = sbr.rel (%p543) target = $region28
        $region27: #{resampler_forward.1} parent=11 // pred_region
          _
        $region28: #{resampler_forward.1} parent=11 // pred_fallthru
          _
        // Predicated region
        $region29: #{resampler_forward.1} parent=11 // pred_check
          %p546 = pneg %p226
        $region30: #{resampler_forward.1} parent=11 // pred_check_branch
          %548 = sbr.rel (%p546) target = $region32
        $region31: #{resampler_forward.1} parent=11 // pred_region
          _
        $region32: #{resampler_forward.1} parent=11 // pred_fallthru
          _
        // Predicated region
        $region33: #{resampler_forward.1} parent=11 // pred_check
          %p549 = pneg %p247
        $region34: #{resampler_forward.1} parent=11 // pred_check_branch
          %551 = sbr.rel (%p549) target = $region36
        $region35: #{resampler_forward.1} parent=11 // pred_region
          %s553 = ssub.s32 4096, 4096
          %554 = vsyncadd [#allocation7], %s553
          %s555 = sshll.u32 [#allocation6], 4
          %s556 = int_to_ptr.vmem [resolvable:$true] %s555
          %561 = dma.hbm_to_vmem [thread:$0]  %s8, 4096, %s556, [#allocation7], 128, 128, 8
        $region36: #{resampler_forward.1} parent=11 // pred_fallthru
          _
        // Predicated region
        $region37: #{resampler_forward.1} parent=11 // pred_check
          %p562 = pneg %p268
        $region38: #{resampler_forward.1} parent=11 // pred_check_branch
          %564 = sbr.rel (%p562) target = $region40
        $region39: #{resampler_forward.1} parent=11 // pred_region
          _
        $region40: #{resampler_forward.1} parent=11 // pred_fallthru
          _
        // Predicated region
        $region41: #{resampler_forward.1} parent=11 // pred_check
          %p565 = pneg %p289
        $region42: #{resampler_forward.1} parent=11 // pred_check_branch
          %567 = sbr.rel (%p565) target = $region44
        $region43: #{resampler_forward.1} parent=11 // pred_region
          %s569 = ssub.s32 4096, 4096
          %570 = vsyncadd [#allocation10], %s569
          %s571 = sshll.u32 [#allocation9], 4
          %s572 = int_to_ptr.vmem [resolvable:$true] %s571
          %577 = dma.hbm_to_vmem [thread:$0]  %s10, 4096, %s572, [#allocation10], 128, 128, 8
        $region44: #{resampler_forward.1} parent=11 // pred_fallthru
          _
        // Predicated region
        $region45: #{resampler_forward.1} parent=11 // pred_check
          %p578 = pneg %p310
        $region46: #{resampler_forward.1} parent=11 // pred_check_branch
          %580 = sbr.rel (%p578) target = $region48
        $region47: #{resampler_forward.1} parent=11 // pred_region
          _
        $region48: #{resampler_forward.1} parent=11 // pred_fallthru
          _
        // Predicated region
        $region49: #{resampler_forward.1} parent=11 // pred_check
          %p581 = pneg %p331
        $region50: #{resampler_forward.1} parent=11 // pred_check_branch
          %583 = sbr.rel (%p581) target = $region52
        $region51: #{resampler_forward.1} parent=11 // pred_region
          _
        $region52: #{resampler_forward.1} parent=11 // pred_fallthru
          _
        // Predicated region
        $region53: #{resampler_forward.1} parent=11 // pred_check
          %p584 = pneg %p352
        $region54: #{resampler_forward.1} parent=11 // pred_check_branch
          %586 = sbr.rel (%p584) target = $region56
        $region55: #{resampler_forward.1} parent=11 // pred_region
          _
        $region56: #{resampler_forward.1} parent=11 // pred_fallthru
          _
        // Predicated region
        $region57: #{resampler_forward.1} parent=11 // pred_check
          %p587 = pneg %p451
        $region58: #{resampler_forward.1} parent=11 // pred_check_branch
          %589 = sbr.rel (%p587) target = $region60
        $region59: #{resampler_forward.1} parent=11 // pred_region
          _
        $region60: #{resampler_forward.1} parent=11 // pred_fallthru
          _
        // Predicated region
        $region61: #{resampler_forward.1} parent=11 // pred_check
          %p590 = pneg %p472
        $region62: #{resampler_forward.1} parent=11 // pred_check_branch
          %592 = sbr.rel (%p590) target = $region64
        $region63: #{resampler_forward.1} parent=11 // pred_region
          _
        $region64: #{resampler_forward.1} parent=11 // pred_fallthru
          _
        // Predicated region
        $region65: #{resampler_forward.1} parent=11 // pred_check
          %p593 = pneg %p493
        $region66: #{resampler_forward.1} parent=11 // pred_check_branch
          %595 = sbr.rel (%p593) target = $region68
        $region67: #{resampler_forward.1} parent=11 // pred_region
          _
        $region68: #{resampler_forward.1} parent=11 // pred_fallthru
          _
      $region12: #{resampler_forward.1} parent=5 // pred_fallthru
        _
      %p596 = scmp.lt.s32.totalorder %s31, 4
      // Predicated region
      $region69: #{resampler_forward.1} parent=5 // pred_check
        %p597 = pneg %p596
      $region70: #{resampler_forward.1} parent=5 // pred_check_branch
        %599 = sbr.rel (%p597) target = $region72
      $region71: #{resampler_forward.1} parent=5 // pred_region
        // Predicated region
        $region73: #{resampler_forward.1} parent=71 // pred_check
          %p600 = pneg %p63
        $region74: #{resampler_forward.1} parent=71 // pred_check_branch
          %602 = sbr.rel (%p600) target = $region76
        $region75: #{resampler_forward.1} parent=71 // pred_region
          %p603 = scmp.lt.s32.totalorder %s38, 1
          %s604 = scalar_select %p603, %s38, 1
          %s605 = smul.addr %s604, 32
          %s606 = smul.addr %s605, 8
          %s607 = scalar_lea.vmem %s0, %s606
        $region76: #{resampler_forward.1} parent=71 // pred_fallthru
          _
        // Predicated region
        $region77: #{resampler_forward.1} parent=71 // pred_check
          %p608 = pneg %p89
        $region78: #{resampler_forward.1} parent=71 // pred_check_branch
          %610 = sbr.rel (%p608) target = $region80
        $region79: #{resampler_forward.1} parent=71 // pred_region
          %p611 = scmp.lt.s32.totalorder %s38, 1
          %s612 = scalar_select %p611, %s38, 1
          %s613 = smul.addr %s612, 32
          %s614 = smul.addr %s613, 4
          %s615 = scalar_lea.vmem %s1, %s614
        $region80: #{resampler_forward.1} parent=71 // pred_fallthru
          _
        // Predicated region
        $region81: #{resampler_forward.1} parent=71 // pred_check
          %p616 = pneg %p115
        $region82: #{resampler_forward.1} parent=71 // pred_check_branch
          %618 = sbr.rel (%p616) target = $region84
        $region83: #{resampler_forward.1} parent=71 // pred_region
          %p619 = scmp.lt.s32.totalorder %s38, 1
          %s620 = scalar_select %p619, %s38, 1
          %s621 = scalar_lea.vmem %s2, %s620
        $region84: #{resampler_forward.1} parent=71 // pred_fallthru
          _
        // Predicated region
        $region85: #{resampler_forward.1} parent=71 // pred_check
          %p622 = pneg %p372
        $region86: #{resampler_forward.1} parent=71 // pred_check_branch
          %624 = sbr.rel (%p622) target = $region88
        $region87: #{resampler_forward.1} parent=71 // pred_region
          %s625 = sand.u32 %s31, 1
          %s626 = scalar_lea.sflag [#allocation7], %s625
          %s627 = sand.u32 %s362, 1
          %s628 = smul.addr %s627, 256
          %s629 = scalar_lea.vmem [#allocation11], %s628
          %s630 = smul.u32 2, %s39
          %s632 = ssub.s32 4096, 4096
          %633 = vsyncadd %s626, %s632
          %s634 = smul.addr %s630, 64
          %s635 = scalar_lea.hbm %s14, %s634
          %s636 = sshll.u32 %s629, 4
          %s637 = int_to_ptr.vmem [resolvable:$true] %s636
          %642 = dma.hbm_to_vmem [thread:$0]  %s635, 4096, %s637, %s626, 256, 128, 8
        $region88: #{resampler_forward.1} parent=71 // pred_fallthru
          _
        // Predicated region
        $region89: #{resampler_forward.1} parent=71 // pred_check
          %p643 = pneg %p398
        $region90: #{resampler_forward.1} parent=71 // pred_check_branch
          %645 = sbr.rel (%p643) target = $region92
        $region91: #{resampler_forward.1} parent=71 // pred_region
          %s646 = smul.u32 2, %s39
          %p647 = scmp.lt.s32.totalorder %s646, 3
          %s648 = scalar_select %p647, %s646, 3
          %s649 = scalar_lea.vmem %s15, %s648
          %s650 = smul.u32 2, %s39
        $region92: #{resampler_forward.1} parent=71 // pred_fallthru
          _
        // Predicated region
        $region93: #{resampler_forward.1} parent=71 // pred_check
          %p651 = pneg %p424
        $region94: #{resampler_forward.1} parent=71 // pred_check_branch
          %653 = sbr.rel (%p651) target = $region96
        $region95: #{resampler_forward.1} parent=71 // pred_region
          %s654 = sand.u32 %s31, 1
          %s655 = scalar_lea.sflag [#allocation7], %s654
          %s656 = sand.u32 %s414, 1
          %s657 = smul.addr %s656, 256
          %s658 = scalar_lea.vmem [#allocation12], %s657
          %s659 = smul.u32 32, %s39
          %s661 = ssub.s32 4096, 4096
          %662 = vsyncadd %s655, %s661
          %s663 = smul.addr %s659, 2
          %s664 = smul.addr %s663, 64
          %s665 = scalar_lea.hbm %s16, %s664
          %s666 = sshll.u32 %s658, 4
          %s667 = int_to_ptr.vmem [resolvable:$true] %s666
          %672 = dma.hbm_to_vmem [thread:$0]  %s665, 4096, %s667, %s655, 128, 128, 8
        $region96: #{resampler_forward.1} parent=71 // pred_fallthru
          _
      $region72: #{resampler_forward.1} parent=5 // pred_fallthru
        _
      %p673 = scmp.le.s32.totalorder 1, %s31
      %p674 = scmp.lt.s32.totalorder %s31, 5
      %p675 = pnand %p673, %p674
      %p676 = pneg %p675
      // Predicated region
      $region97: #{resampler_forward.1} parent=5 // pred_check
        _
      $region98: #{resampler_forward.1} parent=5 // pred_check_branch
        %678 = sbr.rel (%p675) target = $region100
      $region99: #{resampler_forward.1} parent=5 // pred_region
        %s679 = ssub.s32 %s31, 1
        // Predicated region
        $region101: #{resampler_forward.1} parent=99 // pred_check
          %p680 = pneg %p247
        $region102: #{resampler_forward.1} parent=99 // pred_check_branch
          %682 = sbr.rel (%p680) target = $region104
        $region103: #{resampler_forward.1} parent=99 // pred_region
          %683 = dma.done [#allocation7], 4096
        $region104: #{resampler_forward.1} parent=99 // pred_fallthru
          _
        // Predicated region
        $region105: #{resampler_forward.1} parent=99 // pred_check
          %p684 = pneg %p289
        $region106: #{resampler_forward.1} parent=99 // pred_check_branch
          %686 = sbr.rel (%p684) target = $region108
        $region107: #{resampler_forward.1} parent=99 // pred_region
          %687 = dma.done [#allocation10], 4096
        $region108: #{resampler_forward.1} parent=99 // pred_fallthru
          _
        %s688 = sand.u32 %s36, 1
        %s689 = scalar_lea.sflag [#allocation7], %s688
        %s690 = sand.u32 %s365, 1
        %s691 = smul.addr %s690, 256
        %s692 = scalar_lea.vmem [#allocation11], %s691
        // Predicated region
        $region109: #{resampler_forward.1} parent=99 // pred_check
          %p693 = pneg %p378
        $region110: #{resampler_forward.1} parent=99 // pred_check_branch
          %695 = sbr.rel (%p693) target = $region112
        $region111: #{resampler_forward.1} parent=99 // pred_region
          %696 = dma.done %s689, 4096
        $region112: #{resampler_forward.1} parent=99 // pred_fallthru
          _
        %s697 = sand.u32 %s36, 1
        %s698 = scalar_lea.sflag [#allocation7], %s697
        %s699 = sand.u32 %s417, 1
        %s700 = smul.addr %s699, 256
        %s701 = scalar_lea.vmem [#allocation12], %s700
        // Predicated region
        $region113: #{resampler_forward.1} parent=99 // pred_check
          %p702 = pneg %p430
        $region114: #{resampler_forward.1} parent=99 // pred_check_branch
          %704 = sbr.rel (%p702) target = $region116
        $region115: #{resampler_forward.1} parent=99 // pred_region
          %705 = dma.done %s698, 4096
        $region116: #{resampler_forward.1} parent=99 // pred_fallthru
          _
        %p706 = scmp.lt.s32.totalorder %s40, 1
        %s707 = scalar_select %p706, %s40, 1
        %s708 = smul.addr %s707, 32
        %s709 = smul.addr %s708, 8
        %s710 = scalar_lea.vmem %s0, %s709
        %p711 = pneg %p69
        %p712 = pneg %p66
        %p713 = scmp.lt.s32.totalorder %s40, 1
        %s714 = scalar_select %p713, %s40, 1
        %s715 = smul.addr %s714, 32
        %s716 = smul.addr %s715, 4
        %s717 = scalar_lea.vmem %s1, %s716
        %p718 = pneg %p95
        %p719 = pneg %p92
        %p720 = scmp.lt.s32.totalorder %s40, 1
        %s721 = scalar_select %p720, %s40, 1
        %s722 = scalar_lea.vmem %s2, %s721
        %p723 = pneg %p121
        %p724 = pneg %p118
        %p725 = pneg %p142
        %p726 = pneg %p139
        %p727 = pneg %p163
        %p728 = pneg %p160
        %p729 = pneg %p184
        %p730 = pneg %p181
        %p731 = pneg %p205
        %p732 = pneg %p202
        %p733 = pneg %p226
        %p734 = pneg %p223
        %p735 = pneg %p247
        %p736 = pneg %p244
        %p737 = pneg %p268
        %p738 = pneg %p265
        %p739 = pneg %p289
        %p740 = pneg %p286
        %p741 = pneg %p310
        %p742 = pneg %p307
        %p743 = pneg %p331
        %p744 = pneg %p328
        %p745 = pneg %p352
        %p746 = pneg %p349
        %s747 = sand.u32 %s36, 1
        %s748 = scalar_lea.sflag [#allocation7], %s747
        %s749 = sand.u32 %s365, 1
        %s750 = smul.addr %s749, 256
        %s751 = scalar_lea.vmem [#allocation11], %s750
        %p752 = pneg %p378
        %p753 = pneg %p375
        %s754 = smul.u32 2, %s41
        %p755 = scmp.lt.s32.totalorder %s754, 3
        %s756 = scalar_select %p755, %s754, 3
        %s757 = scalar_lea.vmem %s15, %s756
        %p758 = pneg %p404
        %p759 = pneg %p401
        %s760 = sand.u32 %s36, 1
        %s761 = scalar_lea.sflag [#allocation7], %s760
        %s762 = sand.u32 %s417, 1
        %s763 = smul.addr %s762, 256
        %s764 = scalar_lea.vmem [#allocation12], %s763
        %p765 = pneg %p430
        %p766 = pneg %p427
        %p767 = pneg %p451
        %p768 = pneg %p448
        %p769 = pneg %p472
        %p770 = pneg %p469
        %p771 = pneg %p493
        %p772 = pneg %p490
        %p773 = pneg %p519
        %p774 = pneg %p516
        %s775 = sand.u32 %s506, 1
        %s776 = scalar_lea.sflag [#allocation8], %s775
        %s777 = sand.u32 %s506, 1
        %s778 = smul.addr %s777, 32
        %s779 = scalar_lea.vmem [#allocation13], %s778
        %p780 = scmp.lt.s32.totalorder %s40, 1
        %s781 = scalar_select %p780, %s40, 1
        %s782 = smul.addr %s781, 32
        %s783 = smul.addr %s782, 8
        %s784 = scalar_lea.vmem %s0, %s783
        %p785 = scmp.lt.s32.totalorder %s40, 1
        %s786 = scalar_select %p785, %s40, 1
        %s787 = smul.addr %s786, 32
        %s788 = smul.addr %s787, 4
        %s789 = scalar_lea.vmem %s1, %s788
        %p790 = scmp.lt.s32.totalorder %s40, 1
        %s791 = scalar_select %p790, %s40, 1
        %s792 = scalar_lea.vmem %s2, %s791
        %s793 = smul.u32 2, %s41
        %s794 = smul.u32 2, %s41
        %p795 = scmp.lt.s32.totalorder %s794, 3
        %s796 = scalar_select %p795, %s794, 3
        %s797 = scalar_lea.vmem %s15, %s796
        %s798 = smul.u32 2, %s41
        %s799 = smul.u32 32, %s41
        %p801 = scmp.eq.s32.totalorder %s41, 0
        // Predicated region
        $region117: #{resampler_forward.1} parent=99 // pred_check
          %p802 = pneg %p801
        $region118: #{resampler_forward.1} parent=99 // pred_check_branch
          %804 = sbr.rel (%p802) target = $region120
        $region119: #{resampler_forward.1} parent=99 // pred_region
          %v805 = vld [vmem:[%s784] sm:$0xff]
          %v806 = vld [vmem:[%s784 + $0x8] sm:$0xff]
          %v807 = vld [vmem:[%s784 + $0x10] sm:$0xff]
          %v808 = vld [vmem:[%s784 + $0x18] sm:$0xff]
          %v809 = vld [vmem:[%s784 + $0x20] sm:$0xff]
          %v810 = vld [vmem:[%s784 + $0x28] sm:$0xff]
          %v811 = vld [vmem:[%s784 + $0x30] sm:$0xff]
          %v812 = vld [vmem:[%s784 + $0x38] sm:$0xff]
          %v813 = vld [vmem:[%s784 + $0x40] sm:$0xff]
          %v814 = vld [vmem:[%s784 + $0x48] sm:$0xff]
          %v815 = vld [vmem:[%s784 + $0x50] sm:$0xff]
          %v816 = vld [vmem:[%s784 + $0x58] sm:$0xff]
          %v817 = vld [vmem:[%s784 + $0x60] sm:$0xff]
          %v818 = vld [vmem:[%s784 + $0x68] sm:$0xff]
          %v819 = vld [vmem:[%s784 + $0x70] sm:$0xff]
          %v820 = vld [vmem:[%s784 + $0x78] sm:$0xff]
          %v821 = vld [vmem:[%s784 + $0x80] sm:$0xff]
          %v822 = vld [vmem:[%s784 + $0x88] sm:$0xff]
          %v823 = vld [vmem:[%s784 + $0x90] sm:$0xff]
          %v824 = vld [vmem:[%s784 + $0x98] sm:$0xff]
          %v825 = vld [vmem:[%s784 + $0xa0] sm:$0xff]
          %v826 = vld [vmem:[%s784 + $0xa8] sm:$0xff]
          %v827 = vld [vmem:[%s784 + $0xb0] sm:$0xff]
          %v828 = vld [vmem:[%s784 + $0xb8] sm:$0xff]
          %v829 = vld [vmem:[%s784 + $0xc0] sm:$0xff]
          %v830 = vld [vmem:[%s784 + $0xc8] sm:$0xff]
          %v831 = vld [vmem:[%s784 + $0xd0] sm:$0xff]
          %v832 = vld [vmem:[%s784 + $0xd8] sm:$0xff]
          %v833 = vld [vmem:[%s784 + $0xe0] sm:$0xff]
          %v834 = vld [vmem:[%s784 + $0xe8] sm:$0xff]
          %v835 = vld [vmem:[%s784 + $0xf0] sm:$0xff]
          %v836 = vld [vmem:[%s784 + $0xf8] sm:$0xff]
          %v837 = vld [vmem:[%s789] sm:$0xff]
          %v838 = vld [vmem:[%s789 + $0x8] sm:$0xff]
          %v839 = vld [vmem:[%s789 + $0x10] sm:$0xff]
          %v840 = vld [vmem:[%s789 + $0x18] sm:$0xff]
          %v841 = vld [vmem:[%s789 + $0x20] sm:$0xff]
          %v842 = vld [vmem:[%s789 + $0x28] sm:$0xff]
          %v843 = vld [vmem:[%s789 + $0x30] sm:$0xff]
          %v844 = vld [vmem:[%s789 + $0x38] sm:$0xff]
          %v845 = vld [vmem:[%s789 + $0x40] sm:$0xff]
          %v846 = vld [vmem:[%s789 + $0x48] sm:$0xff]
          %v847 = vld [vmem:[%s789 + $0x50] sm:$0xff]
          %v848 = vld [vmem:[%s789 + $0x58] sm:$0xff]
          %v849 = vld [vmem:[%s789 + $0x60] sm:$0xff]
          %v850 = vld [vmem:[%s789 + $0x68] sm:$0xff]
          %v851 = vld [vmem:[%s789 + $0x70] sm:$0xff]
          %v852 = vld [vmem:[%s789 + $0x78] sm:$0xff]
          %v853 = vunpack.c.l.bf16 %v837
          %v854 = vunpack.c.h.bf16 %v837
          %v855 = vunpack.c.l.bf16 %v838
          %v856 = vunpack.c.h.bf16 %v838
          %v857 = vunpack.c.l.bf16 %v839
          %v858 = vunpack.c.h.bf16 %v839
          %v859 = vunpack.c.l.bf16 %v840
          %v860 = vunpack.c.h.bf16 %v840
          %v861 = vunpack.c.l.bf16 %v841
          %v862 = vunpack.c.h.bf16 %v841
          %v863 = vunpack.c.l.bf16 %v842
          %v864 = vunpack.c.h.bf16 %v842
          %v865 = vunpack.c.l.bf16 %v843
          %v866 = vunpack.c.h.bf16 %v843
          %v867 = vunpack.c.l.bf16 %v844
          %v868 = vunpack.c.h.bf16 %v844
          %v869 = vunpack.c.l.bf16 %v845
          %v870 = vunpack.c.h.bf16 %v845
          %v871 = vunpack.c.l.bf16 %v846
          %v872 = vunpack.c.h.bf16 %v846
          %v873 = vunpack.c.l.bf16 %v847
          %v874 = vunpack.c.h.bf16 %v847
          %v875 = vunpack.c.l.bf16 %v848
          %v876 = vunpack.c.h.bf16 %v848
          %v877 = vunpack.c.l.bf16 %v849
          %v878 = vunpack.c.h.bf16 %v849
          %v879 = vunpack.c.l.bf16 %v850
          %v880 = vunpack.c.h.bf16 %v850
          %v881 = vunpack.c.l.bf16 %v851
          %v882 = vunpack.c.h.bf16 %v851
          %v883 = vunpack.c.l.bf16 %v852
          %v884 = vunpack.c.h.bf16 %v852
          %v885 = vld [vmem:[%s4] sm:$0x3]
          %v886 = vld [vmem:[%s5] sm:$0x3]
          %v887 = vadd.f32 %v805, %v806
          %888 = vadd.xlane.f32.xlu0 %v887
          %v889 = vpop.xlane.xlu0 %888
          %v890 = vadd.f32 %v807, %v808
          %891 = vadd.xlane.f32.xlu0 %v890
          %v892 = vpop.xlane.xlu0 %891
          %v893 = vadd.f32 %v809, %v810
          %894 = vadd.xlane.f32.xlu0 %v893
          %v895 = vpop.xlane.xlu0 %894
          %v896 = vadd.f32 %v811, %v812
          %897 = vadd.xlane.f32.xlu0 %v896
          %v898 = vpop.xlane.xlu0 %897
          %v899 = vadd.f32 %v813, %v814
          %900 = vadd.xlane.f32.xlu0 %v899
          %v901 = vpop.xlane.xlu0 %900
          %v902 = vadd.f32 %v815, %v816
          %903 = vadd.xlane.f32.xlu0 %v902
          %v904 = vpop.xlane.xlu0 %903
          %v905 = vadd.f32 %v817, %v818
          %906 = vadd.xlane.f32.xlu0 %v905
          %v907 = vpop.xlane.xlu0 %906
          %v908 = vadd.f32 %v819, %v820
          %909 = vadd.xlane.f32.xlu0 %v908
          %v910 = vpop.xlane.xlu0 %909
          %v911 = vadd.f32 %v821, %v822
          %912 = vadd.xlane.f32.xlu0 %v911
          %v913 = vpop.xlane.xlu0 %912
          %v914 = vadd.f32 %v823, %v824
          %915 = vadd.xlane.f32.xlu0 %v914
          %v916 = vpop.xlane.xlu0 %915
          %v917 = vadd.f32 %v825, %v826
          %918 = vadd.xlane.f32.xlu0 %v917
          %v919 = vpop.xlane.xlu0 %918
          %v920 = vadd.f32 %v827, %v828
          %921 = vadd.xlane.f32.xlu0 %v920
          %v922 = vpop.xlane.xlu0 %921
          %v923 = vadd.f32 %v829, %v830
          %924 = vadd.xlane.f32.xlu0 %v923
          %v925 = vpop.xlane.xlu0 %924
          %v926 = vadd.f32 %v831, %v832
          %927 = vadd.xlane.f32.xlu0 %v926
          %v928 = vpop.xlane.xlu0 %927
          %v929 = vadd.f32 %v833, %v834
          %930 = vadd.xlane.f32.xlu0 %v929
          %v931 = vpop.xlane.xlu0 %930
          %v932 = vadd.f32 %v835, %v836
          %933 = vadd.xlane.f32.xlu0 %v932
          %v934 = vpop.xlane.xlu0 %933
          %v935 = vrcp.pop 256.0
          %v936 = vmul.f32 %v889, %v935
          %v937 = vmul.f32 %v892, %v935
          %v938 = vmul.f32 %v895, %v935
          %v939 = vmul.f32 %v898, %v935
          %v940 = vmul.f32 %v901, %v935
          %v941 = vmul.f32 %v904, %v935
          %v942 = vmul.f32 %v907, %v935
          %v943 = vmul.f32 %v910, %v935
          %v944 = vmul.f32 %v913, %v935
          %v945 = vmul.f32 %v916, %v935
          %v946 = vmul.f32 %v919, %v935
          %v947 = vmul.f32 %v922, %v935
          %v948 = vmul.f32 %v925, %v935
          %v949 = vmul.f32 %v928, %v935
          %v950 = vmul.f32 %v931, %v935
          %v951 = vmul.f32 %v934, %v935
          %v952 = vsub.f32 %v805, %v936
          %v953 = vsub.f32 %v806, %v936
          %v954 = vsub.f32 %v807, %v937
          %v955 = vsub.f32 %v808, %v937
          %v956 = vsub.f32 %v809, %v938
          %v957 = vsub.f32 %v810, %v938
          %v958 = vsub.f32 %v811, %v939
          %v959 = vsub.f32 %v812, %v939
          %v960 = vsub.f32 %v813, %v940
          %v961 = vsub.f32 %v814, %v940
          %v962 = vsub.f32 %v815, %v941
          %v963 = vsub.f32 %v816, %v941
          %v964 = vsub.f32 %v817, %v942
          %v965 = vsub.f32 %v818, %v942
          %v966 = vsub.f32 %v819, %v943
          %v967 = vsub.f32 %v820, %v943
          %v968 = vsub.f32 %v821, %v944
          %v969 = vsub.f32 %v822, %v944
          %v970 = vsub.f32 %v823, %v945
          %v971 = vsub.f32 %v824, %v945
          %v972 = vsub.f32 %v825, %v946
          %v973 = vsub.f32 %v826, %v946
          %v974 = vsub.f32 %v827, %v947
          %v975 = vsub.f32 %v828, %v947
          %v976 = vsub.f32 %v829, %v948
          %v977 = vsub.f32 %v830, %v948
          %v978 = vsub.f32 %v831, %v949
          %v979 = vsub.f32 %v832, %v949
          %v980 = vsub.f32 %v833, %v950
          %v981 = vsub.f32 %v834, %v950
          %v982 = vsub.f32 %v835, %v951
          %v983 = vsub.f32 %v836, %v951
          %v984 = vmul.f32 %v952, %v952
          %v985 = vmul.f32 %v953, %v953
          %v986 = vmul.f32 %v954, %v954
          %v987 = vmul.f32 %v955, %v955
          %v988 = vmul.f32 %v956, %v956
          %v989 = vmul.f32 %v957, %v957
          %v990 = vmul.f32 %v958, %v958
          %v991 = vmul.f32 %v959, %v959
          %v992 = vmul.f32 %v960, %v960
          %v993 = vmul.f32 %v961, %v961
          %v994 = vmul.f32 %v962, %v962
          %v995 = vmul.f32 %v963, %v963
          %v996 = vmul.f32 %v964, %v964
          %v997 = vmul.f32 %v965, %v965
          %v998 = vmul.f32 %v966, %v966
          %v999 = vmul.f32 %v967, %v967
          %v1000 = vmul.f32 %v968, %v968
          %v1001 = vmul.f32 %v969, %v969
          %v1002 = vmul.f32 %v970, %v970
          %v1003 = vmul.f32 %v971, %v971
          %v1004 = vmul.f32 %v972, %v972
          %v1005 = vmul.f32 %v973, %v973
          %v1006 = vmul.f32 %v974, %v974
          %v1007 = vmul.f32 %v975, %v975
          %v1008 = vmul.f32 %v976, %v976
          %v1009 = vmul.f32 %v977, %v977
          %v1010 = vmul.f32 %v978, %v978
          %v1011 = vmul.f32 %v979, %v979
          %v1012 = vmul.f32 %v980, %v980
          %v1013 = vmul.f32 %v981, %v981
          %v1014 = vmul.f32 %v982, %v982
          %v1015 = vmul.f32 %v983, %v983
          %v1016 = vadd.f32 %v984, %v985
          %1017 = vadd.xlane.f32.xlu0 %v1016
          %v1018 = vpop.xlane.xlu0 %1017
          %v1019 = vadd.f32 %v986, %v987
          %1020 = vadd.xlane.f32.xlu0 %v1019
          %v1021 = vpop.xlane.xlu0 %1020
          %v1022 = vadd.f32 %v988, %v989
          %1023 = vadd.xlane.f32.xlu0 %v1022
          %v1024 = vpop.xlane.xlu0 %1023
          %v1025 = vadd.f32 %v990, %v991
          %1026 = vadd.xlane.f32.xlu0 %v1025
          %v1027 = vpop.xlane.xlu0 %1026
          %v1028 = vadd.f32 %v992, %v993
          %1029 = vadd.xlane.f32.xlu0 %v1028
          %v1030 = vpop.xlane.xlu0 %1029
          %v1031 = vadd.f32 %v994, %v995
          %1032 = vadd.xlane.f32.xlu0 %v1031
          %v1033 = vpop.xlane.xlu0 %1032
          %v1034 = vadd.f32 %v996, %v997
          %1035 = vadd.xlane.f32.xlu0 %v1034
          %v1036 = vpop.xlane.xlu0 %1035
          %v1037 = vadd.f32 %v998, %v999
          %1038 = vadd.xlane.f32.xlu0 %v1037
          %v1039 = vpop.xlane.xlu0 %1038
          %v1040 = vadd.f32 %v1000, %v1001
          %1041 = vadd.xlane.f32.xlu0 %v1040
          %v1042 = vpop.xlane.xlu0 %1041
          %v1043 = vadd.f32 %v1002, %v1003
          %1044 = vadd.xlane.f32.xlu0 %v1043
          %v1045 = vpop.xlane.xlu0 %1044
          %v1046 = vadd.f32 %v1004, %v1005
          %1047 = vadd.xlane.f32.xlu0 %v1046
          %v1048 = vpop.xlane.xlu0 %1047
          %v1049 = vadd.f32 %v1006, %v1007
          %1050 = vadd.xlane.f32.xlu0 %v1049
          %v1051 = vpop.xlane.xlu0 %1050
          %v1052 = vadd.f32 %v1008, %v1009
          %1053 = vadd.xlane.f32.xlu0 %v1052
          %v1054 = vpop.xlane.xlu0 %1053
          %v1055 = vadd.f32 %v1010, %v1011
          %1056 = vadd.xlane.f32.xlu0 %v1055
          %v1057 = vpop.xlane.xlu0 %1056
          %v1058 = vadd.f32 %v1012, %v1013
          %1059 = vadd.xlane.f32.xlu0 %v1058
          %v1060 = vpop.xlane.xlu0 %1059
          %v1061 = vadd.f32 %v1014, %v1015
          %1062 = vadd.xlane.f32.xlu0 %v1061
          %v1063 = vpop.xlane.xlu0 %1062
          %v1064 = vmul.f32 %v1018, %v935
          %v1065 = vmul.f32 %v1021, %v935
          %v1066 = vmul.f32 %v1024, %v935
          %v1067 = vmul.f32 %v1027, %v935
          %v1068 = vmul.f32 %v1030, %v935
          %v1069 = vmul.f32 %v1033, %v935
          %v1070 = vmul.f32 %v1036, %v935
          %v1071 = vmul.f32 %v1039, %v935
          %v1072 = vmul.f32 %v1042, %v935
          %v1073 = vmul.f32 %v1045, %v935
          %v1074 = vmul.f32 %v1048, %v935
          %v1075 = vmul.f32 %v1051, %v935
          %v1076 = vmul.f32 %v1054, %v935
          %v1077 = vmul.f32 %v1057, %v935
          %v1078 = vmul.f32 %v1060, %v935
          %v1079 = vmul.f32 %v1063, %v935
          %v1080 = vadd.f32 %v1064, 1e-06
          %v1081 = vadd.f32 %v1065, 1e-06
          %v1082 = vadd.f32 %v1066, 1e-06
          %v1083 = vadd.f32 %v1067, 1e-06
          %v1084 = vadd.f32 %v1068, 1e-06
          %v1085 = vadd.f32 %v1069, 1e-06
          %v1086 = vadd.f32 %v1070, 1e-06
          %v1087 = vadd.f32 %v1071, 1e-06
          %v1088 = vadd.f32 %v1072, 1e-06
          %v1089 = vadd.f32 %v1073, 1e-06
          %v1090 = vadd.f32 %v1074, 1e-06
          %v1091 = vadd.f32 %v1075, 1e-06
          %v1092 = vadd.f32 %v1076, 1e-06
          %v1093 = vadd.f32 %v1077, 1e-06
          %v1094 = vadd.f32 %v1078, 1e-06
          %v1095 = vadd.f32 %v1079, 1e-06
          %v1096 = vrsqrt.pop %v1080
          %v1097 = vrsqrt.pop %v1081
          %v1098 = vrsqrt.pop %v1082
          %v1099 = vrsqrt.pop %v1083
          %v1100 = vrsqrt.pop %v1084
          %v1101 = vrsqrt.pop %v1085
          %v1102 = vrsqrt.pop %v1086
          %v1103 = vrsqrt.pop %v1087
          %v1104 = vrsqrt.pop %v1088
          %v1105 = vrsqrt.pop %v1089
          %v1106 = vrsqrt.pop %v1090
          %v1107 = vrsqrt.pop %v1091
          %v1108 = vrsqrt.pop %v1092
          %v1109 = vrsqrt.pop %v1093
          %v1110 = vrsqrt.pop %v1094
          %v1111 = vrsqrt.pop %v1095
          %v1112 = vmul.f32 %v952, %v1096
          %v1113 = vmul.f32 %v953, %v1096
          %v1114 = vmul.f32 %v954, %v1097
          %v1115 = vmul.f32 %v955, %v1097
          %v1116 = vmul.f32 %v956, %v1098
          %v1117 = vmul.f32 %v957, %v1098
          %v1118 = vmul.f32 %v958, %v1099
          %v1119 = vmul.f32 %v959, %v1099
          %v1120 = vmul.f32 %v960, %v1100
          %v1121 = vmul.f32 %v961, %v1100
          %v1122 = vmul.f32 %v962, %v1101
          %v1123 = vmul.f32 %v963, %v1101
          %v1124 = vmul.f32 %v964, %v1102
          %v1125 = vmul.f32 %v965, %v1102
          %v1126 = vmul.f32 %v966, %v1103
          %v1127 = vmul.f32 %v967, %v1103
          %v1128 = vmul.f32 %v968, %v1104
          %v1129 = vmul.f32 %v969, %v1104
          %v1130 = vmul.f32 %v970, %v1105
          %v1131 = vmul.f32 %v971, %v1105
          %v1132 = vmul.f32 %v972, %v1106
          %v1133 = vmul.f32 %v973, %v1106
          %v1134 = vmul.f32 %v974, %v1107
          %v1135 = vmul.f32 %v975, %v1107
          %v1136 = vmul.f32 %v976, %v1108
          %v1137 = vmul.f32 %v977, %v1108
          %v1138 = vmul.f32 %v978, %v1109
          %v1139 = vmul.f32 %v979, %v1109
          %v1140 = vmul.f32 %v980, %v1110
          %v1141 = vmul.f32 %v981, %v1110
          %v1142 = vmul.f32 %v982, %v1111
          %v1143 = vmul.f32 %v983, %v1111
          %v1145 = vlaneseq
          %v1146 = vshrl.u32 %v1145, 7
          %v1147 = vsub.s32 0, %v1146
          %v1148 = vrot.slane %v885, %v1147
          %v1149 = vlaneseq
          %v1150 = vshrl.u32 %v1149, 7
          %v1151 = vsub.s32 1, %v1150
          %v1152 = vrot.slane %v885, %v1151
          %v1155 = vmul.f32 %v1112, %v1148
          %v1156 = vmul.f32 %v1113, %v1152
          %v1157 = vmul.f32 %v1114, %v1148
          %v1158 = vmul.f32 %v1115, %v1152
          %v1159 = vmul.f32 %v1116, %v1148
          %v1160 = vmul.f32 %v1117, %v1152
          %v1161 = vmul.f32 %v1118, %v1148
          %v1162 = vmul.f32 %v1119, %v1152
          %v1163 = vmul.f32 %v1120, %v1148
          %v1164 = vmul.f32 %v1121, %v1152
          %v1165 = vmul.f32 %v1122, %v1148
          %v1166 = vmul.f32 %v1123, %v1152
          %v1167 = vmul.f32 %v1124, %v1148
          %v1168 = vmul.f32 %v1125, %v1152
          %v1169 = vmul.f32 %v1126, %v1148
          %v1170 = vmul.f32 %v1127, %v1152
          %v1171 = vmul.f32 %v1128, %v1148
          %v1172 = vmul.f32 %v1129, %v1152
          %v1173 = vmul.f32 %v1130, %v1148
          %v1174 = vmul.f32 %v1131, %v1152
          %v1175 = vmul.f32 %v1132, %v1148
          %v1176 = vmul.f32 %v1133, %v1152
          %v1177 = vmul.f32 %v1134, %v1148
          %v1178 = vmul.f32 %v1135, %v1152
          %v1179 = vmul.f32 %v1136, %v1148
          %v1180 = vmul.f32 %v1137, %v1152
          %v1181 = vmul.f32 %v1138, %v1148
          %v1182 = vmul.f32 %v1139, %v1152
          %v1183 = vmul.f32 %v1140, %v1148
          %v1184 = vmul.f32 %v1141, %v1152
          %v1185 = vmul.f32 %v1142, %v1148
          %v1186 = vmul.f32 %v1143, %v1152
          %v1188 = vlaneseq
          %v1189 = vshrl.u32 %v1188, 7
          %v1190 = vsub.s32 0, %v1189
          %v1191 = vrot.slane %v886, %v1190
          %v1192 = vlaneseq
          %v1193 = vshrl.u32 %v1192, 7
          %v1194 = vsub.s32 1, %v1193
          %v1195 = vrot.slane %v886, %v1194
          %v1198 = vadd.f32 %v1155, %v1191
          %v1199 = vadd.f32 %v1156, %v1195
          %v1200 = vadd.f32 %v1157, %v1191
          %v1201 = vadd.f32 %v1158, %v1195
          %v1202 = vadd.f32 %v1159, %v1191
          %v1203 = vadd.f32 %v1160, %v1195
          %v1204 = vadd.f32 %v1161, %v1191
          %v1205 = vadd.f32 %v1162, %v1195
          %v1206 = vadd.f32 %v1163, %v1191
          %v1207 = vadd.f32 %v1164, %v1195
          %v1208 = vadd.f32 %v1165, %v1191
          %v1209 = vadd.f32 %v1166, %v1195
          %v1210 = vadd.f32 %v1167, %v1191
          %v1211 = vadd.f32 %v1168, %v1195
          %v1212 = vadd.f32 %v1169, %v1191
          %v1213 = vadd.f32 %v1170, %v1195
          %v1214 = vadd.f32 %v1171, %v1191
          %v1215 = vadd.f32 %v1172, %v1195
          %v1216 = vadd.f32 %v1173, %v1191
          %v1217 = vadd.f32 %v1174, %v1195
          %v1218 = vadd.f32 %v1175, %v1191
          %v1219 = vadd.f32 %v1176, %v1195
          %v1220 = vadd.f32 %v1177, %v1191
          %v1221 = vadd.f32 %v1178, %v1195
          %v1222 = vadd.f32 %v1179, %v1191
          %v1223 = vadd.f32 %v1180, %v1195
          %v1224 = vadd.f32 %v1181, %v1191
          %v1225 = vadd.f32 %v1182, %v1195
          %v1226 = vadd.f32 %v1183, %v1191
          %v1227 = vadd.f32 %v1184, %v1195
          %v1228 = vadd.f32 %v1185, %v1191
          %v1229 = vadd.f32 %v1186, %v1195
          %v1230 = vadd.f32 %v1198, %v853
          %v1231 = vadd.f32 %v1199, %v854
          %v1232 = vadd.f32 %v1200, %v855
          %v1233 = vadd.f32 %v1201, %v856
          %v1234 = vadd.f32 %v1202, %v857
          %v1235 = vadd.f32 %v1203, %v858
          %v1236 = vadd.f32 %v1204, %v859
          %v1237 = vadd.f32 %v1205, %v860
          %v1238 = vadd.f32 %v1206, %v861
          %v1239 = vadd.f32 %v1207, %v862
          %v1240 = vadd.f32 %v1208, %v863
          %v1241 = vadd.f32 %v1209, %v864
          %v1242 = vadd.f32 %v1210, %v865
          %v1243 = vadd.f32 %v1211, %v866
          %v1244 = vadd.f32 %v1212, %v867
          %v1245 = vadd.f32 %v1213, %v868
          %v1246 = vadd.f32 %v1214, %v869
          %v1247 = vadd.f32 %v1215, %v870
          %v1248 = vadd.f32 %v1216, %v871
          %v1249 = vadd.f32 %v1217, %v872
          %v1250 = vadd.f32 %v1218, %v873
          %v1251 = vadd.f32 %v1219, %v874
          %v1252 = vadd.f32 %v1220, %v875
          %v1253 = vadd.f32 %v1221, %v876
          %v1254 = vadd.f32 %v1222, %v877
          %v1255 = vadd.f32 %v1223, %v878
          %v1256 = vadd.f32 %v1224, %v879
          %v1257 = vadd.f32 %v1225, %v880
          %v1258 = vadd.f32 %v1226, %v881
          %v1259 = vadd.f32 %v1227, %v882
          %v1260 = vadd.f32 %v1228, %v883
          %v1261 = vadd.f32 %v1229, %v884
          %v1262 = vpack.c.bf16 %v1232, %v1230
          %v1263 = vpack.c.bf16 %v1233, %v1231
          %v1264 = vpack.c.bf16 %v1236, %v1234
          %v1265 = vpack.c.bf16 %v1237, %v1235
          %v1266 = vpack.c.bf16 %v1240, %v1238
          %v1267 = vpack.c.bf16 %v1241, %v1239
          %v1268 = vpack.c.bf16 %v1244, %v1242
          %v1269 = vpack.c.bf16 %v1245, %v1243
          %v1270 = vpack.c.bf16 %v1248, %v1246
          %v1271 = vpack.c.bf16 %v1249, %v1247
          %v1272 = vpack.c.bf16 %v1252, %v1250
          %v1273 = vpack.c.bf16 %v1253, %v1251
          %v1274 = vpack.c.bf16 %v1256, %v1254
          %v1275 = vpack.c.bf16 %v1257, %v1255
          %v1276 = vpack.c.bf16 %v1260, %v1258
          %v1277 = vpack.c.bf16 %v1261, %v1259
          %v1278 = vpack.c.bf16 %v1200, %v1198
          %v1279 = vpack.c.bf16 %v1201, %v1199
          %v1280 = vpack.c.bf16 %v1204, %v1202
          %v1281 = vpack.c.bf16 %v1205, %v1203
          %v1282 = vpack.c.bf16 %v1208, %v1206
          %v1283 = vpack.c.bf16 %v1209, %v1207
          %v1284 = vpack.c.bf16 %v1212, %v1210
          %v1285 = vpack.c.bf16 %v1213, %v1211
          %v1286 = vpack.c.bf16 %v1216, %v1214
          %v1287 = vpack.c.bf16 %v1217, %v1215
          %v1288 = vpack.c.bf16 %v1220, %v1218
          %v1289 = vpack.c.bf16 %v1221, %v1219
          %v1290 = vpack.c.bf16 %v1224, %v1222
          %v1291 = vpack.c.bf16 %v1225, %v1223
          %v1292 = vpack.c.bf16 %v1228, %v1226
          %v1293 = vpack.c.bf16 %v1229, %v1227
          %v1294 = vld [vmem:[%s6] sm:$0xff]
          %v1295 = vld [vmem:[%s6 + $0x8] sm:$0xff]
          %v1296 = vld [vmem:[%s6 + $0x10] sm:$0xff]
          %v1297 = vld [vmem:[%s6 + $0x18] sm:$0xff]
          %v1298 = vld [vmem:[%s6 + $0x20] sm:$0xff]
          %v1299 = vld [vmem:[%s6 + $0x28] sm:$0xff]
          %v1300 = vld [vmem:[%s6 + $0x30] sm:$0xff]
          %v1301 = vld [vmem:[%s6 + $0x38] sm:$0xff]
          %v1302 = vld [vmem:[%s6 + $0x40] sm:$0xff]
          %v1303 = vld [vmem:[%s6 + $0x48] sm:$0xff]
          %v1304 = vld [vmem:[%s6 + $0x50] sm:$0xff]
          %v1305 = vld [vmem:[%s6 + $0x58] sm:$0xff]
          %v1306 = vld [vmem:[%s6 + $0x60] sm:$0xff]
          %v1307 = vld [vmem:[%s6 + $0x68] sm:$0xff]
          %v1308 = vld [vmem:[%s6 + $0x70] sm:$0xff]
          %v1309 = vld [vmem:[%s6 + $0x78] sm:$0xff]
          %v1310 = vld [vmem:[%s6 + $0x80] sm:$0xff]
          %v1311 = vld [vmem:[%s6 + $0x88] sm:$0xff]
          %v1312 = vld [vmem:[%s6 + $0x90] sm:$0xff]
          %v1313 = vld [vmem:[%s6 + $0x98] sm:$0xff]
          %v1314 = vld [vmem:[%s6 + $0xa0] sm:$0xff]
          %v1315 = vld [vmem:[%s6 + $0xa8] sm:$0xff]
          %v1316 = vld [vmem:[%s6 + $0xb0] sm:$0xff]
          %v1317 = vld [vmem:[%s6 + $0xb8] sm:$0xff]
          %v1318 = vld [vmem:[%s6 + $0xc0] sm:$0xff]
          %v1319 = vld [vmem:[%s6 + $0xc8] sm:$0xff]
          %v1320 = vld [vmem:[%s6 + $0xd0] sm:$0xff]
          %v1321 = vld [vmem:[%s6 + $0xd8] sm:$0xff]
          %v1322 = vld [vmem:[%s6 + $0xe0] sm:$0xff]
          %v1323 = vld [vmem:[%s6 + $0xe8] sm:$0xff]
          %v1324 = vld [vmem:[%s6 + $0xf0] sm:$0xff]
          %v1325 = vld [vmem:[%s6 + $0xf8] sm:$0xff]
          %v1326 = vld [vmem:[%s7] sm:$0x3]
          %v1328 = vlaneseq
          %v1329 = vshrl.u32 %v1328, 7
          %v1330 = vsub.s32 0, %v1329
          %v1331 = vrot.slane %v1326, %v1330
          %v1332 = vlaneseq
          %v1333 = vshrl.u32 %v1332, 7
          %v1334 = vsub.s32 1, %v1333
          %v1335 = vrot.slane %v1326, %v1334
          %v1370 = vunpack.c.l.b16 %v1294
          %v1371 = vunpack.c.h.b16 %v1294
          %v1372 = vunpack.c.l.b16 %v1295
          %v1373 = vunpack.c.h.b16 %v1295
          %v1374 = vunpack.c.l.b16 %v1296
          %v1375 = vunpack.c.h.b16 %v1296
          %v1376 = vunpack.c.l.b16 %v1297
          %v1377 = vunpack.c.h.b16 %v1297
          %v1378 = vunpack.c.l.b16 %v1298
          %v1379 = vunpack.c.h.b16 %v1298
          %v1380 = vunpack.c.l.b16 %v1299
          %v1381 = vunpack.c.h.b16 %v1299
          %v1382 = vunpack.c.l.b16 %v1300
          %v1383 = vunpack.c.h.b16 %v1300
          %v1384 = vunpack.c.l.b16 %v1301
          %v1385 = vunpack.c.h.b16 %v1301
          %v1386 = vunpack.c.l.b16 %v1302
          %v1387 = vunpack.c.h.b16 %v1302
          %v1388 = vunpack.c.l.b16 %v1303
          %v1389 = vunpack.c.h.b16 %v1303
          %v1390 = vunpack.c.l.b16 %v1304
          %v1391 = vunpack.c.h.b16 %v1304
          %v1392 = vunpack.c.l.b16 %v1305
          %v1393 = vunpack.c.h.b16 %v1305
          %v1394 = vunpack.c.l.b16 %v1306
          %v1395 = vunpack.c.h.b16 %v1306
          %v1396 = vunpack.c.l.b16 %v1307
          %v1397 = vunpack.c.h.b16 %v1307
          %v1398 = vunpack.c.l.b16 %v1308
          %v1399 = vunpack.c.h.b16 %v1308
          %v1400 = vunpack.c.l.b16 %v1309
          %v1401 = vunpack.c.h.b16 %v1309
          %v1402 = vunpack.c.l.b16 %v1310
          %v1403 = vunpack.c.h.b16 %v1310
          %v1404 = vunpack.c.l.b16 %v1311
          %v1405 = vunpack.c.h.b16 %v1311
          %v1406 = vunpack.c.l.b16 %v1312
          %v1407 = vunpack.c.h.b16 %v1312
          %v1408 = vunpack.c.l.b16 %v1313
          %v1409 = vunpack.c.h.b16 %v1313
          %v1410 = vunpack.c.l.b16 %v1314
          %v1411 = vunpack.c.h.b16 %v1314
          %v1412 = vunpack.c.l.b16 %v1315
          %v1413 = vunpack.c.h.b16 %v1315
          %v1414 = vunpack.c.l.b16 %v1316
          %v1415 = vunpack.c.h.b16 %v1316
          %v1416 = vunpack.c.l.b16 %v1317
          %v1417 = vunpack.c.h.b16 %v1317
          %v1418 = vunpack.c.l.b16 %v1318
          %v1419 = vunpack.c.h.b16 %v1318
          %v1420 = vunpack.c.l.b16 %v1319
          %v1421 = vunpack.c.h.b16 %v1319
          %v1422 = vunpack.c.l.b16 %v1320
          %v1423 = vunpack.c.h.b16 %v1320
          %v1424 = vunpack.c.l.b16 %v1321
          %v1425 = vunpack.c.h.b16 %v1321
          %v1426 = vunpack.c.l.b16 %v1322
          %v1427 = vunpack.c.h.b16 %v1322
          %v1428 = vunpack.c.l.b16 %v1323
          %v1429 = vunpack.c.h.b16 %v1323
          %v1430 = vunpack.c.l.b16 %v1324
          %v1431 = vunpack.c.h.b16 %v1324
          %v1432 = vunpack.c.l.b16 %v1325
          %v1433 = vunpack.c.h.b16 %v1325
          %v1434 = vpack.c.b16 %v1372, %v1370
          %v1435 = vpack.c.b16 %v1373, %v1371
          %v1436 = vpack.c.b16 %v1376, %v1374
          %v1437 = vpack.c.b16 %v1377, %v1375
          %v1438 = vpack.c.b16 %v1380, %v1378
          %v1439 = vpack.c.b16 %v1381, %v1379
          %v1440 = vpack.c.b16 %v1384, %v1382
          %v1441 = vpack.c.b16 %v1385, %v1383
          %v1442 = vpack.c.b16 %v1388, %v1386
          %v1443 = vpack.c.b16 %v1389, %v1387
          %v1444 = vpack.c.b16 %v1392, %v1390
          %v1445 = vpack.c.b16 %v1393, %v1391
          %v1446 = vpack.c.b16 %v1396, %v1394
          %v1447 = vpack.c.b16 %v1397, %v1395
          %v1448 = vpack.c.b16 %v1400, %v1398
          %v1449 = vpack.c.b16 %v1401, %v1399
          %v1450 = vpack.c.b16 %v1404, %v1402
          %v1451 = vpack.c.b16 %v1405, %v1403
          %v1452 = vpack.c.b16 %v1408, %v1406
          %v1453 = vpack.c.b16 %v1409, %v1407
          %v1454 = vpack.c.b16 %v1412, %v1410
          %v1455 = vpack.c.b16 %v1413, %v1411
          %v1456 = vpack.c.b16 %v1416, %v1414
          %v1457 = vpack.c.b16 %v1417, %v1415
          %v1458 = vpack.c.b16 %v1420, %v1418
          %v1459 = vpack.c.b16 %v1421, %v1419
          %v1460 = vpack.c.b16 %v1424, %v1422
          %v1461 = vpack.c.b16 %v1425, %v1423
          %v1462 = vpack.c.b16 %v1428, %v1426
          %v1463 = vpack.c.b16 %v1429, %v1427
          %v1464 = vpack.c.b16 %v1432, %v1430
          %v1465 = vpack.c.b16 %v1433, %v1431
          %1498 = vmatprep.subr.bf16.mxu0 %v1435
          %1499 = vmatpush1.bf16.msra.mxu0 %v1434
          %1500 = vmatprep.subr.bf16.mxu0 %v1437
          %1501 = vmatpush1.bf16.msra.mxu0 %v1436
          %1502 = vmatprep.subr.bf16.mxu0 %v1439
          %1503 = vmatpush1.bf16.msra.mxu0 %v1438
          %1504 = vmatprep.subr.bf16.mxu0 %v1441
          %1505 = vmatpush1.bf16.msra.mxu0 %v1440
          %1506 = vmatprep.subr.bf16.mxu0 %v1443
          %1507 = vmatpush1.bf16.msra.mxu0 %v1442
          %1508 = vmatprep.subr.bf16.mxu0 %v1445
          %1509 = vmatpush1.bf16.msra.mxu0 %v1444
          %1510 = vmatprep.subr.bf16.mxu0 %v1447
          %1511 = vmatpush1.bf16.msra.mxu0 %v1446
          %1512 = vmatprep.subr.bf16.mxu0 %v1449
          %1513 = vmatpush1.bf16.msra.mxu0 %v1448
          %1514 = vmatprep.subr.bf16.mxu0 %v1451
          %1515 = vmatpush1.bf16.msra.mxu0 %v1450
          %1516 = vmatprep.subr.bf16.mxu0 %v1453
          %1517 = vmatpush1.bf16.msra.mxu0 %v1452
          %1518 = vmatprep.subr.bf16.mxu0 %v1455
          %1519 = vmatpush1.bf16.msra.mxu0 %v1454
          %1520 = vmatprep.subr.bf16.mxu0 %v1457
          %1521 = vmatpush1.bf16.msra.mxu0 %v1456
          %1522 = vmatprep.subr.bf16.mxu0 %v1459
          %1523 = vmatpush1.bf16.msra.mxu0 %v1458
          %1524 = vmatprep.subr.bf16.mxu0 %v1461
          %1525 = vmatpush1.bf16.msra.mxu0 %v1460
          %1526 = vmatprep.subr.bf16.mxu0 %v1463
          %1527 = vmatpush1.bf16.msra.mxu0 %v1462
          %1528 = vmatprep.subr.bf16.mxu0 %v1465
          %1529 = vmatpush1.bf16.msra.mxu0 %v1464
          %1530 = vmatprep.mubr.bf16.mxu0 %v1263
          %1531 = vmatmul.mubr.bf16.gmra.mrb[0].mxu0 %v1262
          %v1532 = vpop.f32.mrb[0].mxu0
          %v1533 = vadd.f32 %v1331, %v1532
          %v1534 = vpop.f32.mrb[0].mxu0
          %v1535 = vadd.f32 %v1335, %v1534
          %v1536 = vpop.f32.mrb[0].mxu0
          %v1537 = vadd.f32 %v1331, %v1536
          %v1538 = vpop.f32.mrb[0].mxu0
          %v1539 = vadd.f32 %v1335, %v1538
          %1540 = vmatprep.mubr.bf16.mxu0 %v1265
          %1541 = vmatmul.mubr.bf16.gmra.mrb[0].mxu0 %v1264
          %v1542 = vpop.f32.mrb[0].mxu0
          %v1543 = vadd.f32 %v1331, %v1542
          %v1544 = vpop.f32.mrb[0].mxu0
          %v1545 = vadd.f32 %v1335, %v1544
          %v1546 = vpop.f32.mrb[0].mxu0
          %v1547 = vadd.f32 %v1331, %v1546
          %v1548 = vpop.f32.mrb[0].mxu0
          %v1549 = vadd.f32 %v1335, %v1548
          %1550 = vmatprep.mubr.bf16.mxu0 %v1267
          %1551 = vmatmul.mubr.bf16.gmra.mrb[0].mxu0 %v1266
          %v1552 = vpop.f32.mrb[0].mxu0
          %v1553 = vadd.f32 %v1331, %v1552
          %v1554 = vpop.f32.mrb[0].mxu0
          %v1555 = vadd.f32 %v1335, %v1554
          %v1556 = vpop.f32.mrb[0].mxu0
          %v1557 = vadd.f32 %v1331, %v1556
          %v1558 = vpop.f32.mrb[0].mxu0
          %v1559 = vadd.f32 %v1335, %v1558
          %1560 = vmatprep.mubr.bf16.mxu0 %v1269
          %1561 = vmatmul.mubr.bf16.gmra.mrb[0].mxu0 %v1268
          %v1562 = vpop.f32.mrb[0].mxu0
          %v1563 = vadd.f32 %v1331, %v1562
          %v1564 = vpop.f32.mrb[0].mxu0
          %v1565 = vadd.f32 %v1335, %v1564
          %v1566 = vpop.f32.mrb[0].mxu0
          %v1567 = vadd.f32 %v1331, %v1566
          %v1568 = vpop.f32.mrb[0].mxu0
          %v1569 = vadd.f32 %v1335, %v1568
          %1570 = vmatprep.mubr.bf16.mxu0 %v1271
          %1571 = vmatmul.mubr.bf16.gmra.mrb[0].mxu0 %v1270
          %v1572 = vpop.f32.mrb[0].mxu0
          %v1573 = vadd.f32 %v1331, %v1572
          %v1574 = vpop.f32.mrb[0].mxu0
          %v1575 = vadd.f32 %v1335, %v1574
          %v1576 = vpop.f32.mrb[0].mxu0
          %v1577 = vadd.f32 %v1331, %v1576
          %v1578 = vpop.f32.mrb[0].mxu0
          %v1579 = vadd.f32 %v1335, %v1578
          %1580 = vmatprep.mubr.bf16.mxu0 %v1273
          %1581 = vmatmul.mubr.bf16.gmra.mrb[0].mxu0 %v1272
          %v1582 = vpop.f32.mrb[0].mxu0
          %v1583 = vadd.f32 %v1331, %v1582
          %v1584 = vpop.f32.mrb[0].mxu0
          %v1585 = vadd.f32 %v1335, %v1584
          %v1586 = vpop.f32.mrb[0].mxu0
          %v1587 = vadd.f32 %v1331, %v1586
          %v1588 = vpop.f32.mrb[0].mxu0
          %v1589 = vadd.f32 %v1335, %v1588
          %1590 = vmatprep.mubr.bf16.mxu0 %v1275
          %1591 = vmatmul.mubr.bf16.gmra.mrb[0].mxu0 %v1274
          %v1592 = vpop.f32.mrb[0].mxu0
          %v1593 = vadd.f32 %v1331, %v1592
          %v1594 = vpop.f32.mrb[0].mxu0
          %v1595 = vadd.f32 %v1335, %v1594
          %v1596 = vpop.f32.mrb[0].mxu0
          %v1597 = vadd.f32 %v1331, %v1596
          %v1598 = vpop.f32.mrb[0].mxu0
          %v1599 = vadd.f32 %v1335, %v1598
          %1600 = vmatprep.mubr.bf16.mxu0 %v1277
          %1601 = vmatmul.mubr.bf16.gmra.mrb[0].mxu0 %v1276
          %v1602 = vpop.f32.mrb[0].mxu0
          %v1603 = vadd.f32 %v1331, %v1602
          %v1604 = vpop.f32.mrb[0].mxu0
          %v1605 = vadd.f32 %v1335, %v1604
          %v1606 = vpop.f32.mrb[0].mxu0
          %v1607 = vadd.f32 %v1331, %v1606
          %v1608 = vpop.f32.mrb[0].mxu0
          %v1609 = vadd.f32 %v1335, %v1608
          %1610 = vdwg.mxu0
          %v1611 = vpack.c.bf16 %v1537, %v1533
          %v1612 = vpack.c.bf16 %v1539, %v1535
          %v1613 = vpack.c.bf16 %v1547, %v1543
          %v1614 = vpack.c.bf16 %v1549, %v1545
          %v1615 = vpack.c.bf16 %v1557, %v1553
          %v1616 = vpack.c.bf16 %v1559, %v1555
          %v1617 = vpack.c.bf16 %v1567, %v1563
          %v1618 = vpack.c.bf16 %v1569, %v1565
          %v1619 = vpack.c.bf16 %v1577, %v1573
          %v1620 = vpack.c.bf16 %v1579, %v1575
          %v1621 = vpack.c.bf16 %v1587, %v1583
          %v1622 = vpack.c.bf16 %v1589, %v1585
          %v1623 = vpack.c.bf16 %v1597, %v1593
          %v1624 = vpack.c.bf16 %v1599, %v1595
          %v1625 = vpack.c.bf16 %v1607, %v1603
          %v1626 = vpack.c.bf16 %v1609, %v1605
          %1627 = vst [vmem:[#allocation2] sm:$0xff] %v1611
          %1628 = vst [vmem:[#allocation2 + $0x8] sm:$0xff] %v1612
          %1629 = vst [vmem:[#allocation2 + $0x10] sm:$0xff] %v1613
          %1630 = vst [vmem:[#allocation2 + $0x18] sm:$0xff] %v1614
          %1631 = vst [vmem:[#allocation2 + $0x20] sm:$0xff] %v1615
          %1632 = vst [vmem:[#allocation2 + $0x28] sm:$0xff] %v1616
          %1633 = vst [vmem:[#allocation2 + $0x30] sm:$0xff] %v1617
          %1634 = vst [vmem:[#allocation2 + $0x38] sm:$0xff] %v1618
          %1635 = vst [vmem:[#allocation2 + $0x40] sm:$0xff] %v1619
          %1636 = vst [vmem:[#allocation2 + $0x48] sm:$0xff] %v1620
          %1637 = vst [vmem:[#allocation2 + $0x50] sm:$0xff] %v1621
          %1638 = vst [vmem:[#allocation2 + $0x58] sm:$0xff] %v1622
          %1639 = vst [vmem:[#allocation2 + $0x60] sm:$0xff] %v1623
          %1640 = vst [vmem:[#allocation2 + $0x68] sm:$0xff] %v1624
          %1641 = vst [vmem:[#allocation2 + $0x70] sm:$0xff] %v1625
          %1642 = vst [vmem:[#allocation2 + $0x78] sm:$0xff] %v1626
          %v1643 = vld [vmem:[#allocation6] sm:$0xff]
          %v1644 = vld [vmem:[#allocation6 + $0x8] sm:$0xff]
          %v1645 = vld [vmem:[#allocation6 + $0x10] sm:$0xff]
          %v1646 = vld [vmem:[#allocation6 + $0x18] sm:$0xff]
          %v1647 = vld [vmem:[#allocation6 + $0x20] sm:$0xff]
          %v1648 = vld [vmem:[#allocation6 + $0x28] sm:$0xff]
          %v1649 = vld [vmem:[#allocation6 + $0x30] sm:$0xff]
          %v1650 = vld [vmem:[#allocation6 + $0x38] sm:$0xff]
          %v1651 = vld [vmem:[#allocation6 + $0x40] sm:$0xff]
          %v1652 = vld [vmem:[#allocation6 + $0x48] sm:$0xff]
          %v1653 = vld [vmem:[#allocation6 + $0x50] sm:$0xff]
          %v1654 = vld [vmem:[#allocation6 + $0x58] sm:$0xff]
          %v1655 = vld [vmem:[#allocation6 + $0x60] sm:$0xff]
          %v1656 = vld [vmem:[#allocation6 + $0x68] sm:$0xff]
          %v1657 = vld [vmem:[#allocation6 + $0x70] sm:$0xff]
          %v1658 = vld [vmem:[#allocation6 + $0x78] sm:$0xff]
          %v1659 = vld [vmem:[#allocation6 + $0x80] sm:$0xff]
          %v1660 = vld [vmem:[#allocation6 + $0x88] sm:$0xff]
          %v1661 = vld [vmem:[#allocation6 + $0x90] sm:$0xff]
          %v1662 = vld [vmem:[#allocation6 + $0x98] sm:$0xff]
          %v1663 = vld [vmem:[#allocation6 + $0xa0] sm:$0xff]
          %v1664 = vld [vmem:[#allocation6 + $0xa8] sm:$0xff]
          %v1665 = vld [vmem:[#allocation6 + $0xb0] sm:$0xff]
          %v1666 = vld [vmem:[#allocation6 + $0xb8] sm:$0xff]
          %v1667 = vld [vmem:[#allocation6 + $0xc0] sm:$0xff]
          %v1668 = vld [vmem:[#allocation6 + $0xc8] sm:$0xff]
          %v1669 = vld [vmem:[#allocation6 + $0xd0] sm:$0xff]
          %v1670 = vld [vmem:[#allocation6 + $0xd8] sm:$0xff]
          %v1671 = vld [vmem:[#allocation6 + $0xe0] sm:$0xff]
          %v1672 = vld [vmem:[#allocation6 + $0xe8] sm:$0xff]
          %v1673 = vld [vmem:[#allocation6 + $0xf0] sm:$0xff]
          %v1674 = vld [vmem:[#allocation6 + $0xf8] sm:$0xff]
          %v1675 = vld [vmem:[%s9] sm:$0x3]
          %v1677 = vlaneseq
          %v1678 = vshrl.u32 %v1677, 7
          %v1679 = vsub.s32 0, %v1678
          %v1680 = vrot.slane %v1675, %v1679
          %v1681 = vlaneseq
          %v1682 = vshrl.u32 %v1681, 7
          %v1683 = vsub.s32 1, %v1682
          %v1684 = vrot.slane %v1675, %v1683
          %v1719 = vunpack.c.l.b16 %v1643
          %v1720 = vunpack.c.h.b16 %v1643
          %v1721 = vunpack.c.l.b16 %v1644
          %v1722 = vunpack.c.h.b16 %v1644
          %v1723 = vunpack.c.l.b16 %v1645
          %v1724 = vunpack.c.h.b16 %v1645
          %v1725 = vunpack.c.l.b16 %v1646
          %v1726 = vunpack.c.h.b16 %v1646
          %v1727 = vunpack.c.l.b16 %v1647
          %v1728 = vunpack.c.h.b16 %v1647
          %v1729 = vunpack.c.l.b16 %v1648
          %v1730 = vunpack.c.h.b16 %v1648
          %v1731 = vunpack.c.l.b16 %v1649
          %v1732 = vunpack.c.h.b16 %v1649
          %v1733 = vunpack.c.l.b16 %v1650
          %v1734 = vunpack.c.h.b16 %v1650
          %v1735 = vunpack.c.l.b16 %v1651
          %v1736 = vunpack.c.h.b16 %v1651
          %v1737 = vunpack.c.l.b16 %v1652
          %v1738 = vunpack.c.h.b16 %v1652
          %v1739 = vunpack.c.l.b16 %v1653
          %v1740 = vunpack.c.h.b16 %v1653
          %v1741 = vunpack.c.l.b16 %v1654
          %v1742 = vunpack.c.h.b16 %v1654
          %v1743 = vunpack.c.l.b16 %v1655
          %v1744 = vunpack.c.h.b16 %v1655
          %v1745 = vunpack.c.l.b16 %v1656
          %v1746 = vunpack.c.h.b16 %v1656
          %v1747 = vunpack.c.l.b16 %v1657
          %v1748 = vunpack.c.h.b16 %v1657
          %v1749 = vunpack.c.l.b16 %v1658
          %v1750 = vunpack.c.h.b16 %v1658
          %v1751 = vunpack.c.l.b16 %v1659
          %v1752 = vunpack.c.h.b16 %v1659
          %v1753 = vunpack.c.l.b16 %v1660
          %v1754 = vunpack.c.h.b16 %v1660
          %v1755 = vunpack.c.l.b16 %v1661
          %v1756 = vunpack.c.h.b16 %v1661
          %v1757 = vunpack.c.l.b16 %v1662
          %v1758 = vunpack.c.h.b16 %v1662
          %v1759 = vunpack.c.l.b16 %v1663
          %v1760 = vunpack.c.h.b16 %v1663
          %v1761 = vunpack.c.l.b16 %v1664
          %v1762 = vunpack.c.h.b16 %v1664
          %v1763 = vunpack.c.l.b16 %v1665
          %v1764 = vunpack.c.h.b16 %v1665
          %v1765 = vunpack.c.l.b16 %v1666
          %v1766 = vunpack.c.h.b16 %v1666
          %v1767 = vunpack.c.l.b16 %v1667
          %v1768 = vunpack.c.h.b16 %v1667
          %v1769 = vunpack.c.l.b16 %v1668
          %v1770 = vunpack.c.h.b16 %v1668
          %v1771 = vunpack.c.l.b16 %v1669
          %v1772 = vunpack.c.h.b16 %v1669
          %v1773 = vunpack.c.l.b16 %v1670
          %v1774 = vunpack.c.h.b16 %v1670
          %v1775 = vunpack.c.l.b16 %v1671
          %v1776 = vunpack.c.h.b16 %v1671
          %v1777 = vunpack.c.l.b16 %v1672
          %v1778 = vunpack.c.h.b16 %v1672
          %v1779 = vunpack.c.l.b16 %v1673
          %v1780 = vunpack.c.h.b16 %v1673
          %v1781 = vunpack.c.l.b16 %v1674
          %v1782 = vunpack.c.h.b16 %v1674
          %v1783 = vpack.c.b16 %v1721, %v1719
          %v1784 = vpack.c.b16 %v1722, %v1720
          %v1785 = vpack.c.b16 %v1725, %v1723
          %v1786 = vpack.c.b16 %v1726, %v1724
          %v1787 = vpack.c.b16 %v1729, %v1727
          %v1788 = vpack.c.b16 %v1730, %v1728
          %v1789 = vpack.c.b16 %v1733, %v1731
          %v1790 = vpack.c.b16 %v1734, %v1732
          %v1791 = vpack.c.b16 %v1737, %v1735
          %v1792 = vpack.c.b16 %v1738, %v1736
          %v1793 = vpack.c.b16 %v1741, %v1739
          %v1794 = vpack.c.b16 %v1742, %v1740
          %v1795 = vpack.c.b16 %v1745, %v1743
          %v1796 = vpack.c.b16 %v1746, %v1744
          %v1797 = vpack.c.b16 %v1749, %v1747
          %v1798 = vpack.c.b16 %v1750, %v1748
          %v1799 = vpack.c.b16 %v1753, %v1751
          %v1800 = vpack.c.b16 %v1754, %v1752
          %v1801 = vpack.c.b16 %v1757, %v1755
          %v1802 = vpack.c.b16 %v1758, %v1756
          %v1803 = vpack.c.b16 %v1761, %v1759
          %v1804 = vpack.c.b16 %v1762, %v1760
          %v1805 = vpack.c.b16 %v1765, %v1763
          %v1806 = vpack.c.b16 %v1766, %v1764
          %v1807 = vpack.c.b16 %v1769, %v1767
          %v1808 = vpack.c.b16 %v1770, %v1768
          %v1809 = vpack.c.b16 %v1773, %v1771
          %v1810 = vpack.c.b16 %v1774, %v1772
          %v1811 = vpack.c.b16 %v1777, %v1775
          %v1812 = vpack.c.b16 %v1778, %v1776
          %v1813 = vpack.c.b16 %v1781, %v1779
          %v1814 = vpack.c.b16 %v1782, %v1780
          %1847 = vmatprep.subr.bf16.mxu0 %v1784
          %1848 = vmatpush1.bf16.msra.mxu0 %v1783
          %1849 = vmatprep.subr.bf16.mxu0 %v1786
          %1850 = vmatpush1.bf16.msra.mxu0 %v1785
          %1851 = vmatprep.subr.bf16.mxu0 %v1788
          %1852 = vmatpush1.bf16.msra.mxu0 %v1787
          %1853 = vmatprep.subr.bf16.mxu0 %v1790
          %1854 = vmatpush1.bf16.msra.mxu0 %v1789
          %1855 = vmatprep.subr.bf16.mxu0 %v1792
          %1856 = vmatpush1.bf16.msra.mxu0 %v1791
          %1857 = vmatprep.subr.bf16.mxu0 %v1794
          %1858 = vmatpush1.bf16.msra.mxu0 %v1793
          %1859 = vmatprep.subr.bf16.mxu0 %v1796
          %1860 = vmatpush1.bf16.msra.mxu0 %v1795
          %1861 = vmatprep.subr.bf16.mxu0 %v1798
          %1862 = vmatpush1.bf16.msra.mxu0 %v1797
          %1863 = vmatprep.subr.bf16.mxu0 %v1800
          %1864 = vmatpush1.bf16.msra.mxu0 %v1799
          %1865 = vmatprep.subr.bf16.mxu0 %v1802
          %1866 = vmatpush1.bf16.msra.mxu0 %v1801
          %1867 = vmatprep.subr.bf16.mxu0 %v1804
          %1868 = vmatpush1.bf16.msra.mxu0 %v1803
          %1869 = vmatprep.subr.bf16.mxu0 %v1806
          %1870 = vmatpush1.bf16.msra.mxu0 %v1805
          %1871 = vmatprep.subr.bf16.mxu0 %v1808
          %1872 = vmatpush1.bf16.msra.mxu0 %v1807
          %1873 = vmatprep.subr.bf16.mxu0 %v1810
          %1874 = vmatpush1.bf16.msra.mxu0 %v1809
          %1875 = vmatprep.subr.bf16.mxu0 %v1812
          %1876 = vmatpush1.bf16.msra.mxu0 %v1811
          %1877 = vmatprep.subr.bf16.mxu0 %v1814
          %1878 = vmatpush1.bf16.msra.mxu0 %v1813
          %1879 = vmatprep.mubr.bf16.mxu0 %v1279
          %1880 = vmatmul.mubr.bf16.gmra.mrb[0].mxu0 %v1278
          %v1881 = vpop.f32.mrb[0].mxu0
          %v1882 = vadd.f32 %v1680, %v1881
          %v1883 = vpop.f32.mrb[0].mxu0
          %v1884 = vadd.f32 %v1684, %v1883
          %v1885 = vpop.f32.mrb[0].mxu0
          %v1886 = vadd.f32 %v1680, %v1885
          %v1887 = vpop.f32.mrb[0].mxu0
          %v1888 = vadd.f32 %v1684, %v1887
          %1889 = vmatprep.mubr.bf16.mxu0 %v1281
          %1890 = vmatmul.mubr.bf16.gmra.mrb[0].mxu0 %v1280
          %v1891 = vpop.f32.mrb[0].mxu0
          %v1892 = vadd.f32 %v1680, %v1891
          %v1893 = vpop.f32.mrb[0].mxu0
          %v1894 = vadd.f32 %v1684, %v1893
          %v1895 = vpop.f32.mrb[0].mxu0
          %v1896 = vadd.f32 %v1680, %v1895
          %v1897 = vpop.f32.mrb[0].mxu0
          %v1898 = vadd.f32 %v1684, %v1897
          %1899 = vmatprep.mubr.bf16.mxu0 %v1283
          %1900 = vmatmul.mubr.bf16.gmra.mrb[0].mxu0 %v1282
          %v1901 = vpop.f32.mrb[0].mxu0
          %v1902 = vadd.f32 %v1680, %v1901
          %v1903 = vpop.f32.mrb[0].mxu0
          %v1904 = vadd.f32 %v1684, %v1903
          %v1905 = vpop.f32.mrb[0].mxu0
          %v1906 = vadd.f32 %v1680, %v1905
          %v1907 = vpop.f32.mrb[0].mxu0
          %v1908 = vadd.f32 %v1684, %v1907
          %1909 = vmatprep.mubr.bf16.mxu0 %v1285
          %1910 = vmatmul.mubr.bf16.gmra.mrb[0].mxu0 %v1284
          %v1911 = vpop.f32.mrb[0].mxu0
          %v1912 = vadd.f32 %v1680, %v1911
          %v1913 = vpop.f32.mrb[0].mxu0
          %v1914 = vadd.f32 %v1684, %v1913
          %v1915 = vpop.f32.mrb[0].mxu0
          %v1916 = vadd.f32 %v1680, %v1915
          %v1917 = vpop.f32.mrb[0].mxu0
          %v1918 = vadd.f32 %v1684, %v1917
          %1919 = vmatprep.mubr.bf16.mxu0 %v1287
          %1920 = vmatmul.mubr.bf16.gmra.mrb[0].mxu0 %v1286
          %v1921 = vpop.f32.mrb[0].mxu0
          %v1922 = vadd.f32 %v1680, %v1921
          %v1923 = vpop.f32.mrb[0].mxu0
          %v1924 = vadd.f32 %v1684, %v1923
          %v1925 = vpop.f32.mrb[0].mxu0
          %v1926 = vadd.f32 %v1680, %v1925
          %v1927 = vpop.f32.mrb[0].mxu0
          %v1928 = vadd.f32 %v1684, %v1927
          %1929 = vmatprep.mubr.bf16.mxu0 %v1289
          %1930 = vmatmul.mubr.bf16.gmra.mrb[0].mxu0 %v1288
          %v1931 = vpop.f32.mrb[0].mxu0
          %v1932 = vadd.f32 %v1680, %v1931
          %v1933 = vpop.f32.mrb[0].mxu0
          %v1934 = vadd.f32 %v1684, %v1933
          %v1935 = vpop.f32.mrb[0].mxu0
          %v1936 = vadd.f32 %v1680, %v1935
          %v1937 = vpop.f32.mrb[0].mxu0
          %v1938 = vadd.f32 %v1684, %v1937
          %1939 = vmatprep.mubr.bf16.mxu0 %v1291
          %1940 = vmatmul.mubr.bf16.gmra.mrb[0].mxu0 %v1290
          %v1941 = vpop.f32.mrb[0].mxu0
          %v1942 = vadd.f32 %v1680, %v1941
          %v1943 = vpop.f32.mrb[0].mxu0
          %v1944 = vadd.f32 %v1684, %v1943
          %v1945 = vpop.f32.mrb[0].mxu0
          %v1946 = vadd.f32 %v1680, %v1945
          %v1947 = vpop.f32.mrb[0].mxu0
          %v1948 = vadd.f32 %v1684, %v1947
          %1949 = vmatprep.mubr.bf16.mxu0 %v1293
          %1950 = vmatmul.mubr.bf16.gmra.mrb[0].mxu0 %v1292
          %v1951 = vpop.f32.mrb[0].mxu0
          %v1952 = vadd.f32 %v1680, %v1951
          %v1953 = vpop.f32.mrb[0].mxu0
          %v1954 = vadd.f32 %v1684, %v1953
          %v1955 = vpop.f32.mrb[0].mxu0
          %v1956 = vadd.f32 %v1680, %v1955
          %v1957 = vpop.f32.mrb[0].mxu0
          %v1958 = vadd.f32 %v1684, %v1957
          %1959 = vdwg.mxu0
          %v1960 = vpack.c.bf16 %v1886, %v1882
          %v1961 = vpack.c.bf16 %v1888, %v1884
          %v1962 = vpack.c.bf16 %v1896, %v1892
          %v1963 = vpack.c.bf16 %v1898, %v1894
          %v1964 = vpack.c.bf16 %v1906, %v1902
          %v1965 = vpack.c.bf16 %v1908, %v1904
          %v1966 = vpack.c.bf16 %v1916, %v1912
          %v1967 = vpack.c.bf16 %v1918, %v1914
          %v1968 = vpack.c.bf16 %v1926, %v1922
          %v1969 = vpack.c.bf16 %v1928, %v1924
          %v1970 = vpack.c.bf16 %v1936, %v1932
          %v1971 = vpack.c.bf16 %v1938, %v1934
          %v1972 = vpack.c.bf16 %v1946, %v1942
          %v1973 = vpack.c.bf16 %v1948, %v1944
          %v1974 = vpack.c.bf16 %v1956, %v1952
          %v1975 = vpack.c.bf16 %v1958, %v1954
          %1976 = vst [vmem:[#allocation3] sm:$0xff] %v1960
          %1977 = vst [vmem:[#allocation3 + $0x8] sm:$0xff] %v1961
          %1978 = vst [vmem:[#allocation3 + $0x10] sm:$0xff] %v1962
          %1979 = vst [vmem:[#allocation3 + $0x18] sm:$0xff] %v1963
          %1980 = vst [vmem:[#allocation3 + $0x20] sm:$0xff] %v1964
          %1981 = vst [vmem:[#allocation3 + $0x28] sm:$0xff] %v1965
          %1982 = vst [vmem:[#allocation3 + $0x30] sm:$0xff] %v1966
          %1983 = vst [vmem:[#allocation3 + $0x38] sm:$0xff] %v1967
          %1984 = vst [vmem:[#allocation3 + $0x40] sm:$0xff] %v1968
          %1985 = vst [vmem:[#allocation3 + $0x48] sm:$0xff] %v1969
          %1986 = vst [vmem:[#allocation3 + $0x50] sm:$0xff] %v1970
          %1987 = vst [vmem:[#allocation3 + $0x58] sm:$0xff] %v1971
          %1988 = vst [vmem:[#allocation3 + $0x60] sm:$0xff] %v1972
          %1989 = vst [vmem:[#allocation3 + $0x68] sm:$0xff] %v1973
          %1990 = vst [vmem:[#allocation3 + $0x70] sm:$0xff] %v1974
          %1991 = vst [vmem:[#allocation3 + $0x78] sm:$0xff] %v1975
          %v1992 = vld [vmem:[%s792] sm:$0x1]
          %1993 = vst [vmem:[#allocation5] sm:$0xff] 0.0
          %1994 = vst [vmem:[#allocation5 + $0x8] sm:$0xff] 0.0
          %1995 = vst [vmem:[#allocation5 + $0x10] sm:$0xff] 0.0
          %1996 = vst [vmem:[#allocation5 + $0x18] sm:$0xff] 0.0
          loop: start=0, step=1, limit=2
          $region121: #{resampler_forward.1} parent=119 // loop_pre_header
            _
          $region122: #{resampler_forward.1} parent=119 // loop_header
            %s1998 = sphi 0, %s2002
            %p1999 = scmp.ge.s32.totalorder %s1998, 2
          $region123: #{resampler_forward.1} parent=119 // loop_header_branch
            %2001 = sbr.rel (%p1999) target = $region127
          $region124: #{resampler_forward.1} parent=119 // loop_body
            %s2003 = smul.u32 %s1998, 128
            %s2004 = sshra.s32 %s2003, 7
            %s2005 = sand.u32 %s2003, 127
            %s2006 = smul.addr %s2004, 4
            %s2007 = scalar_lea.vmem %s3, %s2006
            %v2008 = vld [vmem:[%s2007] sm:$0xf]
            %v2009 = vld [vmem:[%s2007 + $0x8] sm:$0xf]
            %s2010 = smul.addr %s2004, 8
            %s2011 = scalar_lea.vmem [#allocation2], %s2010
            %v2012 = vld [vmem:[%s2011] sm:$0xff]
            %v2013 = vld [vmem:[%s2011 + $0x10] sm:$0xff]
            %v2014 = vld [vmem:[%s2011 + $0x20] sm:$0xff]
            %v2015 = vld [vmem:[%s2011 + $0x30] sm:$0xff]
            %v2016 = vld [vmem:[%s2011 + $0x40] sm:$0xff]
            %v2017 = vld [vmem:[%s2011 + $0x50] sm:$0xff]
            %v2018 = vld [vmem:[%s2011 + $0x60] sm:$0xff]
            %v2019 = vld [vmem:[%s2011 + $0x70] sm:$0xff]
            %s2020 = smul.addr %s2004, 8
            %s2021 = scalar_lea.vmem [#allocation3], %s2020
            %v2022 = vld [vmem:[%s2021] sm:$0xff]
            %v2023 = vld [vmem:[%s2021 + $0x10] sm:$0xff]
            %v2024 = vld [vmem:[%s2021 + $0x20] sm:$0xff]
            %v2025 = vld [vmem:[%s2021 + $0x30] sm:$0xff]
            %v2026 = vld [vmem:[%s2021 + $0x40] sm:$0xff]
            %v2027 = vld [vmem:[%s2021 + $0x50] sm:$0xff]
            %v2028 = vld [vmem:[%s2021 + $0x60] sm:$0xff]
            %v2029 = vld [vmem:[%s2021 + $0x70] sm:$0xff]
            %v2031 = vlaneseq
            %v2032 = vshrl.u32 %v2031, 7
            %v2033 = vsub.s32 0, %v2032
            %v2034 = vrot.slane %v1992, %v2033
            %v2038 = vunpack.c.l.b16 %v2008
            %v2039 = vunpack.c.l.b16 %v2009
            %v2040 = vpack.c.b16 %v2039, %v2038
            %2042 = vmatprep.subr.bf16.mxu0 0
            %2043 = vmatpush1.bf16.xpose.msra.mxu0 %v2012
            %2044 = vmatprep.subr.bf16.mxu0 0
            %2045 = vmatpush1.bf16.xpose.msra.mxu0 %v2013
            %2046 = vmatprep.subr.bf16.mxu0 0
            %2047 = vmatpush1.bf16.xpose.msra.mxu0 %v2014
            %2048 = vmatprep.subr.bf16.mxu0 0
            %2049 = vmatpush1.bf16.xpose.msra.mxu0 %v2015
            %2050 = vmatprep.subr.bf16.mxu0 0
            %2051 = vmatpush1.bf16.xpose.msra.mxu0 %v2016
            %2052 = vmatprep.subr.bf16.mxu0 0
            %2053 = vmatpush1.bf16.xpose.msra.mxu0 %v2017
            %2054 = vmatprep.subr.bf16.mxu0 0
            %2055 = vmatpush1.bf16.xpose.msra.mxu0 %v2018
            %2056 = vmatprep.subr.bf16.mxu0 0
            %2057 = vmatpush1.bf16.xpose.msra.mxu0 %v2019
            %2058 = vmatprep.subr.bf16.mxu0 0
            %2059 = vmatpush1.bf16.xpose.msra.mxu0 0
            %2060 = vmatprep.subr.bf16.mxu0 0
            %2061 = vmatpush1.bf16.xpose.msra.mxu0 0
            %2062 = vmatprep.subr.bf16.mxu0 0
            %2063 = vmatpush1.bf16.xpose.msra.mxu0 0
            %2064 = vmatprep.subr.bf16.mxu0 0
            %2065 = vmatpush1.bf16.xpose.msra.mxu0 0
            %2066 = vmatprep.subr.bf16.mxu0 0
            %2067 = vmatpush1.bf16.xpose.msra.mxu0 0
            %2068 = vmatprep.subr.bf16.mxu0 0
            %2069 = vmatpush1.bf16.xpose.msra.mxu0 0
            %2070 = vmatprep.subr.bf16.mxu0 0
            %2071 = vmatpush1.bf16.xpose.msra.mxu0 0
            %2072 = vmatprep.subr.bf16.mxu0 0
            %2073 = vmatpush1.bf16.xpose.msra.mxu0 0
            %2074 = vmatprep.mubr.bf16.mxu0 0
            %2075 = vmatmul.mubr.bf16.gmra.mrb[0].mxu0 %v2040
            %v2076 = vpop.f32.mrb[0].mxu0
            %v2077 = vadd.f32 %v2034, %v2076
            %v2078 = vpop.f32.mrb[0].mxu0
            %v2079 = vpop.f32.mrb[0].mxu0
            %v2080 = vadd.f32 %v2034, %v2079
            %v2081 = vpop.f32.mrb[0].mxu0
            %2082 = vdwg.mxu0
            %2083 = vmax.xlane.f32.xlu0 %v2077
            %v2084 = vpop.xlane.xlu0 %2083
            %2085 = vmax.xlane.f32.xlu0 %v2080
            %v2086 = vpop.xlane.xlu0 %2085
            %v2087 = vsub.f32 %v2077, %v2084
            %v2088 = vsub.f32 %v2080, %v2086
            %v2089 = vmul.f32 %v2087, 1.442695
            %v2090 = vpow.pop %v2089
            %v2091 = vmul.f32 %v2088, 1.442695
            %v2092 = vpow.pop %v2091
            %2093 = vadd.xlane.f32.xlu0 %v2090
            %v2094 = vpop.xlane.xlu0 %2093
            %2095 = vadd.xlane.f32.xlu0 %v2092
            %v2096 = vpop.xlane.xlu0 %2095
            %v2097 = vrcp.pop %v2094
            %v2098 = vrcp.pop %v2096
            %v2099 = vmul.f32 %v2090, %v2097
            %v2100 = vmul.f32 %v2092, %v2098
            %v2101 = vpack.c.bf16 %v2100, %v2099
            %2102 = vmatprep.subr.bf16.mxu0 0
            %2103 = vmatpush1.bf16.msra.mxu0 %v2022
            %2104 = vmatprep.subr.bf16.mxu0 0
            %2105 = vmatpush1.bf16.msra.mxu0 %v2023
            %2106 = vmatprep.subr.bf16.mxu0 0
            %2107 = vmatpush1.bf16.msra.mxu0 %v2024
            %2108 = vmatprep.subr.bf16.mxu0 0
            %2109 = vmatpush1.bf16.msra.mxu0 %v2025
            %2110 = vmatprep.subr.bf16.mxu0 0
            %2111 = vmatpush1.bf16.msra.mxu0 %v2026
            %2112 = vmatprep.subr.bf16.mxu0 0
            %2113 = vmatpush1.bf16.msra.mxu0 %v2027
            %2114 = vmatprep.subr.bf16.mxu0 0
            %2115 = vmatpush1.bf16.msra.mxu0 %v2028
            %2116 = vmatprep.subr.bf16.mxu0 0
            %2117 = vmatpush1.bf16.msra.mxu0 %v2029
            %2118 = vmatprep.subr.bf16.mxu0 0
            %2119 = vmatpush1.bf16.msra.mxu0 0
            %2120 = vmatprep.subr.bf16.mxu0 0
            %2121 = vmatpush1.bf16.msra.mxu0 0
            %2122 = vmatprep.subr.bf16.mxu0 0
            %2123 = vmatpush1.bf16.msra.mxu0 0
            %2124 = vmatprep.subr.bf16.mxu0 0
            %2125 = vmatpush1.bf16.msra.mxu0 0
            %2126 = vmatprep.subr.bf16.mxu0 0
            %2127 = vmatpush1.bf16.msra.mxu0 0
            %2128 = vmatprep.subr.bf16.mxu0 0
            %2129 = vmatpush1.bf16.msra.mxu0 0
            %2130 = vmatprep.subr.bf16.mxu0 0
            %2131 = vmatpush1.bf16.msra.mxu0 0
            %2132 = vmatprep.subr.bf16.mxu0 0
            %2133 = vmatpush1.bf16.msra.mxu0 0
            %2134 = vmatprep.mubr.bf16.mxu0 0
            %2135 = vmatmul.mubr.bf16.gmra.mrb[0].mxu0 %v2101
            %v2136 = vpop.f32.mrb[0].mxu0
            %v2137 = vadd.f32 0.0, %v2136
            %v2138 = vpop.f32.mrb[0].mxu0
            %v2139 = vpop.f32.mrb[0].mxu0
            %v2140 = vadd.f32 0.0, %v2139
            %v2141 = vpop.f32.mrb[0].mxu0
            %2142 = vdwg.mxu0
            %v2143 = vld [vmem:[#allocation5] sm:$0xff]
            %v2144 = vld [vmem:[#allocation5 + $0x8] sm:$0xff]
            %v2145 = vld [vmem:[#allocation5 + $0x10] sm:$0xff]
            %v2146 = vld [vmem:[#allocation5 + $0x18] sm:$0xff]
            %v2147 = vpack.c.bf16 %v2140, %v2137
            %s2148 = sshra.s32 %s2003, 3
            %s2149 = sand.u32 %s2003, 7
            %s2150 = smul.u32 %s2148, 2
            %s2151 = smul.addr %s2150, 4
            %s2152 = scalar_lea.vmem [#allocation9], %s2151
            %v2153 = vld [vmem:[%s2152] sm:$0xff]
            %v2154 = vld [vmem:[%s2152 + $0x8] sm:$0xff]
            %v2155 = vld [vmem:[%s2152 + $0x10] sm:$0xff]
            %v2156 = vld [vmem:[%s2152 + $0x18] sm:$0xff]
            %v2157 = vld [vmem:[%s2152 + $0x20] sm:$0xff]
            %v2158 = vld [vmem:[%s2152 + $0x28] sm:$0xff]
            %v2159 = vld [vmem:[%s2152 + $0x30] sm:$0xff]
            %v2160 = vld [vmem:[%s2152 + $0x38] sm:$0xff]
            %v2161 = vld [vmem:[%s2152 + $0x40] sm:$0xff]
            %v2162 = vld [vmem:[%s2152 + $0x48] sm:$0xff]
            %v2163 = vld [vmem:[%s2152 + $0x50] sm:$0xff]
            %v2164 = vld [vmem:[%s2152 + $0x58] sm:$0xff]
            %v2165 = vld [vmem:[%s2152 + $0x60] sm:$0xff]
            %v2166 = vld [vmem:[%s2152 + $0x68] sm:$0xff]
            %v2167 = vld [vmem:[%s2152 + $0x70] sm:$0xff]
            %v2168 = vld [vmem:[%s2152 + $0x78] sm:$0xff]
            %v2185 = vunpack.c.l.b16 %v2153
            %v2186 = vunpack.c.h.b16 %v2153
            %v2187 = vunpack.c.l.b16 %v2154
            %v2188 = vunpack.c.h.b16 %v2154
            %v2189 = vunpack.c.l.b16 %v2155
            %v2190 = vunpack.c.h.b16 %v2155
            %v2191 = vunpack.c.l.b16 %v2156
            %v2192 = vunpack.c.h.b16 %v2156
            %v2193 = vunpack.c.l.b16 %v2157
            %v2194 = vunpack.c.h.b16 %v2157
            %v2195 = vunpack.c.l.b16 %v2158
            %v2196 = vunpack.c.h.b16 %v2158
            %v2197 = vunpack.c.l.b16 %v2159
            %v2198 = vunpack.c.h.b16 %v2159
            %v2199 = vunpack.c.l.b16 %v2160
            %v2200 = vunpack.c.h.b16 %v2160
            %v2201 = vunpack.c.l.b16 %v2161
            %v2202 = vunpack.c.h.b16 %v2161
            %v2203 = vunpack.c.l.b16 %v2162
            %v2204 = vunpack.c.h.b16 %v2162
            %v2205 = vunpack.c.l.b16 %v2163
            %v2206 = vunpack.c.h.b16 %v2163
            %v2207 = vunpack.c.l.b16 %v2164
            %v2208 = vunpack.c.h.b16 %v2164
            %v2209 = vunpack.c.l.b16 %v2165
            %v2210 = vunpack.c.h.b16 %v2165
            %v2211 = vunpack.c.l.b16 %v2166
            %v2212 = vunpack.c.h.b16 %v2166
            %v2213 = vunpack.c.l.b16 %v2167
            %v2214 = vunpack.c.h.b16 %v2167
            %v2215 = vunpack.c.l.b16 %v2168
            %v2216 = vunpack.c.h.b16 %v2168
            %v2217 = vpack.c.b16 %v2187, %v2185
            %v2218 = vpack.c.b16 %v2188, %v2186
            %v2219 = vpack.c.b16 %v2191, %v2189
            %v2220 = vpack.c.b16 %v2192, %v2190
            %v2221 = vpack.c.b16 %v2195, %v2193
            %v2222 = vpack.c.b16 %v2196, %v2194
            %v2223 = vpack.c.b16 %v2199, %v2197
            %v2224 = vpack.c.b16 %v2200, %v2198
            %v2225 = vpack.c.b16 %v2203, %v2201
            %v2226 = vpack.c.b16 %v2204, %v2202
            %v2227 = vpack.c.b16 %v2207, %v2205
            %v2228 = vpack.c.b16 %v2208, %v2206
            %v2229 = vpack.c.b16 %v2211, %v2209
            %v2230 = vpack.c.b16 %v2212, %v2210
            %v2231 = vpack.c.b16 %v2215, %v2213
            %v2232 = vpack.c.b16 %v2216, %v2214
            %2249 = vmatprep.subr.bf16.mxu0 %v2218
            %2250 = vmatpush1.bf16.msra.mxu0 %v2217
            %2251 = vmatprep.subr.bf16.mxu0 %v2220
            %2252 = vmatpush1.bf16.msra.mxu0 %v2219
            %2253 = vmatprep.subr.bf16.mxu0 %v2222
            %2254 = vmatpush1.bf16.msra.mxu0 %v2221
            %2255 = vmatprep.subr.bf16.mxu0 %v2224
            %2256 = vmatpush1.bf16.msra.mxu0 %v2223
            %2257 = vmatprep.subr.bf16.mxu0 %v2226
            %2258 = vmatpush1.bf16.msra.mxu0 %v2225
            %2259 = vmatprep.subr.bf16.mxu0 %v2228
            %2260 = vmatpush1.bf16.msra.mxu0 %v2227
            %2261 = vmatprep.subr.bf16.mxu0 %v2230
            %2262 = vmatpush1.bf16.msra.mxu0 %v2229
            %2263 = vmatprep.subr.bf16.mxu0 %v2232
            %2264 = vmatpush1.bf16.msra.mxu0 %v2231
            %2265 = vmatprep.subr.bf16.mxu0 0
            %2266 = vmatpush1.bf16.msra.mxu0 0
            %2267 = vmatprep.subr.bf16.mxu0 0
            %2268 = vmatpush1.bf16.msra.mxu0 0
            %2269 = vmatprep.subr.bf16.mxu0 0
            %2270 = vmatpush1.bf16.msra.mxu0 0
            %2271 = vmatprep.subr.bf16.mxu0 0
            %2272 = vmatpush1.bf16.msra.mxu0 0
            %2273 = vmatprep.subr.bf16.mxu0 0
            %2274 = vmatpush1.bf16.msra.mxu0 0
            %2275 = vmatprep.subr.bf16.mxu0 0
            %2276 = vmatpush1.bf16.msra.mxu0 0
            %2277 = vmatprep.subr.bf16.mxu0 0
            %2278 = vmatpush1.bf16.msra.mxu0 0
            %2279 = vmatprep.subr.bf16.mxu0 0
            %2280 = vmatpush1.bf16.msra.mxu0 0
            %2281 = vmatprep.mubr.bf16.mxu0 0
            %2282 = vmatmul.mubr.bf16.gmra.mrb[0].mxu0 %v2147
            %v2283 = vpop.f32.mrb[0].mxu0
            %v2284 = vadd.f32 0.0, %v2283
            %v2285 = vpop.f32.mrb[0].mxu0
            %v2286 = vadd.f32 0.0, %v2285
            %v2287 = vpop.f32.mrb[0].mxu0
            %v2288 = vadd.f32 0.0, %v2287
            %v2289 = vpop.f32.mrb[0].mxu0
            %v2290 = vadd.f32 0.0, %v2289
            %2291 = vdwg.mxu0
            %v2292 = vadd.f32 %v2143, %v2284
            %v2293 = vadd.f32 %v2144, %v2286
            %v2294 = vadd.f32 %v2145, %v2288
            %v2295 = vadd.f32 %v2146, %v2290
            %2296 = vst [vmem:[#allocation5] sm:$0xff] %v2292
            %2297 = vst [vmem:[#allocation5 + $0x8] sm:$0xff] %v2293
            %2298 = vst [vmem:[#allocation5 + $0x10] sm:$0xff] %v2294
            %2299 = vst [vmem:[#allocation5 + $0x18] sm:$0xff] %v2295
          $region125: #{resampler_forward.1} parent=119 // loop_footer
            %s2002 = sadd.s32 1, %s1998
          $region126: #{resampler_forward.1} parent=119 // loop_footer_branch
            %1997 = sbr.rel target = $region122
          $region127: #{resampler_forward.1} parent=119 // loop_exit
            _
          %v2300 = vld [vmem:[#allocation5] sm:$0xff]
          %v2301 = vld [vmem:[#allocation5 + $0x8] sm:$0xff]
          %v2302 = vld [vmem:[#allocation5 + $0x10] sm:$0xff]
          %v2303 = vld [vmem:[#allocation5 + $0x18] sm:$0xff]
          %v2304 = vld [vmem:[%s11] sm:$0x3]
          %v2306 = vlaneseq
          %v2307 = vshrl.u32 %v2306, 7
          %v2308 = vsub.s32 0, %v2307
          %v2309 = vrot.slane %v2304, %v2308
          %v2310 = vlaneseq
          %v2311 = vshrl.u32 %v2310, 7
          %v2312 = vsub.s32 1, %v2311
          %v2313 = vrot.slane %v2304, %v2312
          %v2316 = vadd.f32 %v2300, %v2309
          %v2317 = vadd.f32 %v2301, %v2313
          %v2318 = vadd.f32 %v2302, %v2309
          %v2319 = vadd.f32 %v2303, %v2313
          %v2320 = vld [vmem:[%s12] sm:$0x3]
          %v2321 = vld [vmem:[%s13] sm:$0x3]
          %v2322 = vadd.f32 %v2316, %v2317
          %2323 = vadd.xlane.f32.xlu0 %v2322
          %v2324 = vpop.xlane.xlu0 %2323
          %v2325 = vadd.f32 %v2318, %v2319
          %2326 = vadd.xlane.f32.xlu0 %v2325
          %v2327 = vpop.xlane.xlu0 %2326
          %v2328 = vmul.f32 %v2324, %v935
          %v2329 = vmul.f32 %v2327, %v935
          %v2330 = vsub.f32 %v2316, %v2328
          %v2331 = vsub.f32 %v2317, %v2328
          %v2332 = vsub.f32 %v2318, %v2329
          %v2333 = vsub.f32 %v2319, %v2329
          %v2334 = vmul.f32 %v2330, %v2330
          %v2335 = vmul.f32 %v2331, %v2331
          %v2336 = vmul.f32 %v2332, %v2332
          %v2337 = vmul.f32 %v2333, %v2333
          %v2338 = vadd.f32 %v2334, %v2335
          %2339 = vadd.xlane.f32.xlu0 %v2338
          %v2340 = vpop.xlane.xlu0 %2339
          %v2341 = vadd.f32 %v2336, %v2337
          %2342 = vadd.xlane.f32.xlu0 %v2341
          %v2343 = vpop.xlane.xlu0 %2342
          %v2344 = vmul.f32 %v2340, %v935
          %v2345 = vmul.f32 %v2343, %v935
          %v2346 = vadd.f32 %v2344, 1e-06
          %v2347 = vadd.f32 %v2345, 1e-06
          %v2348 = vrsqrt.pop %v2346
          %v2349 = vrsqrt.pop %v2347
          %v2350 = vmul.f32 %v2330, %v2348
          %v2351 = vmul.f32 %v2331, %v2348
          %v2352 = vmul.f32 %v2332, %v2349
          %v2353 = vmul.f32 %v2333, %v2349
          %v2355 = vlaneseq
          %v2356 = vshrl.u32 %v2355, 7
          %v2357 = vsub.s32 0, %v2356
          %v2358 = vrot.slane %v2320, %v2357
          %v2359 = vlaneseq
          %v2360 = vshrl.u32 %v2359, 7
          %v2361 = vsub.s32 1, %v2360
          %v2362 = vrot.slane %v2320, %v2361
          %v2365 = vmul.f32 %v2350, %v2358
          %v2366 = vmul.f32 %v2351, %v2362
          %v2367 = vmul.f32 %v2352, %v2358
          %v2368 = vmul.f32 %v2353, %v2362
          %v2370 = vlaneseq
          %v2371 = vshrl.u32 %v2370, 7
          %v2372 = vsub.s32 0, %v2371
          %v2373 = vrot.slane %v2321, %v2372
          %v2374 = vlaneseq
          %v2375 = vshrl.u32 %v2374, 7
          %v2376 = vsub.s32 1, %v2375
          %v2377 = vrot.slane %v2321, %v2376
          %v2380 = vadd.f32 %v2365, %v2373
          %v2381 = vadd.f32 %v2366, %v2377
          %v2382 = vadd.f32 %v2367, %v2373
          %v2383 = vadd.f32 %v2368, %v2377
          %2384 = vst [vmem:[#allocation4] sm:$0xff] %v2380
          %2385 = vst [vmem:[#allocation4 + $0x8] sm:$0xff] %v2381
          %2386 = vst [vmem:[#allocation4 + $0x10] sm:$0xff] %v2382
          %2387 = vst [vmem:[#allocation4 + $0x18] sm:$0xff] %v2383
          %2388 = vst [vmem:[#allocation5] sm:$0xff] %v2380
          %2389 = vst [vmem:[#allocation5 + $0x8] sm:$0xff] %v2381
          %2390 = vst [vmem:[#allocation5 + $0x10] sm:$0xff] %v2382
          %2391 = vst [vmem:[#allocation5 + $0x18] sm:$0xff] %v2383
        $region120: #{resampler_forward.1} parent=99 // pred_fallthru
          _
        %v2392 = vld [vmem:[#allocation4] sm:$0xff]
        %v2393 = vld [vmem:[#allocation4 + $0x8] sm:$0xff]
        %v2394 = vld [vmem:[#allocation4 + $0x10] sm:$0xff]
        %v2395 = vld [vmem:[#allocation4 + $0x18] sm:$0xff]
        %v2396 = vpack.c.bf16 %v2394, %v2392
        %v2397 = vpack.c.bf16 %v2395, %v2393
        %v2398 = vld [vmem:[%s692] sm:$0xff]
        %v2399 = vld [vmem:[%s692 + $0x8] sm:$0xff]
        %v2400 = vld [vmem:[%s692 + $0x10] sm:$0xff]
        %v2401 = vld [vmem:[%s692 + $0x18] sm:$0xff]
        %v2402 = vld [vmem:[%s692 + $0x20] sm:$0xff]
        %v2403 = vld [vmem:[%s692 + $0x28] sm:$0xff]
        %v2404 = vld [vmem:[%s692 + $0x30] sm:$0xff]
        %v2405 = vld [vmem:[%s692 + $0x38] sm:$0xff]
        %v2406 = vld [vmem:[%s692 + $0x40] sm:$0xff]
        %v2407 = vld [vmem:[%s692 + $0x48] sm:$0xff]
        %v2408 = vld [vmem:[%s692 + $0x50] sm:$0xff]
        %v2409 = vld [vmem:[%s692 + $0x58] sm:$0xff]
        %v2410 = vld [vmem:[%s692 + $0x60] sm:$0xff]
        %v2411 = vld [vmem:[%s692 + $0x68] sm:$0xff]
        %v2412 = vld [vmem:[%s692 + $0x70] sm:$0xff]
        %v2413 = vld [vmem:[%s692 + $0x78] sm:$0xff]
        %v2414 = vld [vmem:[%s692 + $0x80] sm:$0xff]
        %v2415 = vld [vmem:[%s692 + $0x88] sm:$0xff]
        %v2416 = vld [vmem:[%s692 + $0x90] sm:$0xff]
        %v2417 = vld [vmem:[%s692 + $0x98] sm:$0xff]
        %v2418 = vld [vmem:[%s692 + $0xa0] sm:$0xff]
        %v2419 = vld [vmem:[%s692 + $0xa8] sm:$0xff]
        %v2420 = vld [vmem:[%s692 + $0xb0] sm:$0xff]
        %v2421 = vld [vmem:[%s692 + $0xb8] sm:$0xff]
        %v2422 = vld [vmem:[%s692 + $0xc0] sm:$0xff]
        %v2423 = vld [vmem:[%s692 + $0xc8] sm:$0xff]
        %v2424 = vld [vmem:[%s692 + $0xd0] sm:$0xff]
        %v2425 = vld [vmem:[%s692 + $0xd8] sm:$0xff]
        %v2426 = vld [vmem:[%s692 + $0xe0] sm:$0xff]
        %v2427 = vld [vmem:[%s692 + $0xe8] sm:$0xff]
        %v2428 = vld [vmem:[%s692 + $0xf0] sm:$0xff]
        %v2429 = vld [vmem:[%s692 + $0xf8] sm:$0xff]
        %v2430 = vld [vmem:[%s797] sm:$0x3]
        %v2432 = vlaneseq
        %v2433 = vshrl.u32 %v2432, 7
        %v2434 = vsub.s32 0, %v2433
        %v2435 = vrot.slane %v2430, %v2434
        %v2436 = vlaneseq
        %v2437 = vshrl.u32 %v2436, 7
        %v2438 = vsub.s32 1, %v2437
        %v2439 = vrot.slane %v2430, %v2438
        %v2474 = vunpack.c.l.b16 %v2398
        %v2475 = vunpack.c.h.b16 %v2398
        %v2476 = vunpack.c.l.b16 %v2399
        %v2477 = vunpack.c.h.b16 %v2399
        %v2478 = vunpack.c.l.b16 %v2400
        %v2479 = vunpack.c.h.b16 %v2400
        %v2480 = vunpack.c.l.b16 %v2401
        %v2481 = vunpack.c.h.b16 %v2401
        %v2482 = vunpack.c.l.b16 %v2402
        %v2483 = vunpack.c.h.b16 %v2402
        %v2484 = vunpack.c.l.b16 %v2403
        %v2485 = vunpack.c.h.b16 %v2403
        %v2486 = vunpack.c.l.b16 %v2404
        %v2487 = vunpack.c.h.b16 %v2404
        %v2488 = vunpack.c.l.b16 %v2405
        %v2489 = vunpack.c.h.b16 %v2405
        %v2490 = vunpack.c.l.b16 %v2406
        %v2491 = vunpack.c.h.b16 %v2406
        %v2492 = vunpack.c.l.b16 %v2407
        %v2493 = vunpack.c.h.b16 %v2407
        %v2494 = vunpack.c.l.b16 %v2408
        %v2495 = vunpack.c.h.b16 %v2408
        %v2496 = vunpack.c.l.b16 %v2409
        %v2497 = vunpack.c.h.b16 %v2409
        %v2498 = vunpack.c.l.b16 %v2410
        %v2499 = vunpack.c.h.b16 %v2410
        %v2500 = vunpack.c.l.b16 %v2411
        %v2501 = vunpack.c.h.b16 %v2411
        %v2502 = vunpack.c.l.b16 %v2412
        %v2503 = vunpack.c.h.b16 %v2412
        %v2504 = vunpack.c.l.b16 %v2413
        %v2505 = vunpack.c.h.b16 %v2413
        %v2506 = vunpack.c.l.b16 %v2414
        %v2507 = vunpack.c.h.b16 %v2414
        %v2508 = vunpack.c.l.b16 %v2415
        %v2509 = vunpack.c.h.b16 %v2415
        %v2510 = vunpack.c.l.b16 %v2416
        %v2511 = vunpack.c.h.b16 %v2416
        %v2512 = vunpack.c.l.b16 %v2417
        %v2513 = vunpack.c.h.b16 %v2417
        %v2514 = vunpack.c.l.b16 %v2418
        %v2515 = vunpack.c.h.b16 %v2418
        %v2516 = vunpack.c.l.b16 %v2419
        %v2517 = vunpack.c.h.b16 %v2419
        %v2518 = vunpack.c.l.b16 %v2420
        %v2519 = vunpack.c.h.b16 %v2420
        %v2520 = vunpack.c.l.b16 %v2421
        %v2521 = vunpack.c.h.b16 %v2421
        %v2522 = vunpack.c.l.b16 %v2422
        %v2523 = vunpack.c.h.b16 %v2422
        %v2524 = vunpack.c.l.b16 %v2423
        %v2525 = vunpack.c.h.b16 %v2423
        %v2526 = vunpack.c.l.b16 %v2424
        %v2527 = vunpack.c.h.b16 %v2424
        %v2528 = vunpack.c.l.b16 %v2425
        %v2529 = vunpack.c.h.b16 %v2425
        %v2530 = vunpack.c.l.b16 %v2426
        %v2531 = vunpack.c.h.b16 %v2426
        %v2532 = vunpack.c.l.b16 %v2427
        %v2533 = vunpack.c.h.b16 %v2427
        %v2534 = vunpack.c.l.b16 %v2428
        %v2535 = vunpack.c.h.b16 %v2428
        %v2536 = vunpack.c.l.b16 %v2429
        %v2537 = vunpack.c.h.b16 %v2429
        %v2538 = vpack.c.b16 %v2476, %v2474
        %v2539 = vpack.c.b16 %v2477, %v2475
        %v2540 = vpack.c.b16 %v2480, %v2478
        %v2541 = vpack.c.b16 %v2481, %v2479
        %v2542 = vpack.c.b16 %v2484, %v2482
        %v2543 = vpack.c.b16 %v2485, %v2483
        %v2544 = vpack.c.b16 %v2488, %v2486
        %v2545 = vpack.c.b16 %v2489, %v2487
        %v2546 = vpack.c.b16 %v2492, %v2490
        %v2547 = vpack.c.b16 %v2493, %v2491
        %v2548 = vpack.c.b16 %v2496, %v2494
        %v2549 = vpack.c.b16 %v2497, %v2495
        %v2550 = vpack.c.b16 %v2500, %v2498
        %v2551 = vpack.c.b16 %v2501, %v2499
        %v2552 = vpack.c.b16 %v2504, %v2502
        %v2553 = vpack.c.b16 %v2505, %v2503
        %v2554 = vpack.c.b16 %v2508, %v2506
        %v2555 = vpack.c.b16 %v2509, %v2507
        %v2556 = vpack.c.b16 %v2512, %v2510
        %v2557 = vpack.c.b16 %v2513, %v2511
        %v2558 = vpack.c.b16 %v2516, %v2514
        %v2559 = vpack.c.b16 %v2517, %v2515
        %v2560 = vpack.c.b16 %v2520, %v2518
        %v2561 = vpack.c.b16 %v2521, %v2519
        %v2562 = vpack.c.b16 %v2524, %v2522
        %v2563 = vpack.c.b16 %v2525, %v2523
        %v2564 = vpack.c.b16 %v2528, %v2526
        %v2565 = vpack.c.b16 %v2529, %v2527
        %v2566 = vpack.c.b16 %v2532, %v2530
        %v2567 = vpack.c.b16 %v2533, %v2531
        %v2568 = vpack.c.b16 %v2536, %v2534
        %v2569 = vpack.c.b16 %v2537, %v2535
        %2602 = vmatprep.subr.bf16.mxu0 %v2539
        %2603 = vmatpush1.bf16.msra.mxu0 %v2538
        %2604 = vmatprep.subr.bf16.mxu0 %v2541
        %2605 = vmatpush1.bf16.msra.mxu0 %v2540
        %2606 = vmatprep.subr.bf16.mxu0 %v2543
        %2607 = vmatpush1.bf16.msra.mxu0 %v2542
        %2608 = vmatprep.subr.bf16.mxu0 %v2545
        %2609 = vmatpush1.bf16.msra.mxu0 %v2544
        %2610 = vmatprep.subr.bf16.mxu0 %v2547
        %2611 = vmatpush1.bf16.msra.mxu0 %v2546
        %2612 = vmatprep.subr.bf16.mxu0 %v2549
        %2613 = vmatpush1.bf16.msra.mxu0 %v2548
        %2614 = vmatprep.subr.bf16.mxu0 %v2551
        %2615 = vmatpush1.bf16.msra.mxu0 %v2550
        %2616 = vmatprep.subr.bf16.mxu0 %v2553
        %2617 = vmatpush1.bf16.msra.mxu0 %v2552
        %2618 = vmatprep.subr.bf16.mxu0 %v2555
        %2619 = vmatpush1.bf16.msra.mxu0 %v2554
        %2620 = vmatprep.subr.bf16.mxu0 %v2557
        %2621 = vmatpush1.bf16.msra.mxu0 %v2556
        %2622 = vmatprep.subr.bf16.mxu0 %v2559
        %2623 = vmatpush1.bf16.msra.mxu0 %v2558
        %2624 = vmatprep.subr.bf16.mxu0 %v2561
        %2625 = vmatpush1.bf16.msra.mxu0 %v2560
        %2626 = vmatprep.subr.bf16.mxu0 %v2563
        %2627 = vmatpush1.bf16.msra.mxu0 %v2562
        %2628 = vmatprep.subr.bf16.mxu0 %v2565
        %2629 = vmatpush1.bf16.msra.mxu0 %v2564
        %2630 = vmatprep.subr.bf16.mxu0 %v2567
        %2631 = vmatpush1.bf16.msra.mxu0 %v2566
        %2632 = vmatprep.subr.bf16.mxu0 %v2569
        %2633 = vmatpush1.bf16.msra.mxu0 %v2568
        %2634 = vmatprep.mubr.bf16.mxu0 %v2397
        %2635 = vmatmul.mubr.bf16.gmra.mrb[0].mxu0 %v2396
        %v2636 = vpop.f32.mrb[0].mxu0
        %v2637 = vadd.f32 %v2435, %v2636
        %v2638 = vpop.f32.mrb[0].mxu0
        %v2639 = vadd.f32 %v2439, %v2638
        %v2640 = vpop.f32.mrb[0].mxu0
        %v2641 = vadd.f32 %v2435, %v2640
        %v2642 = vpop.f32.mrb[0].mxu0
        %v2643 = vadd.f32 %v2439, %v2642
        %2644 = vdwg.mxu0
        %v2645 = vmul.f32 %v2637, 0.5
        %v2646 = vmul.f32 %v2639, 0.5
        %v2647 = vmul.f32 %v2641, 0.5
        %v2648 = vmul.f32 %v2643, 0.5
        %v2649 = vmul.f32 %v2637, 0.70710677
        %v2650 = vmul.f32 %v2639, 0.70710677
        %v2651 = vmul.f32 %v2641, 0.70710677
        %v2652 = vmul.f32 %v2643, 0.70710677
        %vm2653 = vcmp.ge.f32.partialorder %v2649, 0.0
        %vm2654 = vcmp.ge.f32.partialorder %v2650, 0.0
        %vm2655 = vcmp.ge.f32.partialorder %v2651, 0.0
        %vm2656 = vcmp.ge.f32.partialorder %v2652, 0.0
        %v2657 = vsel %vm2653, 1.0, -1.0
        %v2658 = vsel %vm2654, 1.0, -1.0
        %v2659 = vsel %vm2655, 1.0, -1.0
        %v2660 = vsel %vm2656, 1.0, -1.0
        %v2661 = vand.u32 2147483647, %v2649
        %v2662 = vand.u32 2147483647, %v2650
        %v2663 = vand.u32 2147483647, %v2651
        %v2664 = vand.u32 2147483647, %v2652
        %v2665 = vmul.f32 %v2661, 0.3275911
        %v2666 = vmul.f32 %v2662, 0.3275911
        %v2667 = vmul.f32 %v2663, 0.3275911
        %v2668 = vmul.f32 %v2664, 0.3275911
        %v2669 = vadd.f32 %v2665, 1.0
        %v2670 = vadd.f32 %v2666, 1.0
        %v2671 = vadd.f32 %v2667, 1.0
        %v2672 = vadd.f32 %v2668, 1.0
        %v2673 = vrcp.pop %v2669
        %v2674 = vrcp.pop %v2670
        %v2675 = vrcp.pop %v2671
        %v2676 = vrcp.pop %v2672
        %v2677 = vmul.f32 %v2669, %v2673
        %v2678 = vmul.f32 %v2670, %v2674
        %v2679 = vmul.f32 %v2671, %v2675
        %v2680 = vmul.f32 %v2672, %v2676
        %v2681 = vsub.f32 2.0, %v2677
        %v2682 = vsub.f32 2.0, %v2678
        %v2683 = vsub.f32 2.0, %v2679
        %v2684 = vsub.f32 2.0, %v2680
        %v2685 = vmul.f32 %v2673, %v2681
        %v2686 = vmul.f32 %v2674, %v2682
        %v2687 = vmul.f32 %v2675, %v2683
        %v2688 = vmul.f32 %v2676, %v2684
        %v2689 = vmul.f32 %v2685, 1.0614054
        %v2690 = vmul.f32 %v2686, 1.0614054
        %v2691 = vmul.f32 %v2687, 1.0614054
        %v2692 = vmul.f32 %v2688, 1.0614054
        %v2693 = vadd.f32 %v2689, -1.4531521
        %v2694 = vadd.f32 %v2690, -1.4531521
        %v2695 = vadd.f32 %v2691, -1.4531521
        %v2696 = vadd.f32 %v2692, -1.4531521
        %v2697 = vmul.f32 %v2693, %v2685
        %v2698 = vmul.f32 %v2694, %v2686
        %v2699 = vmul.f32 %v2695, %v2687
        %v2700 = vmul.f32 %v2696, %v2688
        %v2701 = vadd.f32 %v2697, 1.4214138
        %v2702 = vadd.f32 %v2698, 1.4214138
        %v2703 = vadd.f32 %v2699, 1.4214138
        %v2704 = vadd.f32 %v2700, 1.4214138
        %v2705 = vmul.f32 %v2701, %v2685
        %v2706 = vmul.f32 %v2702, %v2686
        %v2707 = vmul.f32 %v2703, %v2687
        %v2708 = vmul.f32 %v2704, %v2688
        %v2709 = vadd.f32 %v2705, -0.28449672
        %v2710 = vadd.f32 %v2706, -0.28449672
        %v2711 = vadd.f32 %v2707, -0.28449672
        %v2712 = vadd.f32 %v2708, -0.28449672
        %v2713 = vmul.f32 %v2709, %v2685
        %v2714 = vmul.f32 %v2710, %v2686
        %v2715 = vmul.f32 %v2711, %v2687
        %v2716 = vmul.f32 %v2712, %v2688
        %v2717 = vadd.f32 %v2713, 0.2548296
        %v2718 = vadd.f32 %v2714, 0.2548296
        %v2719 = vadd.f32 %v2715, 0.2548296
        %v2720 = vadd.f32 %v2716, 0.2548296
        %v2721 = vmul.f32 %v2717, %v2685
        %v2722 = vmul.f32 %v2718, %v2686
        %v2723 = vmul.f32 %v2719, %v2687
        %v2724 = vmul.f32 %v2720, %v2688
        %v2725 = vsub.f32 0.0, %v2661
        %v2726 = vsub.f32 0.0, %v2662
        %v2727 = vsub.f32 0.0, %v2663
        %v2728 = vsub.f32 0.0, %v2664
        %v2729 = vmul.f32 %v2725, %v2661
        %v2730 = vmul.f32 %v2726, %v2662
        %v2731 = vmul.f32 %v2727, %v2663
        %v2732 = vmul.f32 %v2728, %v2664
        %v2733 = vmul.f32 %v2729, 1.442695
        %v2734 = vpow.pop %v2733
        %v2735 = vmul.f32 %v2730, 1.442695
        %v2736 = vpow.pop %v2735
        %v2737 = vmul.f32 %v2731, 1.442695
        %v2738 = vpow.pop %v2737
        %v2739 = vmul.f32 %v2732, 1.442695
        %v2740 = vpow.pop %v2739
        %v2741 = vmul.f32 %v2721, %v2734
        %v2742 = vmul.f32 %v2722, %v2736
        %v2743 = vmul.f32 %v2723, %v2738
        %v2744 = vmul.f32 %v2724, %v2740
        %v2745 = vsub.f32 1.0, %v2741
        %v2746 = vsub.f32 1.0, %v2742
        %v2747 = vsub.f32 1.0, %v2743
        %v2748 = vsub.f32 1.0, %v2744
        %v2749 = vmul.f32 %v2657, %v2745
        %v2750 = vmul.f32 %v2658, %v2746
        %v2751 = vmul.f32 %v2659, %v2747
        %v2752 = vmul.f32 %v2660, %v2748
        %v2753 = vadd.f32 %v2749, 1.0
        %v2754 = vadd.f32 %v2750, 1.0
        %v2755 = vadd.f32 %v2751, 1.0
        %v2756 = vadd.f32 %v2752, 1.0
        %v2757 = vmul.f32 %v2645, %v2753
        %v2758 = vmul.f32 %v2646, %v2754
        %v2759 = vmul.f32 %v2647, %v2755
        %v2760 = vmul.f32 %v2648, %v2756
        %v2761 = vld [vmem:[#allocation5] sm:$0xff]
        %v2762 = vld [vmem:[#allocation5 + $0x8] sm:$0xff]
        %v2763 = vld [vmem:[#allocation5 + $0x10] sm:$0xff]
        %v2764 = vld [vmem:[#allocation5 + $0x18] sm:$0xff]
        %v2765 = vpack.c.bf16 %v2759, %v2757
        %v2766 = vpack.c.bf16 %v2760, %v2758
        %v2767 = vld [vmem:[%s701] sm:$0xff]
        %v2768 = vld [vmem:[%s701 + $0x8] sm:$0xff]
        %v2769 = vld [vmem:[%s701 + $0x10] sm:$0xff]
        %v2770 = vld [vmem:[%s701 + $0x18] sm:$0xff]
        %v2771 = vld [vmem:[%s701 + $0x20] sm:$0xff]
        %v2772 = vld [vmem:[%s701 + $0x28] sm:$0xff]
        %v2773 = vld [vmem:[%s701 + $0x30] sm:$0xff]
        %v2774 = vld [vmem:[%s701 + $0x38] sm:$0xff]
        %v2775 = vld [vmem:[%s701 + $0x40] sm:$0xff]
        %v2776 = vld [vmem:[%s701 + $0x48] sm:$0xff]
        %v2777 = vld [vmem:[%s701 + $0x50] sm:$0xff]
        %v2778 = vld [vmem:[%s701 + $0x58] sm:$0xff]
        %v2779 = vld [vmem:[%s701 + $0x60] sm:$0xff]
        %v2780 = vld [vmem:[%s701 + $0x68] sm:$0xff]
        %v2781 = vld [vmem:[%s701 + $0x70] sm:$0xff]
        %v2782 = vld [vmem:[%s701 + $0x78] sm:$0xff]
        %v2783 = vld [vmem:[%s701 + $0x80] sm:$0xff]
        %v2784 = vld [vmem:[%s701 + $0x88] sm:$0xff]
        %v2785 = vld [vmem:[%s701 + $0x90] sm:$0xff]
        %v2786 = vld [vmem:[%s701 + $0x98] sm:$0xff]
        %v2787 = vld [vmem:[%s701 + $0xa0] sm:$0xff]
        %v2788 = vld [vmem:[%s701 + $0xa8] sm:$0xff]
        %v2789 = vld [vmem:[%s701 + $0xb0] sm:$0xff]
        %v2790 = vld [vmem:[%s701 + $0xb8] sm:$0xff]
        %v2791 = vld [vmem:[%s701 + $0xc0] sm:$0xff]
        %v2792 = vld [vmem:[%s701 + $0xc8] sm:$0xff]
        %v2793 = vld [vmem:[%s701 + $0xd0] sm:$0xff]
        %v2794 = vld [vmem:[%s701 + $0xd8] sm:$0xff]
        %v2795 = vld [vmem:[%s701 + $0xe0] sm:$0xff]
        %v2796 = vld [vmem:[%s701 + $0xe8] sm:$0xff]
        %v2797 = vld [vmem:[%s701 + $0xf0] sm:$0xff]
        %v2798 = vld [vmem:[%s701 + $0xf8] sm:$0xff]
        %v2831 = vunpack.c.l.b16 %v2767
        %v2832 = vunpack.c.h.b16 %v2767
        %v2833 = vunpack.c.l.b16 %v2768
        %v2834 = vunpack.c.h.b16 %v2768
        %v2835 = vunpack.c.l.b16 %v2769
        %v2836 = vunpack.c.h.b16 %v2769
        %v2837 = vunpack.c.l.b16 %v2770
        %v2838 = vunpack.c.h.b16 %v2770
        %v2839 = vunpack.c.l.b16 %v2771
        %v2840 = vunpack.c.h.b16 %v2771
        %v2841 = vunpack.c.l.b16 %v2772
        %v2842 = vunpack.c.h.b16 %v2772
        %v2843 = vunpack.c.l.b16 %v2773
        %v2844 = vunpack.c.h.b16 %v2773
        %v2845 = vunpack.c.l.b16 %v2774
        %v2846 = vunpack.c.h.b16 %v2774
        %v2847 = vunpack.c.l.b16 %v2775
        %v2848 = vunpack.c.h.b16 %v2775
        %v2849 = vunpack.c.l.b16 %v2776
        %v2850 = vunpack.c.h.b16 %v2776
        %v2851 = vunpack.c.l.b16 %v2777
        %v2852 = vunpack.c.h.b16 %v2777
        %v2853 = vunpack.c.l.b16 %v2778
        %v2854 = vunpack.c.h.b16 %v2778
        %v2855 = vunpack.c.l.b16 %v2779
        %v2856 = vunpack.c.h.b16 %v2779
        %v2857 = vunpack.c.l.b16 %v2780
        %v2858 = vunpack.c.h.b16 %v2780
        %v2859 = vunpack.c.l.b16 %v2781
        %v2860 = vunpack.c.h.b16 %v2781
        %v2861 = vunpack.c.l.b16 %v2782
        %v2862 = vunpack.c.h.b16 %v2782
        %v2863 = vunpack.c.l.b16 %v2783
        %v2864 = vunpack.c.h.b16 %v2783
        %v2865 = vunpack.c.l.b16 %v2784
        %v2866 = vunpack.c.h.b16 %v2784
        %v2867 = vunpack.c.l.b16 %v2785
        %v2868 = vunpack.c.h.b16 %v2785
        %v2869 = vunpack.c.l.b16 %v2786
        %v2870 = vunpack.c.h.b16 %v2786
        %v2871 = vunpack.c.l.b16 %v2787
        %v2872 = vunpack.c.h.b16 %v2787
        %v2873 = vunpack.c.l.b16 %v2788
        %v2874 = vunpack.c.h.b16 %v2788
        %v2875 = vunpack.c.l.b16 %v2789
        %v2876 = vunpack.c.h.b16 %v2789
        %v2877 = vunpack.c.l.b16 %v2790
        %v2878 = vunpack.c.h.b16 %v2790
        %v2879 = vunpack.c.l.b16 %v2791
        %v2880 = vunpack.c.h.b16 %v2791
        %v2881 = vunpack.c.l.b16 %v2792
        %v2882 = vunpack.c.h.b16 %v2792
        %v2883 = vunpack.c.l.b16 %v2793
        %v2884 = vunpack.c.h.b16 %v2793
        %v2885 = vunpack.c.l.b16 %v2794
        %v2886 = vunpack.c.h.b16 %v2794
        %v2887 = vunpack.c.l.b16 %v2795
        %v2888 = vunpack.c.h.b16 %v2795
        %v2889 = vunpack.c.l.b16 %v2796
        %v2890 = vunpack.c.h.b16 %v2796
        %v2891 = vunpack.c.l.b16 %v2797
        %v2892 = vunpack.c.h.b16 %v2797
        %v2893 = vunpack.c.l.b16 %v2798
        %v2894 = vunpack.c.h.b16 %v2798
        %v2895 = vpack.c.b16 %v2833, %v2831
        %v2896 = vpack.c.b16 %v2834, %v2832
        %v2897 = vpack.c.b16 %v2837, %v2835
        %v2898 = vpack.c.b16 %v2838, %v2836
        %v2899 = vpack.c.b16 %v2841, %v2839
        %v2900 = vpack.c.b16 %v2842, %v2840
        %v2901 = vpack.c.b16 %v2845, %v2843
        %v2902 = vpack.c.b16 %v2846, %v2844
        %v2903 = vpack.c.b16 %v2849, %v2847
        %v2904 = vpack.c.b16 %v2850, %v2848
        %v2905 = vpack.c.b16 %v2853, %v2851
        %v2906 = vpack.c.b16 %v2854, %v2852
        %v2907 = vpack.c.b16 %v2857, %v2855
        %v2908 = vpack.c.b16 %v2858, %v2856
        %v2909 = vpack.c.b16 %v2861, %v2859
        %v2910 = vpack.c.b16 %v2862, %v2860
        %v2911 = vpack.c.b16 %v2865, %v2863
        %v2912 = vpack.c.b16 %v2866, %v2864
        %v2913 = vpack.c.b16 %v2869, %v2867
        %v2914 = vpack.c.b16 %v2870, %v2868
        %v2915 = vpack.c.b16 %v2873, %v2871
        %v2916 = vpack.c.b16 %v2874, %v2872
        %v2917 = vpack.c.b16 %v2877, %v2875
        %v2918 = vpack.c.b16 %v2878, %v2876
        %v2919 = vpack.c.b16 %v2881, %v2879
        %v2920 = vpack.c.b16 %v2882, %v2880
        %v2921 = vpack.c.b16 %v2885, %v2883
        %v2922 = vpack.c.b16 %v2886, %v2884
        %v2923 = vpack.c.b16 %v2889, %v2887
        %v2924 = vpack.c.b16 %v2890, %v2888
        %v2925 = vpack.c.b16 %v2893, %v2891
        %v2926 = vpack.c.b16 %v2894, %v2892
        %2959 = vmatprep.subr.bf16.mxu0 %v2896
        %2960 = vmatpush1.bf16.msra.mxu0 %v2895
        %2961 = vmatprep.subr.bf16.mxu0 %v2898
        %2962 = vmatpush1.bf16.msra.mxu0 %v2897
        %2963 = vmatprep.subr.bf16.mxu0 %v2900
        %2964 = vmatpush1.bf16.msra.mxu0 %v2899
        %2965 = vmatprep.subr.bf16.mxu0 %v2902
        %2966 = vmatpush1.bf16.msra.mxu0 %v2901
        %2967 = vmatprep.subr.bf16.mxu0 %v2904
        %2968 = vmatpush1.bf16.msra.mxu0 %v2903
        %2969 = vmatprep.subr.bf16.mxu0 %v2906
        %2970 = vmatpush1.bf16.msra.mxu0 %v2905
        %2971 = vmatprep.subr.bf16.mxu0 %v2908
        %2972 = vmatpush1.bf16.msra.mxu0 %v2907
        %2973 = vmatprep.subr.bf16.mxu0 %v2910
        %2974 = vmatpush1.bf16.msra.mxu0 %v2909
        %2975 = vmatprep.subr.bf16.mxu0 %v2912
        %2976 = vmatpush1.bf16.msra.mxu0 %v2911
        %2977 = vmatprep.subr.bf16.mxu0 %v2914
        %2978 = vmatpush1.bf16.msra.mxu0 %v2913
        %2979 = vmatprep.subr.bf16.mxu0 %v2916
        %2980 = vmatpush1.bf16.msra.mxu0 %v2915
        %2981 = vmatprep.subr.bf16.mxu0 %v2918
        %2982 = vmatpush1.bf16.msra.mxu0 %v2917
        %2983 = vmatprep.subr.bf16.mxu0 %v2920
        %2984 = vmatpush1.bf16.msra.mxu0 %v2919
        %2985 = vmatprep.subr.bf16.mxu0 %v2922
        %2986 = vmatpush1.bf16.msra.mxu0 %v2921
        %2987 = vmatprep.subr.bf16.mxu0 %v2924
        %2988 = vmatpush1.bf16.msra.mxu0 %v2923
        %2989 = vmatprep.subr.bf16.mxu0 %v2926
        %2990 = vmatpush1.bf16.msra.mxu0 %v2925
        %2991 = vmatprep.mubr.bf16.mxu0 %v2766
        %2992 = vmatmul.mubr.bf16.gmra.mrb[0].mxu0 %v2765
        %v2993 = vpop.f32.mrb[0].mxu0
        %v2994 = vadd.f32 0.0, %v2993
        %v2995 = vpop.f32.mrb[0].mxu0
        %v2996 = vadd.f32 0.0, %v2995
        %v2997 = vpop.f32.mrb[0].mxu0
        %v2998 = vadd.f32 0.0, %v2997
        %v2999 = vpop.f32.mrb[0].mxu0
        %v3000 = vadd.f32 0.0, %v2999
        %3001 = vdwg.mxu0
        %v3002 = vadd.f32 %v2761, %v2994
        %v3003 = vadd.f32 %v2762, %v2996
        %v3004 = vadd.f32 %v2763, %v2998
        %v3005 = vadd.f32 %v2764, %v3000
        %3006 = vst [vmem:[#allocation5] sm:$0xff] %v3002
        %3007 = vst [vmem:[#allocation5 + $0x8] sm:$0xff] %v3003
        %3008 = vst [vmem:[#allocation5 + $0x10] sm:$0xff] %v3004
        %3009 = vst [vmem:[#allocation5 + $0x18] sm:$0xff] %v3005
        %p3010 = scmp.eq.s32.totalorder %s41, 1
        // Predicated region
        $region128: #{resampler_forward.1} parent=99 // pred_check
          %p3011 = pneg %p3010
        $region129: #{resampler_forward.1} parent=99 // pred_check_branch
          %3013 = sbr.rel (%p3011) target = $region131
        $region130: #{resampler_forward.1} parent=99 // pred_region
          %v3014 = vld [vmem:[#allocation5] sm:$0xff]
          %v3015 = vld [vmem:[#allocation5 + $0x8] sm:$0xff]
          %v3016 = vld [vmem:[#allocation5 + $0x10] sm:$0xff]
          %v3017 = vld [vmem:[#allocation5 + $0x18] sm:$0xff]
          %v3018 = vld [vmem:[%s17] sm:$0x3]
          %v3020 = vlaneseq
          %v3021 = vshrl.u32 %v3020, 7
          %v3022 = vsub.s32 0, %v3021
          %v3023 = vrot.slane %v3018, %v3022
          %v3024 = vlaneseq
          %v3025 = vshrl.u32 %v3024, 7
          %v3026 = vsub.s32 1, %v3025
          %v3027 = vrot.slane %v3018, %v3026
          %v3030 = vadd.f32 %v3014, %v3023
          %v3031 = vadd.f32 %v3015, %v3027
          %v3032 = vadd.f32 %v3016, %v3023
          %v3033 = vadd.f32 %v3017, %v3027
          %v3034 = vld [vmem:[%s18] sm:$0x3]
          %v3035 = vld [vmem:[%s19] sm:$0x3]
          %v3036 = vadd.f32 %v3030, %v3031
          %3037 = vadd.xlane.f32.xlu0 %v3036
          %v3038 = vpop.xlane.xlu0 %3037
          %v3039 = vadd.f32 %v3032, %v3033
          %3040 = vadd.xlane.f32.xlu0 %v3039
          %v3041 = vpop.xlane.xlu0 %3040
          %v3042 = vrcp.pop 256.0
          %v3043 = vmul.f32 %v3038, %v3042
          %v3044 = vmul.f32 %v3041, %v3042
          %v3045 = vsub.f32 %v3030, %v3043
          %v3046 = vsub.f32 %v3031, %v3043
          %v3047 = vsub.f32 %v3032, %v3044
          %v3048 = vsub.f32 %v3033, %v3044
          %v3049 = vmul.f32 %v3045, %v3045
          %v3050 = vmul.f32 %v3046, %v3046
          %v3051 = vmul.f32 %v3047, %v3047
          %v3052 = vmul.f32 %v3048, %v3048
          %v3053 = vadd.f32 %v3049, %v3050
          %3054 = vadd.xlane.f32.xlu0 %v3053
          %v3055 = vpop.xlane.xlu0 %3054
          %v3056 = vadd.f32 %v3051, %v3052
          %3057 = vadd.xlane.f32.xlu0 %v3056
          %v3058 = vpop.xlane.xlu0 %3057
          %v3059 = vmul.f32 %v3055, %v3042
          %v3060 = vmul.f32 %v3058, %v3042
          %v3061 = vadd.f32 %v3059, 1e-06
          %v3062 = vadd.f32 %v3060, 1e-06
          %v3063 = vrsqrt.pop %v3061
          %v3064 = vrsqrt.pop %v3062
          %v3065 = vmul.f32 %v3045, %v3063
          %v3066 = vmul.f32 %v3046, %v3063
          %v3067 = vmul.f32 %v3047, %v3064
          %v3068 = vmul.f32 %v3048, %v3064
          %v3070 = vlaneseq
          %v3071 = vshrl.u32 %v3070, 7
          %v3072 = vsub.s32 0, %v3071
          %v3073 = vrot.slane %v3034, %v3072
          %v3074 = vlaneseq
          %v3075 = vshrl.u32 %v3074, 7
          %v3076 = vsub.s32 1, %v3075
          %v3077 = vrot.slane %v3034, %v3076
          %v3080 = vmul.f32 %v3065, %v3073
          %v3081 = vmul.f32 %v3066, %v3077
          %v3082 = vmul.f32 %v3067, %v3073
          %v3083 = vmul.f32 %v3068, %v3077
          %v3085 = vlaneseq
          %v3086 = vshrl.u32 %v3085, 7
          %v3087 = vsub.s32 0, %v3086
          %v3088 = vrot.slane %v3035, %v3087
          %v3089 = vlaneseq
          %v3090 = vshrl.u32 %v3089, 7
          %v3091 = vsub.s32 1, %v3090
          %v3092 = vrot.slane %v3035, %v3091
          %v3095 = vadd.f32 %v3080, %v3088
          %v3096 = vadd.f32 %v3081, %v3092
          %v3097 = vadd.f32 %v3082, %v3088
          %v3098 = vadd.f32 %v3083, %v3092
          %3099 = vst [vmem:[%s779] sm:$0xff] %v3095
          %3100 = vst [vmem:[%s779 + $0x8] sm:$0xff] %v3096
          %3101 = vst [vmem:[%s779 + $0x10] sm:$0xff] %v3097
          %3102 = vst [vmem:[%s779 + $0x18] sm:$0xff] %v3098
        $region131: #{resampler_forward.1} parent=99 // pred_fallthru
          _
        %s3103 = sand.u32 %s506, 1
        %s3104 = scalar_lea.sflag [#allocation8], %s3103
        %s3105 = sand.u32 %s506, 1
        %s3106 = smul.addr %s3105, 32
        %s3107 = scalar_lea.vmem [#allocation13], %s3106
        // Predicated region
        $region132: #{resampler_forward.1} parent=99 // pred_check
          %p3108 = pneg %p516
        $region133: #{resampler_forward.1} parent=99 // pred_check_branch
          %3110 = sbr.rel (%p3108) target = $region135
        $region134: #{resampler_forward.1} parent=99 // pred_region
          %s3112 = ssub.s32 512, 512
          %3113 = vsyncadd %s3104, %s3112
          %s3114 = smul.addr %s40, 4
          %s3115 = smul.addr %s3114, 128
          %s3116 = scalar_lea.hbm %s20, %s3115
          %s3117 = sshll.u32 %s3107, 4
          %s3118 = int_to_ptr.vmem [resolvable:$true] %s3117
          %3123 = dma.vmem_to_hbm [thread:$0]  %s3118, 512, %s3116, %s3104, 256, 256, 16
        $region135: #{resampler_forward.1} parent=99 // pred_fallthru
          _
      $region100: #{resampler_forward.1} parent=5 // pred_fallthru
        _
      %p3124 = scmp.le.s32.totalorder 2, %s31
      // Predicated region
      $region136: #{resampler_forward.1} parent=5 // pred_check
        %p3125 = pneg %p3124
      $region137: #{resampler_forward.1} parent=5 // pred_check_branch
        %3127 = sbr.rel (%p3125) target = $region139
      $region138: #{resampler_forward.1} parent=5 // pred_region
        %s3128 = ssub.s32 %s31, 2
        // Predicated region
        $region140: #{resampler_forward.1} parent=138 // pred_check
          %p3129 = pneg %p522
        $region141: #{resampler_forward.1} parent=138 // pred_check_branch
          %3131 = sbr.rel (%p3129) target = $region143
        $region142: #{resampler_forward.1} parent=138 // pred_region
          %s3132 = sand.u32 %s507, 1
          %s3133 = scalar_lea.sflag [#allocation8], %s3132
          %s3134 = sand.u32 %s507, 1
          %s3135 = smul.addr %s3134, 32
          %s3136 = scalar_lea.vmem [#allocation13], %s3135
          %3137 = dma.done %s3133, 512
        $region143: #{resampler_forward.1} parent=138 // pred_fallthru
          _
      $region139: #{resampler_forward.1} parent=5 // pred_fallthru
        _
    $region6: #{resampler_forward.1} parent=1 // loop_footer
      %s35 = sadd.s32 1, %s31
    $region7: #{resampler_forward.1} parent=1 // loop_footer_branch
      %30 = sbr.rel target = $region3
    $region8: #{resampler_forward.1} parent=1 // loop_exit
      _
    %3138 = vsyncpa [#allocation7], 1
    %s3139 = scalar_lea.sflag [#allocation7], 1
    %3140 = vsyncpa %s3139, 1
    %3141 = vsyncpa [#allocation10], 1
    %3142 = vsyncpa [#allocation8], 1
    %s3143 = scalar_lea.sflag [#allocation8], 1
    %3144 = vsyncpa %s3143, 1

// kernel: resampler_forward.1
$region0: #{resampler_forward.1}
  #allocation0 [shape = 'u32[]', space=smem, size = 0x4, offset = 0x4, fixed_abs, tag = 'smem constant byte address 0x4 - core index']
  #allocation1 [shape = 'u32[144,128]{1,0:T(1,128)}', space=vmem, size = 0x12000, scoped, tag = 'internal scratch']
  #allocation2 [shape = 'bf16[128,256]{1,0:T(16,128)(2,1)}', space=vmem, size = 0x10000, scoped, tag = 'scratch operand']
  #allocation3 [shape = 'bf16[128,256]{1,0:T(16,128)(2,1)}', space=vmem, size = 0x10000, scoped, tag = 'scratch operand']
  #allocation4 [shape = 'f32[16,256]{1,0:T(8,128)}', space=vmem, size = 0x4000, scoped, tag = 'scratch operand']
  #allocation5 [shape = 'f32[16,256]{1,0:T(8,128)}', space=vmem, size = 0x4000, scoped, tag = 'scratch operand']
  %s0 = inlined_call_operand.vmem [shape: f32[2,128,256], index: 0, kind: input, shape index: {}]
  %s1 = inlined_call_operand.vmem [shape: bf16[2,128,256], index: 1, kind: input, shape index: {}]
  %s2 = inlined_call_operand.vmem [shape: f32[2,1,128], index: 2, kind: input, shape index: {}]
  %s3 = inlined_call_operand.vmem [shape: bf16[16,256], index: 3, kind: input, shape index: {}]
  %s4 = inlined_call_operand.vmem [shape: f32[1,256], index: 4, kind: input, shape index: {}]
  %s5 = inlined_call_operand.vmem [shape: f32[1,256], index: 5, kind: input, shape index: {}]
  %s6 = inlined_call_operand.vmem [shape: bf16[256,256], index: 6, kind: input, shape index: {}]
  %s7 = inlined_call_operand.vmem [shape: f32[1,256], index: 7, kind: input, shape index: {}]
  %s8 = inlined_call_operand.hbm [shape: bf16[256,256], index: 8, kind: input, shape index: {}]
  %s9 = inlined_call_operand.vmem [shape: f32[1,256], index: 9, kind: input, shape index: {}]
  %s10 = inlined_call_operand.hbm [shape: bf16[256,256], index: 10, kind: input, shape index: {}]
  %s11 = inlined_call_operand.vmem [shape: f32[1,256], index: 11, kind: input, shape index: {}]
  %s12 = inlined_call_operand.vmem [shape: f32[1,256], index: 12, kind: input, shape index: {}]
  %s13 = inlined_call_operand.vmem [shape: f32[1,256], index: 13, kind: input, shape index: {}]
  %s14 = inlined_call_operand.hbm [shape: bf16[256,512], index: 14, kind: input, shape index: {}]
  %s15 = inlined_call_operand.vmem [shape: f32[1,512], index: 15, kind: input, shape index: {}]
  %s16 = inlined_call_operand.hbm [shape: bf16[512,256], index: 16, kind: input, shape index: {}]
  %s17 = inlined_call_operand.vmem [shape: f32[1,256], index: 17, kind: input, shape index: {}]
  %s18 = inlined_call_operand.vmem [shape: f32[1,256], index: 18, kind: input, shape index: {}]
  %s19 = inlined_call_operand.vmem [shape: f32[1,256], index: 19, kind: input, shape index: {}]
  %s20 = inlined_call_operand.hbm [shape: f32[2,16,256], index: 20, kind: output, shape index: {}]
  %s21 = sld [smem:[#allocation0]]
  $region144: #{resampler_forward.1} parent=0
    _
  %s23 = ssub.s32 1, %s21
  %s24 = scalar_select 0, %s23, %s21
  $region1: #{resampler_forward.1} parent=0
    #allocation6 [shape = 'u8[131072]{0}', space=vmem, size = 0x20000, scoped, tag = 'input window, operand 8, single buffered']
    #allocation7 [shape = 's32[2]{0}', space=sflag, size = 0x8, scoped, tag = 'scoped memory for resampler_forward.1']
    #allocation8 [shape = 's32[2]{0}', space=sflag, size = 0x8, scoped, tag = 'scoped memory for resampler_forward.1']
    #allocation9 [shape = 'u8[131072]{0}', space=vmem, size = 0x20000, scoped, tag = 'input window, operand 10, single buffered']
    #allocation10 [shape = 's32[1]{0}', space=sflag, size = 0x4, scoped, tag = 'scoped memory for resampler_forward.1']
    #allocation11 [shape = 'u8[262144]{0}', space=vmem, size = 0x40000, scoped, tag = 'input window, operand 14']
    #allocation12 [shape = 'u8[262144]{0}', space=vmem, size = 0x40000, scoped, tag = 'input window, operand 16']
    #allocation13 [shape = 'u8[32768]{0}', space=vmem, size = 0x8000, scoped, tag = 'output window, operand 0']
    %25 = vsyncpa [#allocation7], 0
    %26 = vsyncpa [#allocation10], 0
    %27 = vsyncpa [#allocation8], 0
    %s28 = scalar_lea.sflag [#allocation8], 1
    %29 = vsyncpa %s28, 0
    loop: start=0, step=1, limit=6
    $region2: #{resampler_forward.1} parent=1 // loop_pre_header
      _
    $region3: #{resampler_forward.1} parent=1 // loop_header
      %s31 = sphi 0, %s35
      %p32 = scmp.ge.s32.totalorder %s31, 6
      %s38 = sphi 0, %s50
      %s39 = sphi 0, %s46
      %s40 = sphi 0, %s38
      %s41 = sphi 0, %s39
      %s42 = sphi 0, %s40
      %s43 = sphi 0, %s41
      %s53 = sphi 0, %s55
      %s56 = sphi 0, %s53
      %s57 = sphi 0, %s56
      %s73 = sphi 0, %s57
      %s79 = sphi 0, %s81
      %s82 = sphi 0, %s79
      %s83 = sphi 0, %s82
      %s99 = sphi 0, %s83
      %s105 = sphi 0, %s107
      %s108 = sphi 0, %s105
      %s109 = sphi 0, %s108
      %s125 = sphi 0, %s109
      %s129 = sphi 0, %s129
      %s131 = sphi 0, %s129
      %s132 = sphi 0, %s131
      %s146 = sphi 0, %s132
      %s150 = sphi 0, %s150
      %s152 = sphi 0, %s150
      %s153 = sphi 0, %s152
      %s167 = sphi 0, %s153
      %s171 = sphi 0, %s171
      %s173 = sphi 0, %s171
      %s174 = sphi 0, %s173
      %s188 = sphi 0, %s174
      %s192 = sphi 0, %s192
      %s194 = sphi 0, %s192
      %s195 = sphi 0, %s194
      %s209 = sphi 0, %s195
      %s213 = sphi 0, %s213
      %s215 = sphi 0, %s213
      %s216 = sphi 0, %s215
      %s230 = sphi 0, %s216
      %s234 = sphi 0, %s234
      %s236 = sphi 0, %s234
      %s237 = sphi 0, %s236
      %s251 = sphi 0, %s237
      %s255 = sphi 0, %s255
      %s257 = sphi 0, %s255
      %s258 = sphi 0, %s257
      %s272 = sphi 0, %s258
      %s276 = sphi 0, %s276
      %s278 = sphi 0, %s276
      %s279 = sphi 0, %s278
      %s293 = sphi 0, %s279
      %s297 = sphi 0, %s297
      %s299 = sphi 0, %s297
      %s300 = sphi 0, %s299
      %s314 = sphi 0, %s300
      %s318 = sphi 0, %s318
      %s320 = sphi 0, %s318
      %s321 = sphi 0, %s320
      %s335 = sphi 0, %s321
      %s339 = sphi 0, %s339
      %s341 = sphi 0, %s339
      %s342 = sphi 0, %s341
      %s356 = sphi 0, %s342
      %s362 = sphi 0, %s364
      %s365 = sphi 0, %s362
      %s366 = sphi 0, %s365
      %s382 = sphi 0, %s366
      %s388 = sphi 0, %s390
      %s391 = sphi 0, %s388
      %s392 = sphi 0, %s391
      %s408 = sphi 0, %s392
      %s414 = sphi 0, %s416
      %s417 = sphi 0, %s414
      %s418 = sphi 0, %s417
      %s434 = sphi 0, %s418
      %s438 = sphi 0, %s438
      %s440 = sphi 0, %s438
      %s441 = sphi 0, %s440
      %s455 = sphi 0, %s441
      %s459 = sphi 0, %s459
      %s461 = sphi 0, %s459
      %s462 = sphi 0, %s461
      %s476 = sphi 0, %s462
      %s480 = sphi 0, %s480
      %s482 = sphi 0, %s480
      %s483 = sphi 0, %s482
      %s497 = sphi 0, %s483
      %s503 = sphi 0, %s505
      %s506 = sphi 0, %s503
      %s507 = sphi 0, %s506
      %s523 = sphi 0, %s507
    $region4: #{resampler_forward.1} parent=1 // loop_header_branch
      %34 = sbr.rel (%p32) target = $region8
    $region5: #{resampler_forward.1} parent=1 // loop_body
      %s36 = ssub.s32 %s31, 1
      %s37 = ssub.s32 %s31, 2
      %s44 = sadd.s32 1, %s39
      %p45 = scmp.ge.s32.totalorder %s44, 2
      %s46 = scalar_select %p45, 0, %s44
      %s47 = sadd.s32 1, %s38
      %s48 = scalar_select %p45, %s47, %s38
      %p49 = scmp.ge.s32.totalorder %s48, 2
      %s50 = scalar_select %p49, 0, %s48
      %s51 = ssub.s32 %s38, %s50
      %p52 = scmp.eq.s32.totalorder %s51, 0
      %s54 = sadd.s32 %s53, 1
      %s55 = scalar_select %p52, %s53, %s54
      %p58 = pneg %p52
      %p59 = scmp.eq.s32.totalorder %s31, 3
      %p60 = por %p58, %p59
      %p61 = scmp.ne.s32.totalorder %s53, %s56
      %p62 = scmp.eq.s32.totalorder %s31, 0
      %p63 = por %p61, %p62
      %p64 = scmp.ne.s32.totalorder %s53, %s56
      %p65 = scmp.eq.s32.totalorder %s36, 3
      %p66 = por %p64, %p65
      %p67 = scmp.ne.s32.totalorder %s56, %s57
      %p68 = scmp.eq.s32.totalorder %s36, 0
      %p69 = por %p67, %p68
      %p70 = scmp.ne.s32.totalorder %s56, %s57
      %p71 = scmp.eq.s32.totalorder %s37, 3
      %p72 = por %p70, %p71
      %p74 = scmp.ne.s32.totalorder %s57, %s73
      %p75 = scmp.eq.s32.totalorder %s37, 0
      %p76 = por %p74, %p75
      %s77 = ssub.s32 %s38, %s50
      %p78 = scmp.eq.s32.totalorder %s77, 0
      %s80 = sadd.s32 %s79, 1
      %s81 = scalar_select %p78, %s79, %s80
      %p84 = pneg %p78
      %p85 = scmp.eq.s32.totalorder %s31, 3
      %p86 = por %p84, %p85
      %p87 = scmp.ne.s32.totalorder %s79, %s82
      %p88 = scmp.eq.s32.totalorder %s31, 0
      %p89 = por %p87, %p88
      %p90 = scmp.ne.s32.totalorder %s79, %s82
      %p91 = scmp.eq.s32.totalorder %s36, 3
      %p92 = por %p90, %p91
      %p93 = scmp.ne.s32.totalorder %s82, %s83
      %p94 = scmp.eq.s32.totalorder %s36, 0
      %p95 = por %p93, %p94
      %p96 = scmp.ne.s32.totalorder %s82, %s83
      %p97 = scmp.eq.s32.totalorder %s37, 3
      %p98 = por %p96, %p97
      %p100 = scmp.ne.s32.totalorder %s83, %s99
      %p101 = scmp.eq.s32.totalorder %s37, 0
      %p102 = por %p100, %p101
      %s103 = ssub.s32 %s38, %s50
      %p104 = scmp.eq.s32.totalorder %s103, 0
      %s106 = sadd.s32 %s105, 1
      %s107 = scalar_select %p104, %s105, %s106
      %p110 = pneg %p104
      %p111 = scmp.eq.s32.totalorder %s31, 3
      %p112 = por %p110, %p111
      %p113 = scmp.ne.s32.totalorder %s105, %s108
      %p114 = scmp.eq.s32.totalorder %s31, 0
      %p115 = por %p113, %p114
      %p116 = scmp.ne.s32.totalorder %s105, %s108
      %p117 = scmp.eq.s32.totalorder %s36, 3
      %p118 = por %p116, %p117
      %p119 = scmp.ne.s32.totalorder %s108, %s109
      %p120 = scmp.eq.s32.totalorder %s36, 0
      %p121 = por %p119, %p120
      %p122 = scmp.ne.s32.totalorder %s108, %s109
      %p123 = scmp.eq.s32.totalorder %s37, 3
      %p124 = por %p122, %p123
      %p126 = scmp.ne.s32.totalorder %s109, %s125
      %p127 = scmp.eq.s32.totalorder %s37, 0
      %p128 = por %p126, %p127
      %s130 = sadd.s32 %s129, 1
      %p133 = scmp.eq.s32.totalorder %s31, 3
      %p134 = scmp.ne.s32.totalorder %s129, %s131
      %p135 = scmp.eq.s32.totalorder %s31, 0
      %p136 = por %p134, %p135
      %p137 = scmp.ne.s32.totalorder %s129, %s131
      %p138 = scmp.eq.s32.totalorder %s36, 3
      %p139 = por %p137, %p138
      %p140 = scmp.ne.s32.totalorder %s131, %s132
      %p141 = scmp.eq.s32.totalorder %s36, 0
      %p142 = por %p140, %p141
      %p143 = scmp.ne.s32.totalorder %s131, %s132
      %p144 = scmp.eq.s32.totalorder %s37, 3
      %p145 = por %p143, %p144
      %p147 = scmp.ne.s32.totalorder %s132, %s146
      %p148 = scmp.eq.s32.totalorder %s37, 0
      %p149 = por %p147, %p148
      %s151 = sadd.s32 %s150, 1
      %p154 = scmp.eq.s32.totalorder %s31, 3
      %p155 = scmp.ne.s32.totalorder %s150, %s152
      %p156 = scmp.eq.s32.totalorder %s31, 0
      %p157 = por %p155, %p156
      %p158 = scmp.ne.s32.totalorder %s150, %s152
      %p159 = scmp.eq.s32.totalorder %s36, 3
      %p160 = por %p158, %p159
      %p161 = scmp.ne.s32.totalorder %s152, %s153
      %p162 = scmp.eq.s32.totalorder %s36, 0
      %p163 = por %p161, %p162
      %p164 = scmp.ne.s32.totalorder %s152, %s153
      %p165 = scmp.eq.s32.totalorder %s37, 3
      %p166 = por %p164, %p165
      %p168 = scmp.ne.s32.totalorder %s153, %s167
      %p169 = scmp.eq.s32.totalorder %s37, 0
      %p170 = por %p168, %p169
      %s172 = sadd.s32 %s171, 1
      %p175 = scmp.eq.s32.totalorder %s31, 3
      %p176 = scmp.ne.s32.totalorder %s171, %s173
      %p177 = scmp.eq.s32.totalorder %s31, 0
      %p178 = por %p176, %p177
      %p179 = scmp.ne.s32.totalorder %s171, %s173
      %p180 = scmp.eq.s32.totalorder %s36, 3
      %p181 = por %p179, %p180
      %p182 = scmp.ne.s32.totalorder %s173, %s174
      %p183 = scmp.eq.s32.totalorder %s36, 0
      %p184 = por %p182, %p183
      %p185 = scmp.ne.s32.totalorder %s173, %s174
      %p186 = scmp.eq.s32.totalorder %s37, 3
      %p187 = por %p185, %p186
      %p189 = scmp.ne.s32.totalorder %s174, %s188
      %p190 = scmp.eq.s32.totalorder %s37, 0
      %p191 = por %p189, %p190
      %s193 = sadd.s32 %s192, 1
      %p196 = scmp.eq.s32.totalorder %s31, 3
      %p197 = scmp.ne.s32.totalorder %s192, %s194
      %p198 = scmp.eq.s32.totalorder %s31, 0
      %p199 = por %p197, %p198
      %p200 = scmp.ne.s32.totalorder %s192, %s194
      %p201 = scmp.eq.s32.totalorder %s36, 3
      %p202 = por %p200, %p201
      %p203 = scmp.ne.s32.totalorder %s194, %s195
      %p204 = scmp.eq.s32.totalorder %s36, 0
      %p205 = por %p203, %p204
      %p206 = scmp.ne.s32.totalorder %s194, %s195
      %p207 = scmp.eq.s32.totalorder %s37, 3
      %p208 = por %p206, %p207
      %p210 = scmp.ne.s32.totalorder %s195, %s209
      %p211 = scmp.eq.s32.totalorder %s37, 0
      %p212 = por %p210, %p211
      %s214 = sadd.s32 %s213, 1
      %p217 = scmp.eq.s32.totalorder %s31, 3
      %p218 = scmp.ne.s32.totalorder %s213, %s215
      %p219 = scmp.eq.s32.totalorder %s31, 0
      %p220 = por %p218, %p219
      %p221 = scmp.ne.s32.totalorder %s213, %s215
      %p222 = scmp.eq.s32.totalorder %s36, 3
      %p223 = por %p221, %p222
      %p224 = scmp.ne.s32.totalorder %s215, %s216
      %p225 = scmp.eq.s32.totalorder %s36, 0
      %p226 = por %p224, %p225
      %p227 = scmp.ne.s32.totalorder %s215, %s216
      %p228 = scmp.eq.s32.totalorder %s37, 3
      %p229 = por %p227, %p228
      %p231 = scmp.ne.s32.totalorder %s216, %s230
      %p232 = scmp.eq.s32.totalorder %s37, 0
      %p233 = por %p231, %p232
      %s235 = sadd.s32 %s234, 1
      %p238 = scmp.eq.s32.totalorder %s31, 3
      %p239 = scmp.ne.s32.totalorder %s234, %s236
      %p240 = scmp.eq.s32.totalorder %s31, 0
      %p241 = por %p239, %p240
      %p242 = scmp.ne.s32.totalorder %s234, %s236
      %p243 = scmp.eq.s32.totalorder %s36, 3
      %p244 = por %p242, %p243
      %p245 = scmp.ne.s32.totalorder %s236, %s237
      %p246 = scmp.eq.s32.totalorder %s36, 0
      %p247 = por %p245, %p246
      %p248 = scmp.ne.s32.totalorder %s236, %s237
      %p249 = scmp.eq.s32.totalorder %s37, 3
      %p250 = por %p248, %p249
      %p252 = scmp.ne.s32.totalorder %s237, %s251
      %p253 = scmp.eq.s32.totalorder %s37, 0
      %p254 = por %p252, %p253
      %s256 = sadd.s32 %s255, 1
      %p259 = scmp.eq.s32.totalorder %s31, 3
      %p260 = scmp.ne.s32.totalorder %s255, %s257
      %p261 = scmp.eq.s32.totalorder %s31, 0
      %p262 = por %p260, %p261
      %p263 = scmp.ne.s32.totalorder %s255, %s257
      %p264 = scmp.eq.s32.totalorder %s36, 3
      %p265 = por %p263, %p264
      %p266 = scmp.ne.s32.totalorder %s257, %s258
      %p267 = scmp.eq.s32.totalorder %s36, 0
      %p268 = por %p266, %p267
      %p269 = scmp.ne.s32.totalorder %s257, %s258
      %p270 = scmp.eq.s32.totalorder %s37, 3
      %p271 = por %p269, %p270
      %p273 = scmp.ne.s32.totalorder %s258, %s272
      %p274 = scmp.eq.s32.totalorder %s37, 0
      %p275 = por %p273, %p274
      %s277 = sadd.s32 %s276, 1
      %p280 = scmp.eq.s32.totalorder %s31, 3
      %p281 = scmp.ne.s32.totalorder %s276, %s278
      %p282 = scmp.eq.s32.totalorder %s31, 0
      %p283 = por %p281, %p282
      %p284 = scmp.ne.s32.totalorder %s276, %s278
      %p285 = scmp.eq.s32.totalorder %s36, 3
      %p286 = por %p284, %p285
      %p287 = scmp.ne.s32.totalorder %s278, %s279
      %p288 = scmp.eq.s32.totalorder %s36, 0
      %p289 = por %p287, %p288
      %p290 = scmp.ne.s32.totalorder %s278, %s279
      %p291 = scmp.eq.s32.totalorder %s37, 3
      %p292 = por %p290, %p291
      %p294 = scmp.ne.s32.totalorder %s279, %s293
      %p295 = scmp.eq.s32.totalorder %s37, 0
      %p296 = por %p294, %p295
      %s298 = sadd.s32 %s297, 1
      %p301 = scmp.eq.s32.totalorder %s31, 3
      %p302 = scmp.ne.s32.totalorder %s297, %s299
      %p303 = scmp.eq.s32.totalorder %s31, 0
      %p304 = por %p302, %p303
      %p305 = scmp.ne.s32.totalorder %s297, %s299
      %p306 = scmp.eq.s32.totalorder %s36, 3
      %p307 = por %p305, %p306
      %p308 = scmp.ne.s32.totalorder %s299, %s300
      %p309 = scmp.eq.s32.totalorder %s36, 0
      %p310 = por %p308, %p309
      %p311 = scmp.ne.s32.totalorder %s299, %s300
      %p312 = scmp.eq.s32.totalorder %s37, 3
      %p313 = por %p311, %p312
      %p315 = scmp.ne.s32.totalorder %s300, %s314
      %p316 = scmp.eq.s32.totalorder %s37, 0
      %p317 = por %p315, %p316
      %s319 = sadd.s32 %s318, 1
      %p322 = scmp.eq.s32.totalorder %s31, 3
      %p323 = scmp.ne.s32.totalorder %s318, %s320
      %p324 = scmp.eq.s32.totalorder %s31, 0
      %p325 = por %p323, %p324
      %p326 = scmp.ne.s32.totalorder %s318, %s320
      %p327 = scmp.eq.s32.totalorder %s36, 3
      %p328 = por %p326, %p327
      %p329 = scmp.ne.s32.totalorder %s320, %s321
      %p330 = scmp.eq.s32.totalorder %s36, 0
      %p331 = por %p329, %p330
      %p332 = scmp.ne.s32.totalorder %s320, %s321
      %p333 = scmp.eq.s32.totalorder %s37, 3
      %p334 = por %p332, %p333
      %p336 = scmp.ne.s32.totalorder %s321, %s335
      %p337 = scmp.eq.s32.totalorder %s37, 0
      %p338 = por %p336, %p337
      %s340 = sadd.s32 %s339, 1
      %p343 = scmp.eq.s32.totalorder %s31, 3
      %p344 = scmp.ne.s32.totalorder %s339, %s341
      %p345 = scmp.eq.s32.totalorder %s31, 0
      %p346 = por %p344, %p345
      %p347 = scmp.ne.s32.totalorder %s339, %s341
      %p348 = scmp.eq.s32.totalorder %s36, 3
      %p349 = por %p347, %p348
      %p350 = scmp.ne.s32.totalorder %s341, %s342
      %p351 = scmp.eq.s32.totalorder %s36, 0
      %p352 = por %p350, %p351
      %p353 = scmp.ne.s32.totalorder %s341, %s342
      %p354 = scmp.eq.s32.totalorder %s37, 3
      %p355 = por %p353, %p354
      %p357 = scmp.ne.s32.totalorder %s342, %s356
      %p358 = scmp.eq.s32.totalorder %s37, 0
      %p359 = por %p357, %p358
      %s360 = ssub.s32 %s39, %s46
      %p361 = scmp.eq.s32.totalorder %s360, 0
      %s363 = sadd.s32 %s362, 1
      %s364 = scalar_select %p361, %s362, %s363
      %p367 = pneg %p361
      %p368 = scmp.eq.s32.totalorder %s31, 3
      %p369 = por %p367, %p368
      %p370 = scmp.ne.s32.totalorder %s362, %s365
      %p371 = scmp.eq.s32.totalorder %s31, 0
      %p372 = por %p370, %p371
      %p373 = scmp.ne.s32.totalorder %s362, %s365
      %p374 = scmp.eq.s32.totalorder %s36, 3
      %p375 = por %p373, %p374
      %p376 = scmp.ne.s32.totalorder %s365, %s366
      %p377 = scmp.eq.s32.totalorder %s36, 0
      %p378 = por %p376, %p377
      %p379 = scmp.ne.s32.totalorder %s365, %s366
      %p380 = scmp.eq.s32.totalorder %s37, 3
      %p381 = por %p379, %p380
      %p383 = scmp.ne.s32.totalorder %s366, %s382
      %p384 = scmp.eq.s32.totalorder %s37, 0
      %p385 = por %p383, %p384
      %s386 = ssub.s32 %s39, %s46
      %p387 = scmp.eq.s32.totalorder %s386, 0
      %s389 = sadd.s32 %s388, 1
      %s390 = scalar_select %p387, %s388, %s389
      %p393 = pneg %p387
      %p394 = scmp.eq.s32.totalorder %s31, 3
      %p395 = por %p393, %p394
      %p396 = scmp.ne.s32.totalorder %s388, %s391
      %p397 = scmp.eq.s32.totalorder %s31, 0
      %p398 = por %p396, %p397
      %p399 = scmp.ne.s32.totalorder %s388, %s391
      %p400 = scmp.eq.s32.totalorder %s36, 3
      %p401 = por %p399, %p400
      %p402 = scmp.ne.s32.totalorder %s391, %s392
      %p403 = scmp.eq.s32.totalorder %s36, 0
      %p404 = por %p402, %p403
      %p405 = scmp.ne.s32.totalorder %s391, %s392
      %p406 = scmp.eq.s32.totalorder %s37, 3
      %p407 = por %p405, %p406
      %p409 = scmp.ne.s32.totalorder %s392, %s408
      %p410 = scmp.eq.s32.totalorder %s37, 0
      %p411 = por %p409, %p410
      %s412 = ssub.s32 %s39, %s46
      %p413 = scmp.eq.s32.totalorder %s412, 0
      %s415 = sadd.s32 %s414, 1
      %s416 = scalar_select %p413, %s414, %s415
      %p419 = pneg %p413
      %p420 = scmp.eq.s32.totalorder %s31, 3
      %p421 = por %p419, %p420
      %p422 = scmp.ne.s32.totalorder %s414, %s417
      %p423 = scmp.eq.s32.totalorder %s31, 0
      %p424 = por %p422, %p423
      %p425 = scmp.ne.s32.totalorder %s414, %s417
      %p426 = scmp.eq.s32.totalorder %s36, 3
      %p427 = por %p425, %p426
      %p428 = scmp.ne.s32.totalorder %s417, %s418
      %p429 = scmp.eq.s32.totalorder %s36, 0
      %p430 = por %p428, %p429
      %p431 = scmp.ne.s32.totalorder %s417, %s418
      %p432 = scmp.eq.s32.totalorder %s37, 3
      %p433 = por %p431, %p432
      %p435 = scmp.ne.s32.totalorder %s418, %s434
      %p436 = scmp.eq.s32.totalorder %s37, 0
      %p437 = por %p435, %p436
      %s439 = sadd.s32 %s438, 1
      %p442 = scmp.eq.s32.totalorder %s31, 3
      %p443 = scmp.ne.s32.totalorder %s438, %s440
      %p444 = scmp.eq.s32.totalorder %s31, 0
      %p445 = por %p443, %p444
      %p446 = scmp.ne.s32.totalorder %s438, %s440
      %p447 = scmp.eq.s32.totalorder %s36, 3
      %p448 = por %p446, %p447
      %p449 = scmp.ne.s32.totalorder %s440, %s441
      %p450 = scmp.eq.s32.totalorder %s36, 0
      %p451 = por %p449, %p450
      %p452 = scmp.ne.s32.totalorder %s440, %s441
      %p453 = scmp.eq.s32.totalorder %s37, 3
      %p454 = por %p452, %p453
      %p456 = scmp.ne.s32.totalorder %s441, %s455
      %p457 = scmp.eq.s32.totalorder %s37, 0
      %p458 = por %p456, %p457
      %s460 = sadd.s32 %s459, 1
      %p463 = scmp.eq.s32.totalorder %s31, 3
      %p464 = scmp.ne.s32.totalorder %s459, %s461
      %p465 = scmp.eq.s32.totalorder %s31, 0
      %p466 = por %p464, %p465
      %p467 = scmp.ne.s32.totalorder %s459, %s461
      %p468 = scmp.eq.s32.totalorder %s36, 3
      %p469 = por %p467, %p468
      %p470 = scmp.ne.s32.totalorder %s461, %s462
      %p471 = scmp.eq.s32.totalorder %s36, 0
      %p472 = por %p470, %p471
      %p473 = scmp.ne.s32.totalorder %s461, %s462
      %p474 = scmp.eq.s32.totalorder %s37, 3
      %p475 = por %p473, %p474
      %p477 = scmp.ne.s32.totalorder %s462, %s476
      %p478 = scmp.eq.s32.totalorder %s37, 0
      %p479 = por %p477, %p478
      %s481 = sadd.s32 %s480, 1
      %p484 = scmp.eq.s32.totalorder %s31, 3
      %p485 = scmp.ne.s32.totalorder %s480, %s482
      %p486 = scmp.eq.s32.totalorder %s31, 0
      %p487 = por %p485, %p486
      %p488 = scmp.ne.s32.totalorder %s480, %s482
      %p489 = scmp.eq.s32.totalorder %s36, 3
      %p490 = por %p488, %p489
      %p491 = scmp.ne.s32.totalorder %s482, %s483
      %p492 = scmp.eq.s32.totalorder %s36, 0
      %p493 = por %p491, %p492
      %p494 = scmp.ne.s32.totalorder %s482, %s483
      %p495 = scmp.eq.s32.totalorder %s37, 3
      %p496 = por %p494, %p495
      %p498 = scmp.ne.s32.totalorder %s483, %s497
      %p499 = scmp.eq.s32.totalorder %s37, 0
      %p500 = por %p498, %p499
      %s501 = ssub.s32 %s38, %s50
      %p502 = scmp.eq.s32.totalorder %s501, 0
      %s504 = sadd.s32 %s503, 1
      %s505 = scalar_select %p502, %s503, %s504
      %p508 = pneg %p502
      %p509 = scmp.eq.s32.totalorder %s31, 3
      %p510 = por %p508, %p509
      %p511 = scmp.ne.s32.totalorder %s503, %s506
      %p512 = scmp.eq.s32.totalorder %s31, 0
      %p513 = por %p511, %p512
      %p514 = scmp.ne.s32.totalorder %s503, %s506
      %p515 = scmp.eq.s32.totalorder %s36, 3
      %p516 = por %p514, %p515
      %p517 = scmp.ne.s32.totalorder %s506, %s507
      %p518 = scmp.eq.s32.totalorder %s36, 0
      %p519 = por %p517, %p518
      %p520 = scmp.ne.s32.totalorder %s506, %s507
      %p521 = scmp.eq.s32.totalorder %s37, 3
      %p522 = por %p520, %p521
      %p524 = scmp.ne.s32.totalorder %s507, %s523
      %p525 = scmp.eq.s32.totalorder %s37, 0
      %p526 = por %p524, %p525
      %p527 = scmp.le.s32.totalorder 1, %s31
      %p528 = scmp.lt.s32.totalorder %s31, 5
      %p529 = pnand %p527, %p528
      %p530 = pneg %p529
      // Predicated region
      $region9: #{resampler_forward.1} parent=5 // pred_check
        _
      $region10: #{resampler_forward.1} parent=5 // pred_check_branch
        %532 = sbr.rel (%p529) target = $region12
      $region11: #{resampler_forward.1} parent=5 // pred_region
        %s533 = ssub.s32 %s31, 1
        // Predicated region
        $region13: #{resampler_forward.1} parent=11 // pred_check
          %p534 = pneg %p142
        $region14: #{resampler_forward.1} parent=11 // pred_check_branch
          %536 = sbr.rel (%p534) target = $region16
        $region15: #{resampler_forward.1} parent=11 // pred_region
          _
        $region16: #{resampler_forward.1} parent=11 // pred_fallthru
          _
        // Predicated region
        $region17: #{resampler_forward.1} parent=11 // pred_check
          %p537 = pneg %p163
        $region18: #{resampler_forward.1} parent=11 // pred_check_branch
          %539 = sbr.rel (%p537) target = $region20
        $region19: #{resampler_forward.1} parent=11 // pred_region
          _
        $region20: #{resampler_forward.1} parent=11 // pred_fallthru
          _
        // Predicated region
        $region21: #{resampler_forward.1} parent=11 // pred_check
          %p540 = pneg %p184
        $region22: #{resampler_forward.1} parent=11 // pred_check_branch
          %542 = sbr.rel (%p540) target = $region24
        $region23: #{resampler_forward.1} parent=11 // pred_region
          _
        $region24: #{resampler_forward.1} parent=11 // pred_fallthru
          _
        // Predicated region
        $region25: #{resampler_forward.1} parent=11 // pred_check
          %p543 = pneg %p205
        $region26: #{resampler_forward.1} parent=11 // pred_check_branch
          %545 = sbr.rel (%p543) target = $region28
        $region27: #{resampler_forward.1} parent=11 // pred_region
          _
        $region28: #{resampler_forward.1} parent=11 // pred_fallthru
          _
        // Predicated region
        $region29: #{resampler_forward.1} parent=11 // pred_check
          %p546 = pneg %p226
        $region30: #{resampler_forward.1} parent=11 // pred_check_branch
          %548 = sbr.rel (%p546) target = $region32
        $region31: #{resampler_forward.1} parent=11 // pred_region
          _
        $region32: #{resampler_forward.1} parent=11 // pred_fallthru
          _
        // Predicated region
        $region33: #{resampler_forward.1} parent=11 // pred_check
          %p549 = pneg %p247
        $region34: #{resampler_forward.1} parent=11 // pred_check_branch
          %551 = sbr.rel (%p549) target = $region36
        $region35: #{resampler_forward.1} parent=11 // pred_region
          %s553 = ssub.s32 4096, 4096
          %554 = vsyncadd [#allocation7], %s553
          %s555 = sshll.u32 [#allocation6], 4
          %s556 = int_to_ptr.vmem [resolvable:$true] %s555
          %561 = dma.hbm_to_vmem [thread:$0]  %s8, 4096, %s556, [#allocation7], 128, 128, 8
        $region36: #{resampler_forward.1} parent=11 // pred_fallthru
          _
        // Predicated region
        $region37: #{resampler_forward.1} parent=11 // pred_check
          %p562 = pneg %p268
        $region38: #{resampler_forward.1} parent=11 // pred_check_branch
          %564 = sbr.rel (%p562) target = $region40
        $region39: #{resampler_forward.1} parent=11 // pred_region
          _
        $region40: #{resampler_forward.1} parent=11 // pred_fallthru
          _
        // Predicated region
        $region41: #{resampler_forward.1} parent=11 // pred_check
          %p565 = pneg %p289
        $region42: #{resampler_forward.1} parent=11 // pred_check_branch
          %567 = sbr.rel (%p565) target = $region44
        $region43: #{resampler_forward.1} parent=11 // pred_region
          %s569 = ssub.s32 4096, 4096
          %570 = vsyncadd [#allocation10], %s569
          %s571 = sshll.u32 [#allocation9], 4
          %s572 = int_to_ptr.vmem [resolvable:$true] %s571
          %577 = dma.hbm_to_vmem [thread:$0]  %s10, 4096, %s572, [#allocation10], 128, 128, 8
        $region44: #{resampler_forward.1} parent=11 // pred_fallthru
          _
        // Predicated region
        $region45: #{resampler_forward.1} parent=11 // pred_check
          %p578 = pneg %p310
        $region46: #{resampler_forward.1} parent=11 // pred_check_branch
          %580 = sbr.rel (%p578) target = $region48
        $region47: #{resampler_forward.1} parent=11 // pred_region
          _
        $region48: #{resampler_forward.1} parent=11 // pred_fallthru
          _
        // Predicated region
        $region49: #{resampler_forward.1} parent=11 // pred_check
          %p581 = pneg %p331
        $region50: #{resampler_forward.1} parent=11 // pred_check_branch
          %583 = sbr.rel (%p581) target = $region52
        $region51: #{resampler_forward.1} parent=11 // pred_region
          _
        $region52: #{resampler_forward.1} parent=11 // pred_fallthru
          _
        // Predicated region
        $region53: #{resampler_forward.1} parent=11 // pred_check
          %p584 = pneg %p352
        $region54: #{resampler_forward.1} parent=11 // pred_check_branch
          %586 = sbr.rel (%p584) target = $region56
        $region55: #{resampler_forward.1} parent=11 // pred_region
          _
        $region56: #{resampler_forward.1} parent=11 // pred_fallthru
          _
        // Predicated region
        $region57: #{resampler_forward.1} parent=11 // pred_check
          %p587 = pneg %p451
        $region58: #{resampler_forward.1} parent=11 // pred_check_branch
          %589 = sbr.rel (%p587) target = $region60
        $region59: #{resampler_forward.1} parent=11 // pred_region
          _
        $region60: #{resampler_forward.1} parent=11 // pred_fallthru
          _
        // Predicated region
        $region61: #{resampler_forward.1} parent=11 // pred_check
          %p590 = pneg %p472
        $region62: #{resampler_forward.1} parent=11 // pred_check_branch
          %592 = sbr.rel (%p590) target = $region64
        $region63: #{resampler_forward.1} parent=11 // pred_region
          _
        $region64: #{resampler_forward.1} parent=11 // pred_fallthru
          _
        // Predicated region
        $region65: #{resampler_forward.1} parent=11 // pred_check
          %p593 = pneg %p493
        $region66: #{resampler_forward.1} parent=11 // pred_check_branch
          %595 = sbr.rel (%p593) target = $region68
        $region67: #{resampler_forward.1} parent=11 // pred_region
          _
        $region68: #{resampler_forward.1} parent=11 // pred_fallthru
          _
      $region12: #{resampler_forward.1} parent=5 // pred_fallthru
        _
      %p596 = scmp.lt.s32.totalorder %s31, 4
      // Predicated region
      $region69: #{resampler_forward.1} parent=5 // pred_check
        %p597 = pneg %p596
      $region70: #{resampler_forward.1} parent=5 // pred_check_branch
        %599 = sbr.rel (%p597) target = $region72
      $region71: #{resampler_forward.1} parent=5 // pred_region
        // Predicated region
        $region73: #{resampler_forward.1} parent=71 // pred_check
          %p600 = pneg %p63
        $region74: #{resampler_forward.1} parent=71 // pred_check_branch
          %602 = sbr.rel (%p600) target = $region76
        $region75: #{resampler_forward.1} parent=71 // pred_region
          %p603 = scmp.lt.s32.totalorder %s38, 1
          %s604 = scalar_select %p603, %s38, 1
          %s605 = smul.addr %s604, 32
          %s606 = smul.addr %s605, 8
          %s607 = scalar_lea.vmem %s0, %s606
        $region76: #{resampler_forward.1} parent=71 // pred_fallthru
          _
        // Predicated region
        $region77: #{resampler_forward.1} parent=71 // pred_check
          %p608 = pneg %p89
        $region78: #{resampler_forward.1} parent=71 // pred_check_branch
          %610 = sbr.rel (%p608) target = $region80
        $region79: #{resampler_forward.1} parent=71 // pred_region
          %p611 = scmp.lt.s32.totalorder %s38, 1
          %s612 = scalar_select %p611, %s38, 1
          %s613 = smul.addr %s612, 32
          %s614 = smul.addr %s613, 4
          %s615 = scalar_lea.vmem %s1, %s614
        $region80: #{resampler_forward.1} parent=71 // pred_fallthru
          _
        // Predicated region
        $region81: #{resampler_forward.1} parent=71 // pred_check
          %p616 = pneg %p115
        $region82: #{resampler_forward.1} parent=71 // pred_check_branch
          %618 = sbr.rel (%p616) target = $region84
        $region83: #{resampler_forward.1} parent=71 // pred_region
          %p619 = scmp.lt.s32.totalorder %s38, 1
          %s620 = scalar_select %p619, %s38, 1
          %s621 = scalar_lea.vmem %s2, %s620
        $region84: #{resampler_forward.1} parent=71 // pred_fallthru
          _
        // Predicated region
        $region85: #{resampler_forward.1} parent=71 // pred_check
          %p622 = pneg %p372
        $region86: #{resampler_forward.1} parent=71 // pred_check_branch
          %624 = sbr.rel (%p622) target = $region88
        $region87: #{resampler_forward.1} parent=71 // pred_region
          %s625 = sand.u32 %s31, 1
          %s626 = scalar_lea.sflag [#allocation7], %s625
          %s627 = sand.u32 %s362, 1
          %s628 = smul.addr %s627, 256
          %s629 = scalar_lea.vmem [#allocation11], %s628
          %s630 = smul.u32 2, %s39
          %s632 = ssub.s32 4096, 4096
          %633 = vsyncadd %s626, %s632
          %s634 = smul.addr %s630, 64
          %s635 = scalar_lea.hbm %s14, %s634
          %s636 = sshll.u32 %s629, 4
          %s637 = int_to_ptr.vmem [resolvable:$true] %s636
          %642 = dma.hbm_to_vmem [thread:$0]  %s635, 4096, %s637, %s626, 256, 128, 8
        $region88: #{resampler_forward.1} parent=71 // pred_fallthru
          _
        // Predicated region
        $region89: #{resampler_forward.1} parent=71 // pred_check
          %p643 = pneg %p398
        $region90: #{resampler_forward.1} parent=71 // pred_check_branch
          %645 = sbr.rel (%p643) target = $region92
        $region91: #{resampler_forward.1} parent=71 // pred_region
          %s646 = smul.u32 2, %s39
          %p647 = scmp.lt.s32.totalorder %s646, 3
          %s648 = scalar_select %p647, %s646, 3
          %s649 = scalar_lea.vmem %s15, %s648
          %s650 = smul.u32 2, %s39
        $region92: #{resampler_forward.1} parent=71 // pred_fallthru
          _
        // Predicated region
        $region93: #{resampler_forward.1} parent=71 // pred_check
          %p651 = pneg %p424
        $region94: #{resampler_forward.1} parent=71 // pred_check_branch
          %653 = sbr.rel (%p651) target = $region96
        $region95: #{resampler_forward.1} parent=71 // pred_region
          %s654 = sand.u32 %s31, 1
          %s655 = scalar_lea.sflag [#allocation7], %s654
          %s656 = sand.u32 %s414, 1
          %s657 = smul.addr %s656, 256
          %s658 = scalar_lea.vmem [#allocation12], %s657
          %s659 = smul.u32 32, %s39
          %s661 = ssub.s32 4096, 4096
          %662 = vsyncadd %s655, %s661
          %s663 = smul.addr %s659, 2
          %s664 = smul.addr %s663, 64
          %s665 = scalar_lea.hbm %s16, %s664
          %s666 = sshll.u32 %s658, 4
          %s667 = int_to_ptr.vmem [resolvable:$true] %s666
          %672 = dma.hbm_to_vmem [thread:$0]  %s665, 4096, %s667, %s655, 128, 128, 8
        $region96: #{resampler_forward.1} parent=71 // pred_fallthru
          _
      $region72: #{resampler_forward.1} parent=5 // pred_fallthru
        _
      %p673 = scmp.le.s32.totalorder 1, %s31
      %p674 = scmp.lt.s32.totalorder %s31, 5
      %p675 = pnand %p673, %p674
      %p676 = pneg %p675
      // Predicated region
      $region97: #{resampler_forward.1} parent=5 // pred_check
        _
      $region98: #{resampler_forward.1} parent=5 // pred_check_branch
        %678 = sbr.rel (%p675) target = $region100
      $region99: #{resampler_forward.1} parent=5 // pred_region
        %s679 = ssub.s32 %s31, 1
        // Predicated region
        $region101: #{resampler_forward.1} parent=99 // pred_check
          %p680 = pneg %p247
        $region102: #{resampler_forward.1} parent=99 // pred_check_branch
          %682 = sbr.rel (%p680) target = $region104
        $region103: #{resampler_forward.1} parent=99 // pred_region
          %683 = dma.done [#allocation7], 4096
        $region104: #{resampler_forward.1} parent=99 // pred_fallthru
          _
        // Predicated region
        $region105: #{resampler_forward.1} parent=99 // pred_check
          %p684 = pneg %p289
        $region106: #{resampler_forward.1} parent=99 // pred_check_branch
          %686 = sbr.rel (%p684) target = $region108
        $region107: #{resampler_forward.1} parent=99 // pred_region
          %687 = dma.done [#allocation10], 4096
        $region108: #{resampler_forward.1} parent=99 // pred_fallthru
          _
        %s688 = sand.u32 %s36, 1
        %s689 = scalar_lea.sflag [#allocation7], %s688
        %s690 = sand.u32 %s365, 1
        %s691 = smul.addr %s690, 256
        %s692 = scalar_lea.vmem [#allocation11], %s691
        // Predicated region
        $region109: #{resampler_forward.1} parent=99 // pred_check
          %p693 = pneg %p378
        $region110: #{resampler_forward.1} parent=99 // pred_check_branch
          %695 = sbr.rel (%p693) target = $region112
        $region111: #{resampler_forward.1} parent=99 // pred_region
          %696 = dma.done %s689, 4096
        $region112: #{resampler_forward.1} parent=99 // pred_fallthru
          _
        %s697 = sand.u32 %s36, 1
        %s698 = scalar_lea.sflag [#allocation7], %s697
        %s699 = sand.u32 %s417, 1
        %s700 = smul.addr %s699, 256
        %s701 = scalar_lea.vmem [#allocation12], %s700
        // Predicated region
        $region113: #{resampler_forward.1} parent=99 // pred_check
          %p702 = pneg %p430
        $region114: #{resampler_forward.1} parent=99 // pred_check_branch
          %704 = sbr.rel (%p702) target = $region116
        $region115: #{resampler_forward.1} parent=99 // pred_region
          %705 = dma.done %s698, 4096
        $region116: #{resampler_forward.1} parent=99 // pred_fallthru
          _
        %p706 = scmp.lt.s32.totalorder %s40, 1
        %s707 = scalar_select %p706, %s40, 1
        %s708 = smul.addr %s707, 32
        %s709 = smul.addr %s708, 8
        %s710 = scalar_lea.vmem %s0, %s709
        %p711 = pneg %p69
        %p712 = pneg %p66
        %p713 = scmp.lt.s32.totalorder %s40, 1
        %s714 = scalar_select %p713, %s40, 1
        %s715 = smul.addr %s714, 32
        %s716 = smul.addr %s715, 4
        %s717 = scalar_lea.vmem %s1, %s716
        %p718 = pneg %p95
        %p719 = pneg %p92
        %p720 = scmp.lt.s32.totalorder %s40, 1
        %s721 = scalar_select %p720, %s40, 1
        %s722 = scalar_lea.vmem %s2, %s721
        %p723 = pneg %p121
        %p724 = pneg %p118
        %p725 = pneg %p142
        %p726 = pneg %p139
        %p727 = pneg %p163
        %p728 = pneg %p160
        %p729 = pneg %p184
        %p730 = pneg %p181
        %p731 = pneg %p205
        %p732 = pneg %p202
        %p733 = pneg %p226
        %p734 = pneg %p223
        %p735 = pneg %p247
        %p736 = pneg %p244
        %p737 = pneg %p268
        %p738 = pneg %p265
        %p739 = pneg %p289
        %p740 = pneg %p286
        %p741 = pneg %p310
        %p742 = pneg %p307
        %p743 = pneg %p331
        %p744 = pneg %p328
        %p745 = pneg %p352
        %p746 = pneg %p349
        %s747 = sand.u32 %s36, 1
        %s748 = scalar_lea.sflag [#allocation7], %s747
        %s749 = sand.u32 %s365, 1
        %s750 = smul.addr %s749, 256
        %s751 = scalar_lea.vmem [#allocation11], %s750
        %p752 = pneg %p378
        %p753 = pneg %p375
        %s754 = smul.u32 2, %s41
        %p755 = scmp.lt.s32.totalorder %s754, 3
        %s756 = scalar_select %p755, %s754, 3
        %s757 = scalar_lea.vmem %s15, %s756
        %p758 = pneg %p404
        %p759 = pneg %p401
        %s760 = sand.u32 %s36, 1
        %s761 = scalar_lea.sflag [#allocation7], %s760
        %s762 = sand.u32 %s417, 1
        %s763 = smul.addr %s762, 256
        %s764 = scalar_lea.vmem [#allocation12], %s763
        %p765 = pneg %p430
        %p766 = pneg %p427
        %p767 = pneg %p451
        %p768 = pneg %p448
        %p769 = pneg %p472
        %p770 = pneg %p469
        %p771 = pneg %p493
        %p772 = pneg %p490
        %p773 = pneg %p519
        %p774 = pneg %p516
        %s775 = sand.u32 %s506, 1
        %s776 = scalar_lea.sflag [#allocation8], %s775
        %s777 = sand.u32 %s506, 1
        %s778 = smul.addr %s777, 32
        %s779 = scalar_lea.vmem [#allocation13], %s778
        %p780 = scmp.lt.s32.totalorder %s40, 1
        %s781 = scalar_select %p780, %s40, 1
        %s782 = smul.addr %s781, 32
        %s783 = smul.addr %s782, 8
        %s784 = scalar_lea.vmem %s0, %s783
        %p785 = scmp.lt.s32.totalorder %s40, 1
        %s786 = scalar_select %p785, %s40, 1
        %s787 = smul.addr %s786, 32
        %s788 = smul.addr %s787, 4
        %s789 = scalar_lea.vmem %s1, %s788
        %p790 = scmp.lt.s32.totalorder %s40, 1
        %s791 = scalar_select %p790, %s40, 1
        %s792 = scalar_lea.vmem %s2, %s791
        %s793 = smul.u32 2, %s41
        %s794 = smul.u32 2, %s41
        %p795 = scmp.lt.s32.totalorder %s794, 3
        %s796 = scalar_select %p795, %s794, 3
        %s797 = scalar_lea.vmem %s15, %s796
        %s798 = smul.u32 2, %s41
        %s799 = smul.u32 32, %s41
        %p801 = scmp.eq.s32.totalorder %s41, 0
        // Predicated region
        $region117: #{resampler_forward.1} parent=99 // pred_check
          %p802 = pneg %p801
        $region118: #{resampler_forward.1} parent=99 // pred_check_branch
          %804 = sbr.rel (%p802) target = $region120
        $region119: #{resampler_forward.1} parent=99 // pred_region
          %v805 = vld [vmem:[%s784] sm:$0xff]
          %v806 = vld [vmem:[%s784 + $0x8] sm:$0xff]
          %v807 = vld [vmem:[%s784 + $0x10] sm:$0xff]
          %v808 = vld [vmem:[%s784 + $0x18] sm:$0xff]
          %v809 = vld [vmem:[%s784 + $0x20] sm:$0xff]
          %v810 = vld [vmem:[%s784 + $0x28] sm:$0xff]
          %v811 = vld [vmem:[%s784 + $0x30] sm:$0xff]
          %v812 = vld [vmem:[%s784 + $0x38] sm:$0xff]
          %v813 = vld [vmem:[%s784 + $0x40] sm:$0xff]
          %v814 = vld [vmem:[%s784 + $0x48] sm:$0xff]
          %v815 = vld [vmem:[%s784 + $0x50] sm:$0xff]
          %v816 = vld [vmem:[%s784 + $0x58] sm:$0xff]
          %v817 = vld [vmem:[%s784 + $0x60] sm:$0xff]
          %v818 = vld [vmem:[%s784 + $0x68] sm:$0xff]
          %v819 = vld [vmem:[%s784 + $0x70] sm:$0xff]
          %v820 = vld [vmem:[%s784 + $0x78] sm:$0xff]
          %v821 = vld [vmem:[%s784 + $0x80] sm:$0xff]
          %v822 = vld [vmem:[%s784 + $0x88] sm:$0xff]
          %v823 = vld [vmem:[%s784 + $0x90] sm:$0xff]
          %v824 = vld [vmem:[%s784 + $0x98] sm:$0xff]
          %v825 = vld [vmem:[%s784 + $0xa0] sm:$0xff]
          %v826 = vld [vmem:[%s784 + $0xa8] sm:$0xff]
          %v827 = vld [vmem:[%s784 + $0xb0] sm:$0xff]
          %v828 = vld [vmem:[%s784 + $0xb8] sm:$0xff]
          %v829 = vld [vmem:[%s784 + $0xc0] sm:$0xff]
          %v830 = vld [vmem:[%s784 + $0xc8] sm:$0xff]
          %v831 = vld [vmem:[%s784 + $0xd0] sm:$0xff]
          %v832 = vld [vmem:[%s784 + $0xd8] sm:$0xff]
          %v833 = vld [vmem:[%s784 + $0xe0] sm:$0xff]
          %v834 = vld [vmem:[%s784 + $0xe8] sm:$0xff]
          %v835 = vld [vmem:[%s784 + $0xf0] sm:$0xff]
          %v836 = vld [vmem:[%s784 + $0xf8] sm:$0xff]
          %v837 = vld [vmem:[%s789] sm:$0xff]
          %v838 = vld [vmem:[%s789 + $0x8] sm:$0xff]
          %v839 = vld [vmem:[%s789 + $0x10] sm:$0xff]
          %v840 = vld [vmem:[%s789 + $0x18] sm:$0xff]
          %v841 = vld [vmem:[%s789 + $0x20] sm:$0xff]
          %v842 = vld [vmem:[%s789 + $0x28] sm:$0xff]
          %v843 = vld [vmem:[%s789 + $0x30] sm:$0xff]
          %v844 = vld [vmem:[%s789 + $0x38] sm:$0xff]
          %v845 = vld [vmem:[%s789 + $0x40] sm:$0xff]
          %v846 = vld [vmem:[%s789 + $0x48] sm:$0xff]
          %v847 = vld [vmem:[%s789 + $0x50] sm:$0xff]
          %v848 = vld [vmem:[%s789 + $0x58] sm:$0xff]
          %v849 = vld [vmem:[%s789 + $0x60] sm:$0xff]
          %v850 = vld [vmem:[%s789 + $0x68] sm:$0xff]
          %v851 = vld [vmem:[%s789 + $0x70] sm:$0xff]
          %v852 = vld [vmem:[%s789 + $0x78] sm:$0xff]
          %v853 = vunpack.c.l.bf16 %v837
          %v854 = vunpack.c.h.bf16 %v837
          %v855 = vunpack.c.l.bf16 %v838
          %v856 = vunpack.c.h.bf16 %v838
          %v857 = vunpack.c.l.bf16 %v839
          %v858 = vunpack.c.h.bf16 %v839
          %v859 = vunpack.c.l.bf16 %v840
          %v860 = vunpack.c.h.bf16 %v840
          %v861 = vunpack.c.l.bf16 %v841
          %v862 = vunpack.c.h.bf16 %v841
          %v863 = vunpack.c.l.bf16 %v842
          %v864 = vunpack.c.h.bf16 %v842
          %v865 = vunpack.c.l.bf16 %v843
          %v866 = vunpack.c.h.bf16 %v843
          %v867 = vunpack.c.l.bf16 %v844
          %v868 = vunpack.c.h.bf16 %v844
          %v869 = vunpack.c.l.bf16 %v845
          %v870 = vunpack.c.h.bf16 %v845
          %v871 = vunpack.c.l.bf16 %v846
          %v872 = vunpack.c.h.bf16 %v846
          %v873 = vunpack.c.l.bf16 %v847
          %v874 = vunpack.c.h.bf16 %v847
          %v875 = vunpack.c.l.bf16 %v848
          %v876 = vunpack.c.h.bf16 %v848
          %v877 = vunpack.c.l.bf16 %v849
          %v878 = vunpack.c.h.bf16 %v849
          %v879 = vunpack.c.l.bf16 %v850
          %v880 = vunpack.c.h.bf16 %v850
          %v881 = vunpack.c.l.bf16 %v851
          %v882 = vunpack.c.h.bf16 %v851
          %v883 = vunpack.c.l.bf16 %v852
          %v884 = vunpack.c.h.bf16 %v852
          %v885 = vld [vmem:[%s4] sm:$0x3]
          %v886 = vld [vmem:[%s5] sm:$0x3]
          %v887 = vadd.f32 %v805, %v806
          %888 = vadd.xlane.f32.xlu0 %v887
          %v889 = vpop.xlane.xlu0 %888
          %v890 = vadd.f32 %v807, %v808
          %891 = vadd.xlane.f32.xlu0 %v890
          %v892 = vpop.xlane.xlu0 %891
          %v893 = vadd.f32 %v809, %v810
          %894 = vadd.xlane.f32.xlu0 %v893
          %v895 = vpop.xlane.xlu0 %894
          %v896 = vadd.f32 %v811, %v812
          %897 = vadd.xlane.f32.xlu0 %v896
          %v898 = vpop.xlane.xlu0 %897
          %v899 = vadd.f32 %v813, %v814
          %900 = vadd.xlane.f32.xlu0 %v899
          %v901 = vpop.xlane.xlu0 %900
          %v902 = vadd.f32 %v815, %v816
          %903 = vadd.xlane.f32.xlu0 %v902
          %v904 = vpop.xlane.xlu0 %903
          %v905 = vadd.f32 %v817, %v818
          %906 = vadd.xlane.f32.xlu0 %v905
          %v907 = vpop.xlane.xlu0 %906
          %v908 = vadd.f32 %v819, %v820
          %909 = vadd.xlane.f32.xlu0 %v908
          %v910 = vpop.xlane.xlu0 %909
          %v911 = vadd.f32 %v821, %v822
          %912 = vadd.xlane.f32.xlu0 %v911
          %v913 = vpop.xlane.xlu0 %912
          %v914 = vadd.f32 %v823, %v824
          %915 = vadd.xlane.f32.xlu0 %v914
          %v916 = vpop.xlane.xlu0 %915
          %v917 = vadd.f32 %v825, %v826
          %918 = vadd.xlane.f32.xlu0 %v917
          %v919 = vpop.xlane.xlu0 %918
          %v920 = vadd.f32 %v827, %v828
          %921 = vadd.xlane.f32.xlu0 %v920
          %v922 = vpop.xlane.xlu0 %921
          %v923 = vadd.f32 %v829, %v830
          %924 = vadd.xlane.f32.xlu0 %v923
          %v925 = vpop.xlane.xlu0 %924
          %v926 = vadd.f32 %v831, %v832
          %927 = vadd.xlane.f32.xlu0 %v926
          %v928 = vpop.xlane.xlu0 %927
          %v929 = vadd.f32 %v833, %v834
          %930 = vadd.xlane.f32.xlu0 %v929
          %v931 = vpop.xlane.xlu0 %930
          %v932 = vadd.f32 %v835, %v836
          %933 = vadd.xlane.f32.xlu0 %v932
          %v934 = vpop.xlane.xlu0 %933
          %v935 = vrcp.pop 256.0
          %v936 = vmul.f32 %v889, %v935
          %v937 = vmul.f32 %v892, %v935
          %v938 = vmul.f32 %v895, %v935
          %v939 = vmul.f32 %v898, %v935
          %v940 = vmul.f32 %v901, %v935
          %v941 = vmul.f32 %v904, %v935
          %v942 = vmul.f32 %v907, %v935
          %v943 = vmul.f32 %v910, %v935
          %v944 = vmul.f32 %v913, %v935
          %v945 = vmul.f32 %v916, %v935
          %v946 = vmul.f32 %v919, %v935
          %v947 = vmul.f32 %v922, %v935
          %v948 = vmul.f32 %v925, %v935
          %v949 = vmul.f32 %v928, %v935
          %v950 = vmul.f32 %v931, %v935
          %v951 = vmul.f32 %v934, %v935
          %v952 = vsub.f32 %v805, %v936
          %v953 = vsub.f32 %v806, %v936
          %v954 = vsub.f32 %v807, %v937
          %v955 = vsub.f32 %v808, %v937
          %v956 = vsub.f32 %v809, %v938
          %v957 = vsub.f32 %v810, %v938
          %v958 = vsub.f32 %v811, %v939
          %v959 = vsub.f32 %v812, %v939
          %v960 = vsub.f32 %v813, %v940
          %v961 = vsub.f32 %v814, %v940
          %v962 = vsub.f32 %v815, %v941
          %v963 = vsub.f32 %v816, %v941
          %v964 = vsub.f32 %v817, %v942
          %v965 = vsub.f32 %v818, %v942
          %v966 = vsub.f32 %v819, %v943
          %v967 = vsub.f32 %v820, %v943
          %v968 = vsub.f32 %v821, %v944
          %v969 = vsub.f32 %v822, %v944
          %v970 = vsub.f32 %v823, %v945
          %v971 = vsub.f32 %v824, %v945
          %v972 = vsub.f32 %v825, %v946
          %v973 = vsub.f32 %v826, %v946
          %v974 = vsub.f32 %v827, %v947
          %v975 = vsub.f32 %v828, %v947
          %v976 = vsub.f32 %v829, %v948
          %v977 = vsub.f32 %v830, %v948
          %v978 = vsub.f32 %v831, %v949
          %v979 = vsub.f32 %v832, %v949
          %v980 = vsub.f32 %v833, %v950
          %v981 = vsub.f32 %v834, %v950
          %v982 = vsub.f32 %v835, %v951
          %v983 = vsub.f32 %v836, %v951
          %v984 = vmul.f32 %v952, %v952
          %v985 = vmul.f32 %v953, %v953
          %v986 = vmul.f32 %v954, %v954
          %v987 = vmul.f32 %v955, %v955
          %v988 = vmul.f32 %v956, %v956
          %v989 = vmul.f32 %v957, %v957
          %v990 = vmul.f32 %v958, %v958
          %v991 = vmul.f32 %v959, %v959
          %v992 = vmul.f32 %v960, %v960
          %v993 = vmul.f32 %v961, %v961
          %v994 = vmul.f32 %v962, %v962
          %v995 = vmul.f32 %v963, %v963
          %v996 = vmul.f32 %v964, %v964
          %v997 = vmul.f32 %v965, %v965
          %v998 = vmul.f32 %v966, %v966
          %v999 = vmul.f32 %v967, %v967
          %v1000 = vmul.f32 %v968, %v968
          %v1001 = vmul.f32 %v969, %v969
          %v1002 = vmul.f32 %v970, %v970
          %v1003 = vmul.f32 %v971, %v971
          %v1004 = vmul.f32 %v972, %v972
          %v1005 = vmul.f32 %v973, %v973
          %v1006 = vmul.f32 %v974, %v974
          %v1007 = vmul.f32 %v975, %v975
          %v1008 = vmul.f32 %v976, %v976
          %v1009 = vmul.f32 %v977, %v977
          %v1010 = vmul.f32 %v978, %v978
          %v1011 = vmul.f32 %v979, %v979
          %v1012 = vmul.f32 %v980, %v980
          %v1013 = vmul.f32 %v981, %v981
          %v1014 = vmul.f32 %v982, %v982
          %v1015 = vmul.f32 %v983, %v983
          %v1016 = vadd.f32 %v984, %v985
          %1017 = vadd.xlane.f32.xlu0 %v1016
          %v1018 = vpop.xlane.xlu0 %1017
          %v1019 = vadd.f32 %v986, %v987
          %1020 = vadd.xlane.f32.xlu0 %v1019
          %v1021 = vpop.xlane.xlu0 %1020
          %v1022 = vadd.f32 %v988, %v989
          %1023 = vadd.xlane.f32.xlu0 %v1022
          %v1024 = vpop.xlane.xlu0 %1023
          %v1025 = vadd.f32 %v990, %v991
          %1026 = vadd.xlane.f32.xlu0 %v1025
          %v1027 = vpop.xlane.xlu0 %1026
          %v1028 = vadd.f32 %v992, %v993
          %1029 = vadd.xlane.f32.xlu0 %v1028
          %v1030 = vpop.xlane.xlu0 %1029
          %v1031 = vadd.f32 %v994, %v995
          %1032 = vadd.xlane.f32.xlu0 %v1031
          %v1033 = vpop.xlane.xlu0 %1032
          %v1034 = vadd.f32 %v996, %v997
          %1035 = vadd.xlane.f32.xlu0 %v1034
          %v1036 = vpop.xlane.xlu0 %1035
          %v1037 = vadd.f32 %v998, %v999
          %1038 = vadd.xlane.f32.xlu0 %v1037
          %v1039 = vpop.xlane.xlu0 %1038
          %v1040 = vadd.f32 %v1000, %v1001
          %1041 = vadd.xlane.f32.xlu0 %v1040
          %v1042 = vpop.xlane.xlu0 %1041
          %v1043 = vadd.f32 %v1002, %v1003
          %1044 = vadd.xlane.f32.xlu0 %v1043
          %v1045 = vpop.xlane.xlu0 %1044
          %v1046 = vadd.f32 %v1004, %v1005
          %1047 = vadd.xlane.f32.xlu0 %v1046
          %v1048 = vpop.xlane.xlu0 %1047
          %v1049 = vadd.f32 %v1006, %v1007
          %1050 = vadd.xlane.f32.xlu0 %v1049
          %v1051 = vpop.xlane.xlu0 %1050
          %v1052 = vadd.f32 %v1008, %v1009
          %1053 = vadd.xlane.f32.xlu0 %v1052
          %v1054 = vpop.xlane.xlu0 %1053
          %v1055 = vadd.f32 %v1010, %v1011
          %1056 = vadd.xlane.f32.xlu0 %v1055
          %v1057 = vpop.xlane.xlu0 %1056
          %v1058 = vadd.f32 %v1012, %v1013
          %1059 = vadd.xlane.f32.xlu0 %v1058
          %v1060 = vpop.xlane.xlu0 %1059
          %v1061 = vadd.f32 %v1014, %v1015
          %1062 = vadd.xlane.f32.xlu0 %v1061
          %v1063 = vpop.xlane.xlu0 %1062
          %v1064 = vmul.f32 %v1018, %v935
          %v1065 = vmul.f32 %v1021, %v935
          %v1066 = vmul.f32 %v1024, %v935
          %v1067 = vmul.f32 %v1027, %v935
          %v1068 = vmul.f32 %v1030, %v935
          %v1069 = vmul.f32 %v1033, %v935
          %v1070 = vmul.f32 %v1036, %v935
          %v1071 = vmul.f32 %v1039, %v935
          %v1072 = vmul.f32 %v1042, %v935
          %v1073 = vmul.f32 %v1045, %v935
          %v1074 = vmul.f32 %v1048, %v935
          %v1075 = vmul.f32 %v1051, %v935
          %v1076 = vmul.f32 %v1054, %v935
          %v1077 = vmul.f32 %v1057, %v935
          %v1078 = vmul.f32 %v1060, %v935
          %v1079 = vmul.f32 %v1063, %v935
          %v1080 = vadd.f32 %v1064, 1e-06
          %v1081 = vadd.f32 %v1065, 1e-06
          %v1082 = vadd.f32 %v1066, 1e-06
          %v1083 = vadd.f32 %v1067, 1e-06
          %v1084 = vadd.f32 %v1068, 1e-06
          %v1085 = vadd.f32 %v1069, 1e-06
          %v1086 = vadd.f32 %v1070, 1e-06
          %v1087 = vadd.f32 %v1071, 1e-06
          %v1088 = vadd.f32 %v1072, 1e-06
          %v1089 = vadd.f32 %v1073, 1e-06
          %v1090 = vadd.f32 %v1074, 1e-06
          %v1091 = vadd.f32 %v1075, 1e-06
          %v1092 = vadd.f32 %v1076, 1e-06
          %v1093 = vadd.f32 %v1077, 1e-06
          %v1094 = vadd.f32 %v1078, 1e-06
          %v1095 = vadd.f32 %v1079, 1e-06
          %v1096 = vrsqrt.pop %v1080
          %v1097 = vrsqrt.pop %v1081
          %v1098 = vrsqrt.pop %v1082
          %v1099 = vrsqrt.pop %v1083
          %v1100 = vrsqrt.pop %v1084
          %v1101 = vrsqrt.pop %v1085
          %v1102 = vrsqrt.pop %v1086
          %v1103 = vrsqrt.pop %v1087
          %v1104 = vrsqrt.pop %v1088
          %v1105 = vrsqrt.pop %v1089
          %v1106 = vrsqrt.pop %v1090
          %v1107 = vrsqrt.pop %v1091
          %v1108 = vrsqrt.pop %v1092
          %v1109 = vrsqrt.pop %v1093
          %v1110 = vrsqrt.pop %v1094
          %v1111 = vrsqrt.pop %v1095
          %v1112 = vmul.f32 %v952, %v1096
          %v1113 = vmul.f32 %v953, %v1096
          %v1114 = vmul.f32 %v954, %v1097
          %v1115 = vmul.f32 %v955, %v1097
          %v1116 = vmul.f32 %v956, %v1098
          %v1117 = vmul.f32 %v957, %v1098
          %v1118 = vmul.f32 %v958, %v1099
          %v1119 = vmul.f32 %v959, %v1099
          %v1120 = vmul.f32 %v960, %v1100
          %v1121 = vmul.f32 %v961, %v1100
          %v1122 = vmul.f32 %v962, %v1101
          %v1123 = vmul.f32 %v963, %v1101
          %v1124 = vmul.f32 %v964, %v1102
          %v1125 = vmul.f32 %v965, %v1102
          %v1126 = vmul.f32 %v966, %v1103
          %v1127 = vmul.f32 %v967, %v1103
          %v1128 = vmul.f32 %v968, %v1104
          %v1129 = vmul.f32 %v969, %v1104
          %v1130 = vmul.f32 %v970, %v1105
          %v1131 = vmul.f32 %v971, %v1105
          %v1132 = vmul.f32 %v972, %v1106
          %v1133 = vmul.f32 %v973, %v1106
          %v1134 = vmul.f32 %v974, %v1107
          %v1135 = vmul.f32 %v975, %v1107
          %v1136 = vmul.f32 %v976, %v1108
          %v1137 = vmul.f32 %v977, %v1108
          %v1138 = vmul.f32 %v978, %v1109
          %v1139 = vmul.f32 %v979, %v1109
          %v1140 = vmul.f32 %v980, %v1110
          %v1141 = vmul.f32 %v981, %v1110
          %v1142 = vmul.f32 %v982, %v1111
          %v1143 = vmul.f32 %v983, %v1111
          %v1145 = vlaneseq
          %v1146 = vshrl.u32 %v1145, 7
          %v1147 = vsub.s32 0, %v1146
          %v1148 = vrot.slane %v885, %v1147
          %v1149 = vlaneseq
          %v1150 = vshrl.u32 %v1149, 7
          %v1151 = vsub.s32 1, %v1150
          %v1152 = vrot.slane %v885, %v1151
          %v1155 = vmul.f32 %v1112, %v1148
          %v1156 = vmul.f32 %v1113, %v1152
          %v1157 = vmul.f32 %v1114, %v1148
          %v1158 = vmul.f32 %v1115, %v1152
          %v1159 = vmul.f32 %v1116, %v1148
          %v1160 = vmul.f32 %v1117, %v1152
          %v1161 = vmul.f32 %v1118, %v1148
          %v1162 = vmul.f32 %v1119, %v1152
          %v1163 = vmul.f32 %v1120, %v1148
          %v1164 = vmul.f32 %v1121, %v1152
          %v1165 = vmul.f32 %v1122, %v1148
          %v1166 = vmul.f32 %v1123, %v1152
          %v1167 = vmul.f32 %v1124, %v1148
          %v1168 = vmul.f32 %v1125, %v1152
          %v1169 = vmul.f32 %v1126, %v1148
          %v1170 = vmul.f32 %v1127, %v1152
          %v1171 = vmul.f32 %v1128, %v1148
          %v1172 = vmul.f32 %v1129, %v1152
          %v1173 = vmul.f32 %v1130, %v1148
          %v1174 = vmul.f32 %v1131, %v1152
          %v1175 = vmul.f32 %v1132, %v1148
          %v1176 = vmul.f32 %v1133, %v1152
          %v1177 = vmul.f32 %v1134, %v1148
          %v1178 = vmul.f32 %v1135, %v1152
          %v1179 = vmul.f32 %v1136, %v1148
          %v1180 = vmul.f32 %v1137, %v1152
          %v1181 = vmul.f32 %v1138, %v1148
          %v1182 = vmul.f32 %v1139, %v1152
          %v1183 = vmul.f32 %v1140, %v1148
          %v1184 = vmul.f32 %v1141, %v1152
          %v1185 = vmul.f32 %v1142, %v1148
          %v1186 = vmul.f32 %v1143, %v1152
          %v1188 = vlaneseq
          %v1189 = vshrl.u32 %v1188, 7
          %v1190 = vsub.s32 0, %v1189
          %v1191 = vrot.slane %v886, %v1190
          %v1192 = vlaneseq
          %v1193 = vshrl.u32 %v1192, 7
          %v1194 = vsub.s32 1, %v1193
          %v1195 = vrot.slane %v886, %v1194
          %v1198 = vadd.f32 %v1155, %v1191
          %v1199 = vadd.f32 %v1156, %v1195
          %v1200 = vadd.f32 %v1157, %v1191
          %v1201 = vadd.f32 %v1158, %v1195
          %v1202 = vadd.f32 %v1159, %v1191
          %v1203 = vadd.f32 %v1160, %v1195
          %v1204 = vadd.f32 %v1161, %v1191
          %v1205 = vadd.f32 %v1162, %v1195
          %v1206 = vadd.f32 %v1163, %v1191
          %v1207 = vadd.f32 %v1164, %v1195
          %v1208 = vadd.f32 %v1165, %v1191
          %v1209 = vadd.f32 %v1166, %v1195
          %v1210 = vadd.f32 %v1167, %v1191
          %v1211 = vadd.f32 %v1168, %v1195
          %v1212 = vadd.f32 %v1169, %v1191
          %v1213 = vadd.f32 %v1170, %v1195
          %v1214 = vadd.f32 %v1171, %v1191
          %v1215 = vadd.f32 %v1172, %v1195
          %v1216 = vadd.f32 %v1173, %v1191
          %v1217 = vadd.f32 %v1174, %v1195
          %v1218 = vadd.f32 %v1175, %v1191
          %v1219 = vadd.f32 %v1176, %v1195
          %v1220 = vadd.f32 %v1177, %v1191
          %v1221 = vadd.f32 %v1178, %v1195
          %v1222 = vadd.f32 %v1179, %v1191
          %v1223 = vadd.f32 %v1180, %v1195
          %v1224 = vadd.f32 %v1181, %v1191
          %v1225 = vadd.f32 %v1182, %v1195
          %v1226 = vadd.f32 %v1183, %v1191
          %v1227 = vadd.f32 %v1184, %v1195
          %v1228 = vadd.f32 %v1185, %v1191
          %v1229 = vadd.f32 %v1186, %v1195
          %v1230 = vadd.f32 %v1198, %v853
          %v1231 = vadd.f32 %v1199, %v854
          %v1232 = vadd.f32 %v1200, %v855
          %v1233 = vadd.f32 %v1201, %v856
          %v1234 = vadd.f32 %v1202, %v857
          %v1235 = vadd.f32 %v1203, %v858
          %v1236 = vadd.f32 %v1204, %v859
          %v1237 = vadd.f32 %v1205, %v860
          %v1238 = vadd.f32 %v1206, %v861
          %v1239 = vadd.f32 %v1207, %v862
          %v1240 = vadd.f32 %v1208, %v863
          %v1241 = vadd.f32 %v1209, %v864
          %v1242 = vadd.f32 %v1210, %v865
          %v1243 = vadd.f32 %v1211, %v866
          %v1244 = vadd.f32 %v1212, %v867
          %v1245 = vadd.f32 %v1213, %v868
          %v1246 = vadd.f32 %v1214, %v869
          %v1247 = vadd.f32 %v1215, %v870
          %v1248 = vadd.f32 %v1216, %v871
          %v1249 = vadd.f32 %v1217, %v872
          %v1250 = vadd.f32 %v1218, %v873
          %v1251 = vadd.f32 %v1219, %v874
          %v1252 = vadd.f32 %v1220, %v875
          %v1253 = vadd.f32 %v1221, %v876
          %v1254 = vadd.f32 %v1222, %v877
          %v1255 = vadd.f32 %v1223, %v878
          %v1256 = vadd.f32 %v1224, %v879
          %v1257 = vadd.f32 %v1225, %v880
          %v1258 = vadd.f32 %v1226, %v881
          %v1259 = vadd.f32 %v1227, %v882
          %v1260 = vadd.f32 %v1228, %v883
          %v1261 = vadd.f32 %v1229, %v884
          %v1262 = vpack.c.bf16 %v1232, %v1230
          %v1263 = vpack.c.bf16 %v1233, %v1231
          %v1264 = vpack.c.bf16 %v1236, %v1234
          %v1265 = vpack.c.bf16 %v1237, %v1235
          %v1266 = vpack.c.bf16 %v1240, %v1238
          %v1267 = vpack.c.bf16 %v1241, %v1239
          %v1268 = vpack.c.bf16 %v1244, %v1242
          %v1269 = vpack.c.bf16 %v1245, %v1243
          %v1270 = vpack.c.bf16 %v1248, %v1246
          %v1271 = vpack.c.bf16 %v1249, %v1247
          %v1272 = vpack.c.bf16 %v1252, %v1250
          %v1273 = vpack.c.bf16 %v1253, %v1251
          %v1274 = vpack.c.bf16 %v1256, %v1254
          %v1275 = vpack.c.bf16 %v1257, %v1255
          %v1276 = vpack.c.bf16 %v1260, %v1258
          %v1277 = vpack.c.bf16 %v1261, %v1259
          %v1278 = vpack.c.bf16 %v1200, %v1198
          %v1279 = vpack.c.bf16 %v1201, %v1199
          %v1280 = vpack.c.bf16 %v1204, %v1202
          %v1281 = vpack.c.bf16 %v1205, %v1203
          %v1282 = vpack.c.bf16 %v1208, %v1206
          %v1283 = vpack.c.bf16 %v1209, %v1207
          %v1284 = vpack.c.bf16 %v1212, %v1210
          %v1285 = vpack.c.bf16 %v1213, %v1211
          %v1286 = vpack.c.bf16 %v1216, %v1214
          %v1287 = vpack.c.bf16 %v1217, %v1215
          %v1288 = vpack.c.bf16 %v1220, %v1218
          %v1289 = vpack.c.bf16 %v1221, %v1219
          %v1290 = vpack.c.bf16 %v1224, %v1222
          %v1291 = vpack.c.bf16 %v1225, %v1223
          %v1292 = vpack.c.bf16 %v1228, %v1226
          %v1293 = vpack.c.bf16 %v1229, %v1227
          %v1294 = vld [vmem:[%s6] sm:$0xff]
          %v1295 = vld [vmem:[%s6 + $0x8] sm:$0xff]
          %v1296 = vld [vmem:[%s6 + $0x10] sm:$0xff]
          %v1297 = vld [vmem:[%s6 + $0x18] sm:$0xff]
          %v1298 = vld [vmem:[%s6 + $0x20] sm:$0xff]
          %v1299 = vld [vmem:[%s6 + $0x28] sm:$0xff]
          %v1300 = vld [vmem:[%s6 + $0x30] sm:$0xff]
          %v1301 = vld [vmem:[%s6 + $0x38] sm:$0xff]
          %v1302 = vld [vmem:[%s6 + $0x40] sm:$0xff]
          %v1303 = vld [vmem:[%s6 + $0x48] sm:$0xff]
          %v1304 = vld [vmem:[%s6 + $0x50] sm:$0xff]
          %v1305 = vld [vmem:[%s6 + $0x58] sm:$0xff]
          %v1306 = vld [vmem:[%s6 + $0x60] sm:$0xff]
          %v1307 = vld [vmem:[%s6 + $0x68] sm:$0xff]
          %v1308 = vld [vmem:[%s6 + $0x70] sm:$0xff]
          %v1309 = vld [vmem:[%s6 + $0x78] sm:$0xff]
          %v1310 = vld [vmem:[%s6 + $0x80] sm:$0xff]
          %v1311 = vld [vmem:[%s6 + $0x88] sm:$0xff]
          %v1312 = vld [vmem:[%s6 + $0x90] sm:$0xff]
          %v1313 = vld [vmem:[%s6 + $0x98] sm:$0xff]
          %v1314 = vld [vmem:[%s6 + $0xa0] sm:$0xff]
          %v1315 = vld [vmem:[%s6 + $0xa8] sm:$0xff]
          %v1316 = vld [vmem:[%s6 + $0xb0] sm:$0xff]
          %v1317 = vld [vmem:[%s6 + $0xb8] sm:$0xff]
          %v1318 = vld [vmem:[%s6 + $0xc0] sm:$0xff]
          %v1319 = vld [vmem:[%s6 + $0xc8] sm:$0xff]
          %v1320 = vld [vmem:[%s6 + $0xd0] sm:$0xff]
          %v1321 = vld [vmem:[%s6 + $0xd8] sm:$0xff]
          %v1322 = vld [vmem:[%s6 + $0xe0] sm:$0xff]
          %v1323 = vld [vmem:[%s6 + $0xe8] sm:$0xff]
          %v1324 = vld [vmem:[%s6 + $0xf0] sm:$0xff]
          %v1325 = vld [vmem:[%s6 + $0xf8] sm:$0xff]
          %v1326 = vld [vmem:[%s7] sm:$0x3]
          %v1328 = vlaneseq
          %v1329 = vshrl.u32 %v1328, 7
          %v1330 = vsub.s32 0, %v1329
          %v1331 = vrot.slane %v1326, %v1330
          %v1332 = vlaneseq
          %v1333 = vshrl.u32 %v1332, 7
          %v1334 = vsub.s32 1, %v1333
          %v1335 = vrot.slane %v1326, %v1334
          %v1370 = vunpack.c.l.b16 %v1294
          %v1371 = vunpack.c.h.b16 %v1294
          %v1372 = vunpack.c.l.b16 %v1295
          %v1373 = vunpack.c.h.b16 %v1295
          %v1374 = vunpack.c.l.b16 %v1296
          %v1375 = vunpack.c.h.b16 %v1296
          %v1376 = vunpack.c.l.b16 %v1297
          %v1377 = vunpack.c.h.b16 %v1297
          %v1378 = vunpack.c.l.b16 %v1298
          %v1379 = vunpack.c.h.b16 %v1298
          %v1380 = vunpack.c.l.b16 %v1299
          %v1381 = vunpack.c.h.b16 %v1299
          %v1382 = vunpack.c.l.b16 %v1300
          %v1383 = vunpack.c.h.b16 %v1300
          %v1384 = vunpack.c.l.b16 %v1301
          %v1385 = vunpack.c.h.b16 %v1301
          %v1386 = vunpack.c.l.b16 %v1302
          %v1387 = vunpack.c.h.b16 %v1302
          %v1388 = vunpack.c.l.b16 %v1303
          %v1389 = vunpack.c.h.b16 %v1303
          %v1390 = vunpack.c.l.b16 %v1304
          %v1391 = vunpack.c.h.b16 %v1304
          %v1392 = vunpack.c.l.b16 %v1305
          %v1393 = vunpack.c.h.b16 %v1305
          %v1394 = vunpack.c.l.b16 %v1306
          %v1395 = vunpack.c.h.b16 %v1306
          %v1396 = vunpack.c.l.b16 %v1307
          %v1397 = vunpack.c.h.b16 %v1307
          %v1398 = vunpack.c.l.b16 %v1308
          %v1399 = vunpack.c.h.b16 %v1308
          %v1400 = vunpack.c.l.b16 %v1309
          %v1401 = vunpack.c.h.b16 %v1309
          %v1402 = vunpack.c.l.b16 %v1310
          %v1403 = vunpack.c.h.b16 %v1310
          %v1404 = vunpack.c.l.b16 %v1311
          %v1405 = vunpack.c.h.b16 %v1311
          %v1406 = vunpack.c.l.b16 %v1312
          %v1407 = vunpack.c.h.b16 %v1312
          %v1408 = vunpack.c.l.b16 %v1313
          %v1409 = vunpack.c.h.b16 %v1313
          %v1410 = vunpack.c.l.b16 %v1314
          %v1411 = vunpack.c.h.b16 %v1314
          %v1412 = vunpack.c.l.b16 %v1315
          %v1413 = vunpack.c.h.b16 %v1315
          %v1414 = vunpack.c.l.b16 %v1316
          %v1415 = vunpack.c.h.b16 %v1316
          %v1416 = vunpack.c.l.b16 %v1317
          %v1417 = vunpack.c.h.b16 %v1317
          %v1418 = vunpack.c.l.b16 %v1318
          %v1419 = vunpack.c.h.b16 %v1318
          %v1420 = vunpack.c.l.b16 %v1319
          %v1421 = vunpack.c.h.b16 %v1319
          %v1422 = vunpack.c.l.b16 %v1320
          %v1423 = vunpack.c.h.b16 %v1320
          %v1424 = vunpack.c.l.b16 %v1321
          %v1425 = vunpack.c.h.b16 %v1321
          %v1426 = vunpack.c.l.b16 %v1322
          %v1427 = vunpack.c.h.b16 %v1322
          %v1428 = vunpack.c.l.b16 %v1323
          %v1429 = vunpack.c.h.b16 %v1323
          %v1430 = vunpack.c.l.b16 %v1324
          %v1431 = vunpack.c.h.b16 %v1324
          %v1432 = vunpack.c.l.b16 %v1325
          %v1433 = vunpack.c.h.b16 %v1325
          %v1434 = vpack.c.b16 %v1372, %v1370
          %v1435 = vpack.c.b16 %v1373, %v1371
          %v1436 = vpack.c.b16 %v1376, %v1374
          %v1437 = vpack.c.b16 %v1377, %v1375
          %v1438 = vpack.c.b16 %v1380, %v1378
          %v1439 = vpack.c.b16 %v1381, %v1379
          %v1440 = vpack.c.b16 %v1384, %v1382
          %v1441 = vpack.c.b16 %v1385, %v1383
          %v1442 = vpack.c.b16 %v1388, %v1386
          %v1443 = vpack.c.b16 %v1389, %v1387
          %v1444 = vpack.c.b16 %v1392, %v1390
          %v1445 = vpack.c.b16 %v1393, %v1391
          %v1446 = vpack.c.b16 %v1396, %v1394
          %v1447 = vpack.c.b16 %v1397, %v1395
          %v1448 = vpack.c.b16 %v1400, %v1398
          %v1449 = vpack.c.b16 %v1401, %v1399
          %v1450 = vpack.c.b16 %v1404, %v1402
          %v1451 = vpack.c.b16 %v1405, %v1403
          %v1452 = vpack.c.b16 %v1408, %v1406
          %v1453 = vpack.c.b16 %v1409, %v1407
          %v1454 = vpack.c.b16 %v1412, %v1410
          %v1455 = vpack.c.b16 %v1413, %v1411
          %v1456 = vpack.c.b16 %v1416, %v1414
          %v1457 = vpack.c.b16 %v1417, %v1415
          %v1458 = vpack.c.b16 %v1420, %v1418
          %v1459 = vpack.c.b16 %v1421, %v1419
          %v1460 = vpack.c.b16 %v1424, %v1422
          %v1461 = vpack.c.b16 %v1425, %v1423
          %v1462 = vpack.c.b16 %v1428, %v1426
          %v1463 = vpack.c.b16 %v1429, %v1427
          %v1464 = vpack.c.b16 %v1432, %v1430
          %v1465 = vpack.c.b16 %v1433, %v1431
          %1498 = vmatprep.subr.bf16.mxu0 %v1435
          %1499 = vmatpush1.bf16.msra.mxu0 %v1434
          %1500 = vmatprep.subr.bf16.mxu0 %v1437
          %1501 = vmatpush1.bf16.msra.mxu0 %v1436
          %1502 = vmatprep.subr.bf16.mxu0 %v1439
          %1503 = vmatpush1.bf16.msra.mxu0 %v1438
          %1504 = vmatprep.subr.bf16.mxu0 %v1441
          %1505 = vmatpush1.bf16.msra.mxu0 %v1440
          %1506 = vmatprep.subr.bf16.mxu0 %v1443
          %1507 = vmatpush1.bf16.msra.mxu0 %v1442
          %1508 = vmatprep.subr.bf16.mxu0 %v1445
          %1509 = vmatpush1.bf16.msra.mxu0 %v1444
          %1510 = vmatprep.subr.bf16.mxu0 %v1447
          %1511 = vmatpush1.bf16.msra.mxu0 %v1446
          %1512 = vmatprep.subr.bf16.mxu0 %v1449
          %1513 = vmatpush1.bf16.msra.mxu0 %v1448
          %1514 = vmatprep.subr.bf16.mxu0 %v1451
          %1515 = vmatpush1.bf16.msra.mxu0 %v1450
          %1516 = vmatprep.subr.bf16.mxu0 %v1453
          %1517 = vmatpush1.bf16.msra.mxu0 %v1452
          %1518 = vmatprep.subr.bf16.mxu0 %v1455
          %1519 = vmatpush1.bf16.msra.mxu0 %v1454
          %1520 = vmatprep.subr.bf16.mxu0 %v1457
          %1521 = vmatpush1.bf16.msra.mxu0 %v1456
          %1522 = vmatprep.subr.bf16.mxu0 %v1459
          %1523 = vmatpush1.bf16.msra.mxu0 %v1458
          %1524 = vmatprep.subr.bf16.mxu0 %v1461
          %1525 = vmatpush1.bf16.msra.mxu0 %v1460
          %1526 = vmatprep.subr.bf16.mxu0 %v1463
          %1527 = vmatpush1.bf16.msra.mxu0 %v1462
          %1528 = vmatprep.subr.bf16.mxu0 %v1465
          %1529 = vmatpush1.bf16.msra.mxu0 %v1464
          %1530 = vmatprep.mubr.bf16.mxu0 %v1263
          %1531 = vmatmul.mubr.bf16.gmra.mrb[0].mxu0 %v1262
          %v1532 = vpop.f32.mrb[0].mxu0
          %v1533 = vadd.f32 %v1331, %v1532
          %v1534 = vpop.f32.mrb[0].mxu0
          %v1535 = vadd.f32 %v1335, %v1534
          %v1536 = vpop.f32.mrb[0].mxu0
          %v1537 = vadd.f32 %v1331, %v1536
          %v1538 = vpop.f32.mrb[0].mxu0
          %v1539 = vadd.f32 %v1335, %v1538
          %1540 = vmatprep.mubr.bf16.mxu0 %v1265
          %1541 = vmatmul.mubr.bf16.gmra.mrb[0].mxu0 %v1264
          %v1542 = vpop.f32.mrb[0].mxu0
          %v1543 = vadd.f32 %v1331, %v1542
          %v1544 = vpop.f32.mrb[0].mxu0
          %v1545 = vadd.f32 %v1335, %v1544
          %v1546 = vpop.f32.mrb[0].mxu0
          %v1547 = vadd.f32 %v1331, %v1546
          %v1548 = vpop.f32.mrb[0].mxu0
          %v1549 = vadd.f32 %v1335, %v1548
          %1550 = vmatprep.mubr.bf16.mxu0 %v1267
          %1551 = vmatmul.mubr.bf16.gmra.mrb[0].mxu0 %v1266
          %v1552 = vpop.f32.mrb[0].mxu0
          %v1553 = vadd.f32 %v1331, %v1552
          %v1554 = vpop.f32.mrb[0].mxu0
          %v1555 = vadd.f32 %v1335, %v1554
          %v1556 = vpop.f32.mrb[0].mxu0
          %v1557 = vadd.f32 %v1331, %v1556
          %v1558 = vpop.f32.mrb[0].mxu0
          %v1559 = vadd.f32 %v1335, %v1558
          %1560 = vmatprep.mubr.bf16.mxu0 %v1269
          %1561 = vmatmul.mubr.bf16.gmra.mrb[0].mxu0 %v1268
          %v1562 = vpop.f32.mrb[0].mxu0
          %v1563 = vadd.f32 %v1331, %v1562
          %v1564 = vpop.f32.mrb[0].mxu0
          %v1565 = vadd.f32 %v1335, %v1564
          %v1566 = vpop.f32.mrb[0].mxu0
          %v1567 = vadd.f32 %v1331, %v1566
          %v1568 = vpop.f32.mrb[0].mxu0
          %v1569 = vadd.f32 %v1335, %v1568
          %1570 = vmatprep.mubr.bf16.mxu0 %v1271
          %1571 = vmatmul.mubr.bf16.gmra.mrb[0].mxu0 %v1270
          %v1572 = vpop.f32.mrb[0].mxu0
          %v1573 = vadd.f32 %v1331, %v1572
          %v1574 = vpop.f32.mrb[0].mxu0
          %v1575 = vadd.f32 %v1335, %v1574
          %v1576 = vpop.f32.mrb[0].mxu0
          %v1577 = vadd.f32 %v1331, %v1576
          %v1578 = vpop.f32.mrb[0].mxu0
          %v1579 = vadd.f32 %v1335, %v1578
          %1580 = vmatprep.mubr.bf16.mxu0 %v1273
          %1581 = vmatmul.mubr.bf16.gmra.mrb[0].mxu0 %v1272
          %v1582 = vpop.f32.mrb[0].mxu0
          %v1583 = vadd.f32 %v1331, %v1582
          %v1584 = vpop.f32.mrb[0].mxu0
          %v1585 = vadd.f32 %v1335, %v1584
          %v1586 = vpop.f32.mrb[0].mxu0
          %v1587 = vadd.f32 %v1331, %v1586
          %v1588 = vpop.f32.mrb[0].mxu0
          %v1589 = vadd.f32 %v1335, %v1588
          %1590 = vmatprep.mubr.bf16.mxu0 %v1275
          %1591 = vmatmul.mubr.bf16.gmra.mrb[0].mxu0 %v1274
          %v1592 = vpop.f32.mrb[0].mxu0
          %v1593 = vadd.f32 %v1331, %v1592
          %v1594 = vpop.f32.mrb[0].mxu0
          %v1595 = vadd.f32 %v1335, %v1594
          %v1596 = vpop.f32.mrb[0].mxu0
          %v1597 = vadd.f32 %v1331, %v1596
          %v1598 = vpop.f32.mrb[0].mxu0
          %v1599 = vadd.f32 %v1335, %v1598
          %1600 = vmatprep.mubr.bf16.mxu0 %v1277
          %1601 = vmatmul.mubr.bf16.gmra.mrb[0].mxu0 %v1276
          %v1602 = vpop.f32.mrb[0].mxu0
          %v1603 = vadd.f32 %v1331, %v1602
          %v1604 = vpop.f32.mrb[0].mxu0
          %v1605 = vadd.f32 %v1335, %v1604
          %v1606 = vpop.f32.mrb[0].mxu0
          %v1607 = vadd.f32 %v1331, %v1606
          %v1608 = vpop.f32.mrb[0].mxu0
          %v1609 = vadd.f32 %v1335, %v1608
          %1610 = vdwg.mxu0
          %v1611 = vpack.c.bf16 %v1537, %v1533
          %v1612 = vpack.c.bf16 %v1539, %v1535
          %v1613 = vpack.c.bf16 %v1547, %v1543
          %v1614 = vpack.c.bf16 %v1549, %v1545
          %v1615 = vpack.c.bf16 %v1557, %v1553
          %v1616 = vpack.c.bf16 %v1559, %v1555
          %v1617 = vpack.c.bf16 %v1567, %v1563
          %v1618 = vpack.c.bf16 %v1569, %v1565
          %v1619 = vpack.c.bf16 %v1577, %v1573
          %v1620 = vpack.c.bf16 %v1579, %v1575
          %v1621 = vpack.c.bf16 %v1587, %v1583
          %v1622 = vpack.c.bf16 %v1589, %v1585
          %v1623 = vpack.c.bf16 %v1597, %v1593
          %v1624 = vpack.c.bf16 %v1599, %v1595
          %v1625 = vpack.c.bf16 %v1607, %v1603
          %v1626 = vpack.c.bf16 %v1609, %v1605
          %1627 = vst [vmem:[#allocation2] sm:$0xff] %v1611
          %1628 = vst [vmem:[#allocation2 + $0x8] sm:$0xff] %v1612
          %1629 = vst [vmem:[#allocation2 + $0x10] sm:$0xff] %v1613
          %1630 = vst [vmem:[#allocation2 + $0x18] sm:$0xff] %v1614
          %1631 = vst [vmem:[#allocation2 + $0x20] sm:$0xff] %v1615
          %1632 = vst [vmem:[#allocation2 + $0x28] sm:$0xff] %v1616
          %1633 = vst [vmem:[#allocation2 + $0x30] sm:$0xff] %v1617
          %1634 = vst [vmem:[#allocation2 + $0x38] sm:$0xff] %v1618
          %1635 = vst [vmem:[#allocation2 + $0x40] sm:$0xff] %v1619
          %1636 = vst [vmem:[#allocation2 + $0x48] sm:$0xff] %v1620
          %1637 = vst [vmem:[#allocation2 + $0x50] sm:$0xff] %v1621
          %1638 = vst [vmem:[#allocation2 + $0x58] sm:$0xff] %v1622
          %1639 = vst [vmem:[#allocation2 + $0x60] sm:$0xff] %v1623
          %1640 = vst [vmem:[#allocation2 + $0x68] sm:$0xff] %v1624
          %1641 = vst [vmem:[#allocation2 + $0x70] sm:$0xff] %v1625
          %1642 = vst [vmem:[#allocation2 + $0x78] sm:$0xff] %v1626
          %v1643 = vld [vmem:[#allocation6] sm:$0xff]
          %v1644 = vld [vmem:[#allocation6 + $0x8] sm:$0xff]
          %v1645 = vld [vmem:[#allocation6 + $0x10] sm:$0xff]
          %v1646 = vld [vmem:[#allocation6 + $0x18] sm:$0xff]
          %v1647 = vld [vmem:[#allocation6 + $0x20] sm:$0xff]
          %v1648 = vld [vmem:[#allocation6 + $0x28] sm:$0xff]
          %v1649 = vld [vmem:[#allocation6 + $0x30] sm:$0xff]
          %v1650 = vld [vmem:[#allocation6 + $0x38] sm:$0xff]
          %v1651 = vld [vmem:[#allocation6 + $0x40] sm:$0xff]
          %v1652 = vld [vmem:[#allocation6 + $0x48] sm:$0xff]
          %v1653 = vld [vmem:[#allocation6 + $0x50] sm:$0xff]
          %v1654 = vld [vmem:[#allocation6 + $0x58] sm:$0xff]
          %v1655 = vld [vmem:[#allocation6 + $0x60] sm:$0xff]
          %v1656 = vld [vmem:[#allocation6 + $0x68] sm:$0xff]
          %v1657 = vld [vmem:[#allocation6 + $0x70] sm:$0xff]
          %v1658 = vld [vmem:[#allocation6 + $0x78] sm:$0xff]
          %v1659 = vld [vmem:[#allocation6 + $0x80] sm:$0xff]
          %v1660 = vld [vmem:[#allocation6 + $0x88] sm:$0xff]
          %v1661 = vld [vmem:[#allocation6 + $0x90] sm:$0xff]
          %v1662 = vld [vmem:[#allocation6 + $0x98] sm:$0xff]
          %v1663 = vld [vmem:[#allocation6 + $0xa0] sm:$0xff]
          %v1664 = vld [vmem:[#allocation6 + $0xa8] sm:$0xff]
          %v1665 = vld [vmem:[#allocation6 + $0xb0] sm:$0xff]
          %v1666 = vld [vmem:[#allocation6 + $0xb8] sm:$0xff]
          %v1667 = vld [vmem:[#allocation6 + $0xc0] sm:$0xff]
          %v1668 = vld [vmem:[#allocation6 + $0xc8] sm:$0xff]
          %v1669 = vld [vmem:[#allocation6 + $0xd0] sm:$0xff]
          %v1670 = vld [vmem:[#allocation6 + $0xd8] sm:$0xff]
          %v1671 = vld [vmem:[#allocation6 + $0xe0] sm:$0xff]
          %v1672 = vld [vmem:[#allocation6 + $0xe8] sm:$0xff]
          %v1673 = vld [vmem:[#allocation6 + $0xf0] sm:$0xff]
          %v1674 = vld [vmem:[#allocation6 + $0xf8] sm:$0xff]
          %v1675 = vld [vmem:[%s9] sm:$0x3]
          %v1677 = vlaneseq
          %v1678 = vshrl.u32 %v1677, 7
          %v1679 = vsub.s32 0, %v1678
          %v1680 = vrot.slane %v1675, %v1679
          %v1681 = vlaneseq
          %v1682 = vshrl.u32 %v1681, 7
          %v1683 = vsub.s32 1, %v1682
          %v1684 = vrot.slane %v1675, %v1683
          %v1719 = vunpack.c.l.b16 %v1643
          %v1720 = vunpack.c.h.b16 %v1643
          %v1721 = vunpack.c.l.b16 %v1644
          %v1722 = vunpack.c.h.b16 %v1644
          %v1723 = vunpack.c.l.b16 %v1645
          %v1724 = vunpack.c.h.b16 %v1645
          %v1725 = vunpack.c.l.b16 %v1646
          %v1726 = vunpack.c.h.b16 %v1646
          %v1727 = vunpack.c.l.b16 %v1647
          %v1728 = vunpack.c.h.b16 %v1647
          %v1729 = vunpack.c.l.b16 %v1648
          %v1730 = vunpack.c.h.b16 %v1648
          %v1731 = vunpack.c.l.b16 %v1649
          %v1732 = vunpack.c.h.b16 %v1649
          %v1733 = vunpack.c.l.b16 %v1650
          %v1734 = vunpack.c.h.b16 %v1650
          %v1735 = vunpack.c.l.b16 %v1651
          %v1736 = vunpack.c.h.b16 %v1651
          %v1737 = vunpack.c.l.b16 %v1652
          %v1738 = vunpack.c.h.b16 %v1652
          %v1739 = vunpack.c.l.b16 %v1653
          %v1740 = vunpack.c.h.b16 %v1653
          %v1741 = vunpack.c.l.b16 %v1654
          %v1742 = vunpack.c.h.b16 %v1654
          %v1743 = vunpack.c.l.b16 %v1655
          %v1744 = vunpack.c.h.b16 %v1655
          %v1745 = vunpack.c.l.b16 %v1656
          %v1746 = vunpack.c.h.b16 %v1656
          %v1747 = vunpack.c.l.b16 %v1657
          %v1748 = vunpack.c.h.b16 %v1657
          %v1749 = vunpack.c.l.b16 %v1658
          %v1750 = vunpack.c.h.b16 %v1658
          %v1751 = vunpack.c.l.b16 %v1659
          %v1752 = vunpack.c.h.b16 %v1659
          %v1753 = vunpack.c.l.b16 %v1660
          %v1754 = vunpack.c.h.b16 %v1660
          %v1755 = vunpack.c.l.b16 %v1661
          %v1756 = vunpack.c.h.b16 %v1661
          %v1757 = vunpack.c.l.b16 %v1662
          %v1758 = vunpack.c.h.b16 %v1662
          %v1759 = vunpack.c.l.b16 %v1663
          %v1760 = vunpack.c.h.b16 %v1663
          %v1761 = vunpack.c.l.b16 %v1664
          %v1762 = vunpack.c.h.b16 %v1664
          %v1763 = vunpack.c.l.b16 %v1665
          %v1764 = vunpack.c.h.b16 %v1665
          %v1765 = vunpack.c.l.b16 %v1666
          %v1766 = vunpack.c.h.b16 %v1666
          %v1767 = vunpack.c.l.b16 %v1667
          %v1768 = vunpack.c.h.b16 %v1667
          %v1769 = vunpack.c.l.b16 %v1668
          %v1770 = vunpack.c.h.b16 %v1668
          %v1771 = vunpack.c.l.b16 %v1669
          %v1772 = vunpack.c.h.b16 %v1669
          %v1773 = vunpack.c.l.b16 %v1670
          %v1774 = vunpack.c.h.b16 %v1670
          %v1775 = vunpack.c.l.b16 %v1671
          %v1776 = vunpack.c.h.b16 %v1671
          %v1777 = vunpack.c.l.b16 %v1672
          %v1778 = vunpack.c.h.b16 %v1672
          %v1779 = vunpack.c.l.b16 %v1673
          %v1780 = vunpack.c.h.b16 %v1673
          %v1781 = vunpack.c.l.b16 %v1674
          %v1782 = vunpack.c.h.b16 %v1674
          %v1783 = vpack.c.b16 %v1721, %v1719
          %v1784 = vpack.c.b16 %v1722, %v1720
          %v1785 = vpack.c.b16 %v1725, %v1723
          %v1786 = vpack.c.b16 %v1726, %v1724
          %v1787 = vpack.c.b16 %v1729, %v1727
          %v1788 = vpack.c.b16 %v1730, %v1728
          %v1789 = vpack.c.b16 %v1733, %v1731
          %v1790 = vpack.c.b16 %v1734, %v1732
          %v1791 = vpack.c.b16 %v1737, %v1735
          %v1792 = vpack.c.b16 %v1738, %v1736
          %v1793 = vpack.c.b16 %v1741, %v1739
          %v1794 = vpack.c.b16 %v1742, %v1740
          %v1795 = vpack.c.b16 %v1745, %v1743
          %v1796 = vpack.c.b16 %v1746, %v1744
          %v1797 = vpack.c.b16 %v1749, %v1747
          %v1798 = vpack.c.b16 %v1750, %v1748
          %v1799 = vpack.c.b16 %v1753, %v1751
          %v1800 = vpack.c.b16 %v1754, %v1752
          %v1801 = vpack.c.b16 %v1757, %v1755
          %v1802 = vpack.c.b16 %v1758, %v1756
          %v1803 = vpack.c.b16 %v1761, %v1759
          %v1804 = vpack.c.b16 %v1762, %v1760
          %v1805 = vpack.c.b16 %v1765, %v1763
          %v1806 = vpack.c.b16 %v1766, %v1764
          %v1807 = vpack.c.b16 %v1769, %v1767
          %v1808 = vpack.c.b16 %v1770, %v1768
          %v1809 = vpack.c.b16 %v1773, %v1771
          %v1810 = vpack.c.b16 %v1774, %v1772
          %v1811 = vpack.c.b16 %v1777, %v1775
          %v1812 = vpack.c.b16 %v1778, %v1776
          %v1813 = vpack.c.b16 %v1781, %v1779
          %v1814 = vpack.c.b16 %v1782, %v1780
          %1847 = vmatprep.subr.bf16.mxu0 %v1784
          %1848 = vmatpush1.bf16.msra.mxu0 %v1783
          %1849 = vmatprep.subr.bf16.mxu0 %v1786
          %1850 = vmatpush1.bf16.msra.mxu0 %v1785
          %1851 = vmatprep.subr.bf16.mxu0 %v1788
          %1852 = vmatpush1.bf16.msra.mxu0 %v1787
          %1853 = vmatprep.subr.bf16.mxu0 %v1790
          %1854 = vmatpush1.bf16.msra.mxu0 %v1789
          %1855 = vmatprep.subr.bf16.mxu0 %v1792
          %1856 = vmatpush1.bf16.msra.mxu0 %v1791
          %1857 = vmatprep.subr.bf16.mxu0 %v1794
          %1858 = vmatpush1.bf16.msra.mxu0 %v1793
          %1859 = vmatprep.subr.bf16.mxu0 %v1796
          %1860 = vmatpush1.bf16.msra.mxu0 %v1795
          %1861 = vmatprep.subr.bf16.mxu0 %v1798
          %1862 = vmatpush1.bf16.msra.mxu0 %v1797
          %1863 = vmatprep.subr.bf16.mxu0 %v1800
          %1864 = vmatpush1.bf16.msra.mxu0 %v1799
          %1865 = vmatprep.subr.bf16.mxu0 %v1802
          %1866 = vmatpush1.bf16.msra.mxu0 %v1801
          %1867 = vmatprep.subr.bf16.mxu0 %v1804
          %1868 = vmatpush1.bf16.msra.mxu0 %v1803
          %1869 = vmatprep.subr.bf16.mxu0 %v1806
          %1870 = vmatpush1.bf16.msra.mxu0 %v1805
          %1871 = vmatprep.subr.bf16.mxu0 %v1808
          %1872 = vmatpush1.bf16.msra.mxu0 %v1807
          %1873 = vmatprep.subr.bf16.mxu0 %v1810
          %1874 = vmatpush1.bf16.msra.mxu0 %v1809
          %1875 = vmatprep.subr.bf16.mxu0 %v1812
          %1876 = vmatpush1.bf16.msra.mxu0 %v1811
          %1877 = vmatprep.subr.bf16.mxu0 %v1814
          %1878 = vmatpush1.bf16.msra.mxu0 %v1813
          %1879 = vmatprep.mubr.bf16.mxu0 %v1279
          %1880 = vmatmul.mubr.bf16.gmra.mrb[0].mxu0 %v1278
          %v1881 = vpop.f32.mrb[0].mxu0
          %v1882 = vadd.f32 %v1680, %v1881
          %v1883 = vpop.f32.mrb[0].mxu0
          %v1884 = vadd.f32 %v1684, %v1883
          %v1885 = vpop.f32.mrb[0].mxu0
          %v1886 = vadd.f32 %v1680, %v1885
          %v1887 = vpop.f32.mrb[0].mxu0
          %v1888 = vadd.f32 %v1684, %v1887
          %1889 = vmatprep.mubr.bf16.mxu0 %v1281
          %1890 = vmatmul.mubr.bf16.gmra.mrb[0].mxu0 %v1280
          %v1891 = vpop.f32.mrb[0].mxu0
          %v1892 = vadd.f32 %v1680, %v1891
          %v1893 = vpop.f32.mrb[0].mxu0
          %v1894 = vadd.f32 %v1684, %v1893
          %v1895 = vpop.f32.mrb[0].mxu0
          %v1896 = vadd.f32 %v1680, %v1895
          %v1897 = vpop.f32.mrb[0].mxu0
          %v1898 = vadd.f32 %v1684, %v1897
          %1899 = vmatprep.mubr.bf16.mxu0 %v1283
          %1900 = vmatmul.mubr.bf16.gmra.mrb[0].mxu0 %v1282
          %v1901 = vpop.f32.mrb[0].mxu0
          %v1902 = vadd.f32 %v1680, %v1901
          %v1903 = vpop.f32.mrb[0].mxu0
          %v1904 = vadd.f32 %v1684, %v1903
          %v1905 = vpop.f32.mrb[0].mxu0
          %v1906 = vadd.f32 %v1680, %v1905
          %v1907 = vpop.f32.mrb[0].mxu0
          %v1908 = vadd.f32 %v1684, %v1907
          %1909 = vmatprep.mubr.bf16.mxu0 %v1285
          %1910 = vmatmul.mubr.bf16.gmra.mrb[0].mxu0 %v1284
          %v1911 = vpop.f32.mrb[0].mxu0
          %v1912 = vadd.f32 %v1680, %v1911
          %v1913 = vpop.f32.mrb[0].mxu0
          %v1914 = vadd.f32 %v1684, %v1913
          %v1915 = vpop.f32.mrb[0].mxu0
          %v1916 = vadd.f32 %v1680, %v1915
          %v1917 = vpop.f32.mrb[0].mxu0
          %v1918 = vadd.f32 %v1684, %v1917
          %1919 = vmatprep.mubr.bf16.mxu0 %v1287
          %1920 = vmatmul.mubr.bf16.gmra.mrb[0].mxu0 %v1286
          %v1921 = vpop.f32.mrb[0].mxu0
          %v1922 = vadd.f32 %v1680, %v1921
          %v1923 = vpop.f32.mrb[0].mxu0
          %v1924 = vadd.f32 %v1684, %v1923
          %v1925 = vpop.f32.mrb[0].mxu0
          %v1926 = vadd.f32 %v1680, %v1925
          %v1927 = vpop.f32.mrb[0].mxu0
          %v1928 = vadd.f32 %v1684, %v1927
          %1929 = vmatprep.mubr.bf16.mxu0 %v1289
          %1930 = vmatmul.mubr.bf16.gmra.mrb[0].mxu0 %v1288
          %v1931 = vpop.f32.mrb[0].mxu0
          %v1932 = vadd.f32 %v1680, %v1931
          %v1933 = vpop.f32.mrb[0].mxu0
          %v1934 = vadd.f32 %v1684, %v1933
          %v1935 = vpop.f32.mrb[0].mxu0
          %v1936 = vadd.f32 %v1680, %v1935
          %v1937 = vpop.f32.mrb[0].mxu0
          %v1938 = vadd.f32 %v1684, %v1937
          %1939 = vmatprep.mubr.bf16.mxu0 %v1291
          %1940 = vmatmul.mubr.bf16.gmra.mrb[0].mxu0 %v1290
          %v1941 = vpop.f32.mrb[0].mxu0
          %v1942 = vadd.f32 %v1680, %v1941
          %v1943 = vpop.f32.mrb[0].mxu0
          %v1944 = vadd.f32 %v1684, %v1943
          %v1945 = vpop.f32.mrb[0].mxu0
          %v1946 = vadd.f32 %v1680, %v1945
          %v1947 = vpop.f32.mrb[0].mxu0
          %v1948 = vadd.f32 %v1684, %v1947
          %1949 = vmatprep.mubr.bf16.mxu0 %v1293
          %1950 = vmatmul.mubr.bf16.gmra.mrb[0].mxu0 %v1292
          %v1951 = vpop.f32.mrb[0].mxu0
          %v1952 = vadd.f32 %v1680, %v1951
          %v1953 = vpop.f32.mrb[0].mxu0
          %v1954 = vadd.f32 %v1684, %v1953
          %v1955 = vpop.f32.mrb[0].mxu0
          %v1956 = vadd.f32 %v1680, %v1955
          %v1957 = vpop.f32.mrb[0].mxu0
          %v1958 = vadd.f32 %v1684, %v1957
          %1959 = vdwg.mxu0
          %v1960 = vpack.c.bf16 %v1886, %v1882
          %v1961 = vpack.c.bf16 %v1888, %v1884
          %v1962 = vpack.c.bf16 %v1896, %v1892
          %v1963 = vpack.c.bf16 %v1898, %v1894
          %v1964 = vpack.c.bf16 %v1906, %v1902
          %v1965 = vpack.c.bf16 %v1908, %v1904
          %v1966 = vpack.c.bf16 %v1916, %v1912
          %v1967 = vpack.c.bf16 %v1918, %v1914
          %v1968 = vpack.c.bf16 %v1926, %v1922
          %v1969 = vpack.c.bf16 %v1928, %v1924
          %v1970 = vpack.c.bf16 %v1936, %v1932
          %v1971 = vpack.c.bf16 %v1938, %v1934
          %v1972 = vpack.c.bf16 %v1946, %v1942
          %v1973 = vpack.c.bf16 %v1948, %v1944
          %v1974 = vpack.c.bf16 %v1956, %v1952
          %v1975 = vpack.c.bf16 %v1958, %v1954
          %1976 = vst [vmem:[#allocation3] sm:$0xff] %v1960
          %1977 = vst [vmem:[#allocation3 + $0x8] sm:$0xff] %v1961
          %1978 = vst [vmem:[#allocation3 + $0x10] sm:$0xff] %v1962
          %1979 = vst [vmem:[#allocation3 + $0x18] sm:$0xff] %v1963
          %1980 = vst [vmem:[#allocation3 + $0x20] sm:$0xff] %v1964
          %1981 = vst [vmem:[#allocation3 + $0x28] sm:$0xff] %v1965
          %1982 = vst [vmem:[#allocation3 + $0x30] sm:$0xff] %v1966
          %1983 = vst [vmem:[#allocation3 + $0x38] sm:$0xff] %v1967
          %1984 = vst [vmem:[#allocation3 + $0x40] sm:$0xff] %v1968
          %1985 = vst [vmem:[#allocation3 + $0x48] sm:$0xff] %v1969
          %1986 = vst [vmem:[#allocation3 + $0x50] sm:$0xff] %v1970
          %1987 = vst [vmem:[#allocation3 + $0x58] sm:$0xff] %v1971
          %1988 = vst [vmem:[#allocation3 + $0x60] sm:$0xff] %v1972
          %1989 = vst [vmem:[#allocation3 + $0x68] sm:$0xff] %v1973
          %1990 = vst [vmem:[#allocation3 + $0x70] sm:$0xff] %v1974
          %1991 = vst [vmem:[#allocation3 + $0x78] sm:$0xff] %v1975
          %v1992 = vld [vmem:[%s792] sm:$0x1]
          %1993 = vst [vmem:[#allocation5] sm:$0xff] 0.0
          %1994 = vst [vmem:[#allocation5 + $0x8] sm:$0xff] 0.0
          %1995 = vst [vmem:[#allocation5 + $0x10] sm:$0xff] 0.0
          %1996 = vst [vmem:[#allocation5 + $0x18] sm:$0xff] 0.0
          loop: start=0, step=1, limit=2
          $region121: #{resampler_forward.1} parent=119 // loop_pre_header
            _
          $region122: #{resampler_forward.1} parent=119 // loop_header
            %s1998 = sphi 0, %s2002
            %p1999 = scmp.ge.s32.totalorder %s1998, 2
          $region123: #{resampler_forward.1} parent=119 // loop_header_branch
            %2001 = sbr.rel (%p1999) target = $region127
          $region124: #{resampler_forward.1} parent=119 // loop_body
            %s2003 = smul.u32 %s1998, 128
            %s2004 = sshra.s32 %s2003, 7
            %s2005 = sand.u32 %s2003, 127
            %s2006 = smul.addr %s2004, 4
            %s2007 = scalar_lea.vmem %s3, %s2006
            %v2008 = vld [vmem:[%s2007] sm:$0xf]
            %v2009 = vld [vmem:[%s2007 + $0x8] sm:$0xf]
            %s2010 = smul.addr %s2004, 8
            %s2011 = scalar_lea.vmem [#allocation2], %s2010
            %v2012 = vld [vmem:[%s2011] sm:$0xff]
            %v2013 = vld [vmem:[%s2011 + $0x10] sm:$0xff]
            %v2014 = vld [vmem:[%s2011 + $0x20] sm:$0xff]
            %v2015 = vld [vmem:[%s2011 + $0x30] sm:$0xff]
            %v2016 = vld [vmem:[%s2011 + $0x40] sm:$0xff]
            %v2017 = vld [vmem:[%s2011 + $0x50] sm:$0xff]
            %v2018 = vld [vmem:[%s2011 + $0x60] sm:$0xff]
            %v2019 = vld [vmem:[%s2011 + $0x70] sm:$0xff]
            %s2020 = smul.addr %s2004, 8
            %s2021 = scalar_lea.vmem [#allocation3], %s2020
            %v2022 = vld [vmem:[%s2021] sm:$0xff]
            %v2023 = vld [vmem:[%s2021 + $0x10] sm:$0xff]
            %v2024 = vld [vmem:[%s2021 + $0x20] sm:$0xff]
            %v2025 = vld [vmem:[%s2021 + $0x30] sm:$0xff]
            %v2026 = vld [vmem:[%s2021 + $0x40] sm:$0xff]
            %v2027 = vld [vmem:[%s2021 + $0x50] sm:$0xff]
            %v2028 = vld [vmem:[%s2021 + $0x60] sm:$0xff]
            %v2029 = vld [vmem:[%s2021 + $0x70] sm:$0xff]
            %v2031 = vlaneseq
            %v2032 = vshrl.u32 %v2031, 7
            %v2033 = vsub.s32 0, %v2032
            %v2034 = vrot.slane %v1992, %v2033
            %v2038 = vunpack.c.l.b16 %v2008
            %v2039 = vunpack.c.l.b16 %v2009
            %v2040 = vpack.c.b16 %v2039, %v2038
            %2042 = vmatprep.subr.bf16.mxu0 0
            %2043 = vmatpush1.bf16.xpose.msra.mxu0 %v2012
            %2044 = vmatprep.subr.bf16.mxu0 0
            %2045 = vmatpush1.bf16.xpose.msra.mxu0 %v2013
            %2046 = vmatprep.subr.bf16.mxu0 0
            %2047 = vmatpush1.bf16.xpose.msra.mxu0 %v2014
            %2048 = vmatprep.subr.bf16.mxu0 0
            %2049 = vmatpush1.bf16.xpose.msra.mxu0 %v2015
            %2050 = vmatprep.subr.bf16.mxu0 0
            %2051 = vmatpush1.bf16.xpose.msra.mxu0 %v2016
            %2052 = vmatprep.subr.bf16.mxu0 0
            %2053 = vmatpush1.bf16.xpose.msra.mxu0 %v2017
            %2054 = vmatprep.subr.bf16.mxu0 0
            %2055 = vmatpush1.bf16.xpose.msra.mxu0 %v2018
            %2056 = vmatprep.subr.bf16.mxu0 0
            %2057 = vmatpush1.bf16.xpose.msra.mxu0 %v2019
            %2058 = vmatprep.subr.bf16.mxu0 0
            %2059 = vmatpush1.bf16.xpose.msra.mxu0 0
            %2060 = vmatprep.subr.bf16.mxu0 0
            %2061 = vmatpush1.bf16.xpose.msra.mxu0 0
            %2062 = vmatprep.subr.bf16.mxu0 0
            %2063 = vmatpush1.bf16.xpose.msra.mxu0 0
            %2064 = vmatprep.subr.bf16.mxu0 0
            %2065 = vmatpush1.bf16.xpose.msra.mxu0 0
            %2066 = vmatprep.subr.bf16.mxu0 0
            %2067 = vmatpush1.bf16.xpose.msra.mxu0 0
            %2068 = vmatprep.subr.bf16.mxu0 0
            %2069 = vmatpush1.bf16.xpose.msra.mxu0 0
            %2070 = vmatprep.subr.bf16.mxu0 0
            %2071 = vmatpush1.bf16.xpose.msra.mxu0 0
            %2072 = vmatprep.subr.bf16.mxu0 0
            %2073 = vmatpush1.bf16.xpose.msra.mxu0 0
            %2074 = vmatprep.mubr.bf16.mxu0 0
            %2075 = vmatmul.mubr.bf16.gmra.mrb[0].mxu0 %v2040
            %v2076 = vpop.f32.mrb[0].mxu0
            %v2077 = vadd.f32 %v2034, %v2076
            %v2078 = vpop.f32.mrb[0].mxu0
            %v2079 = vpop.f32.mrb[0].mxu0
            %v2080 = vadd.f32 %v2034, %v2079
            %v2081 = vpop.f32.mrb[0].mxu0
            %2082 = vdwg.mxu0
            %2083 = vmax.xlane.f32.xlu0 %v2077
            %v2084 = vpop.xlane.xlu0 %2083
            %2085 = vmax.xlane.f32.xlu0 %v2080
            %v2086 = vpop.xlane.xlu0 %2085
            %v2087 = vsub.f32 %v2077, %v2084
            %v2088 = vsub.f32 %v2080, %v2086
            %v2089 = vmul.f32 %v2087, 1.442695
            %v2090 = vpow.pop %v2089
            %v2091 = vmul.f32 %v2088, 1.442695
            %v2092 = vpow.pop %v2091
            %2093 = vadd.xlane.f32.xlu0 %v2090
            %v2094 = vpop.xlane.xlu0 %2093
            %2095 = vadd.xlane.f32.xlu0 %v2092
            %v2096 = vpop.xlane.xlu0 %2095
            %v2097 = vrcp.pop %v2094
            %v2098 = vrcp.pop %v2096
            %v2099 = vmul.f32 %v2090, %v2097
            %v2100 = vmul.f32 %v2092, %v2098
            %v2101 = vpack.c.bf16 %v2100, %v2099
            %2102 = vmatprep.subr.bf16.mxu0 0
            %2103 = vmatpush1.bf16.msra.mxu0 %v2022
            %2104 = vmatprep.subr.bf16.mxu0 0
            %2105 = vmatpush1.bf16.msra.mxu0 %v2023
            %2106 = vmatprep.subr.bf16.mxu0 0
            %2107 = vmatpush1.bf16.msra.mxu0 %v2024
            %2108 = vmatprep.subr.bf16.mxu0 0
            %2109 = vmatpush1.bf16.msra.mxu0 %v2025
            %2110 = vmatprep.subr.bf16.mxu0 0
            %2111 = vmatpush1.bf16.msra.mxu0 %v2026
            %2112 = vmatprep.subr.bf16.mxu0 0
            %2113 = vmatpush1.bf16.msra.mxu0 %v2027
            %2114 = vmatprep.subr.bf16.mxu0 0
            %2115 = vmatpush1.bf16.msra.mxu0 %v2028
            %2116 = vmatprep.subr.bf16.mxu0 0
            %2117 = vmatpush1.bf16.msra.mxu0 %v2029
            %2118 = vmatprep.subr.bf16.mxu0 0
            %2119 = vmatpush1.bf16.msra.mxu0 0
            %2120 = vmatprep.subr.bf16.mxu0 0
            %2121 = vmatpush1.bf16.msra.mxu0 0
            %2122 = vmatprep.subr.bf16.mxu0 0
            %2123 = vmatpush1.bf16.msra.mxu0 0
            %2124 = vmatprep.subr.bf16.mxu0 0
            %2125 = vmatpush1.bf16.msra.mxu0 0
            %2126 = vmatprep.subr.bf16.mxu0 0
            %2127 = vmatpush1.bf16.msra.mxu0 0
            %2128 = vmatprep.subr.bf16.mxu0 0
            %2129 = vmatpush1.bf16.msra.mxu0 0
            %2130 = vmatprep.subr.bf16.mxu0 0
            %2131 = vmatpush1.bf16.msra.mxu0 0
            %2132 = vmatprep.subr.bf16.mxu0 0
            %2133 = vmatpush1.bf16.msra.mxu0 0
            %2134 = vmatprep.mubr.bf16.mxu0 0
            %2135 = vmatmul.mubr.bf16.gmra.mrb[0].mxu0 %v2101
            %v2136 = vpop.f32.mrb[0].mxu0
            %v2137 = vadd.f32 0.0, %v2136
            %v2138 = vpop.f32.mrb[0].mxu0
            %v2139 = vpop.f32.mrb[0].mxu0
            %v2140 = vadd.f32 0.0, %v2139
            %v2141 = vpop.f32.mrb[0].mxu0
            %2142 = vdwg.mxu0
            %v2143 = vld [vmem:[#allocation5] sm:$0xff]
            %v2144 = vld [vmem:[#allocation5 + $0x8] sm:$0xff]
            %v2145 = vld [vmem:[#allocation5 + $0x10] sm:$0xff]
            %v2146 = vld [vmem:[#allocation5 + $0x18] sm:$0xff]
            %v2147 = vpack.c.bf16 %v2140, %v2137
            %s2148 = sshra.s32 %s2003, 3
            %s2149 = sand.u32 %s2003, 7
            %s2150 = smul.u32 %s2148, 2
            %s2151 = smul.addr %s2150, 4
            %s2152 = scalar_lea.vmem [#allocation9], %s2151
            %v2153 = vld [vmem:[%s2152] sm:$0xff]
            %v2154 = vld [vmem:[%s2152 + $0x8] sm:$0xff]
            %v2155 = vld [vmem:[%s2152 + $0x10] sm:$0xff]
            %v2156 = vld [vmem:[%s2152 + $0x18] sm:$0xff]
            %v2157 = vld [vmem:[%s2152 + $0x20] sm:$0xff]
            %v2158 = vld [vmem:[%s2152 + $0x28] sm:$0xff]
            %v2159 = vld [vmem:[%s2152 + $0x30] sm:$0xff]
            %v2160 = vld [vmem:[%s2152 + $0x38] sm:$0xff]
            %v2161 = vld [vmem:[%s2152 + $0x40] sm:$0xff]
            %v2162 = vld [vmem:[%s2152 + $0x48] sm:$0xff]
            %v2163 = vld [vmem:[%s2152 + $0x50] sm:$0xff]
            %v2164 = vld [vmem:[%s2152 + $0x58] sm:$0xff]
            %v2165 = vld [vmem:[%s2152 + $0x60] sm:$0xff]
            %v2166 = vld [vmem:[%s2152 + $0x68] sm:$0xff]
            %v2167 = vld [vmem:[%s2152 + $0x70] sm:$0xff]
            %v2168 = vld [vmem:[%s2152 + $0x78] sm:$0xff]
            %v2185 = vunpack.c.l.b16 %v2153
            %v2186 = vunpack.c.h.b16 %v2153
            %v2187 = vunpack.c.l.b16 %v2154
            %v2188 = vunpack.c.h.b16 %v2154
            %v2189 = vunpack.c.l.b16 %v2155
            %v2190 = vunpack.c.h.b16 %v2155
            %v2191 = vunpack.c.l.b16 %v2156
            %v2192 = vunpack.c.h.b16 %v2156
            %v2193 = vunpack.c.l.b16 %v2157
            %v2194 = vunpack.c.h.b16 %v2157
            %v2195 = vunpack.c.l.b16 %v2158
            %v2196 = vunpack.c.h.b16 %v2158
            %v2197 = vunpack.c.l.b16 %v2159
            %v2198 = vunpack.c.h.b16 %v2159
            %v2199 = vunpack.c.l.b16 %v2160
            %v2200 = vunpack.c.h.b16 %v2160
            %v2201 = vunpack.c.l.b16 %v2161
            %v2202 = vunpack.c.h.b16 %v2161
            %v2203 = vunpack.c.l.b16 %v2162
            %v2204 = vunpack.c.h.b16 %v2162
            %v2205 = vunpack.c.l.b16 %v2163
            %v2206 = vunpack.c.h.b16 %v2163
            %v2207 = vunpack.c.l.b16 %v2164
            %v2208 = vunpack.c.h.b16 %v2164
            %v2209 = vunpack.c.l.b16 %v2165
            %v2210 = vunpack.c.h.b16 %v2165
            %v2211 = vunpack.c.l.b16 %v2166
            %v2212 = vunpack.c.h.b16 %v2166
            %v2213 = vunpack.c.l.b16 %v2167
            %v2214 = vunpack.c.h.b16 %v2167
            %v2215 = vunpack.c.l.b16 %v2168
            %v2216 = vunpack.c.h.b16 %v2168
            %v2217 = vpack.c.b16 %v2187, %v2185
            %v2218 = vpack.c.b16 %v2188, %v2186
            %v2219 = vpack.c.b16 %v2191, %v2189
            %v2220 = vpack.c.b16 %v2192, %v2190
            %v2221 = vpack.c.b16 %v2195, %v2193
            %v2222 = vpack.c.b16 %v2196, %v2194
            %v2223 = vpack.c.b16 %v2199, %v2197
            %v2224 = vpack.c.b16 %v2200, %v2198
            %v2225 = vpack.c.b16 %v2203, %v2201
            %v2226 = vpack.c.b16 %v2204, %v2202
            %v2227 = vpack.c.b16 %v2207, %v2205
            %v2228 = vpack.c.b16 %v2208, %v2206
            %v2229 = vpack.c.b16 %v2211, %v2209
            %v2230 = vpack.c.b16 %v2212, %v2210
            %v2231 = vpack.c.b16 %v2215, %v2213
            %v2232 = vpack.c.b16 %v2216, %v2214
            %2249 = vmatprep.subr.bf16.mxu0 %v2218
            %2250 = vmatpush1.bf16.msra.mxu0 %v2217
            %2251 = vmatprep.subr.bf16.mxu0 %v2220
            %2252 = vmatpush1.bf16.msra.mxu0 %v2219
            %2253 = vmatprep.subr.bf16.mxu0 %v2222
            %2254 = vmatpush1.bf16.msra.mxu0 %v2221
            %2255 = vmatprep.subr.bf16.mxu0 %v2224
            %2256 = vmatpush1.bf16.msra.mxu0 %v2223
            %2257 = vmatprep.subr.bf16.mxu0 %v2226
            %2258 = vmatpush1.bf16.msra.mxu0 %v2225
            %2259 = vmatprep.subr.bf16.mxu0 %v2228
            %2260 = vmatpush1.bf16.msra.mxu0 %v2227
            %2261 = vmatprep.subr.bf16.mxu0 %v2230
            %2262 = vmatpush1.bf16.msra.mxu0 %v2229
            %2263 = vmatprep.subr.bf16.mxu0 %v2232
            %2264 = vmatpush1.bf16.msra.mxu0 %v2231
            %2265 = vmatprep.subr.bf16.mxu0 0
            %2266 = vmatpush1.bf16.msra.mxu0 0
            %2267 = vmatprep.subr.bf16.mxu0 0
            %2268 = vmatpush1.bf16.msra.mxu0 0
            %2269 = vmatprep.subr.bf16.mxu0 0
            %2270 = vmatpush1.bf16.msra.mxu0 0
            %2271 = vmatprep.subr.bf16.mxu0 0
            %2272 = vmatpush1.bf16.msra.mxu0 0
            %2273 = vmatprep.subr.bf16.mxu0 0
            %2274 = vmatpush1.bf16.msra.mxu0 0
            %2275 = vmatprep.subr.bf16.mxu0 0
            %2276 = vmatpush1.bf16.msra.mxu0 0
            %2277 = vmatprep.subr.bf16.mxu0 0
            %2278 = vmatpush1.bf16.msra.mxu0 0
            %2279 = vmatprep.subr.bf16.mxu0 0
            %2280 = vmatpush1.bf16.msra.mxu0 0
            %2281 = vmatprep.mubr.bf16.mxu0 0
            %2282 = vmatmul.mubr.bf16.gmra.mrb[0].mxu0 %v2147
            %v2283 = vpop.f32.mrb[0].mxu0
            %v2284 = vadd.f32 0.0, %v2283
            %v2285 = vpop.f32.mrb[0].mxu0
            %v2286 = vadd.f32 0.0, %v2285
            %v2287 = vpop.f32.mrb[0].mxu0
            %v2288 = vadd.f32 0.0, %v2287
            %v2289 = vpop.f32.mrb[0].mxu0
            %v2290 = vadd.f32 0.0, %v2289
            %2291 = vdwg.mxu0
            %v2292 = vadd.f32 %v2143, %v2284
            %v2293 = vadd.f32 %v2144, %v2286
            %v2294 = vadd.f32 %v2145, %v2288
            %v2295 = vadd.f32 %v2146, %v2290
            %2296 = vst [vmem:[#allocation5] sm:$0xff] %v2292
            %2297 = vst [vmem:[#allocation5 + $0x8] sm:$0xff] %v2293
            %2298 = vst [vmem:[#allocation5 + $0x10] sm:$0xff] %v2294
            %2299 = vst [vmem:[#allocation5 + $0x18] sm:$0xff] %v2295
          $region125: #{resampler_forward.1} parent=119 // loop_footer
            %s2002 = sadd.s32 1, %s1998
          $region126: #{resampler_forward.1} parent=119 // loop_footer_branch
            %1997 = sbr.rel target = $region122
          $region127: #{resampler_forward.1} parent=119 // loop_exit
            _
          %v2300 = vld [vmem:[#allocation5] sm:$0xff]
          %v2301 = vld [vmem:[#allocation5 + $0x8] sm:$0xff]
          %v2302 = vld [vmem:[#allocation5 + $0x10] sm:$0xff]
          %v2303 = vld [vmem:[#allocation5 + $0x18] sm:$0xff]
          %v2304 = vld [vmem:[%s11] sm:$0x3]
          %v2306 = vlaneseq
          %v2307 = vshrl.u32 %v2306, 7
          %v2308 = vsub.s32 0, %v2307
          %v2309 = vrot.slane %v2304, %v2308
          %v2310 = vlaneseq
          %v2311 = vshrl.u32 %v2310, 7
          %v2312 = vsub.s32 1, %v2311
          %v2313 = vrot.slane %v2304, %v2312
          %v2316 = vadd.f32 %v2300, %v2309
          %v2317 = vadd.f32 %v2301, %v2313
          %v2318 = vadd.f32 %v2302, %v2309
          %v2319 = vadd.f32 %v2303, %v2313
          %v2320 = vld [vmem:[%s12] sm:$0x3]
          %v2321 = vld [vmem:[%s13] sm:$0x3]
          %v2322 = vadd.f32 %v2316, %v2317
          %2323 = vadd.xlane.f32.xlu0 %v2322
          %v2324 = vpop.xlane.xlu0 %2323
          %v2325 = vadd.f32 %v2318, %v2319
          %2326 = vadd.xlane.f32.xlu0 %v2325
          %v2327 = vpop.xlane.xlu0 %2326
          %v2328 = vmul.f32 %v2324, %v935
          %v2329 = vmul.f32 %v2327, %v935
          %v2330 = vsub.f32 %v2316, %v2328
          %v2331 = vsub.f32 %v2317, %v2328
          %v2332 = vsub.f32 %v2318, %v2329
          %v2333 = vsub.f32 %v2319, %v2329
          %v2334 = vmul.f32 %v2330, %v2330
          %v2335 = vmul.f32 %v2331, %v2331
          %v2336 = vmul.f32 %v2332, %v2332
          %v2337 = vmul.f32 %v2333, %v2333
          %v2338 = vadd.f32 %v2334, %v2335
          %2339 = vadd.xlane.f32.xlu0 %v2338
          %v2340 = vpop.xlane.xlu0 %2339
          %v2341 = vadd.f32 %v2336, %v2337
          %2342 = vadd.xlane.f32.xlu0 %v2341
          %v2343 = vpop.xlane.xlu0 %2342
          %v2344 = vmul.f32 %v2340, %v935
          %v2345 = vmul.f32 %v2343, %v935
          %v2346 = vadd.f32 %v2344, 1e-06
          %v2347 = vadd.f32 %v2345, 1e-06
          %v2348 = vrsqrt.pop %v2346
          %v2349 = vrsqrt.pop %v2347
          %v2350 = vmul.f32 %v2330, %v2348
          %v2351 = vmul.f32 %v2331, %v2348
          %v2352 = vmul.f32 %v2332, %v2349
          %v2353 = vmul.f32 %v2333, %v2349
          %v2355 = vlaneseq
          %v2356 = vshrl.u32 %v2355, 7
          %v2357 = vsub.s32 0, %v2356
          %v2358 = vrot.slane %v2320, %v2357
          %v2359 = vlaneseq
          %v2360 = vshrl.u32 %v2359, 7
          %v2361 = vsub.s32 1, %v2360
          %v2362 = vrot.slane %v2320, %v2361
          %v2365 = vmul.f32 %v2350, %v2358
          %v2366 = vmul.f32 %v2351, %v2362
          %v2367 = vmul.f32 %v2352, %v2358
          %v2368 = vmul.f32 %v2353, %v2362
          %v2370 = vlaneseq
          %v2371 = vshrl.u32 %v2370, 7
          %v2372 = vsub.s32 0, %v2371
          %v2373 = vrot.slane %v2321, %v2372
          %v2374 = vlaneseq
          %v2375 = vshrl.u32 %v2374, 7
          %v2376 = vsub.s32 1, %v2375
          %v2377 = vrot.slane %v2321, %v2376
          %v2380 = vadd.f32 %v2365, %v2373
          %v2381 = vadd.f32 %v2366, %v2377
          %v2382 = vadd.f32 %v2367, %v2373
          %v2383 = vadd.f32 %v2368, %v2377
          %2384 = vst [vmem:[#allocation4] sm:$0xff] %v2380
          %2385 = vst [vmem:[#allocation4 + $0x8] sm:$0xff] %v2381
          %2386 = vst [vmem:[#allocation4 + $0x10] sm:$0xff] %v2382
          %2387 = vst [vmem:[#allocation4 + $0x18] sm:$0xff] %v2383
          %2388 = vst [vmem:[#allocation5] sm:$0xff] %v2380
          %2389 = vst [vmem:[#allocation5 + $0x8] sm:$0xff] %v2381
          %2390 = vst [vmem:[#allocation5 + $0x10] sm:$0xff] %v2382
          %2391 = vst [vmem:[#allocation5 + $0x18] sm:$0xff] %v2383
        $region120: #{resampler_forward.1} parent=99 // pred_fallthru
          _
        %v2392 = vld [vmem:[#allocation4] sm:$0xff]
        %v2393 = vld [vmem:[#allocation4 + $0x8] sm:$0xff]
        %v2394 = vld [vmem:[#allocation4 + $0x10] sm:$0xff]
        %v2395 = vld [vmem:[#allocation4 + $0x18] sm:$0xff]
        %v2396 = vpack.c.bf16 %v2394, %v2392
        %v2397 = vpack.c.bf16 %v2395, %v2393
        %v2398 = vld [vmem:[%s692] sm:$0xff]
        %v2399 = vld [vmem:[%s692 + $0x8] sm:$0xff]
        %v2400 = vld [vmem:[%s692 + $0x10] sm:$0xff]
        %v2401 = vld [vmem:[%s692 + $0x18] sm:$0xff]
        %v2402 = vld [vmem:[%s692 + $0x20] sm:$0xff]
        %v2403 = vld [vmem:[%s692 + $0x28] sm:$0xff]
        %v2404 = vld [vmem:[%s692 + $0x30] sm:$0xff]
        %v2405 = vld [vmem:[%s692 + $0x38] sm:$0xff]
        %v2406 = vld [vmem:[%s692 + $0x40] sm:$0xff]
        %v2407 = vld [vmem:[%s692 + $0x48] sm:$0xff]
        %v2408 = vld [vmem:[%s692 + $0x50] sm:$0xff]
        %v2409 = vld [vmem:[%s692 + $0x58] sm:$0xff]
        %v2410 = vld [vmem:[%s692 + $0x60] sm:$0xff]
        %v2411 = vld [vmem:[%s692 + $0x68] sm:$0xff]
        %v2412 = vld [vmem:[%s692 + $0x70] sm:$0xff]
        %v2413 = vld [vmem:[%s692 + $0x78] sm:$0xff]
        %v2414 = vld [vmem:[%s692 + $0x80] sm:$0xff]
        %v2415 = vld [vmem:[%s692 + $0x88] sm:$0xff]
        %v2416 = vld [vmem:[%s692 + $0x90] sm:$0xff]
        %v2417 = vld [vmem:[%s692 + $0x98] sm:$0xff]
        %v2418 = vld [vmem:[%s692 + $0xa0] sm:$0xff]
        %v2419 = vld [vmem:[%s692 + $0xa8] sm:$0xff]
        %v2420 = vld [vmem:[%s692 + $0xb0] sm:$0xff]
        %v2421 = vld [vmem:[%s692 + $0xb8] sm:$0xff]
        %v2422 = vld [vmem:[%s692 + $0xc0] sm:$0xff]
        %v2423 = vld [vmem:[%s692 + $0xc8] sm:$0xff]
        %v2424 = vld [vmem:[%s692 + $0xd0] sm:$0xff]
        %v2425 = vld [vmem:[%s692 + $0xd8] sm:$0xff]
        %v2426 = vld [vmem:[%s692 + $0xe0] sm:$0xff]
        %v2427 = vld [vmem:[%s692 + $0xe8] sm:$0xff]
        %v2428 = vld [vmem:[%s692 + $0xf0] sm:$0xff]
        %v2429 = vld [vmem:[%s692 + $0xf8] sm:$0xff]
        %v2430 = vld [vmem:[%s797] sm:$0x3]
        %v2432 = vlaneseq
        %v2433 = vshrl.u32 %v2432, 7
        %v2434 = vsub.s32 0, %v2433
        %v2435 = vrot.slane %v2430, %v2434
        %v2436 = vlaneseq
        %v2437 = vshrl.u32 %v2436, 7
        %v2438 = vsub.s32 1, %v2437
        %v2439 = vrot.slane %v2430, %v2438
        %v2474 = vunpack.c.l.b16 %v2398
        %v2475 = vunpack.c.h.b16 %v2398
        %v2476 = vunpack.c.l.b16 %v2399
        %v2477 = vunpack.c.h.b16 %v2399
        %v2478 = vunpack.c.l.b16 %v2400
        %v2479 = vunpack.c.h.b16 %v2400
        %v2480 = vunpack.c.l.b16 %v2401
        %v2481 = vunpack.c.h.b16 %v2401
        %v2482 = vunpack.c.l.b16 %v2402
        %v2483 = vunpack.c.h.b16 %v2402
        %v2484 = vunpack.c.l.b16 %v2403
        %v2485 = vunpack.c.h.b16 %v2403
        %v2486 = vunpack.c.l.b16 %v2404
        %v2487 = vunpack.c.h.b16 %v2404
        %v2488 = vunpack.c.l.b16 %v2405
        %v2489 = vunpack.c.h.b16 %v2405
        %v2490 = vunpack.c.l.b16 %v2406
        %v2491 = vunpack.c.h.b16 %v2406
        %v2492 = vunpack.c.l.b16 %v2407
        %v2493 = vunpack.c.h.b16 %v2407
        %v2494 = vunpack.c.l.b16 %v2408
        %v2495 = vunpack.c.h.b16 %v2408
        %v2496 = vunpack.c.l.b16 %v2409
        %v2497 = vunpack.c.h.b16 %v2409
        %v2498 = vunpack.c.l.b16 %v2410
        %v2499 = vunpack.c.h.b16 %v2410
        %v2500 = vunpack.c.l.b16 %v2411
        %v2501 = vunpack.c.h.b16 %v2411
        %v2502 = vunpack.c.l.b16 %v2412
        %v2503 = vunpack.c.h.b16 %v2412
        %v2504 = vunpack.c.l.b16 %v2413
        %v2505 = vunpack.c.h.b16 %v2413
        %v2506 = vunpack.c.l.b16 %v2414
        %v2507 = vunpack.c.h.b16 %v2414
        %v2508 = vunpack.c.l.b16 %v2415
        %v2509 = vunpack.c.h.b16 %v2415
        %v2510 = vunpack.c.l.b16 %v2416
        %v2511 = vunpack.c.h.b16 %v2416
        %v2512 = vunpack.c.l.b16 %v2417
        %v2513 = vunpack.c.h.b16 %v2417
        %v2514 = vunpack.c.l.b16 %v2418
        %v2515 = vunpack.c.h.b16 %v2418
        %v2516 = vunpack.c.l.b16 %v2419
        %v2517 = vunpack.c.h.b16 %v2419
        %v2518 = vunpack.c.l.b16 %v2420
        %v2519 = vunpack.c.h.b16 %v2420
        %v2520 = vunpack.c.l.b16 %v2421
        %v2521 = vunpack.c.h.b16 %v2421
        %v2522 = vunpack.c.l.b16 %v2422
        %v2523 = vunpack.c.h.b16 %v2422
        %v2524 = vunpack.c.l.b16 %v2423
        %v2525 = vunpack.c.h.b16 %v2423
        %v2526 = vunpack.c.l.b16 %v2424
        %v2527 = vunpack.c.h.b16 %v2424
        %v2528 = vunpack.c.l.b16 %v2425
        %v2529 = vunpack.c.h.b16 %v2425
        %v2530 = vunpack.c.l.b16 %v2426
        %v2531 = vunpack.c.h.b16 %v2426
        %v2532 = vunpack.c.l.b16 %v2427
        %v2533 = vunpack.c.h.b16 %v2427
        %v2534 = vunpack.c.l.b16 %v2428
        %v2535 = vunpack.c.h.b16 %v2428
        %v2536 = vunpack.c.l.b16 %v2429
        %v2537 = vunpack.c.h.b16 %v2429
        %v2538 = vpack.c.b16 %v2476, %v2474
        %v2539 = vpack.c.b16 %v2477, %v2475
        %v2540 = vpack.c.b16 %v2480, %v2478
        %v2541 = vpack.c.b16 %v2481, %v2479
        %v2542 = vpack.c.b16 %v2484, %v2482
        %v2543 = vpack.c.b16 %v2485, %v2483
        %v2544 = vpack.c.b16 %v2488, %v2486
        %v2545 = vpack.c.b16 %v2489, %v2487
        %v2546 = vpack.c.b16 %v2492, %v2490
        %v2547 = vpack.c.b16 %v2493, %v2491
        %v2548 = vpack.c.b16 %v2496, %v2494
        %v2549 = vpack.c.b16 %v2497, %v2495
        %v2550 = vpack.c.b16 %v2500, %v2498
        %v2551 = vpack.c.b16 %v2501, %v2499
        %v2552 = vpack.c.b16 %v2504, %v2502
        %v2553 = vpack.c.b16 %v2505, %v2503
        %v2554 = vpack.c.b16 %v2508, %v2506
        %v2555 = vpack.c.b16 %v2509, %v2507
        %v2556 = vpack.c.b16 %v2512, %v2510
        %v2557 = vpack.c.b16 %v2513, %v2511
        %v2558 = vpack.c.b16 %v2516, %v2514
        %v2559 = vpack.c.b16 %v2517, %v2515
        %v2560 = vpack.c.b16 %v2520, %v2518
        %v2561 = vpack.c.b16 %v2521, %v2519
        %v2562 = vpack.c.b16 %v2524, %v2522
        %v2563 = vpack.c.b16 %v2525, %v2523
        %v2564 = vpack.c.b16 %v2528, %v2526
        %v2565 = vpack.c.b16 %v2529, %v2527
        %v2566 = vpack.c.b16 %v2532, %v2530
        %v2567 = vpack.c.b16 %v2533, %v2531
        %v2568 = vpack.c.b16 %v2536, %v2534
        %v2569 = vpack.c.b16 %v2537, %v2535
        %2602 = vmatprep.subr.bf16.mxu0 %v2539
        %2603 = vmatpush1.bf16.msra.mxu0 %v2538
        %2604 = vmatprep.subr.bf16.mxu0 %v2541
        %2605 = vmatpush1.bf16.msra.mxu0 %v2540
        %2606 = vmatprep.subr.bf16.mxu0 %v2543
        %2607 = vmatpush1.bf16.msra.mxu0 %v2542
        %2608 = vmatprep.subr.bf16.mxu0 %v2545
        %2609 = vmatpush1.bf16.msra.mxu0 %v2544
        %2610 = vmatprep.subr.bf16.mxu0 %v2547
        %2611 = vmatpush1.bf16.msra.mxu0 %v2546
        %2612 = vmatprep.subr.bf16.mxu0 %v2549
        %2613 = vmatpush1.bf16.msra.mxu0 %v2548
        %2614 = vmatprep.subr.bf16.mxu0 %v2551
        %2615 = vmatpush1.bf16.msra.mxu0 %v2550
        %2616 = vmatprep.subr.bf16.mxu0 %v2553
        %2617 = vmatpush1.bf16.msra.mxu0 %v2552
        %2618 = vmatprep.subr.bf16.mxu0 %v2555
        %2619 = vmatpush1.bf16.msra.mxu0 %v2554
        %2620 = vmatprep.subr.bf16.mxu0 %v2557
        %2621 = vmatpush1.bf16.msra.mxu0 %v2556
        %2622 = vmatprep.subr.bf16.mxu0 %v2559
        %2623 = vmatpush1.bf16.msra.mxu0 %v2558
        %2624 = vmatprep.subr.bf16.mxu0 %v2561
        %2625 = vmatpush1.bf16.msra.mxu0 %v2560
        %2626 = vmatprep.subr.bf16.mxu0 %v2563
        %2627 = vmatpush1.bf16.msra.mxu0 %v2562
        %2628 = vmatprep.subr.bf16.mxu0 %v2565
        %2629 = vmatpush1.bf16.msra.mxu0 %v2564
        %2630 = vmatprep.subr.bf16.mxu0 %v2567
        %2631 = vmatpush1.bf16.msra.mxu0 %v2566
        %2632 = vmatprep.subr.bf16.mxu0 %v2569
        %2633 = vmatpush1.bf16.msra.mxu0 %v2568
        %2634 = vmatprep.mubr.bf16.mxu0 %v2397
        %2635 = vmatmul.mubr.bf16.gmra.mrb[0].mxu0 %v2396
        %v2636 = vpop.f32.mrb[0].mxu0
        %v2637 = vadd.f32 %v2435, %v2636
        %v2638 = vpop.f32.mrb[0].mxu0
        %v2639 = vadd.f32 %v2439, %v2638
        %v2640 = vpop.f32.mrb[0].mxu0
        %v2641 = vadd.f32 %v2435, %v2640
        %v2642 = vpop.f32.mrb[0].mxu0
        %v2643 = vadd.f32 %v2439, %v2642
        %2644 = vdwg.mxu0
        %v2645 = vmul.f32 %v2637, 0.5
        %v2646 = vmul.f32 %v2639, 0.5
        %v2647 = vmul.f32 %v2641, 0.5
        %v2648 = vmul.f32 %v2643, 0.5
        %v2649 = vmul.f32 %v2637, 0.70710677
        %v2650 = vmul.f32 %v2639, 0.70710677
        %v2651 = vmul.f32 %v2641, 0.70710677
        %v2652 = vmul.f32 %v2643, 0.70710677
        %vm2653 = vcmp.ge.f32.partialorder %v2649, 0.0
        %vm2654 = vcmp.ge.f32.partialorder %v2650, 0.0
        %vm2655 = vcmp.ge.f32.partialorder %v2651, 0.0
        %vm2656 = vcmp.ge.f32.partialorder %v2652, 0.0
        %v2657 = vsel %vm2653, 1.0, -1.0
        %v2658 = vsel %vm2654, 1.0, -1.0
        %v2659 = vsel %vm2655, 1.0, -1.0
        %v2660 = vsel %vm2656, 1.0, -1.0
        %v2661 = vand.u32 2147483647, %v2649
        %v2662 = vand.u32 2147483647, %v2650
        %v2663 = vand.u32 2147483647, %v2651
        %v2664 = vand.u32 2147483647, %v2652
        %v2665 = vmul.f32 %v2661, 0.3275911
        %v2666 = vmul.f32 %v2662, 0.3275911
        %v2667 = vmul.f32 %v2663, 0.3275911
        %v2668 = vmul.f32 %v2664, 0.3275911
        %v2669 = vadd.f32 %v2665, 1.0
        %v2670 = vadd.f32 %v2666, 1.0
        %v2671 = vadd.f32 %v2667, 1.0
        %v2672 = vadd.f32 %v2668, 1.0
        %v2673 = vrcp.pop %v2669
        %v2674 = vrcp.pop %v2670
        %v2675 = vrcp.pop %v2671
        %v2676 = vrcp.pop %v2672
        %v2677 = vmul.f32 %v2669, %v2673
        %v2678 = vmul.f32 %v2670, %v2674
        %v2679 = vmul.f32 %v2671, %v2675
        %v2680 = vmul.f32 %v2672, %v2676
        %v2681 = vsub.f32 2.0, %v2677
        %v2682 = vsub.f32 2.0, %v2678
        %v2683 = vsub.f32 2.0, %v2679
        %v2684 = vsub.f32 2.0, %v2680
        %v2685 = vmul.f32 %v2673, %v2681
        %v2686 = vmul.f32 %v2674, %v2682
        %v2687 = vmul.f32 %v2675, %v2683
        %v2688 = vmul.f32 %v2676, %v2684
        %v2689 = vmul.f32 %v2685, 1.0614054
        %v2690 = vmul.f32 %v2686, 1.0614054
        %v2691 = vmul.f32 %v2687, 1.0614054
        %v2692 = vmul.f32 %v2688, 1.0614054
        %v2693 = vadd.f32 %v2689, -1.4531521
        %v2694 = vadd.f32 %v2690, -1.4531521
        %v2695 = vadd.f32 %v2691, -1.4531521
        %v2696 = vadd.f32 %v2692, -1.4531521
        %v2697 = vmul.f32 %v2693, %v2685
        %v2698 = vmul.f32 %v2694, %v2686
        %v2699 = vmul.f32 %v2695, %v2687
        %v2700 = vmul.f32 %v2696, %v2688
        %v2701 = vadd.f32 %v2697, 1.4214138
        %v2702 = vadd.f32 %v2698, 1.4214138
        %v2703 = vadd.f32 %v2699, 1.4214138
        %v2704 = vadd.f32 %v2700, 1.4214138
        %v2705 = vmul.f32 %v2701, %v2685
        %v2706 = vmul.f32 %v2702, %v2686
        %v2707 = vmul.f32 %v2703, %v2687
        %v2708 = vmul.f32 %v2704, %v2688
        %v2709 = vadd.f32 %v2705, -0.28449672
        %v2710 = vadd.f32 %v2706, -0.28449672
        %v2711 = vadd.f32 %v2707, -0.28449672
        %v2712 = vadd.f32 %v2708, -0.28449672
        %v2713 = vmul.f32 %v2709, %v2685
        %v2714 = vmul.f32 %v2710, %v2686
        %v2715 = vmul.f32 %v2711, %v2687
        %v2716 = vmul.f32 %v2712, %v2688
        %v2717 = vadd.f32 %v2713, 0.2548296
        %v2718 = vadd.f32 %v2714, 0.2548296
        %v2719 = vadd.f32 %v2715, 0.2548296
        %v2720 = vadd.f32 %v2716, 0.2548296
        %v2721 = vmul.f32 %v2717, %v2685
        %v2722 = vmul.f32 %v2718, %v2686
        %v2723 = vmul.f32 %v2719, %v2687
        %v2724 = vmul.f32 %v2720, %v2688
        %v2725 = vsub.f32 0.0, %v2661
        %v2726 = vsub.f32 0.0, %v2662
        %v2727 = vsub.f32 0.0, %v2663
        %v2728 = vsub.f32 0.0, %v2664
        %v2729 = vmul.f32 %v2725, %v2661
        %v2730 = vmul.f32 %v2726, %v2662
        %v2731 = vmul.f32 %v2727, %v2663
        %v2732 = vmul.f32 %v2728, %v2664
        %v2733 = vmul.f32 %v2729, 1.442695
        %v2734 = vpow.pop %v2733
        %v2735 = vmul.f32 %v2730, 1.442695
        %v2736 = vpow.pop %v2735
        %v2737 = vmul.f32 %v2731, 1.442695
        %v2738 = vpow.pop %v2737
        %v2739 = vmul.f32 %v2732, 1.442695
        %v2740 = vpow.pop %v2739
        %v2741 = vmul.f32 %v2721, %v2734
        %v2742 = vmul.f32 %v2722, %v2736
        %v2743 = vmul.f32 %v2723, %v2738
        %v2744 = vmul.f32 %v2724, %v2740
        %v2745 = vsub.f32 1.0, %v2741
        %v2746 = vsub.f32 1.0, %v2742
        %v2747 = vsub.f32 1.0, %v2743
        %v2748 = vsub.f32 1.0, %v2744
        %v2749 = vmul.f32 %v2657, %v2745
        %v2750 = vmul.f32 %v2658, %v2746
        %v2751 = vmul.f32 %v2659, %v2747
        %v2752 = vmul.f32 %v2660, %v2748
        %v2753 = vadd.f32 %v2749, 1.0
        %v2754 = vadd.f32 %v2750, 1.0
        %v2755 = vadd.f32 %v2751, 1.0
        %v2756 = vadd.f32 %v2752, 1.0
        %v2757 = vmul.f32 %v2645, %v2753
        %v2758 = vmul.f32 %v2646, %v2754
        %v2759 = vmul.f32 %v2647, %v2755
        %v2760 = vmul.f32 %v2648, %v2756
        %v2761 = vld [vmem:[#allocation5] sm:$0xff]
        %v2762 = vld [vmem:[#allocation5 + $0x8] sm:$0xff]
        %v2763 = vld [vmem:[#allocation5 + $0x10] sm:$0xff]
        %v2764 = vld [vmem:[#allocation5 + $0x18] sm:$0xff]
        %v2765 = vpack.c.bf16 %v2759, %v2757
        %v2766 = vpack.c.bf16 %v2760, %v2758
        %v2767 = vld [vmem:[%s701] sm:$0xff]
        %v2768 = vld [vmem:[%s701 + $0x8] sm:$0xff]
        %v2769 = vld [vmem:[%s701 + $0x10] sm:$0xff]
        %v2770 = vld [vmem:[%s701 + $0x18] sm:$0xff]
        %v2771 = vld [vmem:[%s701 + $0x20] sm:$0xff]
        %v2772 = vld [vmem:[%s701 + $0x28] sm:$0xff]
        %v2773 = vld [vmem:[%s701 + $0x30] sm:$0xff]
        %v2774 = vld [vmem:[%s701 + $0x38] sm:$0xff]
        %v2775 = vld [vmem:[%s701 + $0x40] sm:$0xff]
        %v2776 = vld [vmem:[%s701 + $0x48] sm:$0xff]
        %v2777 = vld [vmem:[%s701 + $0x50] sm:$0xff]
        %v2778 = vld [vmem:[%s701 + $0x58] sm:$0xff]
        %v2779 = vld [vmem:[%s701 + $0x60] sm:$0xff]
        %v2780 = vld [vmem:[%s701 + $0x68] sm:$0xff]
        %v2781 = vld [vmem:[%s701 + $0x70] sm:$0xff]
        %v2782 = vld [vmem:[%s701 + $0x78] sm:$0xff]
        %v2783 = vld [vmem:[%s701 + $0x80] sm:$0xff]
        %v2784 = vld [vmem:[%s701 + $0x88] sm:$0xff]
        %v2785 = vld [vmem:[%s701 + $0x90] sm:$0xff]
        %v2786 = vld [vmem:[%s701 + $0x98] sm:$0xff]
        %v2787 = vld [vmem:[%s701 + $0xa0] sm:$0xff]
        %v2788 = vld [vmem:[%s701 + $0xa8] sm:$0xff]
        %v2789 = vld [vmem:[%s701 + $0xb0] sm:$0xff]
        %v2790 = vld [vmem:[%s701 + $0xb8] sm:$0xff]
        %v2791 = vld [vmem:[%s701 + $0xc0] sm:$0xff]
        %v2792 = vld [vmem:[%s701 + $0xc8] sm:$0xff]
        %v2793 = vld [vmem:[%s701 + $0xd0] sm:$0xff]
        %v2794 = vld [vmem:[%s701 + $0xd8] sm:$0xff]
        %v2795 = vld [vmem:[%s701 + $0xe0] sm:$0xff]
        %v2796 = vld [vmem:[%s701 + $0xe8] sm:$0xff]
        %v2797 = vld [vmem:[%s701 + $0xf0] sm:$0xff]
        %v2798 = vld [vmem:[%s701 + $0xf8] sm:$0xff]
        %v2831 = vunpack.c.l.b16 %v2767
        %v2832 = vunpack.c.h.b16 %v2767
        %v2833 = vunpack.c.l.b16 %v2768
        %v2834 = vunpack.c.h.b16 %v2768
        %v2835 = vunpack.c.l.b16 %v2769
        %v2836 = vunpack.c.h.b16 %v2769
        %v2837 = vunpack.c.l.b16 %v2770
        %v2838 = vunpack.c.h.b16 %v2770
        %v2839 = vunpack.c.l.b16 %v2771
        %v2840 = vunpack.c.h.b16 %v2771
        %v2841 = vunpack.c.l.b16 %v2772
        %v2842 = vunpack.c.h.b16 %v2772
        %v2843 = vunpack.c.l.b16 %v2773
        %v2844 = vunpack.c.h.b16 %v2773
        %v2845 = vunpack.c.l.b16 %v2774
        %v2846 = vunpack.c.h.b16 %v2774
        %v2847 = vunpack.c.l.b16 %v2775
        %v2848 = vunpack.c.h.b16 %v2775
        %v2849 = vunpack.c.l.b16 %v2776
        %v2850 = vunpack.c.h.b16 %v2776
        %v2851 = vunpack.c.l.b16 %v2777
        %v2852 = vunpack.c.h.b16 %v2777
        %v2853 = vunpack.c.l.b16 %v2778
        %v2854 = vunpack.c.h.b16 %v2778
        %v2855 = vunpack.c.l.b16 %v2779
        %v2856 = vunpack.c.h.b16 %v2779
        %v2857 = vunpack.c.l.b16 %v2780
        %v2858 = vunpack.c.h.b16 %v2780
        %v2859 = vunpack.c.l.b16 %v2781
        %v2860 = vunpack.c.h.b16 %v2781
        %v2861 = vunpack.c.l.b16 %v2782
        %v2862 = vunpack.c.h.b16 %v2782
        %v2863 = vunpack.c.l.b16 %v2783
        %v2864 = vunpack.c.h.b16 %v2783
        %v2865 = vunpack.c.l.b16 %v2784
        %v2866 = vunpack.c.h.b16 %v2784
        %v2867 = vunpack.c.l.b16 %v2785
        %v2868 = vunpack.c.h.b16 %v2785
        %v2869 = vunpack.c.l.b16 %v2786
        %v2870 = vunpack.c.h.b16 %v2786
        %v2871 = vunpack.c.l.b16 %v2787
        %v2872 = vunpack.c.h.b16 %v2787
        %v2873 = vunpack.c.l.b16 %v2788
        %v2874 = vunpack.c.h.b16 %v2788
        %v2875 = vunpack.c.l.b16 %v2789
        %v2876 = vunpack.c.h.b16 %v2789
        %v2877 = vunpack.c.l.b16 %v2790
        %v2878 = vunpack.c.h.b16 %v2790
        %v2879 = vunpack.c.l.b16 %v2791
        %v2880 = vunpack.c.h.b16 %v2791
        %v2881 = vunpack.c.l.b16 %v2792
        %v2882 = vunpack.c.h.b16 %v2792
        %v2883 = vunpack.c.l.b16 %v2793
        %v2884 = vunpack.c.h.b16 %v2793
        %v2885 = vunpack.c.l.b16 %v2794
        %v2886 = vunpack.c.h.b16 %v2794
        %v2887 = vunpack.c.l.b16 %v2795
        %v2888 = vunpack.c.h.b16 %v2795
        %v2889 = vunpack.c.l.b16 %v2796
        %v2890 = vunpack.c.h.b16 %v2796
        %v2891 = vunpack.c.l.b16 %v2797
        %v2892 = vunpack.c.h.b16 %v2797
        %v2893 = vunpack.c.l.b16 %v2798
        %v2894 = vunpack.c.h.b16 %v2798
        %v2895 = vpack.c.b16 %v2833, %v2831
        %v2896 = vpack.c.b16 %v2834, %v2832
        %v2897 = vpack.c.b16 %v2837, %v2835
        %v2898 = vpack.c.b16 %v2838, %v2836
        %v2899 = vpack.c.b16 %v2841, %v2839
        %v2900 = vpack.c.b16 %v2842, %v2840
        %v2901 = vpack.c.b16 %v2845, %v2843
        %v2902 = vpack.c.b16 %v2846, %v2844
        %v2903 = vpack.c.b16 %v2849, %v2847
        %v2904 = vpack.c.b16 %v2850, %v2848
        %v2905 = vpack.c.b16 %v2853, %v2851
        %v2906 = vpack.c.b16 %v2854, %v2852
        %v2907 = vpack.c.b16 %v2857, %v2855
        %v2908 = vpack.c.b16 %v2858, %v2856
        %v2909 = vpack.c.b16 %v2861, %v2859
        %v2910 = vpack.c.b16 %v2862, %v2860
        %v2911 = vpack.c.b16 %v2865, %v2863
        %v2912 = vpack.c.b16 %v2866, %v2864
        %v2913 = vpack.c.b16 %v2869, %v2867
        %v2914 = vpack.c.b16 %v2870, %v2868
        %v2915 = vpack.c.b16 %v2873, %v2871
        %v2916 = vpack.c.b16 %v2874, %v2872
        %v2917 = vpack.c.b16 %v2877, %v2875
        %v2918 = vpack.c.b16 %v2878, %v2876
        %v2919 = vpack.c.b16 %v2881, %v2879
        %v2920 = vpack.c.b16 %v2882, %v2880
        %v2921 = vpack.c.b16 %v2885, %v2883
        %v2922 = vpack.c.b16 %v2886, %v2884
        %v2923 = vpack.c.b16 %v2889, %v2887
        %v2924 = vpack.c.b16 %v2890, %v2888
        %v2925 = vpack.c.b16 %v2893, %v2891
        %v2926 = vpack.c.b16 %v2894, %v2892
        %2959 = vmatprep.subr.bf16.mxu0 %v2896
        %2960 = vmatpush1.bf16.msra.mxu0 %v2895
        %2961 = vmatprep.subr.bf16.mxu0 %v2898
        %2962 = vmatpush1.bf16.msra.mxu0 %v2897
        %2963 = vmatprep.subr.bf16.mxu0 %v2900
        %2964 = vmatpush1.bf16.msra.mxu0 %v2899
        %2965 = vmatprep.subr.bf16.mxu0 %v2902
        %2966 = vmatpush1.bf16.msra.mxu0 %v2901
        %2967 = vmatprep.subr.bf16.mxu0 %v2904
        %2968 = vmatpush1.bf16.msra.mxu0 %v2903
        %2969 = vmatprep.subr.bf16.mxu0 %v2906
        %2970 = vmatpush1.bf16.msra.mxu0 %v2905
        %2971 = vmatprep.subr.bf16.mxu0 %v2908
        %2972 = vmatpush1.bf16.msra.mxu0 %v2907
        %2973 = vmatprep.subr.bf16.mxu0 %v2910
        %2974 = vmatpush1.bf16.msra.mxu0 %v2909
        %2975 = vmatprep.subr.bf16.mxu0 %v2912
        %2976 = vmatpush1.bf16.msra.mxu0 %v2911
        %2977 = vmatprep.subr.bf16.mxu0 %v2914
        %2978 = vmatpush1.bf16.msra.mxu0 %v2913
        %2979 = vmatprep.subr.bf16.mxu0 %v2916
        %2980 = vmatpush1.bf16.msra.mxu0 %v2915
        %2981 = vmatprep.subr.bf16.mxu0 %v2918
        %2982 = vmatpush1.bf16.msra.mxu0 %v2917
        %2983 = vmatprep.subr.bf16.mxu0 %v2920
        %2984 = vmatpush1.bf16.msra.mxu0 %v2919
        %2985 = vmatprep.subr.bf16.mxu0 %v2922
        %2986 = vmatpush1.bf16.msra.mxu0 %v2921
        %2987 = vmatprep.subr.bf16.mxu0 %v2924
        %2988 = vmatpush1.bf16.msra.mxu0 %v2923
        %2989 = vmatprep.subr.bf16.mxu0 %v2926
        %2990 = vmatpush1.bf16.msra.mxu0 %v2925
        %2991 = vmatprep.mubr.bf16.mxu0 %v2766
        %2992 = vmatmul.mubr.bf16.gmra.mrb[0].mxu0 %v2765
        %v2993 = vpop.f32.mrb[0].mxu0
        %v2994 = vadd.f32 0.0, %v2993
        %v2995 = vpop.f32.mrb[0].mxu0
        %v2996 = vadd.f32 0.0, %v2995
        %v2997 = vpop.f32.mrb[0].mxu0
        %v2998 = vadd.f32 0.0, %v2997
        %v2999 = vpop.f32.mrb[0].mxu0
        %v3000 = vadd.f32 0.0, %v2999
        %3001 = vdwg.mxu0
        %v3002 = vadd.f32 %v2761, %v2994
        %v3003 = vadd.f32 %v2762, %v2996
        %v3004 = vadd.f32 %v2763, %v2998
        %v3005 = vadd.f32 %v2764, %v3000
        %3006 = vst [vmem:[#allocation5] sm:$0xff] %v3002
        %3007 = vst [vmem:[#allocation5 + $0x8] sm:$0xff] %v3003
        %3008 = vst [vmem:[#allocation5 + $0x10] sm:$0xff] %v3004
        %3009 = vst [vmem:[#allocation5 + $0x18] sm:$0xff] %v3005
        %p3010 = scmp.eq.s32.totalorder %s41, 1
        // Predicated region
        $region128: #{resampler_forward.1} parent=99 // pred_check
          %p3011 = pneg %p3010
        $region129: #{resampler_forward.1} parent=99 // pred_check_branch
          %3013 = sbr.rel (%p3011) target = $region131
        $region130: #{resampler_forward.1} parent=99 // pred_region
          %v3014 = vld [vmem:[#allocation5] sm:$0xff]
          %v3015 = vld [vmem:[#allocation5 + $0x8] sm:$0xff]
          %v3016 = vld [vmem:[#allocation5 + $0x10] sm:$0xff]
          %v3017 = vld [vmem:[#allocation5 + $0x18] sm:$0xff]
          %v3018 = vld [vmem:[%s17] sm:$0x3]
          %v3020 = vlaneseq
          %v3021 = vshrl.u32 %v3020, 7
          %v3022 = vsub.s32 0, %v3021
          %v3023 = vrot.slane %v3018, %v3022
          %v3024 = vlaneseq
          %v3025 = vshrl.u32 %v3024, 7
          %v3026 = vsub.s32 1, %v3025
          %v3027 = vrot.slane %v3018, %v3026
          %v3030 = vadd.f32 %v3014, %v3023
          %v3031 = vadd.f32 %v3015, %v3027
          %v3032 = vadd.f32 %v3016, %v3023
          %v3033 = vadd.f32 %v3017, %v3027
          %v3034 = vld [vmem:[%s18] sm:$0x3]
          %v3035 = vld [vmem:[%s19] sm:$0x3]
          %v3036 = vadd.f32 %v3030, %v3031
          %3037 = vadd.xlane.f32.xlu0 %v3036
          %v3038 = vpop.xlane.xlu0 %3037
          %v3039 = vadd.f32 %v3032, %v3033
          %3040 = vadd.xlane.f32.xlu0 %v3039
          %v3041 = vpop.xlane.xlu0 %3040
          %v3042 = vrcp.pop 256.0
          %v3043 = vmul.f32 %v3038, %v3042
          %v3044 = vmul.f32 %v3041, %v3042
          %v3045 = vsub.f32 %v3030, %v3043
          %v3046 = vsub.f32 %v3031, %v3043
          %v3047 = vsub.f32 %v3032, %v3044
          %v3048 = vsub.f32 %v3033, %v3044
          %v3049 = vmul.f32 %v3045, %v3045
          %v3050 = vmul.f32 %v3046, %v3046
          %v3051 = vmul.f32 %v3047, %v3047
          %v3052 = vmul.f32 %v3048, %v3048
          %v3053 = vadd.f32 %v3049, %v3050
          %3054 = vadd.xlane.f32.xlu0 %v3053
          %v3055 = vpop.xlane.xlu0 %3054
          %v3056 = vadd.f32 %v3051, %v3052
          %3057 = vadd.xlane.f32.xlu0 %v3056
          %v3058 = vpop.xlane.xlu0 %3057
          %v3059 = vmul.f32 %v3055, %v3042
          %v3060 = vmul.f32 %v3058, %v3042
          %v3061 = vadd.f32 %v3059, 1e-06
          %v3062 = vadd.f32 %v3060, 1e-06
          %v3063 = vrsqrt.pop %v3061
          %v3064 = vrsqrt.pop %v3062
          %v3065 = vmul.f32 %v3045, %v3063
          %v3066 = vmul.f32 %v3046, %v3063
          %v3067 = vmul.f32 %v3047, %v3064
          %v3068 = vmul.f32 %v3048, %v3064
          %v3070 = vlaneseq
          %v3071 = vshrl.u32 %v3070, 7
          %v3072 = vsub.s32 0, %v3071
          %v3073 = vrot.slane %v3034, %v3072
          %v3074 = vlaneseq
          %v3075 = vshrl.u32 %v3074, 7
          %v3076 = vsub.s32 1, %v3075
          %v3077 = vrot.slane %v3034, %v3076
          %v3080 = vmul.f32 %v3065, %v3073
          %v3081 = vmul.f32 %v3066, %v3077
          %v3082 = vmul.f32 %v3067, %v3073
          %v3083 = vmul.f32 %v3068, %v3077
          %v3085 = vlaneseq
          %v3086 = vshrl.u32 %v3085, 7
          %v3087 = vsub.s32 0, %v3086
          %v3088 = vrot.slane %v3035, %v3087
          %v3089 = vlaneseq
          %v3090 = vshrl.u32 %v3089, 7
          %v3091 = vsub.s32 1, %v3090
          %v3092 = vrot.slane %v3035, %v3091
          %v3095 = vadd.f32 %v3080, %v3088
          %v3096 = vadd.f32 %v3081, %v3092
          %v3097 = vadd.f32 %v3082, %v3088
          %v3098 = vadd.f32 %v3083, %v3092
          %3099 = vst [vmem:[%s779] sm:$0xff] %v3095
          %3100 = vst [vmem:[%s779 + $0x8] sm:$0xff] %v3096
          %3101 = vst [vmem:[%s779 + $0x10] sm:$0xff] %v3097
          %3102 = vst [vmem:[%s779 + $0x18] sm:$0xff] %v3098
        $region131: #{resampler_forward.1} parent=99 // pred_fallthru
          _
        %s3103 = sand.u32 %s506, 1
        %s3104 = scalar_lea.sflag [#allocation8], %s3103
        %s3105 = sand.u32 %s506, 1
        %s3106 = smul.addr %s3105, 32
        %s3107 = scalar_lea.vmem [#allocation13], %s3106
        // Predicated region
        $region132: #{resampler_forward.1} parent=99 // pred_check
          %p3108 = pneg %p516
        $region133: #{resampler_forward.1} parent=99 // pred_check_branch
          %3110 = sbr.rel (%p3108) target = $region135
        $region134: #{resampler_forward.1} parent=99 // pred_region
          %s3112 = ssub.s32 512, 512
          %3113 = vsyncadd %s3104, %s3112
          %s3114 = smul.addr %s40, 4
          %s3115 = smul.addr %s3114, 128
          %s3116 = scalar_lea.hbm %s20, %s3115
          %s3117 = sshll.u32 %s3107, 4
          %s3118 = int_to_ptr.vmem [resolvable:$true] %s3117
          %3123 = dma.vmem_to_hbm [thread:$0]  %s3118, 512, %s3116, %s3104, 256, 256, 16
        $region135: #{resampler_forward.1} parent=99 // pred_fallthru
          _
      $region100: #{resampler_forward.1} parent=5 // pred_fallthru
        _
      %p3124 = scmp.le.s32.totalorder 2, %s31
      // Predicated region
      $region136: #{resampler_forward.1} parent=5 // pred_check
        %p3125 = pneg %p3124
      $region137: #{resampler_forward.1} parent=5 // pred_check_branch
        %3127 = sbr.rel (%p3125) target = $region139
      $region138: #{resampler_forward.1} parent=5 // pred_region
        %s3128 = ssub.s32 %s31, 2
        // Predicated region
        $region140: #{resampler_forward.1} parent=138 // pred_check
          %p3129 = pneg %p522
        $region141: #{resampler_forward.1} parent=138 // pred_check_branch
          %3131 = sbr.rel (%p3129) target = $region143
        $region142: #{resampler_forward.1} parent=138 // pred_region
          %s3132 = sand.u32 %s507, 1
          %s3133 = scalar_lea.sflag [#allocation8], %s3132
          %s3134 = sand.u32 %s507, 1
          %s3135 = smul.addr %s3134, 32
          %s3136 = scalar_lea.vmem [#allocation13], %s3135
          %3137 = dma.done %s3133, 512
        $region143: #{resampler_forward.1} parent=138 // pred_fallthru
          _
      $region139: #{resampler_forward.1} parent=5 // pred_fallthru
        _
    $region6: #{resampler_forward.1} parent=1 // loop_footer
      %s35 = sadd.s32 1, %s31
    $region7: #{resampler_forward.1} parent=1 // loop_footer_branch
      %30 = sbr.rel target = $region3
    $region8: #{resampler_forward.1} parent=1 // loop_exit
      _
    %3138 = vsyncpa [#allocation7], 1
    %s3139 = scalar_lea.sflag [#allocation7], 1
    %3140 = vsyncpa %s3139, 1
    %3141 = vsyncpa [#allocation10], 1
    %3142 = vsyncpa [#allocation8], 1
    %s3143 = scalar_lea.sflag [#allocation8], 1
    %3144 = vsyncpa %s3143, 1

</llo_original>
